<compile_context>
chip_gen: v7x
topology: tpu7x:2x2x1
jax: 0.10.0
libtpu: 0.0.40
codegen_flags: <defaults>
</compile_context>

<pallas_src>
import functools
import math

import jax
import jax.numpy as jnp
from jax.experimental import pallas as pl
from jax.experimental.pallas import tpu as pltpu

F32 = jnp.float32
BF16 = jnp.bfloat16

VMEM_LIMIT = 40 * 1024 * 1024          # safe on v5e/v6e (128 MiB) and v7x (64 MiB)
WEIGHT_TILE_BYTES = 8 * 1024 * 1024    # per weight tile (double-buffered by Pallas)
ATTN_SCORE_BYTES = 512 * 1024          # per-grid-step attention score budget


# ----------------------------------------------------------------------------
# Static config wrapper: value lives in the pytree treedef, so layer params can
# be passed straight through jax.jit while tile sizes / head counts stay static.
# ----------------------------------------------------------------------------
class Static:
    def __init__(self, value):
        self.value = value

    def __hash__(self):
        return hash(self.value)

    def __eq__(self, other):
        return isinstance(other, Static) and self.value == other.value


jax.tree_util.register_pytree_node(
    Static, lambda s: ((), s.value), lambda aux, _: Static(aux))


# ----------------------------------------------------------------------------
# Tile selection: tiles are exact divisors of (K, N) (multiples of 128 on the
# lane axis, or the full dim), so no padding of weights or activations is ever
# required.  Prefer large tn (A streamed once per N-block) then large tk.
# ----------------------------------------------------------------------------
def _tile_options(dim):
    opts = [dim]
    if dim % 128 == 0:
        q = dim // 128
        opts += [128 * k for k in range(1, q + 1) if q % k == 0]
    return sorted(set(opts))


def _choose_tiles(K, N, budget=WEIGHT_TILE_BYTES):
    best = None
    for tn in _tile_options(N):
        for tk in _tile_options(K):
            size = tk * tn * 2                      # bf16 weight tile
            fits = size <= budget
            key = (fits, tn if fits else -size, tk if fits else 0)
            if best is None or key > best[0]:
                best = (key, tk, tn)
    return best[1], best[2]


def _pick_hb(BH, S, T, budget=ATTN_SCORE_BYTES, cap=64):
    """Heads per attention grid step under a score-tensor VMEM budget."""
    best = 1
    for hb in range(1, min(BH, cap) + 1):
        if BH % hb == 0 and hb * S * max(T, 128) * 4 <= budget:
            best = hb
    return best


# ----------------------------------------------------------------------------
# Pallas kernels
# ----------------------------------------------------------------------------
def _apply_act(r, act):
    if act == "silu":
        r = r * jax.nn.sigmoid(r)
    return r


def _mm_kernel_single(a_ref, w_ref, b_ref, o_ref, *, act):
    # Whole K in one block: no accumulator scratch, epilogue straight to output.
    r = jnp.dot(a_ref[...], w_ref[...], preferred_element_type=jnp.float32)
    r = _apply_act(r + b_ref[...], act)
    o_ref[...] = r.astype(o_ref.dtype)


def _mm_kernel_ksplit(a_ref, w_ref, b_ref, o_ref, acc_ref, *, act):
    k = pl.program_id(1)

    @pl.when(k == 0)
    def _():
        acc_ref[...] = jnp.zeros_like(acc_ref)

    acc_ref[...] += jnp.dot(a_ref[...], w_ref[...],
                            preferred_element_type=jnp.float32)

    @pl.when(k == pl.num_programs(1) - 1)
    def _():
        r = _apply_act(acc_ref[...] + b_ref[...], act)
        o_ref[...] = r.astype(o_ref.dtype)


def matmul(a, p, act="none", out_dtype=BF16):
    """a: (M, K); p: packed weight dict with bf16 (K, N) weight + f32 bias."""
    K, N, tk, tn = p["cfg"].value[:4]
    M = a.shape[0]
    a = a.astype(BF16)
    nj, nk = N // tn, K // tk
    if nk == 1:
        return pl.pallas_call(
            functools.partial(_mm_kernel_single, act=act),
            out_shape=jax.ShapeDtypeStruct((M, N), out_dtype),
            grid=(nj,),
            in_specs=[
                pl.BlockSpec((M, K), lambda j: (0, 0)),
                pl.BlockSpec((K, tn), lambda j: (0, j)),
                pl.BlockSpec((1, tn), lambda j: (0, j)),
            ],
            out_specs=pl.BlockSpec((M, tn), lambda j: (0, j)),
            compiler_params=pltpu.CompilerParams(
                dimension_semantics=("parallel",),
                vmem_limit_bytes=VMEM_LIMIT),
        )(a, p["w"], p["b"])
    return pl.pallas_call(
        functools.partial(_mm_kernel_ksplit, act=act),
        out_shape=jax.ShapeDtypeStruct((M, N), out_dtype),
        grid=(nj, nk),
        in_specs=[
            pl.BlockSpec((M, tk), lambda j, k: (0, k)),
            pl.BlockSpec((tk, tn), lambda j, k: (k, j)),
            pl.BlockSpec((1, tn), lambda j, k: (0, j)),
        ],
        out_specs=pl.BlockSpec((M, tn), lambda j, k: (0, j)),
        scratch_shapes=[pltpu.VMEM((M, tn), jnp.float32)],
        compiler_params=pltpu.CompilerParams(
            dimension_semantics=("parallel", "arbitrary"),
            vmem_limit_bytes=VMEM_LIMIT),
    )(a, p["w"], p["b"])


def _gn_kernel(x_ref, g_ref, b_ref, oh_ref, oht_ref, o_ref, *, eps, act_silu,
               inv_n):
    # Lane-dense GroupNorm on the (HW, C) slab; per-group stats via two tiny
    # MXU matmuls against a one-hot (C, G) group map.  bf16 in / bf16 out.
    x = x_ref[0].astype(jnp.float32)                          # (HW, C)
    oh = oh_ref[...]                                          # (C, G)
    oht = oht_ref[...]                                        # (G, C)
    colsum = jnp.sum(x, axis=0, keepdims=True)                # (1, C)
    mean_g = jnp.dot(colsum, oh, preferred_element_type=jnp.float32) * inv_n
    mean_c = jnp.dot(mean_g, oht, preferred_element_type=jnp.float32)
    d = x - mean_c
    colsq = jnp.sum(d * d, axis=0, keepdims=True)
    var_g = jnp.dot(colsq, oh, preferred_element_type=jnp.float32) * inv_n
    rstd_c = jnp.dot(jax.lax.rsqrt(var_g + eps), oht,
                     preferred_element_type=jnp.float32)
    y = d * rstd_c * g_ref[...] + b_ref[...]
    if act_silu:
        y = y * jax.nn.sigmoid(y)
    o_ref[0] = y.astype(o_ref.dtype)


def group_norm(x, gn, groups=32, eps=1e-5, act_silu=False):
    """x: (B, H, W, C) NHWC bf16 -> bf16.  PyTorch GroupNorm (+ optional SiLU)."""
    B, H, W, C = x.shape
    G = groups
    Cg = C // G
    HW = H * W
    xr = x.reshape(B, HW, C)
    oh = (jnp.arange(C, dtype=jnp.int32)[:, None] // Cg
          == jnp.arange(G, dtype=jnp.int32)[None, :]).astype(F32)
    out = pl.pallas_call(
        functools.partial(_gn_kernel, eps=eps, act_silu=act_silu,
                          inv_n=1.0 / float(HW * Cg)),
        out_shape=jax.ShapeDtypeStruct((B, HW, C), BF16),
        grid=(B,),
        in_specs=[
            pl.BlockSpec((1, HW, C), lambda i: (i, 0, 0)),
            pl.BlockSpec((1, C), lambda i: (0, 0)),
            pl.BlockSpec((1, C), lambda i: (0, 0)),
            pl.BlockSpec((C, G), lambda i: (0, 0)),
            pl.BlockSpec((G, C), lambda i: (0, 0)),
        ],
        out_specs=pl.BlockSpec((1, HW, C), lambda i: (i, 0, 0)),
        compiler_params=pltpu.CompilerParams(
            dimension_semantics=("parallel",), vmem_limit_bytes=VMEM_LIMIT),
    )(xr, gn["g"].reshape(1, C), gn["b"].reshape(1, C), oh, oh.T)
    return out.reshape(B, H, W, C)


def _ln_kernel(x_ref, g_ref, b_ref, o_ref, *, eps):
    x = x_ref[...].astype(jnp.float32)
    mean = jnp.mean(x, axis=-1, keepdims=True)
    d = x - mean
    var = jnp.mean(d * d, axis=-1, keepdims=True)
    y = d * jax.lax.rsqrt(var + eps) * g_ref[...] + b_ref[...]
    o_ref[...] = y.astype(o_ref.dtype)


def layer_norm(x2d, ln, eps=1e-5):
    M, C = x2d.shape
    return pl.pallas_call(
        functools.partial(_ln_kernel, eps=eps),
        out_shape=jax.ShapeDtypeStruct((M, C), BF16),
        grid=(1,),
        in_specs=[
            pl.BlockSpec((M, C), lambda i: (0, 0)),
            pl.BlockSpec((1, C), lambda i: (0, 0)),
            pl.BlockSpec((1, C), lambda i: (0, 0)),
        ],
        out_specs=pl.BlockSpec((M, C), lambda i: (0, 0)),
        compiler_params=pltpu.CompilerParams(vmem_limit_bytes=VMEM_LIMIT),
    )(x2d, ln["g"].reshape(1, C), ln["b"].reshape(1, C))


def _attn_kernel(q_ref, k_ref, v_ref, o_ref):
    q = q_ref[...]                      # (hb, S, D), 1/sqrt(D) pre-folded
    k = k_ref[...]                      # (hb, T, D)
    v = v_ref[...]                      # (hb, T, D)
    s = jnp.einsum("hqd,hkd->hqk", q, k, preferred_element_type=jnp.float32)
    s = s - jnp.max(s, axis=-1, keepdims=True)
    p = jnp.exp(s)
    p = p * pl.reciprocal(jnp.sum(p, axis=-1, keepdims=True), approx=True)
    o = jnp.einsum("hqk,hkd->hqd", p.astype(v.dtype), v,
                   preferred_element_type=jnp.float32)
    o_ref[...] = o.astype(o_ref.dtype)


def mha(q, k, v):
    """q: (BH, S, D), k/v: (BH, T, D) -> (BH, S, D) bf16 (scale folded in q)."""
    BH, S, D = q.shape
    T = k.shape[1]
    hb = _pick_hb(BH, S, T)
    return pl.pallas_call(
        _attn_kernel,
        out_shape=jax.ShapeDtypeStruct((BH, S, D), BF16),
        grid=(BH // hb,),
        in_specs=[
            pl.BlockSpec((hb, S, D), lambda i: (i, 0, 0)),
            pl.BlockSpec((hb, T, D), lambda i: (i, 0, 0)),
            pl.BlockSpec((hb, T, D), lambda i: (i, 0, 0)),
        ],
        out_specs=pl.BlockSpec((hb, S, D), lambda i: (i, 0, 0)),
        compiler_params=pltpu.CompilerParams(
            dimension_semantics=("parallel",), vmem_limit_bytes=VMEM_LIMIT),
    )(q.astype(BF16), k.astype(BF16), v.astype(BF16))


# ----------------------------------------------------------------------------
# Layer wrappers (glue in plain JAX, fused by XLA inside the per-layer jit)
# ----------------------------------------------------------------------------
def linear(x2d, p, act="none"):
    return matmul(x2d, p, act=act)


def _im2col(x, kh, stride):
    B, H, W, C = x.shape
    pad = (kh - 1) // 2
    xp = jnp.pad(x, ((0, 0), (pad, pad), (pad, pad), (0, 0)))
    Ho = (H + 2 * pad - kh) // stride + 1
    Wo = (W + 2 * pad - kh) // stride + 1
    cols = []
    for i in range(kh):
        for j in range(kh):
            cols.append(xp[:, i:i + (Ho - 1) * stride + 1:stride,
                           j:j + (Wo - 1) * stride + 1:stride, :])
    return (jnp.concatenate(cols, axis=-1).reshape(B * Ho * Wo, kh * kh * C),
            Ho, Wo)


def conv2d(x, p, stride=1):
    """x NHWC bf16; weight packed as (kh*kw*Cin, Cout) bf16 matmul operand."""
    _, N, _, _, kh, cin = p["cfg"].value
    B, H, W, _ = x.shape
    if kh == 1:
        cols, Ho, Wo = x.reshape(B * H * W, cin), H, W
    else:
        # TODO(synk): im2col still materializes the kh*kw-replicated activation
        # (bf16) in HBM; streaming taps via Element-offset index_maps not done.
        cols, Ho, Wo = _im2col(x.astype(BF16), kh, stride)
    y = matmul(cols, p)
    return y.reshape(B, Ho, Wo, N)


def _time_embedding(p, t):
    h = linear(t.astype(BF16), p["l1"], act="silu")
    # The trailing SiLU is hoisted here: every consumer (UNET_ResidualBlock)
    # applies F.silu(time) before its linear_time and nothing reads the raw
    # embedding, so fusing it once is mathematically identical.
    return linear(h, p["l2"], act="silu")


def _split_heads(t, B, S, heads, D):
    return t.reshape(B, S, heads, D).transpose(0, 2, 1, 3).reshape(B * heads, S, D)


def _merge_heads(t, B, S, heads, D):
    return t.reshape(B, heads, S, D).transpose(0, 2, 1, 3).reshape(B * S, heads * D)


def self_attention(p, x, heads):
    B, S, C = x.shape
    D = C // heads
    qkv = linear(x.reshape(B * S, C), p["in_proj"])
    q, k, v = jnp.split(qkv, 3, axis=-1)
    o = mha(_split_heads(q, B, S, heads, D),
            _split_heads(k, B, S, heads, D),
            _split_heads(v, B, S, heads, D))
    return linear(_merge_heads(o, B, S, heads, D), p["out_proj"]).reshape(B, S, C)


def cross_attention(p, x, ctx, heads):
    B, S, C = x.shape
    _, T, Cc = ctx.shape
    D = C // heads
    q = linear(x.reshape(B * S, C), p["q"])
    kv = linear(ctx.reshape(B * T, Cc), p["kv"])        # fused K & V projection
    k, v = jnp.split(kv, 2, axis=-1)
    o = mha(_split_heads(q, B, S, heads, D),
            _split_heads(k, B, T, heads, D),
            _split_heads(v, B, T, heads, D))
    return linear(_merge_heads(o, B, S, heads, D), p["out"]).reshape(B, S, C)


def _attention_block(p, x, context):
    heads = p["heads"].value
    B, H, W, C = x.shape
    residue_long = x
    h = group_norm(x, p["gn"], groups=32, eps=1e-6, act_silu=False)
    h = conv2d(h, p["conv_in"])
    S = H * W
    h = h.reshape(B, S, C)

    t = layer_norm(h.reshape(B * S, C), p["ln1"]).reshape(B, S, C)
    h = self_attention(p["attn1"], t, heads) + h

    t = layer_norm(h.reshape(B * S, C), p["ln2"]).reshape(B, S, C)
    h = cross_attention(p["attn2"], t, context, heads) + h

    t = layer_norm(h.reshape(B * S, C), p["ln3"])
    g = linear(t, p["geglu1"])
    a, gate = jnp.split(g, 2, axis=-1)
    # TODO(synk): exact erf-GELU gate stays in plain JAX between two Pallas
    # matmuls (it fuses with the surrounding glue inside this jitted layer).
    t = a * jax.nn.gelu(gate.astype(F32), approximate=False).astype(a.dtype)
    h = linear(t, p["geglu2"]).reshape(B, S, C) + h

    h = h.reshape(B, H, W, C)
    return conv2d(h, p["conv_out"]) + residue_long


def _residual_block(p, x, time_act, skip=None):
    if skip is not None:
        x = jnp.concatenate([x, skip], axis=-1)          # channel concat (NHWC)
    residue = x
    h = group_norm(x, p["gn1"], groups=32, eps=1e-5, act_silu=True)
    h = conv2d(h, p["conv1"])
    t = linear(time_act, p["lin_time"])                  # time_act already SiLU'd
    h = h + t.reshape(t.shape[0], 1, 1, -1)
    h = group_norm(h, p["gn2"], groups=32, eps=1e-5, act_silu=True)
    h = conv2d(h, p["conv2"])
    if "res_conv" in p:
        residue = conv2d(residue, p["res_conv"])
    return h + residue


def _upsample(p, x):
    x = jnp.repeat(jnp.repeat(x, 2, axis=1), 2, axis=2)  # nearest 2x
    return conv2d(x, p)


def _output_layer(p, x):
    h = group_norm(x, p["gn"], groups=32, eps=1e-5, act_silu=True)
    h = conv2d(h, p["conv"])
    return jnp.transpose(h, (0, 3, 1, 2)).astype(F32)    # NHWC -> NCHW f32


@functools.partial(jax.jit, static_argnames=("stride",))
def conv_layer_fwd(p, x, *, stride):
    return conv2d(x, p, stride=stride)


time_embedding_fwd = jax.jit(_time_embedding)
attention_block_fwd = jax.jit(_attention_block)
residual_block_fwd = jax.jit(_residual_block)
upsample_fwd = jax.jit(_upsample)
output_layer_fwd = jax.jit(_output_layer)


# ----------------------------------------------------------------------------
# UNet orchestration (eager: ~60 dispatches of already-jitted layer functions)
# ----------------------------------------------------------------------------
def run_layer(layer, x, context, time_act, skip=None):
    tag = layer[0]
    if tag == "conv":
        return conv_layer_fwd(layer[1], x, stride=layer[2])
    if tag == "r":
        return residual_block_fwd(layer[1], x, time_act, skip)
    if tag == "ra":
        x = residual_block_fwd(layer[1], x, time_act, skip)
        return attention_block_fwd(layer[2], x, context)
    if tag == "ru":
        x = residual_block_fwd(layer[1], x, time_act, skip)
        return upsample_fwd(layer[2], x)
    if tag == "rau":
        x = residual_block_fwd(layer[1], x, time_act, skip)
        x = attention_block_fwd(layer[2], x, context)
        return upsample_fwd(layer[3], x)
    raise ValueError(tag)


def diffusion_forward(params, latent_nchw, context, time):
    time_act = time_embedding_fwd(params["time"], time)      # (1, 1280), SiLU'd
    context = context.astype(BF16)
    x = jnp.transpose(latent_nchw, (0, 2, 3, 1)).astype(BF16)  # NCHW -> NHWC
    skips = []
    for layer in params["unet"]["enc"]:
        x = run_layer(layer, x, context, time_act)
        skips.append(x)
    r1, a1, r2 = params["unet"]["bottleneck"]
    x = residual_block_fwd(r1, x, time_act)
    x = attention_block_fwd(a1, x, context)
    x = residual_block_fwd(r2, x, time_act)
    for layer in params["unet"]["dec"]:
        x = run_layer(layer, x, context, time_act, skip=skips.pop())
    return output_layer_fwd(params["final"], x)


# ----------------------------------------------------------------------------
# Deterministic parameter init (synthetic weights, packed once for the kernels)
# ----------------------------------------------------------------------------
_KEY = jax.random.PRNGKey(0)
_COUNTER = [0]


def _init(shape, scale=0.02):
    _COUNTER[0] += 1
    k = jax.random.fold_in(_KEY, _COUNTER[0])
    return jax.random.normal(k, shape, F32) * scale


def _pack_linear(w, b):
    K, N = w.shape
    tk, tn = _choose_tiles(K, N)
    return {"w": w.astype(BF16), "b": b.reshape(1, N).astype(F32),
            "cfg": Static((int(K), int(N), int(tk), int(tn)))}


def make_linear(cin, cout, col_scale=None):
    w = _init((cin, cout))
    b = jnp.zeros((cout,), F32)
    if col_scale is not None:
        cs = jnp.asarray(col_scale, F32)
        w = w * cs[None, :]
        b = b * cs
    return _pack_linear(w, b)


def make_conv(cin, cout, k):
    w = _init((k, k, cin, cout)).reshape(k * k * cin, cout)
    b = jnp.zeros((cout,), F32)
    K, N = w.shape
    tk, tn = _choose_tiles(K, N)
    return {"w": w.astype(BF16), "b": b.reshape(1, N).astype(F32),
            "cfg": Static((int(K), int(N), int(tk), int(tn), int(k), int(cin)))}


def make_norm(c):
    return {"g": jnp.ones((c,), F32), "b": jnp.zeros((c,), F32)}


def make_res(cin, cout, n_time=1280):
    p = {"gn1": make_norm(cin), "conv1": make_conv(cin, cout, 3),
         "lin_time": make_linear(n_time, cout),
         "gn2": make_norm(cout), "conv2": make_conv(cout, cout, 3)}
    if cin != cout:
        p["res_conv"] = make_conv(cin, cout, 1)
    return p


def make_attn(embed_size, heads, ctx=768, fwd_exp=4):
    # UNET_AttentionBlock(embed_size, heads): channels = heads * embed_size and
    # SelfAttention(channels, heads) => `heads` heads of dim `embed_size` (=8),
    # following the reference module's literal argument wiring.
    channels = heads * embed_size
    d = channels // heads
    scale = 1.0 / math.sqrt(d)
    # Fold the 1/sqrt(D) attention scale into the q-projection columns.
    qkv_scale = jnp.concatenate([jnp.full((channels,), scale, F32),
                                 jnp.ones((2 * channels,), F32)])
    # Fuse the cross-attention K and V projections into one (ctx, 2C) matmul.
    kv_w = jnp.concatenate([_init((ctx, channels)), _init((ctx, channels))], axis=1)
    kv_b = jnp.zeros((2 * channels,), F32)
    return {
        "heads": Static(int(heads)),
        "gn": make_norm(channels),
        "conv_in": make_conv(channels, channels, 1),
        "ln1": make_norm(channels),
        "attn1": {"in_proj": make_linear(channels, 3 * channels,
                                         col_scale=qkv_scale),
                  "out_proj": make_linear(channels, channels)},
        "ln2": make_norm(channels),
        "attn2": {"q": make_linear(channels, channels,
                                   col_scale=jnp.full((channels,), scale, F32)),
                  "kv": _pack_linear(kv_w, kv_b),
                  "out": make_linear(channels, channels)},
        "ln3": make_norm(channels),
        "geglu1": make_linear(channels, fwd_exp * channels * 2),
        "geglu2": make_linear(fwd_exp * channels, channels),
        "conv_out": make_conv(channels, channels, 1),
    }


def make_params():
    enc = [
        ("conv", make_conv(4, 320, 3), 1),
        ("ra", make_res(320, 320), make_attn(8, 40)),
        ("ra", make_res(320, 320), make_attn(8, 40)),
        ("conv", make_conv(320, 320, 3), 2),
        ("ra", make_res(320, 640), make_attn(8, 80)),
        ("ra", make_res(640, 640), make_attn(8, 80)),
        ("conv", make_conv(640, 640, 3), 2),
        ("ra", make_res(640, 1280), make_attn(8, 160)),
        ("ra", make_res(1280, 1280), make_attn(8, 160)),
        ("conv", make_conv(1280, 1280, 3), 2),
        ("r", make_res(1280, 1280)),
        ("r", make_res(1280, 1280)),
    ]
    bottleneck = (make_res(1280, 1280), make_attn(8, 160), make_res(1280, 1280))
    dec = [
        ("r", make_res(2560, 1280)),
        ("r", make_res(2560, 1280)),
        ("ru", make_res(2560, 1280), make_conv(1280, 1280, 3)),
        ("ra", make_res(2560, 1280), make_attn(8, 160)),
        ("ra", make_res(2560, 1280), make_attn(8, 160)),
        ("rau", make_res(1920, 1280), make_attn(8, 160), make_conv(1280, 1280, 3)),
        ("ra", make_res(1920, 640), make_attn(8, 80)),
        ("ra", make_res(1280, 640), make_attn(8, 80)),
        ("rau", make_res(960, 640), make_attn(8, 80), make_conv(640, 640, 3)),
        ("ra", make_res(960, 320), make_attn(8, 40)),
        ("ra", make_res(640, 320), make_attn(8, 40)),
        ("ra", make_res(640, 320), make_attn(8, 40)),
    ]
    return {
        "time": {"l1": make_linear(320, 1280), "l2": make_linear(1280, 1280)},
        "unet": {"enc": enc, "bottleneck": bottleneck, "dec": dec},
        "final": {"gn": make_norm(320), "conv": make_conv(320, 4, 3)},
    }


# ----------------------------------------------------------------------------
if __name__ == "__main__":
    params = make_params()

    key = jax.random.PRNGKey(0)
    k1, k2, k3 = jax.random.split(key, 3)
    latent = jax.random.normal(k1, (1, 4, 16, 16), F32)   # NCHW, like PyTorch
    context = jax.random.normal(k2, (1, 8, 768), F32)     # (B, seq, 768)
    time = jax.random.normal(k3, (1, 320), F32)

    out = diffusion_forward(params, latent, context, time)
    out = jax.block_until_ready(out)
    assert out.shape == (1, 4, 16, 16), out.shape
    assert bool(jnp.all(jnp.isfinite(out)))
    print("KERNEL_OK")
</pallas_src>

<mosaic_0001>
module attributes {stable_mosaic.version = 11 : i64} {
  func.func @_mm_kernel_single(%arg0: i32, %arg1: memref<1x320xbf16, #tpu.memory_space<vmem>>, %arg2: memref<320x1280xbf16, #tpu.memory_space<vmem>>, %arg3: memref<1x1280xf32, #tpu.memory_space<vmem>>, %arg4: memref<1x1280xbf16, #tpu.memory_space<vmem>>) attributes {dimension_semantics = [#tpu.dimension_semantics<parallel>], iteration_bounds = array<i64: 1>, scalar_prefetch = 0 : i64, scratch_operands = 0 : i64, tpu.core_type = #tpu.core_type<tc>, window_params = [{pipeline_mode = #tpu.pipeline_mode<synchronous>, transform_indices = @transform_0, window_bounds = array<i64: 1, 320>}, {transform_indices = @transform_1, window_bounds = array<i64: 320, 1280>}, {transform_indices = @transform_2, window_bounds = array<i64: 1, 1280>}, {transform_indices = @transform_3, window_bounds = array<i64: 1, 1280>}]} {
    %c0 = arith.constant 0 : index
    %c0_0 = arith.constant 0 : index
    %0 = vector.load %arg1[%c0, %c0_0] : memref<1x320xbf16, #tpu.memory_space<vmem>>, vector<1x320xbf16>
    %c0_1 = arith.constant 0 : index
    %c0_2 = arith.constant 0 : index
    %1 = vector.load %arg2[%c0_1, %c0_2] : memref<320x1280xbf16, #tpu.memory_space<vmem>>, vector<320x1280xbf16>
    %cst = arith.constant dense<0.000000e+00> : vector<1x1280xf32>
    %2 = tpu.matmul %0, %1, %cst {dimension_numbers = #tpu.dot_dimension_numbers<[1], [0], [0], [1], [0, 0, 1, 1], [], []>} : vector<1x320xbf16>, vector<320x1280xbf16>, vector<1x1280xf32> -> vector<1x1280xf32>
    %c0_3 = arith.constant 0 : index
    %c0_4 = arith.constant 0 : index
    %3 = vector.load %arg3[%c0_3, %c0_4] : memref<1x1280xf32, #tpu.memory_space<vmem>>, vector<1x1280xf32>
    %4 = arith.addf %2, %3 : vector<1x1280xf32>
    %5 = arith.negf %4 : vector<1x1280xf32>
    %6 = math.exp %5 : vector<1x1280xf32>
    %cst_5 = arith.constant 1.000000e+00 : f32
    %7 = vector.broadcast %cst_5 : f32 to vector<1x1280xf32>
    %8 = arith.addf %7, %6 : vector<1x1280xf32>
    %9 = arith.divf %7, %8 : vector<1x1280xf32>
    %10 = arith.mulf %4, %9 : vector<1x1280xf32>
    %11 = arith.truncf %10 : vector<1x1280xf32> to vector<1x1280xbf16>
    %c0_6 = arith.constant 0 : index
    %c0_7 = arith.constant 0 : index
    %12 = vector.load %arg4[%c0_6, %c0_7] : memref<1x1280xbf16, #tpu.memory_space<vmem>>, vector<1x1280xbf16>
    tpu.vector_store %arg4[%c0_6, %c0_7], %11 {strides = array<i32>} : memref<1x1280xbf16, #tpu.memory_space<vmem>>, vector<1x1280xbf16>,
    return
  }
  func.func @transform_0(%arg0: i32) -> (i32, i32) {
    %c0_i32 = arith.constant 0 : i32
    %c0_i32_0 = arith.constant 0 : i32
    %c0_i32_1 = arith.constant 0 : i32
    return %c0_i32, %c0_i32_0 : i32, i32
  }
  func.func @transform_1(%arg0: i32) -> (i32, i32) {
    %c0_i32 = arith.constant 0 : i32
    %c0_i32_0 = arith.constant 0 : i32
    return %c0_i32, %arg0 : i32, i32
  }
  func.func @transform_2(%arg0: i32) -> (i32, i32) {
    %c0_i32 = arith.constant 0 : i32
    %c0_i32_0 = arith.constant 0 : i32
    return %c0_i32, %arg0 : i32, i32
  }
  func.func @transform_3(%arg0: i32) -> (i32, i32) {
    %c0_i32 = arith.constant 0 : i32
    %c0_i32_0 = arith.constant 0 : i32
    return %c0_i32, %arg0 : i32, i32
  }
}

module attributes {stable_mosaic.version = 11 : i64} {
  func.func @_mm_kernel_single(%arg0: i32, %arg1: memref<1x1280xbf16, #tpu.memory_space<vmem>>, %arg2: memref<1280x1280xbf16, #tpu.memory_space<vmem>>, %arg3: memref<1x1280xf32, #tpu.memory_space<vmem>>, %arg4: memref<1x1280xbf16, #tpu.memory_space<vmem>>) attributes {dimension_semantics = [#tpu.dimension_semantics<parallel>], iteration_bounds = array<i64: 1>, scalar_prefetch = 0 : i64, scratch_operands = 0 : i64, tpu.core_type = #tpu.core_type<tc>, window_params = [{pipeline_mode = #tpu.pipeline_mode<synchronous>, transform_indices = @transform_0, window_bounds = array<i64: 1, 1280>}, {transform_indices = @transform_1, window_bounds = array<i64: 1280, 1280>}, {transform_indices = @transform_2, window_bounds = array<i64: 1, 1280>}, {transform_indices = @transform_3, window_bounds = array<i64: 1, 1280>}]} {
    %c0 = arith.constant 0 : index
    %c0_0 = arith.constant 0 : index
    %0 = vector.load %arg1[%c0, %c0_0] : memref<1x1280xbf16, #tpu.memory_space<vmem>>, vector<1x1280xbf16>
    %c0_1 = arith.constant 0 : index
    %c0_2 = arith.constant 0 : index
    %1 = vector.load %arg2[%c0_1, %c0_2] : memref<1280x1280xbf16, #tpu.memory_space<vmem>>, vector<1280x1280xbf16>
    %cst = arith.constant dense<0.000000e+00> : vector<1x1280xf32>
    %2 = tpu.matmul %0, %1, %cst {dimension_numbers = #tpu.dot_dimension_numbers<[1], [0], [0], [1], [0, 0, 1, 1], [], []>} : vector<1x1280xbf16>, vector<1280x1280xbf16>, vector<1x1280xf32> -> vector<1x1280xf32>
    %c0_3 = arith.constant 0 : index
    %c0_4 = arith.constant 0 : index
    %3 = vector.load %arg3[%c0_3, %c0_4] : memref<1x1280xf32, #tpu.memory_space<vmem>>, vector<1x1280xf32>
    %4 = arith.addf %2, %3 : vector<1x1280xf32>
    %5 = arith.negf %4 : vector<1x1280xf32>
    %6 = math.exp %5 : vector<1x1280xf32>
    %cst_5 = arith.constant 1.000000e+00 : f32
    %7 = vector.broadcast %cst_5 : f32 to vector<1x1280xf32>
    %8 = arith.addf %7, %6 : vector<1x1280xf32>
    %9 = arith.divf %7, %8 : vector<1x1280xf32>
    %10 = arith.mulf %4, %9 : vector<1x1280xf32>
    %11 = arith.truncf %10 : vector<1x1280xf32> to vector<1x1280xbf16>
    %c0_6 = arith.constant 0 : index
    %c0_7 = arith.constant 0 : index
    %12 = vector.load %arg4[%c0_6, %c0_7] : memref<1x1280xbf16, #tpu.memory_space<vmem>>, vector<1x1280xbf16>
    tpu.vector_store %arg4[%c0_6, %c0_7], %11 {strides = array<i32>} : memref<1x1280xbf16, #tpu.memory_space<vmem>>, vector<1x1280xbf16>,
    return
  }
  func.func @transform_0(%arg0: i32) -> (i32, i32) {
    %c0_i32 = arith.constant 0 : i32
    %c0_i32_0 = arith.constant 0 : i32
    %c0_i32_1 = arith.constant 0 : i32
    return %c0_i32, %c0_i32_0 : i32, i32
  }
  func.func @transform_1(%arg0: i32) -> (i32, i32) {
    %c0_i32 = arith.constant 0 : i32
    %c0_i32_0 = arith.constant 0 : i32
    return %c0_i32, %arg0 : i32, i32
  }
  func.func @transform_2(%arg0: i32) -> (i32, i32) {
    %c0_i32 = arith.constant 0 : i32
    %c0_i32_0 = arith.constant 0 : i32
    return %c0_i32, %arg0 : i32, i32
  }
  func.func @transform_3(%arg0: i32) -> (i32, i32) {
    %c0_i32 = arith.constant 0 : i32
    %c0_i32_0 = arith.constant 0 : i32
    return %c0_i32, %arg0 : i32, i32
  }
}

</mosaic_0001>

<llo_original>
// kernel: _time_embedding.2
$region0: #{_time_embedding.2}
  #allocation0 [shape = 'u32[]', space=smem, size = 0x4, offset = 0x4, fixed_abs, tag = 'smem constant byte address 0x4 - core index']
  #allocation1 [shape = 'u32[144,128]{1,0:T(1,128)}', space=vmem, size = 0x12000, scoped, tag = 'internal scratch']
  %s0 = inlined_call_operand.vmem [shape: bf16[1,320], index: 0, kind: input, shape index: {}]
  %s1 = inlined_call_operand.hbm [shape: bf16[320,1280], index: 1, kind: input, shape index: {}]
  %s2 = inlined_call_operand.hbm [shape: f32[1,1280], index: 2, kind: input, shape index: {}]
  %s3 = inlined_call_operand.vmem [shape: bf16[1,1280], index: 3, kind: output, shape index: {}]
  %s4 = sld [smem:[#allocation0]]
  $region30: #{_time_embedding.2} parent=0
    _
  %s6 = ssub.s32 1, %s4
  %s7 = scalar_select 0, %s6, %s4
  $region1: #{_time_embedding.2} parent=0
    #allocation2 [shape = 'u8[819200]{0}', space=vmem, size = 0xc8000, scoped, tag = 'input window, operand 1, single buffered']
    #allocation3 [shape = 's32[1]{0}', space=sflag, size = 0x4, scoped, tag = 'scoped memory for _time_embedding.2']
    #allocation4 [shape = 'u8[5120]{0}', space=vmem, size = 0x1400, scoped, tag = 'input window, operand 2, single buffered']
    #allocation5 [shape = 's32[1]{0}', space=sflag, size = 0x4, scoped, tag = 'scoped memory for _time_embedding.2']
    %8 = vsyncpa [#allocation3], 0
    %9 = vsyncpa [#allocation5], 0
    // Predicated region
    $region2: #{_time_embedding.2} parent=1 // pred_check
      _
    $region3: #{_time_embedding.2} parent=1 // pred_check_branch
      %11 = sbr.rel (0) target = $region5
    $region4: #{_time_embedding.2} parent=1 // pred_region
      _
    $region5: #{_time_embedding.2} parent=1 // pred_fallthru
      _
    // Predicated region
    $region6: #{_time_embedding.2} parent=1 // pred_check
      _
    $region7: #{_time_embedding.2} parent=1 // pred_check_branch
      %13 = sbr.rel (0) target = $region9
    $region8: #{_time_embedding.2} parent=1 // pred_region
      %s15 = ssub.s32 25600, 25600
      %16 = vsyncadd [#allocation3], %s15
      %s17 = sshll.u32 [#allocation2], 4
      %s18 = int_to_ptr.vmem [resolvable:$true] %s17
      %23 = dma.hbm_to_vmem [thread:$0]  %s1, 25600, %s18, [#allocation3], 640, 640, 40
    $region9: #{_time_embedding.2} parent=1 // pred_fallthru
      _
    // Predicated region
    $region10: #{_time_embedding.2} parent=1 // pred_check
      _
    $region11: #{_time_embedding.2} parent=1 // pred_check_branch
      %25 = sbr.rel (0) target = $region13
    $region12: #{_time_embedding.2} parent=1 // pred_region
      %s27 = ssub.s32 160, 160
      %28 = vsyncadd [#allocation5], %s27
      %s30 = sshll.u32 [#allocation4], 4
      %s31 = int_to_ptr.vmem [resolvable:$true] %s30
      %33 = dma.hbm_to_vmem [thread:$0]  %s2, 160, %s31, [#allocation5]
    $region13: #{_time_embedding.2} parent=1 // pred_fallthru
      _
    // Predicated region
    $region14: #{_time_embedding.2} parent=1 // pred_check
      _
    $region15: #{_time_embedding.2} parent=1 // pred_check_branch
      %35 = sbr.rel (0) target = $region17
    $region16: #{_time_embedding.2} parent=1 // pred_region
      %36 = dma.done [#allocation3], 25600
    $region17: #{_time_embedding.2} parent=1 // pred_fallthru
      _
    // Predicated region
    $region18: #{_time_embedding.2} parent=1 // pred_check
      _
    $region19: #{_time_embedding.2} parent=1 // pred_check_branch
      %38 = sbr.rel (0) target = $region21
    $region20: #{_time_embedding.2} parent=1 // pred_region
      %39 = dma.done [#allocation5], 160
    $region21: #{_time_embedding.2} parent=1 // pred_fallthru
      _
    %v41 = vld [vmem:[%s0] sm:$0x7]
    %v42 = vld [vmem:[#allocation2] sm:$0xff]
    %v43 = vld [vmem:[#allocation2 + $0x8] sm:$0xff]
    %v44 = vld [vmem:[#allocation2 + $0x10] sm:$0xff]
    %v45 = vld [vmem:[#allocation2 + $0x18] sm:$0xff]
    %v46 = vld [vmem:[#allocation2 + $0x20] sm:$0xff]
    %v47 = vld [vmem:[#allocation2 + $0x28] sm:$0xff]
    %v48 = vld [vmem:[#allocation2 + $0x30] sm:$0xff]
    %v49 = vld [vmem:[#allocation2 + $0x38] sm:$0xff]
    %v50 = vld [vmem:[#allocation2 + $0x40] sm:$0xff]
    %v51 = vld [vmem:[#allocation2 + $0x48] sm:$0xff]
    %v52 = vld [vmem:[#allocation2 + $0x50] sm:$0xff]
    %v53 = vld [vmem:[#allocation2 + $0x58] sm:$0xff]
    %v54 = vld [vmem:[#allocation2 + $0x60] sm:$0xff]
    %v55 = vld [vmem:[#allocation2 + $0x68] sm:$0xff]
    %v56 = vld [vmem:[#allocation2 + $0x70] sm:$0xff]
    %v57 = vld [vmem:[#allocation2 + $0x78] sm:$0xff]
    %v58 = vld [vmem:[#allocation2 + $0x80] sm:$0xff]
    %v59 = vld [vmem:[#allocation2 + $0x88] sm:$0xff]
    %v60 = vld [vmem:[#allocation2 + $0x90] sm:$0xff]
    %v61 = vld [vmem:[#allocation2 + $0x98] sm:$0xff]
    %v62 = vld [vmem:[#allocation2 + $0xa0] sm:$0xff]
    %v63 = vld [vmem:[#allocation2 + $0xa8] sm:$0xff]
    %v64 = vld [vmem:[#allocation2 + $0xb0] sm:$0xff]
    %v65 = vld [vmem:[#allocation2 + $0xb8] sm:$0xff]
    %v66 = vld [vmem:[#allocation2 + $0xc0] sm:$0xff]
    %v67 = vld [vmem:[#allocation2 + $0xc8] sm:$0xff]
    %v68 = vld [vmem:[#allocation2 + $0xd0] sm:$0xff]
    %v69 = vld [vmem:[#allocation2 + $0xd8] sm:$0xff]
    %v70 = vld [vmem:[#allocation2 + $0xe0] sm:$0xff]
    %v71 = vld [vmem:[#allocation2 + $0xe8] sm:$0xff]
    %v72 = vld [vmem:[#allocation2 + $0xf0] sm:$0xff]
    %v73 = vld [vmem:[#allocation2 + $0xf8] sm:$0xff]
    %v74 = vld [vmem:[#allocation2 + $0x100] sm:$0xff]
    %v75 = vld [vmem:[#allocation2 + $0x108] sm:$0xff]
    %v76 = vld [vmem:[#allocation2 + $0x110] sm:$0xff]
    %v77 = vld [vmem:[#allocation2 + $0x118] sm:$0xff]
    %v78 = vld [vmem:[#allocation2 + $0x120] sm:$0xff]
    %v79 = vld [vmem:[#allocation2 + $0x128] sm:$0xff]
    %v80 = vld [vmem:[#allocation2 + $0x130] sm:$0xff]
    %v81 = vld [vmem:[#allocation2 + $0x138] sm:$0xff]
    %v82 = vld [vmem:[#allocation2 + $0x140] sm:$0xff]
    %v83 = vld [vmem:[#allocation2 + $0x148] sm:$0xff]
    %v84 = vld [vmem:[#allocation2 + $0x150] sm:$0xff]
    %v85 = vld [vmem:[#allocation2 + $0x158] sm:$0xff]
    %v86 = vld [vmem:[#allocation2 + $0x160] sm:$0xff]
    %v87 = vld [vmem:[#allocation2 + $0x168] sm:$0xff]
    %v88 = vld [vmem:[#allocation2 + $0x170] sm:$0xff]
    %v89 = vld [vmem:[#allocation2 + $0x178] sm:$0xff]
    %v90 = vld [vmem:[#allocation2 + $0x180] sm:$0xff]
    %v91 = vld [vmem:[#allocation2 + $0x188] sm:$0xff]
    %v92 = vld [vmem:[#allocation2 + $0x190] sm:$0xff]
    %v93 = vld [vmem:[#allocation2 + $0x198] sm:$0xff]
    %v94 = vld [vmem:[#allocation2 + $0x1a0] sm:$0xff]
    %v95 = vld [vmem:[#allocation2 + $0x1a8] sm:$0xff]
    %v96 = vld [vmem:[#allocation2 + $0x1b0] sm:$0xff]
    %v97 = vld [vmem:[#allocation2 + $0x1b8] sm:$0xff]
    %v98 = vld [vmem:[#allocation2 + $0x1c0] sm:$0xff]
    %v99 = vld [vmem:[#allocation2 + $0x1c8] sm:$0xff]
    %v100 = vld [vmem:[#allocation2 + $0x1d0] sm:$0xff]
    %v101 = vld [vmem:[#allocation2 + $0x1d8] sm:$0xff]
    %v102 = vld [vmem:[#allocation2 + $0x1e0] sm:$0xff]
    %v103 = vld [vmem:[#allocation2 + $0x1e8] sm:$0xff]
    %v104 = vld [vmem:[#allocation2 + $0x1f0] sm:$0xff]
    %v105 = vld [vmem:[#allocation2 + $0x1f8] sm:$0xff]
    %v106 = vld [vmem:[#allocation2 + $0x200] sm:$0xff]
    %v107 = vld [vmem:[#allocation2 + $0x208] sm:$0xff]
    %v108 = vld [vmem:[#allocation2 + $0x210] sm:$0xff]
    %v109 = vld [vmem:[#allocation2 + $0x218] sm:$0xff]
    %v110 = vld [vmem:[#allocation2 + $0x220] sm:$0xff]
    %v111 = vld [vmem:[#allocation2 + $0x228] sm:$0xff]
    %v112 = vld [vmem:[#allocation2 + $0x230] sm:$0xff]
    %v113 = vld [vmem:[#allocation2 + $0x238] sm:$0xff]
    %v114 = vld [vmem:[#allocation2 + $0x240] sm:$0xff]
    %v115 = vld [vmem:[#allocation2 + $0x248] sm:$0xff]
    %v116 = vld [vmem:[#allocation2 + $0x250] sm:$0xff]
    %v117 = vld [vmem:[#allocation2 + $0x258] sm:$0xff]
    %v118 = vld [vmem:[#allocation2 + $0x260] sm:$0xff]
    %v119 = vld [vmem:[#allocation2 + $0x268] sm:$0xff]
    %v120 = vld [vmem:[#allocation2 + $0x270] sm:$0xff]
    %v121 = vld [vmem:[#allocation2 + $0x278] sm:$0xff]
    %v122 = vld [vmem:[#allocation2 + $0x280] sm:$0xff]
    %v123 = vld [vmem:[#allocation2 + $0x288] sm:$0xff]
    %v124 = vld [vmem:[#allocation2 + $0x290] sm:$0xff]
    %v125 = vld [vmem:[#allocation2 + $0x298] sm:$0xff]
    %v126 = vld [vmem:[#allocation2 + $0x2a0] sm:$0xff]
    %v127 = vld [vmem:[#allocation2 + $0x2a8] sm:$0xff]
    %v128 = vld [vmem:[#allocation2 + $0x2b0] sm:$0xff]
    %v129 = vld [vmem:[#allocation2 + $0x2b8] sm:$0xff]
    %v130 = vld [vmem:[#allocation2 + $0x2c0] sm:$0xff]
    %v131 = vld [vmem:[#allocation2 + $0x2c8] sm:$0xff]
    %v132 = vld [vmem:[#allocation2 + $0x2d0] sm:$0xff]
    %v133 = vld [vmem:[#allocation2 + $0x2d8] sm:$0xff]
    %v134 = vld [vmem:[#allocation2 + $0x2e0] sm:$0xff]
    %v135 = vld [vmem:[#allocation2 + $0x2e8] sm:$0xff]
    %v136 = vld [vmem:[#allocation2 + $0x2f0] sm:$0xff]
    %v137 = vld [vmem:[#allocation2 + $0x2f8] sm:$0xff]
    %v138 = vld [vmem:[#allocation2 + $0x300] sm:$0xff]
    %v139 = vld [vmem:[#allocation2 + $0x308] sm:$0xff]
    %v140 = vld [vmem:[#allocation2 + $0x310] sm:$0xff]
    %v141 = vld [vmem:[#allocation2 + $0x318] sm:$0xff]
    %v142 = vld [vmem:[#allocation2 + $0x320] sm:$0xff]
    %v143 = vld [vmem:[#allocation2 + $0x328] sm:$0xff]
    %v144 = vld [vmem:[#allocation2 + $0x330] sm:$0xff]
    %v145 = vld [vmem:[#allocation2 + $0x338] sm:$0xff]
    %v146 = vld [vmem:[#allocation2 + $0x340] sm:$0xff]
    %v147 = vld [vmem:[#allocation2 + $0x348] sm:$0xff]
    %v148 = vld [vmem:[#allocation2 + $0x350] sm:$0xff]
    %v149 = vld [vmem:[#allocation2 + $0x358] sm:$0xff]
    %v150 = vld [vmem:[#allocation2 + $0x360] sm:$0xff]
    %v151 = vld [vmem:[#allocation2 + $0x368] sm:$0xff]
    %v152 = vld [vmem:[#allocation2 + $0x370] sm:$0xff]
    %v153 = vld [vmem:[#allocation2 + $0x378] sm:$0xff]
    %v154 = vld [vmem:[#allocation2 + $0x380] sm:$0xff]
    %v155 = vld [vmem:[#allocation2 + $0x388] sm:$0xff]
    %v156 = vld [vmem:[#allocation2 + $0x390] sm:$0xff]
    %v157 = vld [vmem:[#allocation2 + $0x398] sm:$0xff]
    %v158 = vld [vmem:[#allocation2 + $0x3a0] sm:$0xff]
    %v159 = vld [vmem:[#allocation2 + $0x3a8] sm:$0xff]
    %v160 = vld [vmem:[#allocation2 + $0x3b0] sm:$0xff]
    %v161 = vld [vmem:[#allocation2 + $0x3b8] sm:$0xff]
    %v162 = vld [vmem:[#allocation2 + $0x3c0] sm:$0xff]
    %v163 = vld [vmem:[#allocation2 + $0x3c8] sm:$0xff]
    %v164 = vld [vmem:[#allocation2 + $0x3d0] sm:$0xff]
    %v165 = vld [vmem:[#allocation2 + $0x3d8] sm:$0xff]
    %v166 = vld [vmem:[#allocation2 + $0x3e0] sm:$0xff]
    %v167 = vld [vmem:[#allocation2 + $0x3e8] sm:$0xff]
    %v168 = vld [vmem:[#allocation2 + $0x3f0] sm:$0xff]
    %v169 = vld [vmem:[#allocation2 + $0x3f8] sm:$0xff]
    %v170 = vld [vmem:[#allocation2 + $0x400] sm:$0xff]
    %v171 = vld [vmem:[#allocation2 + $0x408] sm:$0xff]
    %v172 = vld [vmem:[#allocation2 + $0x410] sm:$0xff]
    %v173 = vld [vmem:[#allocation2 + $0x418] sm:$0xff]
    %v174 = vld [vmem:[#allocation2 + $0x420] sm:$0xff]
    %v175 = vld [vmem:[#allocation2 + $0x428] sm:$0xff]
    %v176 = vld [vmem:[#allocation2 + $0x430] sm:$0xff]
    %v177 = vld [vmem:[#allocation2 + $0x438] sm:$0xff]
    %v178 = vld [vmem:[#allocation2 + $0x440] sm:$0xff]
    %v179 = vld [vmem:[#allocation2 + $0x448] sm:$0xff]
    %v180 = vld [vmem:[#allocation2 + $0x450] sm:$0xff]
    %v181 = vld [vmem:[#allocation2 + $0x458] sm:$0xff]
    %v182 = vld [vmem:[#allocation2 + $0x460] sm:$0xff]
    %v183 = vld [vmem:[#allocation2 + $0x468] sm:$0xff]
    %v184 = vld [vmem:[#allocation2 + $0x470] sm:$0xff]
    %v185 = vld [vmem:[#allocation2 + $0x478] sm:$0xff]
    %v186 = vld [vmem:[#allocation2 + $0x480] sm:$0xff]
    %v187 = vld [vmem:[#allocation2 + $0x488] sm:$0xff]
    %v188 = vld [vmem:[#allocation2 + $0x490] sm:$0xff]
    %v189 = vld [vmem:[#allocation2 + $0x498] sm:$0xff]
    %v190 = vld [vmem:[#allocation2 + $0x4a0] sm:$0xff]
    %v191 = vld [vmem:[#allocation2 + $0x4a8] sm:$0xff]
    %v192 = vld [vmem:[#allocation2 + $0x4b0] sm:$0xff]
    %v193 = vld [vmem:[#allocation2 + $0x4b8] sm:$0xff]
    %v194 = vld [vmem:[#allocation2 + $0x4c0] sm:$0xff]
    %v195 = vld [vmem:[#allocation2 + $0x4c8] sm:$0xff]
    %v196 = vld [vmem:[#allocation2 + $0x4d0] sm:$0xff]
    %v197 = vld [vmem:[#allocation2 + $0x4d8] sm:$0xff]
    %v198 = vld [vmem:[#allocation2 + $0x4e0] sm:$0xff]
    %v199 = vld [vmem:[#allocation2 + $0x4e8] sm:$0xff]
    %v200 = vld [vmem:[#allocation2 + $0x4f0] sm:$0xff]
    %v201 = vld [vmem:[#allocation2 + $0x4f8] sm:$0xff]
    %v202 = vld [vmem:[#allocation2 + $0x500] sm:$0xff]
    %v203 = vld [vmem:[#allocation2 + $0x508] sm:$0xff]
    %v204 = vld [vmem:[#allocation2 + $0x510] sm:$0xff]
    %v205 = vld [vmem:[#allocation2 + $0x518] sm:$0xff]
    %v206 = vld [vmem:[#allocation2 + $0x520] sm:$0xff]
    %v207 = vld [vmem:[#allocation2 + $0x528] sm:$0xff]
    %v208 = vld [vmem:[#allocation2 + $0x530] sm:$0xff]
    %v209 = vld [vmem:[#allocation2 + $0x538] sm:$0xff]
    %v210 = vld [vmem:[#allocation2 + $0x540] sm:$0xff]
    %v211 = vld [vmem:[#allocation2 + $0x548] sm:$0xff]
    %v212 = vld [vmem:[#allocation2 + $0x550] sm:$0xff]
    %v213 = vld [vmem:[#allocation2 + $0x558] sm:$0xff]
    %v214 = vld [vmem:[#allocation2 + $0x560] sm:$0xff]
    %v215 = vld [vmem:[#allocation2 + $0x568] sm:$0xff]
    %v216 = vld [vmem:[#allocation2 + $0x570] sm:$0xff]
    %v217 = vld [vmem:[#allocation2 + $0x578] sm:$0xff]
    %v218 = vld [vmem:[#allocation2 + $0x580] sm:$0xff]
    %v219 = vld [vmem:[#allocation2 + $0x588] sm:$0xff]
    %v220 = vld [vmem:[#allocation2 + $0x590] sm:$0xff]
    %v221 = vld [vmem:[#allocation2 + $0x598] sm:$0xff]
    %v222 = vld [vmem:[#allocation2 + $0x5a0] sm:$0xff]
    %v223 = vld [vmem:[#allocation2 + $0x5a8] sm:$0xff]
    %v224 = vld [vmem:[#allocation2 + $0x5b0] sm:$0xff]
    %v225 = vld [vmem:[#allocation2 + $0x5b8] sm:$0xff]
    %v226 = vld [vmem:[#allocation2 + $0x5c0] sm:$0xff]
    %v227 = vld [vmem:[#allocation2 + $0x5c8] sm:$0xff]
    %v228 = vld [vmem:[#allocation2 + $0x5d0] sm:$0xff]
    %v229 = vld [vmem:[#allocation2 + $0x5d8] sm:$0xff]
    %v230 = vld [vmem:[#allocation2 + $0x5e0] sm:$0xff]
    %v231 = vld [vmem:[#allocation2 + $0x5e8] sm:$0xff]
    %v232 = vld [vmem:[#allocation2 + $0x5f0] sm:$0xff]
    %v233 = vld [vmem:[#allocation2 + $0x5f8] sm:$0xff]
    %v234 = vld [vmem:[#allocation2 + $0x600] sm:$0xff]
    %v235 = vld [vmem:[#allocation2 + $0x608] sm:$0xff]
    %v236 = vld [vmem:[#allocation2 + $0x610] sm:$0xff]
    %v237 = vld [vmem:[#allocation2 + $0x618] sm:$0xff]
    %v238 = vld [vmem:[#allocation2 + $0x620] sm:$0xff]
    %v239 = vld [vmem:[#allocation2 + $0x628] sm:$0xff]
    %v240 = vld [vmem:[#allocation2 + $0x630] sm:$0xff]
    %v241 = vld [vmem:[#allocation2 + $0x638] sm:$0xff]
    %v242 = vld [vmem:[#allocation4] sm:$0xff]
    %v243 = vld [vmem:[#allocation4 + $0x8] sm:$0x3]
    %v246 = vunpack.c.l.s4 1966171168
    %v247 = vunpack.c.0.s8 %v246
    %v248 = vlaneseq
    %v249 = vshrl.u32 %v248, 7
    %v250 = vsub.s32 %v247, %v249
    %v251 = vrot.slane %v41, %v250
    %v252 = vcombine.high %v251, %v251
    %v254 = vunpack.c.l.s4 1966171168
    %v255 = vunpack.c.0.s8 %v254
    %v256 = vlaneseq
    %v257 = vshrl.u32 %v256, 7
    %v258 = vsub.s32 %v255, %v257
    %v259 = vrot.slane %v251, %v258
    %v261 = vunpack.c.l.s4 1966171168
    %v262 = vunpack.c.0.s8 %v261
    %v263 = vlaneseq
    %v264 = vshrl.u32 %v263, 7
    %v265 = vsub.s32 %v262, %v264
    %v266 = vrot.slane %v252, %v265
    %v267 = vcombine.high %v259, %v259
    %v470 = vunpack.c.l.b16 %v42
    %v471 = vunpack.c.h.b16 %v42
    %v472 = vunpack.c.l.b16 %v43
    %v473 = vunpack.c.h.b16 %v43
    %v474 = vunpack.c.l.b16 %v44
    %v475 = vunpack.c.h.b16 %v44
    %v476 = vunpack.c.l.b16 %v45
    %v477 = vunpack.c.h.b16 %v45
    %v478 = vunpack.c.l.b16 %v46
    %v479 = vunpack.c.h.b16 %v46
    %v480 = vunpack.c.l.b16 %v47
    %v481 = vunpack.c.h.b16 %v47
    %v482 = vunpack.c.l.b16 %v48
    %v483 = vunpack.c.h.b16 %v48
    %v484 = vunpack.c.l.b16 %v49
    %v485 = vunpack.c.h.b16 %v49
    %v486 = vunpack.c.l.b16 %v50
    %v487 = vunpack.c.h.b16 %v50
    %v488 = vunpack.c.l.b16 %v51
    %v489 = vunpack.c.h.b16 %v51
    %v490 = vunpack.c.l.b16 %v52
    %v491 = vunpack.c.h.b16 %v52
    %v492 = vunpack.c.l.b16 %v53
    %v493 = vunpack.c.h.b16 %v53
    %v494 = vunpack.c.l.b16 %v54
    %v495 = vunpack.c.h.b16 %v54
    %v496 = vunpack.c.l.b16 %v55
    %v497 = vunpack.c.h.b16 %v55
    %v498 = vunpack.c.l.b16 %v56
    %v499 = vunpack.c.h.b16 %v56
    %v500 = vunpack.c.l.b16 %v57
    %v501 = vunpack.c.h.b16 %v57
    %v502 = vunpack.c.l.b16 %v58
    %v503 = vunpack.c.h.b16 %v58
    %v504 = vunpack.c.l.b16 %v59
    %v505 = vunpack.c.h.b16 %v59
    %v506 = vunpack.c.l.b16 %v60
    %v507 = vunpack.c.h.b16 %v60
    %v508 = vunpack.c.l.b16 %v61
    %v509 = vunpack.c.h.b16 %v61
    %v510 = vunpack.c.l.b16 %v62
    %v511 = vunpack.c.h.b16 %v62
    %v512 = vunpack.c.l.b16 %v63
    %v513 = vunpack.c.h.b16 %v63
    %v514 = vunpack.c.l.b16 %v64
    %v515 = vunpack.c.h.b16 %v64
    %v516 = vunpack.c.l.b16 %v65
    %v517 = vunpack.c.h.b16 %v65
    %v518 = vunpack.c.l.b16 %v66
    %v519 = vunpack.c.h.b16 %v66
    %v520 = vunpack.c.l.b16 %v67
    %v521 = vunpack.c.h.b16 %v67
    %v522 = vunpack.c.l.b16 %v68
    %v523 = vunpack.c.h.b16 %v68
    %v524 = vunpack.c.l.b16 %v69
    %v525 = vunpack.c.h.b16 %v69
    %v526 = vunpack.c.l.b16 %v70
    %v527 = vunpack.c.h.b16 %v70
    %v528 = vunpack.c.l.b16 %v71
    %v529 = vunpack.c.h.b16 %v71
    %v530 = vunpack.c.l.b16 %v72
    %v531 = vunpack.c.h.b16 %v72
    %v532 = vunpack.c.l.b16 %v73
    %v533 = vunpack.c.h.b16 %v73
    %v534 = vunpack.c.l.b16 %v74
    %v535 = vunpack.c.h.b16 %v74
    %v536 = vunpack.c.l.b16 %v75
    %v537 = vunpack.c.h.b16 %v75
    %v538 = vunpack.c.l.b16 %v76
    %v539 = vunpack.c.h.b16 %v76
    %v540 = vunpack.c.l.b16 %v77
    %v541 = vunpack.c.h.b16 %v77
    %v542 = vunpack.c.l.b16 %v78
    %v543 = vunpack.c.h.b16 %v78
    %v544 = vunpack.c.l.b16 %v79
    %v545 = vunpack.c.h.b16 %v79
    %v546 = vunpack.c.l.b16 %v80
    %v547 = vunpack.c.h.b16 %v80
    %v548 = vunpack.c.l.b16 %v81
    %v549 = vunpack.c.h.b16 %v81
    %v550 = vunpack.c.l.b16 %v82
    %v551 = vunpack.c.h.b16 %v82
    %v552 = vunpack.c.l.b16 %v83
    %v553 = vunpack.c.h.b16 %v83
    %v554 = vunpack.c.l.b16 %v84
    %v555 = vunpack.c.h.b16 %v84
    %v556 = vunpack.c.l.b16 %v85
    %v557 = vunpack.c.h.b16 %v85
    %v558 = vunpack.c.l.b16 %v86
    %v559 = vunpack.c.h.b16 %v86
    %v560 = vunpack.c.l.b16 %v87
    %v561 = vunpack.c.h.b16 %v87
    %v562 = vunpack.c.l.b16 %v88
    %v563 = vunpack.c.h.b16 %v88
    %v564 = vunpack.c.l.b16 %v89
    %v565 = vunpack.c.h.b16 %v89
    %v566 = vunpack.c.l.b16 %v90
    %v567 = vunpack.c.h.b16 %v90
    %v568 = vunpack.c.l.b16 %v91
    %v569 = vunpack.c.h.b16 %v91
    %v570 = vunpack.c.l.b16 %v92
    %v571 = vunpack.c.h.b16 %v92
    %v572 = vunpack.c.l.b16 %v93
    %v573 = vunpack.c.h.b16 %v93
    %v574 = vunpack.c.l.b16 %v94
    %v575 = vunpack.c.h.b16 %v94
    %v576 = vunpack.c.l.b16 %v95
    %v577 = vunpack.c.h.b16 %v95
    %v578 = vunpack.c.l.b16 %v96
    %v579 = vunpack.c.h.b16 %v96
    %v580 = vunpack.c.l.b16 %v97
    %v581 = vunpack.c.h.b16 %v97
    %v582 = vunpack.c.l.b16 %v98
    %v583 = vunpack.c.h.b16 %v98
    %v584 = vunpack.c.l.b16 %v99
    %v585 = vunpack.c.h.b16 %v99
    %v586 = vunpack.c.l.b16 %v100
    %v587 = vunpack.c.h.b16 %v100
    %v588 = vunpack.c.l.b16 %v101
    %v589 = vunpack.c.h.b16 %v101
    %v590 = vunpack.c.l.b16 %v102
    %v591 = vunpack.c.h.b16 %v102
    %v592 = vunpack.c.l.b16 %v103
    %v593 = vunpack.c.h.b16 %v103
    %v594 = vunpack.c.l.b16 %v104
    %v595 = vunpack.c.h.b16 %v104
    %v596 = vunpack.c.l.b16 %v105
    %v597 = vunpack.c.h.b16 %v105
    %v598 = vunpack.c.l.b16 %v106
    %v599 = vunpack.c.h.b16 %v106
    %v600 = vunpack.c.l.b16 %v107
    %v601 = vunpack.c.h.b16 %v107
    %v602 = vunpack.c.l.b16 %v108
    %v603 = vunpack.c.h.b16 %v108
    %v604 = vunpack.c.l.b16 %v109
    %v605 = vunpack.c.h.b16 %v109
    %v606 = vunpack.c.l.b16 %v110
    %v607 = vunpack.c.h.b16 %v110
    %v608 = vunpack.c.l.b16 %v111
    %v609 = vunpack.c.h.b16 %v111
    %v610 = vunpack.c.l.b16 %v112
    %v611 = vunpack.c.h.b16 %v112
    %v612 = vunpack.c.l.b16 %v113
    %v613 = vunpack.c.h.b16 %v113
    %v614 = vunpack.c.l.b16 %v114
    %v615 = vunpack.c.h.b16 %v114
    %v616 = vunpack.c.l.b16 %v115
    %v617 = vunpack.c.h.b16 %v115
    %v618 = vunpack.c.l.b16 %v116
    %v619 = vunpack.c.h.b16 %v116
    %v620 = vunpack.c.l.b16 %v117
    %v621 = vunpack.c.h.b16 %v117
    %v622 = vunpack.c.l.b16 %v118
    %v623 = vunpack.c.h.b16 %v118
    %v624 = vunpack.c.l.b16 %v119
    %v625 = vunpack.c.h.b16 %v119
    %v626 = vunpack.c.l.b16 %v120
    %v627 = vunpack.c.h.b16 %v120
    %v628 = vunpack.c.l.b16 %v121
    %v629 = vunpack.c.h.b16 %v121
    %v630 = vunpack.c.l.b16 %v122
    %v631 = vunpack.c.h.b16 %v122
    %v632 = vunpack.c.l.b16 %v123
    %v633 = vunpack.c.h.b16 %v123
    %v634 = vunpack.c.l.b16 %v124
    %v635 = vunpack.c.h.b16 %v124
    %v636 = vunpack.c.l.b16 %v125
    %v637 = vunpack.c.h.b16 %v125
    %v638 = vunpack.c.l.b16 %v126
    %v639 = vunpack.c.h.b16 %v126
    %v640 = vunpack.c.l.b16 %v127
    %v641 = vunpack.c.h.b16 %v127
    %v642 = vunpack.c.l.b16 %v128
    %v643 = vunpack.c.h.b16 %v128
    %v644 = vunpack.c.l.b16 %v129
    %v645 = vunpack.c.h.b16 %v129
    %v646 = vunpack.c.l.b16 %v130
    %v647 = vunpack.c.h.b16 %v130
    %v648 = vunpack.c.l.b16 %v131
    %v649 = vunpack.c.h.b16 %v131
    %v650 = vunpack.c.l.b16 %v132
    %v651 = vunpack.c.h.b16 %v132
    %v652 = vunpack.c.l.b16 %v133
    %v653 = vunpack.c.h.b16 %v133
    %v654 = vunpack.c.l.b16 %v134
    %v655 = vunpack.c.h.b16 %v134
    %v656 = vunpack.c.l.b16 %v135
    %v657 = vunpack.c.h.b16 %v135
    %v658 = vunpack.c.l.b16 %v136
    %v659 = vunpack.c.h.b16 %v136
    %v660 = vunpack.c.l.b16 %v137
    %v661 = vunpack.c.h.b16 %v137
    %v662 = vunpack.c.l.b16 %v138
    %v663 = vunpack.c.h.b16 %v138
    %v664 = vunpack.c.l.b16 %v139
    %v665 = vunpack.c.h.b16 %v139
    %v666 = vunpack.c.l.b16 %v140
    %v667 = vunpack.c.h.b16 %v140
    %v668 = vunpack.c.l.b16 %v141
    %v669 = vunpack.c.h.b16 %v141
    %v670 = vunpack.c.l.b16 %v142
    %v671 = vunpack.c.h.b16 %v142
    %v672 = vunpack.c.l.b16 %v143
    %v673 = vunpack.c.h.b16 %v143
    %v674 = vunpack.c.l.b16 %v144
    %v675 = vunpack.c.h.b16 %v144
    %v676 = vunpack.c.l.b16 %v145
    %v677 = vunpack.c.h.b16 %v145
    %v678 = vunpack.c.l.b16 %v146
    %v679 = vunpack.c.h.b16 %v146
    %v680 = vunpack.c.l.b16 %v147
    %v681 = vunpack.c.h.b16 %v147
    %v682 = vunpack.c.l.b16 %v148
    %v683 = vunpack.c.h.b16 %v148
    %v684 = vunpack.c.l.b16 %v149
    %v685 = vunpack.c.h.b16 %v149
    %v686 = vunpack.c.l.b16 %v150
    %v687 = vunpack.c.h.b16 %v150
    %v688 = vunpack.c.l.b16 %v151
    %v689 = vunpack.c.h.b16 %v151
    %v690 = vunpack.c.l.b16 %v152
    %v691 = vunpack.c.h.b16 %v152
    %v692 = vunpack.c.l.b16 %v153
    %v693 = vunpack.c.h.b16 %v153
    %v694 = vunpack.c.l.b16 %v154
    %v695 = vunpack.c.h.b16 %v154
    %v696 = vunpack.c.l.b16 %v155
    %v697 = vunpack.c.h.b16 %v155
    %v698 = vunpack.c.l.b16 %v156
    %v699 = vunpack.c.h.b16 %v156
    %v700 = vunpack.c.l.b16 %v157
    %v701 = vunpack.c.h.b16 %v157
    %v702 = vunpack.c.l.b16 %v158
    %v703 = vunpack.c.h.b16 %v158
    %v704 = vunpack.c.l.b16 %v159
    %v705 = vunpack.c.h.b16 %v159
    %v706 = vunpack.c.l.b16 %v160
    %v707 = vunpack.c.h.b16 %v160
    %v708 = vunpack.c.l.b16 %v161
    %v709 = vunpack.c.h.b16 %v161
    %v710 = vunpack.c.l.b16 %v162
    %v711 = vunpack.c.h.b16 %v162
    %v712 = vunpack.c.l.b16 %v163
    %v713 = vunpack.c.h.b16 %v163
    %v714 = vunpack.c.l.b16 %v164
    %v715 = vunpack.c.h.b16 %v164
    %v716 = vunpack.c.l.b16 %v165
    %v717 = vunpack.c.h.b16 %v165
    %v718 = vunpack.c.l.b16 %v166
    %v719 = vunpack.c.h.b16 %v166
    %v720 = vunpack.c.l.b16 %v167
    %v721 = vunpack.c.h.b16 %v167
    %v722 = vunpack.c.l.b16 %v168
    %v723 = vunpack.c.h.b16 %v168
    %v724 = vunpack.c.l.b16 %v169
    %v725 = vunpack.c.h.b16 %v169
    %v726 = vunpack.c.l.b16 %v170
    %v727 = vunpack.c.h.b16 %v170
    %v728 = vunpack.c.l.b16 %v171
    %v729 = vunpack.c.h.b16 %v171
    %v730 = vunpack.c.l.b16 %v172
    %v731 = vunpack.c.h.b16 %v172
    %v732 = vunpack.c.l.b16 %v173
    %v733 = vunpack.c.h.b16 %v173
    %v734 = vunpack.c.l.b16 %v174
    %v735 = vunpack.c.h.b16 %v174
    %v736 = vunpack.c.l.b16 %v175
    %v737 = vunpack.c.h.b16 %v175
    %v738 = vunpack.c.l.b16 %v176
    %v739 = vunpack.c.h.b16 %v176
    %v740 = vunpack.c.l.b16 %v177
    %v741 = vunpack.c.h.b16 %v177
    %v742 = vunpack.c.l.b16 %v178
    %v743 = vunpack.c.h.b16 %v178
    %v744 = vunpack.c.l.b16 %v179
    %v745 = vunpack.c.h.b16 %v179
    %v746 = vunpack.c.l.b16 %v180
    %v747 = vunpack.c.h.b16 %v180
    %v748 = vunpack.c.l.b16 %v181
    %v749 = vunpack.c.h.b16 %v181
    %v750 = vunpack.c.l.b16 %v182
    %v751 = vunpack.c.h.b16 %v182
    %v752 = vunpack.c.l.b16 %v183
    %v753 = vunpack.c.h.b16 %v183
    %v754 = vunpack.c.l.b16 %v184
    %v755 = vunpack.c.h.b16 %v184
    %v756 = vunpack.c.l.b16 %v185
    %v757 = vunpack.c.h.b16 %v185
    %v758 = vunpack.c.l.b16 %v186
    %v759 = vunpack.c.h.b16 %v186
    %v760 = vunpack.c.l.b16 %v187
    %v761 = vunpack.c.h.b16 %v187
    %v762 = vunpack.c.l.b16 %v188
    %v763 = vunpack.c.h.b16 %v188
    %v764 = vunpack.c.l.b16 %v189
    %v765 = vunpack.c.h.b16 %v189
    %v766 = vunpack.c.l.b16 %v190
    %v767 = vunpack.c.h.b16 %v190
    %v768 = vunpack.c.l.b16 %v191
    %v769 = vunpack.c.h.b16 %v191
    %v770 = vunpack.c.l.b16 %v192
    %v771 = vunpack.c.h.b16 %v192
    %v772 = vunpack.c.l.b16 %v193
    %v773 = vunpack.c.h.b16 %v193
    %v774 = vunpack.c.l.b16 %v194
    %v775 = vunpack.c.h.b16 %v194
    %v776 = vunpack.c.l.b16 %v195
    %v777 = vunpack.c.h.b16 %v195
    %v778 = vunpack.c.l.b16 %v196
    %v779 = vunpack.c.h.b16 %v196
    %v780 = vunpack.c.l.b16 %v197
    %v781 = vunpack.c.h.b16 %v197
    %v782 = vunpack.c.l.b16 %v198
    %v783 = vunpack.c.h.b16 %v198
    %v784 = vunpack.c.l.b16 %v199
    %v785 = vunpack.c.h.b16 %v199
    %v786 = vunpack.c.l.b16 %v200
    %v787 = vunpack.c.h.b16 %v200
    %v788 = vunpack.c.l.b16 %v201
    %v789 = vunpack.c.h.b16 %v201
    %v790 = vunpack.c.l.b16 %v202
    %v791 = vunpack.c.h.b16 %v202
    %v792 = vunpack.c.l.b16 %v203
    %v793 = vunpack.c.h.b16 %v203
    %v794 = vunpack.c.l.b16 %v204
    %v795 = vunpack.c.h.b16 %v204
    %v796 = vunpack.c.l.b16 %v205
    %v797 = vunpack.c.h.b16 %v205
    %v798 = vunpack.c.l.b16 %v206
    %v799 = vunpack.c.h.b16 %v206
    %v800 = vunpack.c.l.b16 %v207
    %v801 = vunpack.c.h.b16 %v207
    %v802 = vunpack.c.l.b16 %v208
    %v803 = vunpack.c.h.b16 %v208
    %v804 = vunpack.c.l.b16 %v209
    %v805 = vunpack.c.h.b16 %v209
    %v806 = vunpack.c.l.b16 %v210
    %v807 = vunpack.c.h.b16 %v210
    %v808 = vunpack.c.l.b16 %v211
    %v809 = vunpack.c.h.b16 %v211
    %v810 = vunpack.c.l.b16 %v212
    %v811 = vunpack.c.h.b16 %v212
    %v812 = vunpack.c.l.b16 %v213
    %v813 = vunpack.c.h.b16 %v213
    %v814 = vunpack.c.l.b16 %v214
    %v815 = vunpack.c.h.b16 %v214
    %v816 = vunpack.c.l.b16 %v215
    %v817 = vunpack.c.h.b16 %v215
    %v818 = vunpack.c.l.b16 %v216
    %v819 = vunpack.c.h.b16 %v216
    %v820 = vunpack.c.l.b16 %v217
    %v821 = vunpack.c.h.b16 %v217
    %v822 = vunpack.c.l.b16 %v218
    %v823 = vunpack.c.h.b16 %v218
    %v824 = vunpack.c.l.b16 %v219
    %v825 = vunpack.c.h.b16 %v219
    %v826 = vunpack.c.l.b16 %v220
    %v827 = vunpack.c.h.b16 %v220
    %v828 = vunpack.c.l.b16 %v221
    %v829 = vunpack.c.h.b16 %v221
    %v830 = vunpack.c.l.b16 %v222
    %v831 = vunpack.c.h.b16 %v222
    %v832 = vunpack.c.l.b16 %v223
    %v833 = vunpack.c.h.b16 %v223
    %v834 = vunpack.c.l.b16 %v224
    %v835 = vunpack.c.h.b16 %v224
    %v836 = vunpack.c.l.b16 %v225
    %v837 = vunpack.c.h.b16 %v225
    %v838 = vunpack.c.l.b16 %v226
    %v839 = vunpack.c.h.b16 %v226
    %v840 = vunpack.c.l.b16 %v227
    %v841 = vunpack.c.h.b16 %v227
    %v842 = vunpack.c.l.b16 %v228
    %v843 = vunpack.c.h.b16 %v228
    %v844 = vunpack.c.l.b16 %v229
    %v845 = vunpack.c.h.b16 %v229
    %v846 = vunpack.c.l.b16 %v230
    %v847 = vunpack.c.h.b16 %v230
    %v848 = vunpack.c.l.b16 %v231
    %v849 = vunpack.c.h.b16 %v231
    %v850 = vunpack.c.l.b16 %v232
    %v851 = vunpack.c.h.b16 %v232
    %v852 = vunpack.c.l.b16 %v233
    %v853 = vunpack.c.h.b16 %v233
    %v854 = vunpack.c.l.b16 %v234
    %v855 = vunpack.c.h.b16 %v234
    %v856 = vunpack.c.l.b16 %v235
    %v857 = vunpack.c.h.b16 %v235
    %v858 = vunpack.c.l.b16 %v236
    %v859 = vunpack.c.h.b16 %v236
    %v860 = vunpack.c.l.b16 %v237
    %v861 = vunpack.c.h.b16 %v237
    %v862 = vunpack.c.l.b16 %v238
    %v863 = vunpack.c.h.b16 %v238
    %v864 = vunpack.c.l.b16 %v239
    %v865 = vunpack.c.h.b16 %v239
    %v866 = vunpack.c.l.b16 %v240
    %v867 = vunpack.c.h.b16 %v240
    %v868 = vunpack.c.l.b16 %v241
    %v869 = vunpack.c.h.b16 %v241
    %v870 = vpack.c.b16 %v480, %v470
    %v871 = vpack.c.b16 %v481, %v471
    %v872 = vpack.c.b16 %v482, %v472
    %v873 = vpack.c.b16 %v483, %v473
    %v874 = vpack.c.b16 %v484, %v474
    %v875 = vpack.c.b16 %v485, %v475
    %v876 = vpack.c.b16 %v486, %v476
    %v877 = vpack.c.b16 %v487, %v477
    %v878 = vpack.c.b16 %v488, %v478
    %v879 = vpack.c.b16 %v489, %v479
    %v880 = vpack.c.b16 %v500, %v490
    %v881 = vpack.c.b16 %v501, %v491
    %v882 = vpack.c.b16 %v502, %v492
    %v883 = vpack.c.b16 %v503, %v493
    %v884 = vpack.c.b16 %v504, %v494
    %v885 = vpack.c.b16 %v505, %v495
    %v886 = vpack.c.b16 %v506, %v496
    %v887 = vpack.c.b16 %v507, %v497
    %v888 = vpack.c.b16 %v508, %v498
    %v889 = vpack.c.b16 %v509, %v499
    %v890 = vpack.c.b16 %v520, %v510
    %v891 = vpack.c.b16 %v521, %v511
    %v892 = vpack.c.b16 %v522, %v512
    %v893 = vpack.c.b16 %v523, %v513
    %v894 = vpack.c.b16 %v524, %v514
    %v895 = vpack.c.b16 %v525, %v515
    %v896 = vpack.c.b16 %v526, %v516
    %v897 = vpack.c.b16 %v527, %v517
    %v898 = vpack.c.b16 %v528, %v518
    %v899 = vpack.c.b16 %v529, %v519
    %v900 = vpack.c.b16 %v540, %v530
    %v901 = vpack.c.b16 %v541, %v531
    %v902 = vpack.c.b16 %v542, %v532
    %v903 = vpack.c.b16 %v543, %v533
    %v904 = vpack.c.b16 %v544, %v534
    %v905 = vpack.c.b16 %v545, %v535
    %v906 = vpack.c.b16 %v546, %v536
    %v907 = vpack.c.b16 %v547, %v537
    %v908 = vpack.c.b16 %v548, %v538
    %v909 = vpack.c.b16 %v549, %v539
    %v910 = vpack.c.b16 %v560, %v550
    %v911 = vpack.c.b16 %v561, %v551
    %v912 = vpack.c.b16 %v562, %v552
    %v913 = vpack.c.b16 %v563, %v553
    %v914 = vpack.c.b16 %v564, %v554
    %v915 = vpack.c.b16 %v565, %v555
    %v916 = vpack.c.b16 %v566, %v556
    %v917 = vpack.c.b16 %v567, %v557
    %v918 = vpack.c.b16 %v568, %v558
    %v919 = vpack.c.b16 %v569, %v559
    %v920 = vpack.c.b16 %v580, %v570
    %v921 = vpack.c.b16 %v581, %v571
    %v922 = vpack.c.b16 %v582, %v572
    %v923 = vpack.c.b16 %v583, %v573
    %v924 = vpack.c.b16 %v584, %v574
    %v925 = vpack.c.b16 %v585, %v575
    %v926 = vpack.c.b16 %v586, %v576
    %v927 = vpack.c.b16 %v587, %v577
    %v928 = vpack.c.b16 %v588, %v578
    %v929 = vpack.c.b16 %v589, %v579
    %v930 = vpack.c.b16 %v600, %v590
    %v931 = vpack.c.b16 %v601, %v591
    %v932 = vpack.c.b16 %v602, %v592
    %v933 = vpack.c.b16 %v603, %v593
    %v934 = vpack.c.b16 %v604, %v594
    %v935 = vpack.c.b16 %v605, %v595
    %v936 = vpack.c.b16 %v606, %v596
    %v937 = vpack.c.b16 %v607, %v597
    %v938 = vpack.c.b16 %v608, %v598
    %v939 = vpack.c.b16 %v609, %v599
    %v940 = vpack.c.b16 %v620, %v610
    %v941 = vpack.c.b16 %v621, %v611
    %v942 = vpack.c.b16 %v622, %v612
    %v943 = vpack.c.b16 %v623, %v613
    %v944 = vpack.c.b16 %v624, %v614
    %v945 = vpack.c.b16 %v625, %v615
    %v946 = vpack.c.b16 %v626, %v616
    %v947 = vpack.c.b16 %v627, %v617
    %v948 = vpack.c.b16 %v628, %v618
    %v949 = vpack.c.b16 %v629, %v619
    %v950 = vpack.c.b16 %v640, %v630
    %v951 = vpack.c.b16 %v641, %v631
    %v952 = vpack.c.b16 %v642, %v632
    %v953 = vpack.c.b16 %v643, %v633
    %v954 = vpack.c.b16 %v644, %v634
    %v955 = vpack.c.b16 %v645, %v635
    %v956 = vpack.c.b16 %v646, %v636
    %v957 = vpack.c.b16 %v647, %v637
    %v958 = vpack.c.b16 %v648, %v638
    %v959 = vpack.c.b16 %v649, %v639
    %v960 = vpack.c.b16 %v660, %v650
    %v961 = vpack.c.b16 %v661, %v651
    %v962 = vpack.c.b16 %v662, %v652
    %v963 = vpack.c.b16 %v663, %v653
    %v964 = vpack.c.b16 %v664, %v654
    %v965 = vpack.c.b16 %v665, %v655
    %v966 = vpack.c.b16 %v666, %v656
    %v967 = vpack.c.b16 %v667, %v657
    %v968 = vpack.c.b16 %v668, %v658
    %v969 = vpack.c.b16 %v669, %v659
    %v970 = vpack.c.b16 %v680, %v670
    %v971 = vpack.c.b16 %v681, %v671
    %v972 = vpack.c.b16 %v682, %v672
    %v973 = vpack.c.b16 %v683, %v673
    %v974 = vpack.c.b16 %v684, %v674
    %v975 = vpack.c.b16 %v685, %v675
    %v976 = vpack.c.b16 %v686, %v676
    %v977 = vpack.c.b16 %v687, %v677
    %v978 = vpack.c.b16 %v688, %v678
    %v979 = vpack.c.b16 %v689, %v679
    %v980 = vpack.c.b16 %v700, %v690
    %v981 = vpack.c.b16 %v701, %v691
    %v982 = vpack.c.b16 %v702, %v692
    %v983 = vpack.c.b16 %v703, %v693
    %v984 = vpack.c.b16 %v704, %v694
    %v985 = vpack.c.b16 %v705, %v695
    %v986 = vpack.c.b16 %v706, %v696
    %v987 = vpack.c.b16 %v707, %v697
    %v988 = vpack.c.b16 %v708, %v698
    %v989 = vpack.c.b16 %v709, %v699
    %v990 = vpack.c.b16 %v720, %v710
    %v991 = vpack.c.b16 %v721, %v711
    %v992 = vpack.c.b16 %v722, %v712
    %v993 = vpack.c.b16 %v723, %v713
    %v994 = vpack.c.b16 %v724, %v714
    %v995 = vpack.c.b16 %v725, %v715
    %v996 = vpack.c.b16 %v726, %v716
    %v997 = vpack.c.b16 %v727, %v717
    %v998 = vpack.c.b16 %v728, %v718
    %v999 = vpack.c.b16 %v729, %v719
    %v1000 = vpack.c.b16 %v740, %v730
    %v1001 = vpack.c.b16 %v741, %v731
    %v1002 = vpack.c.b16 %v742, %v732
    %v1003 = vpack.c.b16 %v743, %v733
    %v1004 = vpack.c.b16 %v744, %v734
    %v1005 = vpack.c.b16 %v745, %v735
    %v1006 = vpack.c.b16 %v746, %v736
    %v1007 = vpack.c.b16 %v747, %v737
    %v1008 = vpack.c.b16 %v748, %v738
    %v1009 = vpack.c.b16 %v749, %v739
    %v1010 = vpack.c.b16 %v760, %v750
    %v1011 = vpack.c.b16 %v761, %v751
    %v1012 = vpack.c.b16 %v762, %v752
    %v1013 = vpack.c.b16 %v763, %v753
    %v1014 = vpack.c.b16 %v764, %v754
    %v1015 = vpack.c.b16 %v765, %v755
    %v1016 = vpack.c.b16 %v766, %v756
    %v1017 = vpack.c.b16 %v767, %v757
    %v1018 = vpack.c.b16 %v768, %v758
    %v1019 = vpack.c.b16 %v769, %v759
    %v1020 = vpack.c.b16 %v780, %v770
    %v1021 = vpack.c.b16 %v781, %v771
    %v1022 = vpack.c.b16 %v782, %v772
    %v1023 = vpack.c.b16 %v783, %v773
    %v1024 = vpack.c.b16 %v784, %v774
    %v1025 = vpack.c.b16 %v785, %v775
    %v1026 = vpack.c.b16 %v786, %v776
    %v1027 = vpack.c.b16 %v787, %v777
    %v1028 = vpack.c.b16 %v788, %v778
    %v1029 = vpack.c.b16 %v789, %v779
    %v1030 = vpack.c.b16 %v800, %v790
    %v1031 = vpack.c.b16 %v801, %v791
    %v1032 = vpack.c.b16 %v802, %v792
    %v1033 = vpack.c.b16 %v803, %v793
    %v1034 = vpack.c.b16 %v804, %v794
    %v1035 = vpack.c.b16 %v805, %v795
    %v1036 = vpack.c.b16 %v806, %v796
    %v1037 = vpack.c.b16 %v807, %v797
    %v1038 = vpack.c.b16 %v808, %v798
    %v1039 = vpack.c.b16 %v809, %v799
    %v1040 = vpack.c.b16 %v820, %v810
    %v1041 = vpack.c.b16 %v821, %v811
    %v1042 = vpack.c.b16 %v822, %v812
    %v1043 = vpack.c.b16 %v823, %v813
    %v1044 = vpack.c.b16 %v824, %v814
    %v1045 = vpack.c.b16 %v825, %v815
    %v1046 = vpack.c.b16 %v826, %v816
    %v1047 = vpack.c.b16 %v827, %v817
    %v1048 = vpack.c.b16 %v828, %v818
    %v1049 = vpack.c.b16 %v829, %v819
    %v1050 = vpack.c.b16 %v840, %v830
    %v1051 = vpack.c.b16 %v841, %v831
    %v1052 = vpack.c.b16 %v842, %v832
    %v1053 = vpack.c.b16 %v843, %v833
    %v1054 = vpack.c.b16 %v844, %v834
    %v1055 = vpack.c.b16 %v845, %v835
    %v1056 = vpack.c.b16 %v846, %v836
    %v1057 = vpack.c.b16 %v847, %v837
    %v1058 = vpack.c.b16 %v848, %v838
    %v1059 = vpack.c.b16 %v849, %v839
    %v1060 = vpack.c.b16 %v860, %v850
    %v1061 = vpack.c.b16 %v861, %v851
    %v1062 = vpack.c.b16 %v862, %v852
    %v1063 = vpack.c.b16 %v863, %v853
    %v1064 = vpack.c.b16 %v864, %v854
    %v1065 = vpack.c.b16 %v865, %v855
    %v1066 = vpack.c.b16 %v866, %v856
    %v1067 = vpack.c.b16 %v867, %v857
    %v1068 = vpack.c.b16 %v868, %v858
    %v1069 = vpack.c.b16 %v869, %v859
    %v1272 = vlaneseq
    %v1273 = vshrl.u32 %v1272, 7
    %v1274 = vsub.s32 0, %v1273
    %v1275 = vrot.slane %v242, %v1274
    %v1276 = vlaneseq
    %v1277 = vshrl.u32 %v1276, 7
    %v1278 = vsub.s32 1, %v1277
    %v1279 = vrot.slane %v242, %v1278
    %v1280 = vlaneseq
    %v1281 = vshrl.u32 %v1280, 7
    %v1282 = vsub.s32 2, %v1281
    %v1283 = vrot.slane %v242, %v1282
    %v1284 = vlaneseq
    %v1285 = vshrl.u32 %v1284, 7
    %v1286 = vsub.s32 3, %v1285
    %v1287 = vrot.slane %v242, %v1286
    %v1288 = vlaneseq
    %v1289 = vshrl.u32 %v1288, 7
    %v1290 = vsub.s32 4, %v1289
    %v1291 = vrot.slane %v242, %v1290
    %v1292 = vlaneseq
    %v1293 = vshrl.u32 %v1292, 7
    %v1294 = vsub.s32 5, %v1293
    %v1295 = vrot.slane %v242, %v1294
    %v1296 = vlaneseq
    %v1297 = vshrl.u32 %v1296, 7
    %v1298 = vsub.s32 6, %v1297
    %v1299 = vrot.slane %v242, %v1298
    %v1300 = vlaneseq
    %v1301 = vshrl.u32 %v1300, 7
    %v1302 = vsub.s32 7, %v1301
    %v1303 = vrot.slane %v242, %v1302
    %v1304 = vlaneseq
    %v1305 = vshrl.u32 %v1304, 7
    %v1306 = vsub.s32 0, %v1305
    %v1307 = vrot.slane %v243, %v1306
    %v1308 = vlaneseq
    %v1309 = vshrl.u32 %v1308, 7
    %v1310 = vsub.s32 1, %v1309
    %v1311 = vrot.slane %v243, %v1310
    %vm1322 = vcmask 523264
    %v1324 = vsel %vm1322, %v267, 0
    %1326 = vmatprep.subr.bf16.mxu0 %v871
    %1327 = vmatpush1.bf16.msra.mxu0 %v870
    %1328 = vmatprep.subr.bf16.mxu0 %v881
    %1329 = vmatpush1.bf16.msra.mxu0 %v880
    %1330 = vmatprep.subr.bf16.mxu0 %v891
    %1331 = vmatpush1.bf16.msra.mxu0 %v890
    %1332 = vmatprep.subr.bf16.mxu0 %v901
    %1333 = vmatpush1.bf16.msra.mxu0 %v900
    %1334 = vmatprep.subr.bf16.mxu0 %v911
    %1335 = vmatpush1.bf16.msra.mxu0 %v910
    %1336 = vmatprep.subr.bf16.mxu0 %v921
    %1337 = vmatpush1.bf16.msra.mxu0 %v920
    %1338 = vmatprep.subr.bf16.mxu0 %v931
    %1339 = vmatpush1.bf16.msra.mxu0 %v930
    %1340 = vmatprep.subr.bf16.mxu0 %v941
    %1341 = vmatpush1.bf16.msra.mxu0 %v940
    %1342 = vmatprep.subr.bf16.mxu0 %v951
    %1343 = vmatpush1.bf16.msra.mxu0 %v950
    %1344 = vmatprep.subr.bf16.mxu0 %v961
    %1345 = vmatpush1.bf16.msra.mxu0 %v960
    %1346 = vmatprep.subr.bf16.mxu0 %v971
    %1347 = vmatpush1.bf16.msra.mxu0 %v970
    %1348 = vmatprep.subr.bf16.mxu0 %v981
    %1349 = vmatpush1.bf16.msra.mxu0 %v980
    %1350 = vmatprep.subr.bf16.mxu0 %v991
    %1351 = vmatpush1.bf16.msra.mxu0 %v990
    %1352 = vmatprep.subr.bf16.mxu0 %v1001
    %1353 = vmatpush1.bf16.msra.mxu0 %v1000
    %1354 = vmatprep.subr.bf16.mxu0 %v1011
    %1355 = vmatpush1.bf16.msra.mxu0 %v1010
    %1356 = vmatprep.subr.bf16.mxu0 %v1021
    %1357 = vmatpush1.bf16.msra.mxu0 %v1020
    %1358 = vmatprep.mubr.bf16.mxu0 %v266
    %1359 = vmatmul.mubr.bf16.gmra.mrb[0].mxu0 %v259
    %v1360 = vpop.f32.mrb[0].mxu0
    %v1361 = vadd.f32 %v1275, %v1360
    %v1362 = vpop.f32.mrb[0].mxu0
    %v1363 = vadd.f32 %v1279, %v1362
    %v1364 = vpop.f32.mrb[0].mxu0
    %v1365 = vpop.f32.mrb[0].mxu0
    %1366 = vdwg.mxu0
    %1367 = vmatprep.subr.bf16.mxu0 %v1031
    %1368 = vmatpush1.bf16.msra.mxu0 %v1030
    %1369 = vmatprep.subr.bf16.mxu0 %v1041
    %1370 = vmatpush1.bf16.msra.mxu0 %v1040
    %1371 = vmatprep.subr.bf16.mxu0 %v1051
    %1372 = vmatpush1.bf16.msra.mxu0 %v1050
    %1373 = vmatprep.subr.bf16.mxu0 %v1061
    %1374 = vmatpush1.bf16.msra.mxu0 %v1060
    %1375 = vmatprep.subr.bf16.mxu0 0
    %1376 = vmatpush1.bf16.msra.mxu0 0
    %1377 = vmatprep.subr.bf16.mxu0 0
    %1378 = vmatpush1.bf16.msra.mxu0 0
    %1379 = vmatprep.subr.bf16.mxu0 0
    %1380 = vmatpush1.bf16.msra.mxu0 0
    %1381 = vmatprep.subr.bf16.mxu0 0
    %1382 = vmatpush1.bf16.msra.mxu0 0
    %1383 = vmatprep.subr.bf16.mxu0 0
    %1384 = vmatpush1.bf16.msra.mxu0 0
    %1385 = vmatprep.subr.bf16.mxu0 0
    %1386 = vmatpush1.bf16.msra.mxu0 0
    %1387 = vmatprep.subr.bf16.mxu0 0
    %1388 = vmatpush1.bf16.msra.mxu0 0
    %1389 = vmatprep.subr.bf16.mxu0 0
    %1390 = vmatpush1.bf16.msra.mxu0 0
    %1391 = vmatprep.subr.bf16.mxu0 0
    %1392 = vmatpush1.bf16.msra.mxu0 0
    %1393 = vmatprep.subr.bf16.mxu0 0
    %1394 = vmatpush1.bf16.msra.mxu0 0
    %1395 = vmatprep.subr.bf16.mxu0 0
    %1396 = vmatpush1.bf16.msra.mxu0 0
    %1397 = vmatprep.subr.bf16.mxu0 0
    %1398 = vmatpush1.bf16.msra.mxu0 0
    %1399 = vmatprep.mubr.bf16.mxu0 0
    %1400 = vmatmul.mubr.bf16.gmra.mrb[0].mxu0 %v1324
    %v1401 = vpop.f32.mrb[0].mxu0
    %v1402 = vadd.f32 %v1361, %v1401
    %v1403 = vpop.f32.mrb[0].mxu0
    %v1404 = vadd.f32 %v1363, %v1403
    %v1405 = vpop.f32.mrb[0].mxu0
    %v1406 = vpop.f32.mrb[0].mxu0
    %1407 = vdwg.mxu0
    %1408 = vmatprep.subr.bf16.mxu0 %v873
    %1409 = vmatpush1.bf16.msra.mxu0 %v872
    %1410 = vmatprep.subr.bf16.mxu0 %v883
    %1411 = vmatpush1.bf16.msra.mxu0 %v882
    %1412 = vmatprep.subr.bf16.mxu0 %v893
    %1413 = vmatpush1.bf16.msra.mxu0 %v892
    %1414 = vmatprep.subr.bf16.mxu0 %v903
    %1415 = vmatpush1.bf16.msra.mxu0 %v902
    %1416 = vmatprep.subr.bf16.mxu0 %v913
    %1417 = vmatpush1.bf16.msra.mxu0 %v912
    %1418 = vmatprep.subr.bf16.mxu0 %v923
    %1419 = vmatpush1.bf16.msra.mxu0 %v922
    %1420 = vmatprep.subr.bf16.mxu0 %v933
    %1421 = vmatpush1.bf16.msra.mxu0 %v932
    %1422 = vmatprep.subr.bf16.mxu0 %v943
    %1423 = vmatpush1.bf16.msra.mxu0 %v942
    %1424 = vmatprep.subr.bf16.mxu0 %v953
    %1425 = vmatpush1.bf16.msra.mxu0 %v952
    %1426 = vmatprep.subr.bf16.mxu0 %v963
    %1427 = vmatpush1.bf16.msra.mxu0 %v962
    %1428 = vmatprep.subr.bf16.mxu0 %v973
    %1429 = vmatpush1.bf16.msra.mxu0 %v972
    %1430 = vmatprep.subr.bf16.mxu0 %v983
    %1431 = vmatpush1.bf16.msra.mxu0 %v982
    %1432 = vmatprep.subr.bf16.mxu0 %v993
    %1433 = vmatpush1.bf16.msra.mxu0 %v992
    %1434 = vmatprep.subr.bf16.mxu0 %v1003
    %1435 = vmatpush1.bf16.msra.mxu0 %v1002
    %1436 = vmatprep.subr.bf16.mxu0 %v1013
    %1437 = vmatpush1.bf16.msra.mxu0 %v1012
    %1438 = vmatprep.subr.bf16.mxu0 %v1023
    %1439 = vmatpush1.bf16.msra.mxu0 %v1022
    %1440 = vmatprep.mubr.bf16.mxu0 %v266
    %1441 = vmatmul.mubr.bf16.gmra.mrb[0].mxu0 %v259
    %v1442 = vpop.f32.mrb[0].mxu0
    %v1443 = vadd.f32 %v1283, %v1442
    %v1444 = vpop.f32.mrb[0].mxu0
    %v1445 = vadd.f32 %v1287, %v1444
    %v1446 = vpop.f32.mrb[0].mxu0
    %v1447 = vpop.f32.mrb[0].mxu0
    %1448 = vdwg.mxu0
    %1449 = vmatprep.subr.bf16.mxu0 %v1033
    %1450 = vmatpush1.bf16.msra.mxu0 %v1032
    %1451 = vmatprep.subr.bf16.mxu0 %v1043
    %1452 = vmatpush1.bf16.msra.mxu0 %v1042
    %1453 = vmatprep.subr.bf16.mxu0 %v1053
    %1454 = vmatpush1.bf16.msra.mxu0 %v1052
    %1455 = vmatprep.subr.bf16.mxu0 %v1063
    %1456 = vmatpush1.bf16.msra.mxu0 %v1062
    %1457 = vmatprep.subr.bf16.mxu0 0
    %1458 = vmatpush1.bf16.msra.mxu0 0
    %1459 = vmatprep.subr.bf16.mxu0 0
    %1460 = vmatpush1.bf16.msra.mxu0 0
    %1461 = vmatprep.subr.bf16.mxu0 0
    %1462 = vmatpush1.bf16.msra.mxu0 0
    %1463 = vmatprep.subr.bf16.mxu0 0
    %1464 = vmatpush1.bf16.msra.mxu0 0
    %1465 = vmatprep.subr.bf16.mxu0 0
    %1466 = vmatpush1.bf16.msra.mxu0 0
    %1467 = vmatprep.subr.bf16.mxu0 0
    %1468 = vmatpush1.bf16.msra.mxu0 0
    %1469 = vmatprep.subr.bf16.mxu0 0
    %1470 = vmatpush1.bf16.msra.mxu0 0
    %1471 = vmatprep.subr.bf16.mxu0 0
    %1472 = vmatpush1.bf16.msra.mxu0 0
    %1473 = vmatprep.subr.bf16.mxu0 0
    %1474 = vmatpush1.bf16.msra.mxu0 0
    %1475 = vmatprep.subr.bf16.mxu0 0
    %1476 = vmatpush1.bf16.msra.mxu0 0
    %1477 = vmatprep.subr.bf16.mxu0 0
    %1478 = vmatpush1.bf16.msra.mxu0 0
    %1479 = vmatprep.subr.bf16.mxu0 0
    %1480 = vmatpush1.bf16.msra.mxu0 0
    %1481 = vmatprep.mubr.bf16.mxu0 0
    %1482 = vmatmul.mubr.bf16.gmra.mrb[0].mxu0 %v1324
    %v1483 = vpop.f32.mrb[0].mxu0
    %v1484 = vadd.f32 %v1443, %v1483
    %v1485 = vpop.f32.mrb[0].mxu0
    %v1486 = vadd.f32 %v1445, %v1485
    %v1487 = vpop.f32.mrb[0].mxu0
    %v1488 = vpop.f32.mrb[0].mxu0
    %1489 = vdwg.mxu0
    %1490 = vmatprep.subr.bf16.mxu0 %v875
    %1491 = vmatpush1.bf16.msra.mxu0 %v874
    %1492 = vmatprep.subr.bf16.mxu0 %v885
    %1493 = vmatpush1.bf16.msra.mxu0 %v884
    %1494 = vmatprep.subr.bf16.mxu0 %v895
    %1495 = vmatpush1.bf16.msra.mxu0 %v894
    %1496 = vmatprep.subr.bf16.mxu0 %v905
    %1497 = vmatpush1.bf16.msra.mxu0 %v904
    %1498 = vmatprep.subr.bf16.mxu0 %v915
    %1499 = vmatpush1.bf16.msra.mxu0 %v914
    %1500 = vmatprep.subr.bf16.mxu0 %v925
    %1501 = vmatpush1.bf16.msra.mxu0 %v924
    %1502 = vmatprep.subr.bf16.mxu0 %v935
    %1503 = vmatpush1.bf16.msra.mxu0 %v934
    %1504 = vmatprep.subr.bf16.mxu0 %v945
    %1505 = vmatpush1.bf16.msra.mxu0 %v944
    %1506 = vmatprep.subr.bf16.mxu0 %v955
    %1507 = vmatpush1.bf16.msra.mxu0 %v954
    %1508 = vmatprep.subr.bf16.mxu0 %v965
    %1509 = vmatpush1.bf16.msra.mxu0 %v964
    %1510 = vmatprep.subr.bf16.mxu0 %v975
    %1511 = vmatpush1.bf16.msra.mxu0 %v974
    %1512 = vmatprep.subr.bf16.mxu0 %v985
    %1513 = vmatpush1.bf16.msra.mxu0 %v984
    %1514 = vmatprep.subr.bf16.mxu0 %v995
    %1515 = vmatpush1.bf16.msra.mxu0 %v994
    %1516 = vmatprep.subr.bf16.mxu0 %v1005
    %1517 = vmatpush1.bf16.msra.mxu0 %v1004
    %1518 = vmatprep.subr.bf16.mxu0 %v1015
    %1519 = vmatpush1.bf16.msra.mxu0 %v1014
    %1520 = vmatprep.subr.bf16.mxu0 %v1025
    %1521 = vmatpush1.bf16.msra.mxu0 %v1024
    %1522 = vmatprep.mubr.bf16.mxu0 %v266
    %1523 = vmatmul.mubr.bf16.gmra.mrb[0].mxu0 %v259
    %v1524 = vpop.f32.mrb[0].mxu0
    %v1525 = vadd.f32 %v1291, %v1524
    %v1526 = vpop.f32.mrb[0].mxu0
    %v1527 = vadd.f32 %v1295, %v1526
    %v1528 = vpop.f32.mrb[0].mxu0
    %v1529 = vpop.f32.mrb[0].mxu0
    %1530 = vdwg.mxu0
    %1531 = vmatprep.subr.bf16.mxu0 %v1035
    %1532 = vmatpush1.bf16.msra.mxu0 %v1034
    %1533 = vmatprep.subr.bf16.mxu0 %v1045
    %1534 = vmatpush1.bf16.msra.mxu0 %v1044
    %1535 = vmatprep.subr.bf16.mxu0 %v1055
    %1536 = vmatpush1.bf16.msra.mxu0 %v1054
    %1537 = vmatprep.subr.bf16.mxu0 %v1065
    %1538 = vmatpush1.bf16.msra.mxu0 %v1064
    %1539 = vmatprep.subr.bf16.mxu0 0
    %1540 = vmatpush1.bf16.msra.mxu0 0
    %1541 = vmatprep.subr.bf16.mxu0 0
    %1542 = vmatpush1.bf16.msra.mxu0 0
    %1543 = vmatprep.subr.bf16.mxu0 0
    %1544 = vmatpush1.bf16.msra.mxu0 0
    %1545 = vmatprep.subr.bf16.mxu0 0
    %1546 = vmatpush1.bf16.msra.mxu0 0
    %1547 = vmatprep.subr.bf16.mxu0 0
    %1548 = vmatpush1.bf16.msra.mxu0 0
    %1549 = vmatprep.subr.bf16.mxu0 0
    %1550 = vmatpush1.bf16.msra.mxu0 0
    %1551 = vmatprep.subr.bf16.mxu0 0
    %1552 = vmatpush1.bf16.msra.mxu0 0
    %1553 = vmatprep.subr.bf16.mxu0 0
    %1554 = vmatpush1.bf16.msra.mxu0 0
    %1555 = vmatprep.subr.bf16.mxu0 0
    %1556 = vmatpush1.bf16.msra.mxu0 0
    %1557 = vmatprep.subr.bf16.mxu0 0
    %1558 = vmatpush1.bf16.msra.mxu0 0
    %1559 = vmatprep.subr.bf16.mxu0 0
    %1560 = vmatpush1.bf16.msra.mxu0 0
    %1561 = vmatprep.subr.bf16.mxu0 0
    %1562 = vmatpush1.bf16.msra.mxu0 0
    %1563 = vmatprep.mubr.bf16.mxu0 0
    %1564 = vmatmul.mubr.bf16.gmra.mrb[0].mxu0 %v1324
    %v1565 = vpop.f32.mrb[0].mxu0
    %v1566 = vadd.f32 %v1525, %v1565
    %v1567 = vpop.f32.mrb[0].mxu0
    %v1568 = vadd.f32 %v1527, %v1567
    %v1569 = vpop.f32.mrb[0].mxu0
    %v1570 = vpop.f32.mrb[0].mxu0
    %1571 = vdwg.mxu0
    %1572 = vmatprep.subr.bf16.mxu0 %v877
    %1573 = vmatpush1.bf16.msra.mxu0 %v876
    %1574 = vmatprep.subr.bf16.mxu0 %v887
    %1575 = vmatpush1.bf16.msra.mxu0 %v886
    %1576 = vmatprep.subr.bf16.mxu0 %v897
    %1577 = vmatpush1.bf16.msra.mxu0 %v896
    %1578 = vmatprep.subr.bf16.mxu0 %v907
    %1579 = vmatpush1.bf16.msra.mxu0 %v906
    %1580 = vmatprep.subr.bf16.mxu0 %v917
    %1581 = vmatpush1.bf16.msra.mxu0 %v916
    %1582 = vmatprep.subr.bf16.mxu0 %v927
    %1583 = vmatpush1.bf16.msra.mxu0 %v926
    %1584 = vmatprep.subr.bf16.mxu0 %v937
    %1585 = vmatpush1.bf16.msra.mxu0 %v936
    %1586 = vmatprep.subr.bf16.mxu0 %v947
    %1587 = vmatpush1.bf16.msra.mxu0 %v946
    %1588 = vmatprep.subr.bf16.mxu0 %v957
    %1589 = vmatpush1.bf16.msra.mxu0 %v956
    %1590 = vmatprep.subr.bf16.mxu0 %v967
    %1591 = vmatpush1.bf16.msra.mxu0 %v966
    %1592 = vmatprep.subr.bf16.mxu0 %v977
    %1593 = vmatpush1.bf16.msra.mxu0 %v976
    %1594 = vmatprep.subr.bf16.mxu0 %v987
    %1595 = vmatpush1.bf16.msra.mxu0 %v986
    %1596 = vmatprep.subr.bf16.mxu0 %v997
    %1597 = vmatpush1.bf16.msra.mxu0 %v996
    %1598 = vmatprep.subr.bf16.mxu0 %v1007
    %1599 = vmatpush1.bf16.msra.mxu0 %v1006
    %1600 = vmatprep.subr.bf16.mxu0 %v1017
    %1601 = vmatpush1.bf16.msra.mxu0 %v1016
    %1602 = vmatprep.subr.bf16.mxu0 %v1027
    %1603 = vmatpush1.bf16.msra.mxu0 %v1026
    %1604 = vmatprep.mubr.bf16.mxu0 %v266
    %1605 = vmatmul.mubr.bf16.gmra.mrb[0].mxu0 %v259
    %v1606 = vpop.f32.mrb[0].mxu0
    %v1607 = vadd.f32 %v1299, %v1606
    %v1608 = vpop.f32.mrb[0].mxu0
    %v1609 = vadd.f32 %v1303, %v1608
    %v1610 = vpop.f32.mrb[0].mxu0
    %v1611 = vpop.f32.mrb[0].mxu0
    %1612 = vdwg.mxu0
    %1613 = vmatprep.subr.bf16.mxu0 %v1037
    %1614 = vmatpush1.bf16.msra.mxu0 %v1036
    %1615 = vmatprep.subr.bf16.mxu0 %v1047
    %1616 = vmatpush1.bf16.msra.mxu0 %v1046
    %1617 = vmatprep.subr.bf16.mxu0 %v1057
    %1618 = vmatpush1.bf16.msra.mxu0 %v1056
    %1619 = vmatprep.subr.bf16.mxu0 %v1067
    %1620 = vmatpush1.bf16.msra.mxu0 %v1066
    %1621 = vmatprep.subr.bf16.mxu0 0
    %1622 = vmatpush1.bf16.msra.mxu0 0
    %1623 = vmatprep.subr.bf16.mxu0 0
    %1624 = vmatpush1.bf16.msra.mxu0 0
    %1625 = vmatprep.subr.bf16.mxu0 0
    %1626 = vmatpush1.bf16.msra.mxu0 0
    %1627 = vmatprep.subr.bf16.mxu0 0
    %1628 = vmatpush1.bf16.msra.mxu0 0
    %1629 = vmatprep.subr.bf16.mxu0 0
    %1630 = vmatpush1.bf16.msra.mxu0 0
    %1631 = vmatprep.subr.bf16.mxu0 0
    %1632 = vmatpush1.bf16.msra.mxu0 0
    %1633 = vmatprep.subr.bf16.mxu0 0
    %1634 = vmatpush1.bf16.msra.mxu0 0
    %1635 = vmatprep.subr.bf16.mxu0 0
    %1636 = vmatpush1.bf16.msra.mxu0 0
    %1637 = vmatprep.subr.bf16.mxu0 0
    %1638 = vmatpush1.bf16.msra.mxu0 0
    %1639 = vmatprep.subr.bf16.mxu0 0
    %1640 = vmatpush1.bf16.msra.mxu0 0
    %1641 = vmatprep.subr.bf16.mxu0 0
    %1642 = vmatpush1.bf16.msra.mxu0 0
    %1643 = vmatprep.subr.bf16.mxu0 0
    %1644 = vmatpush1.bf16.msra.mxu0 0
    %1645 = vmatprep.mubr.bf16.mxu0 0
    %1646 = vmatmul.mubr.bf16.gmra.mrb[0].mxu0 %v1324
    %v1647 = vpop.f32.mrb[0].mxu0
    %v1648 = vadd.f32 %v1607, %v1647
    %v1649 = vpop.f32.mrb[0].mxu0
    %v1650 = vadd.f32 %v1609, %v1649
    %v1651 = vpop.f32.mrb[0].mxu0
    %v1652 = vpop.f32.mrb[0].mxu0
    %1653 = vdwg.mxu0
    %1654 = vmatprep.subr.bf16.mxu0 %v879
    %1655 = vmatpush1.bf16.msra.mxu0 %v878
    %1656 = vmatprep.subr.bf16.mxu0 %v889
    %1657 = vmatpush1.bf16.msra.mxu0 %v888
    %1658 = vmatprep.subr.bf16.mxu0 %v899
    %1659 = vmatpush1.bf16.msra.mxu0 %v898
    %1660 = vmatprep.subr.bf16.mxu0 %v909
    %1661 = vmatpush1.bf16.msra.mxu0 %v908
    %1662 = vmatprep.subr.bf16.mxu0 %v919
    %1663 = vmatpush1.bf16.msra.mxu0 %v918
    %1664 = vmatprep.subr.bf16.mxu0 %v929
    %1665 = vmatpush1.bf16.msra.mxu0 %v928
    %1666 = vmatprep.subr.bf16.mxu0 %v939
    %1667 = vmatpush1.bf16.msra.mxu0 %v938
    %1668 = vmatprep.subr.bf16.mxu0 %v949
    %1669 = vmatpush1.bf16.msra.mxu0 %v948
    %1670 = vmatprep.subr.bf16.mxu0 %v959
    %1671 = vmatpush1.bf16.msra.mxu0 %v958
    %1672 = vmatprep.subr.bf16.mxu0 %v969
    %1673 = vmatpush1.bf16.msra.mxu0 %v968
    %1674 = vmatprep.subr.bf16.mxu0 %v979
    %1675 = vmatpush1.bf16.msra.mxu0 %v978
    %1676 = vmatprep.subr.bf16.mxu0 %v989
    %1677 = vmatpush1.bf16.msra.mxu0 %v988
    %1678 = vmatprep.subr.bf16.mxu0 %v999
    %1679 = vmatpush1.bf16.msra.mxu0 %v998
    %1680 = vmatprep.subr.bf16.mxu0 %v1009
    %1681 = vmatpush1.bf16.msra.mxu0 %v1008
    %1682 = vmatprep.subr.bf16.mxu0 %v1019
    %1683 = vmatpush1.bf16.msra.mxu0 %v1018
    %1684 = vmatprep.subr.bf16.mxu0 %v1029
    %1685 = vmatpush1.bf16.msra.mxu0 %v1028
    %1686 = vmatprep.mubr.bf16.mxu0 %v266
    %1687 = vmatmul.mubr.bf16.gmra.mrb[0].mxu0 %v259
    %v1688 = vpop.f32.mrb[0].mxu0
    %v1689 = vadd.f32 %v1307, %v1688
    %v1690 = vpop.f32.mrb[0].mxu0
    %v1691 = vadd.f32 %v1311, %v1690
    %v1692 = vpop.f32.mrb[0].mxu0
    %v1693 = vpop.f32.mrb[0].mxu0
    %1694 = vdwg.mxu0
    %1695 = vmatprep.subr.bf16.mxu0 %v1039
    %1696 = vmatpush1.bf16.msra.mxu0 %v1038
    %1697 = vmatprep.subr.bf16.mxu0 %v1049
    %1698 = vmatpush1.bf16.msra.mxu0 %v1048
    %1699 = vmatprep.subr.bf16.mxu0 %v1059
    %1700 = vmatpush1.bf16.msra.mxu0 %v1058
    %1701 = vmatprep.subr.bf16.mxu0 %v1069
    %1702 = vmatpush1.bf16.msra.mxu0 %v1068
    %1703 = vmatprep.subr.bf16.mxu0 0
    %1704 = vmatpush1.bf16.msra.mxu0 0
    %1705 = vmatprep.subr.bf16.mxu0 0
    %1706 = vmatpush1.bf16.msra.mxu0 0
    %1707 = vmatprep.subr.bf16.mxu0 0
    %1708 = vmatpush1.bf16.msra.mxu0 0
    %1709 = vmatprep.subr.bf16.mxu0 0
    %1710 = vmatpush1.bf16.msra.mxu0 0
    %1711 = vmatprep.subr.bf16.mxu0 0
    %1712 = vmatpush1.bf16.msra.mxu0 0
    %1713 = vmatprep.subr.bf16.mxu0 0
    %1714 = vmatpush1.bf16.msra.mxu0 0
    %1715 = vmatprep.subr.bf16.mxu0 0
    %1716 = vmatpush1.bf16.msra.mxu0 0
    %1717 = vmatprep.subr.bf16.mxu0 0
    %1718 = vmatpush1.bf16.msra.mxu0 0
    %1719 = vmatprep.subr.bf16.mxu0 0
    %1720 = vmatpush1.bf16.msra.mxu0 0
    %1721 = vmatprep.subr.bf16.mxu0 0
    %1722 = vmatpush1.bf16.msra.mxu0 0
    %1723 = vmatprep.subr.bf16.mxu0 0
    %1724 = vmatpush1.bf16.msra.mxu0 0
    %1725 = vmatprep.subr.bf16.mxu0 0
    %1726 = vmatpush1.bf16.msra.mxu0 0
    %1727 = vmatprep.mubr.bf16.mxu0 0
    %1728 = vmatmul.mubr.bf16.gmra.mrb[0].mxu0 %v1324
    %v1729 = vpop.f32.mrb[0].mxu0
    %v1730 = vadd.f32 %v1689, %v1729
    %v1731 = vpop.f32.mrb[0].mxu0
    %v1732 = vadd.f32 %v1691, %v1731
    %v1733 = vpop.f32.mrb[0].mxu0
    %v1734 = vpop.f32.mrb[0].mxu0
    %1735 = vdwg.mxu0
    %v1736 = vxor.u32 %v1402, 2147483648
    %v1737 = vxor.u32 %v1404, 2147483648
    %v1738 = vxor.u32 %v1484, 2147483648
    %v1739 = vxor.u32 %v1486, 2147483648
    %v1740 = vxor.u32 %v1566, 2147483648
    %v1741 = vxor.u32 %v1568, 2147483648
    %v1742 = vxor.u32 %v1648, 2147483648
    %v1743 = vxor.u32 %v1650, 2147483648
    %v1744 = vxor.u32 %v1730, 2147483648
    %v1745 = vxor.u32 %v1732, 2147483648
    %v1746 = vmul.f32 %v1736, 1.442695
    %v1747 = vpow.pop %v1746
    %v1748 = vmul.f32 %v1737, 1.442695
    %v1749 = vpow.pop %v1748
    %v1750 = vmul.f32 %v1738, 1.442695
    %v1751 = vpow.pop %v1750
    %v1752 = vmul.f32 %v1739, 1.442695
    %v1753 = vpow.pop %v1752
    %v1754 = vmul.f32 %v1740, 1.442695
    %v1755 = vpow.pop %v1754
    %v1756 = vmul.f32 %v1741, 1.442695
    %v1757 = vpow.pop %v1756
    %v1758 = vmul.f32 %v1742, 1.442695
    %v1759 = vpow.pop %v1758
    %v1760 = vmul.f32 %v1743, 1.442695
    %v1761 = vpow.pop %v1760
    %v1762 = vmul.f32 %v1744, 1.442695
    %v1763 = vpow.pop %v1762
    %v1764 = vmul.f32 %v1745, 1.442695
    %v1765 = vpow.pop %v1764
    %v1766 = vadd.f32 %v1747, 1.0
    %v1767 = vadd.f32 %v1749, 1.0
    %v1768 = vadd.f32 %v1751, 1.0
    %v1769 = vadd.f32 %v1753, 1.0
    %v1770 = vadd.f32 %v1755, 1.0
    %v1771 = vadd.f32 %v1757, 1.0
    %v1772 = vadd.f32 %v1759, 1.0
    %v1773 = vadd.f32 %v1761, 1.0
    %v1774 = vadd.f32 %v1763, 1.0
    %v1775 = vadd.f32 %v1765, 1.0
    %v1776 = vrcp.pop %v1766
    %v1777 = vmul.f32 1.0, %v1776
    %v1778 = vrcp.pop %v1767
    %v1779 = vmul.f32 1.0, %v1778
    %v1780 = vrcp.pop %v1768
    %v1781 = vmul.f32 1.0, %v1780
    %v1782 = vrcp.pop %v1769
    %v1783 = vmul.f32 1.0, %v1782
    %v1784 = vrcp.pop %v1770
    %v1785 = vmul.f32 1.0, %v1784
    %v1786 = vrcp.pop %v1771
    %v1787 = vmul.f32 1.0, %v1786
    %v1788 = vrcp.pop %v1772
    %v1789 = vmul.f32 1.0, %v1788
    %v1790 = vrcp.pop %v1773
    %v1791 = vmul.f32 1.0, %v1790
    %v1792 = vrcp.pop %v1774
    %v1793 = vmul.f32 1.0, %v1792
    %v1794 = vrcp.pop %v1775
    %v1795 = vmul.f32 1.0, %v1794
    %v1796 = vmul.f32 %v1402, %v1777
    %v1797 = vmul.f32 %v1404, %v1779
    %v1798 = vmul.f32 %v1484, %v1781
    %v1799 = vmul.f32 %v1486, %v1783
    %v1800 = vmul.f32 %v1566, %v1785
    %v1801 = vmul.f32 %v1568, %v1787
    %v1802 = vmul.f32 %v1648, %v1789
    %v1803 = vmul.f32 %v1650, %v1791
    %v1804 = vmul.f32 %v1730, %v1793
    %v1805 = vmul.f32 %v1732, %v1795
    %v1806 = vpack.c.bf16 %v1796, %v1796
    %v1807 = vpack.c.bf16 %v1797, %v1797
    %v1808 = vpack.c.bf16 %v1798, %v1798
    %v1809 = vpack.c.bf16 %v1799, %v1799
    %v1810 = vpack.c.bf16 %v1800, %v1800
    %v1811 = vpack.c.bf16 %v1801, %v1801
    %v1812 = vpack.c.bf16 %v1802, %v1802
    %v1813 = vpack.c.bf16 %v1803, %v1803
    %v1814 = vpack.c.bf16 %v1804, %v1804
    %v1815 = vpack.c.bf16 %v1805, %v1805
    %v1826 = vcombine.low %v1806, %v1807
    %v1827 = vcombine.low %v1808, %v1809
    %v1828 = vcombine.low %v1810, %v1811
    %v1829 = vcombine.low %v1812, %v1813
    %v1831 = vunpack.c.l.s4 1966171168
    %v1832 = vunpack.c.0.s8 %v1831
    %v1833 = vlaneseq
    %v1834 = vshrl.u32 %v1833, 7
    %v1835 = vsub.s32 %v1832, %v1834
    %v1836 = vrot.slane %v1826, %v1835
    %v1838 = vunpack.c.l.s4 1966171168
    %v1839 = vunpack.c.0.s8 %v1838
    %v1840 = vlaneseq
    %v1841 = vshrl.u32 %v1840, 7
    %v1842 = vsub.s32 %v1839, %v1841
    %v1843 = vrot.slane %v1827, %v1842
    %v1845 = vunpack.c.l.s4 1966171168
    %v1846 = vunpack.c.0.s8 %v1845
    %v1847 = vlaneseq
    %v1848 = vshrl.u32 %v1847, 7
    %v1849 = vsub.s32 %v1846, %v1848
    %v1850 = vrot.slane %v1828, %v1849
    %v1852 = vunpack.c.l.s4 1966171168
    %v1853 = vunpack.c.0.s8 %v1852
    %v1854 = vlaneseq
    %v1855 = vshrl.u32 %v1854, 7
    %v1856 = vsub.s32 %v1853, %v1855
    %v1857 = vrot.slane %v1829, %v1856
    %v1858 = vcombine.low %v1836, %v1843
    %v1859 = vcombine.low %v1850, %v1857
    %v1861 = vunpack.c.l.s4 1966171168
    %v1862 = vunpack.c.0.s8 %v1861
    %v1863 = vlaneseq
    %v1864 = vshrl.u32 %v1863, 7
    %v1865 = vsub.s32 %v1862, %v1864
    %v1866 = vrot.slane %v1858, %v1865
    %v1868 = vunpack.c.l.s4 1966171168
    %v1869 = vunpack.c.0.s8 %v1868
    %v1870 = vlaneseq
    %v1871 = vshrl.u32 %v1870, 7
    %v1872 = vsub.s32 %v1869, %v1871
    %v1873 = vrot.slane %v1859, %v1872
    %v1874 = vcombine.low %v1866, %v1873
    %v1875 = vcombine.low %v1814, %v1815
    %v1877 = vunpack.c.l.s4 1966171168
    %v1878 = vunpack.c.0.s8 %v1877
    %v1879 = vlaneseq
    %v1880 = vshrl.u32 %v1879, 7
    %v1881 = vsub.s32 %v1878, %v1880
    %v1882 = vrot.slane %v1875, %v1881
    %v1884 = vunpack.c.l.s4 1966171168
    %v1885 = vunpack.c.0.s8 %v1884
    %v1886 = vlaneseq
    %v1887 = vshrl.u32 %v1886, 7
    %v1888 = vsub.s32 %v1885, %v1887
    %v1889 = vrot.slane %v1882, %v1888
    %vm1892 = vcmask 1040384
    %vm1893 = vsmask.f32 256
    %vm1894 = vmand %vm1892, %vm1893
    %vm1895 = vcmask 1041409
    %vm1896 = vsmask.f32 1280
    %vm1897 = vmand %vm1895, %vm1896
    %vm1898 = vmor %vm1897, %vm1894
    %vm1899 = vcmask 1042434
    %vm1900 = vsmask.f32 2304
    %vm1901 = vmand %vm1899, %vm1900
    %vm1902 = vmor %vm1901, %vm1898
    %vm1903 = vcmask 1043459
    %vm1904 = vsmask.f32 3328
    %vm1905 = vmand %vm1903, %vm1904
    %vm1906 = vmor %vm1905, %vm1902
    %vm1907 = vcmask 1044484
    %vm1908 = vsmask.f32 4352
    %vm1909 = vmand %vm1907, %vm1908
    %vm1910 = vmor %vm1909, %vm1906
    %vm1911 = vcmask 1045509
    %vm1912 = vsmask.f32 5376
    %vm1913 = vmand %vm1911, %vm1912
    %vm1914 = vmor %vm1913, %vm1910
    %vm1915 = vcmask 1046534
    %vm1916 = vsmask.f32 6400
    %vm1917 = vmand %vm1915, %vm1916
    %vm1918 = vmor %vm1917, %vm1914
    %vm1919 = vcmask 1047559
    %vm1920 = vsmask.f32 7424
    %vm1921 = vmand %vm1919, %vm1920
    %vm1922 = vmor %vm1921, %vm1918
    %v1923 = vld [vmem:[%s3] sm:$0xff]
    %v1924 = vsel %vm1922, %v1874, %v1923
    %1925 = vst [vmem:[%s3] sm:$0xff] %v1924
    %v1926 = vld [vmem:[%s3 + $0x8] sm:$0x3]
    %v1927 = vsel %vm1898, %v1889, %v1926
    %1928 = vst [vmem:[%s3 + $0x8] sm:$0x3] %v1927
    // Predicated region
    $region22: #{_time_embedding.2} parent=1 // pred_check
      _
    $region23: #{_time_embedding.2} parent=1 // pred_check_branch
      %1930 = sbr.rel (0) target = $region25
    $region24: #{_time_embedding.2} parent=1 // pred_region
      _
    $region25: #{_time_embedding.2} parent=1 // pred_fallthru
      _
    // Predicated region
    $region26: #{_time_embedding.2} parent=1 // pred_check
      _
    $region27: #{_time_embedding.2} parent=1 // pred_check_branch
      %1932 = sbr.rel (0) target = $region29
    $region28: #{_time_embedding.2} parent=1 // pred_region
      _
    $region29: #{_time_embedding.2} parent=1 // pred_fallthru
      _
    %1933 = vsyncpa [#allocation3], 1
    %1934 = vsyncpa [#allocation5], 1

// kernel: _time_embedding.3
$region0: #{_time_embedding.3}
  #allocation0 [shape = 'u32[]', space=smem, size = 0x4, offset = 0x4, fixed_abs, tag = 'smem constant byte address 0x4 - core index']
  #allocation1 [shape = 'u32[144,128]{1,0:T(1,128)}', space=vmem, size = 0x12000, scoped, tag = 'internal scratch']
  %s0 = inlined_call_operand.vmem [shape: bf16[1,1280], index: 0, kind: input, shape index: {}]
  %s1 = inlined_call_operand.hbm [shape: bf16[1280,1280], index: 1, kind: input, shape index: {}]
  %s2 = inlined_call_operand.hbm [shape: f32[1,1280], index: 2, kind: input, shape index: {}]
  %s3 = inlined_call_operand.hbm [shape: bf16[1,1280], index: 3, kind: output, shape index: {}]
  %s4 = sld [smem:[#allocation0]]
  $region30: #{_time_embedding.3} parent=0
    _
  %s6 = ssub.s32 1, %s4
  %s7 = scalar_select 0, %s6, %s4
  $region1: #{_time_embedding.3} parent=0
    #allocation2 [shape = 'u8[3276800]{0}', space=vmem, size = 0x320000, scoped, tag = 'input window, operand 1, single buffered']
    #allocation3 [shape = 's32[1]{0}', space=sflag, size = 0x4, scoped, tag = 'scoped memory for _time_embedding.3']
    #allocation4 [shape = 's32[1]{0}', space=sflag, size = 0x4, scoped, tag = 'scoped memory for _time_embedding.3']
    #allocation5 [shape = 'u8[5120]{0}', space=vmem, size = 0x1400, scoped, tag = 'input window, operand 2, single buffered']
    #allocation6 [shape = 's32[1]{0}', space=sflag, size = 0x4, scoped, tag = 'scoped memory for _time_embedding.3']
    #allocation7 [shape = 'u8[5120]{0}', space=vmem, size = 0x1400, scoped, tag = 'output window, operand 0, single buffered']
    %8 = vsyncpa [#allocation3], 0
    %9 = vsyncpa [#allocation6], 0
    %10 = vsyncpa [#allocation4], 0
    // Predicated region
    $region2: #{_time_embedding.3} parent=1 // pred_check
      _
    $region3: #{_time_embedding.3} parent=1 // pred_check_branch
      %12 = sbr.rel (0) target = $region5
    $region4: #{_time_embedding.3} parent=1 // pred_region
      _
    $region5: #{_time_embedding.3} parent=1 // pred_fallthru
      _
    // Predicated region
    $region6: #{_time_embedding.3} parent=1 // pred_check
      _
    $region7: #{_time_embedding.3} parent=1 // pred_check_branch
      %14 = sbr.rel (0) target = $region9
    $region8: #{_time_embedding.3} parent=1 // pred_region
      %s16 = ssub.s32 102400, 102400
      %17 = vsyncadd [#allocation3], %s16
      %s18 = sshll.u32 [#allocation2], 4
      %s19 = int_to_ptr.vmem [resolvable:$true] %s18
      %24 = dma.hbm_to_vmem [thread:$0]  %s1, 102400, %s19, [#allocation3], 640, 640, 40
    $region9: #{_time_embedding.3} parent=1 // pred_fallthru
      _
    // Predicated region
    $region10: #{_time_embedding.3} parent=1 // pred_check
      _
    $region11: #{_time_embedding.3} parent=1 // pred_check_branch
      %26 = sbr.rel (0) target = $region13
    $region12: #{_time_embedding.3} parent=1 // pred_region
      %s28 = ssub.s32 160, 160
      %29 = vsyncadd [#allocation6], %s28
      %s31 = sshll.u32 [#allocation5], 4
      %s32 = int_to_ptr.vmem [resolvable:$true] %s31
      %34 = dma.hbm_to_vmem [thread:$0]  %s2, 160, %s32, [#allocation6]
    $region13: #{_time_embedding.3} parent=1 // pred_fallthru
      _
    // Predicated region
    $region14: #{_time_embedding.3} parent=1 // pred_check
      _
    $region15: #{_time_embedding.3} parent=1 // pred_check_branch
      %36 = sbr.rel (0) target = $region17
    $region16: #{_time_embedding.3} parent=1 // pred_region
      %37 = dma.done [#allocation3], 102400
    $region17: #{_time_embedding.3} parent=1 // pred_fallthru
      _
    // Predicated region
    $region18: #{_time_embedding.3} parent=1 // pred_check
      _
    $region19: #{_time_embedding.3} parent=1 // pred_check_branch
      %39 = sbr.rel (0) target = $region21
    $region20: #{_time_embedding.3} parent=1 // pred_region
      %40 = dma.done [#allocation6], 160
    $region21: #{_time_embedding.3} parent=1 // pred_fallthru
      _
    %v41 = vld [vmem:[%s0] sm:$0xff]
    %v42 = vld [vmem:[%s0 + $0x8] sm:$0x3]
    %v43 = vld [vmem:[#allocation2] sm:$0xff]
    %v44 = vld [vmem:[#allocation2 + $0x8] sm:$0xff]
    %v45 = vld [vmem:[#allocation2 + $0x10] sm:$0xff]
    %v46 = vld [vmem:[#allocation2 + $0x18] sm:$0xff]
    %v47 = vld [vmem:[#allocation2 + $0x20] sm:$0xff]
    %v48 = vld [vmem:[#allocation2 + $0x28] sm:$0xff]
    %v49 = vld [vmem:[#allocation2 + $0x30] sm:$0xff]
    %v50 = vld [vmem:[#allocation2 + $0x38] sm:$0xff]
    %v51 = vld [vmem:[#allocation2 + $0x40] sm:$0xff]
    %v52 = vld [vmem:[#allocation2 + $0x48] sm:$0xff]
    %v53 = vld [vmem:[#allocation2 + $0x50] sm:$0xff]
    %v54 = vld [vmem:[#allocation2 + $0x58] sm:$0xff]
    %v55 = vld [vmem:[#allocation2 + $0x60] sm:$0xff]
    %v56 = vld [vmem:[#allocation2 + $0x68] sm:$0xff]
    %v57 = vld [vmem:[#allocation2 + $0x70] sm:$0xff]
    %v58 = vld [vmem:[#allocation2 + $0x78] sm:$0xff]
    %v59 = vld [vmem:[#allocation2 + $0x80] sm:$0xff]
    %v60 = vld [vmem:[#allocation2 + $0x88] sm:$0xff]
    %v61 = vld [vmem:[#allocation2 + $0x90] sm:$0xff]
    %v62 = vld [vmem:[#allocation2 + $0x98] sm:$0xff]
    %v63 = vld [vmem:[#allocation2 + $0xa0] sm:$0xff]
    %v64 = vld [vmem:[#allocation2 + $0xa8] sm:$0xff]
    %v65 = vld [vmem:[#allocation2 + $0xb0] sm:$0xff]
    %v66 = vld [vmem:[#allocation2 + $0xb8] sm:$0xff]
    %v67 = vld [vmem:[#allocation2 + $0xc0] sm:$0xff]
    %v68 = vld [vmem:[#allocation2 + $0xc8] sm:$0xff]
    %v69 = vld [vmem:[#allocation2 + $0xd0] sm:$0xff]
    %v70 = vld [vmem:[#allocation2 + $0xd8] sm:$0xff]
    %v71 = vld [vmem:[#allocation2 + $0xe0] sm:$0xff]
    %v72 = vld [vmem:[#allocation2 + $0xe8] sm:$0xff]
    %v73 = vld [vmem:[#allocation2 + $0xf0] sm:$0xff]
    %v74 = vld [vmem:[#allocation2 + $0xf8] sm:$0xff]
    %v75 = vld [vmem:[#allocation2 + $0x100] sm:$0xff]
    %v76 = vld [vmem:[#allocation2 + $0x108] sm:$0xff]
    %v77 = vld [vmem:[#allocation2 + $0x110] sm:$0xff]
    %v78 = vld [vmem:[#allocation2 + $0x118] sm:$0xff]
    %v79 = vld [vmem:[#allocation2 + $0x120] sm:$0xff]
    %v80 = vld [vmem:[#allocation2 + $0x128] sm:$0xff]
    %v81 = vld [vmem:[#allocation2 + $0x130] sm:$0xff]
    %v82 = vld [vmem:[#allocation2 + $0x138] sm:$0xff]
    %v83 = vld [vmem:[#allocation2 + $0x140] sm:$0xff]
    %v84 = vld [vmem:[#allocation2 + $0x148] sm:$0xff]
    %v85 = vld [vmem:[#allocation2 + $0x150] sm:$0xff]
    %v86 = vld [vmem:[#allocation2 + $0x158] sm:$0xff]
    %v87 = vld [vmem:[#allocation2 + $0x160] sm:$0xff]
    %v88 = vld [vmem:[#allocation2 + $0x168] sm:$0xff]
    %v89 = vld [vmem:[#allocation2 + $0x170] sm:$0xff]
    %v90 = vld [vmem:[#allocation2 + $0x178] sm:$0xff]
    %v91 = vld [vmem:[#allocation2 + $0x180] sm:$0xff]
    %v92 = vld [vmem:[#allocation2 + $0x188] sm:$0xff]
    %v93 = vld [vmem:[#allocation2 + $0x190] sm:$0xff]
    %v94 = vld [vmem:[#allocation2 + $0x198] sm:$0xff]
    %v95 = vld [vmem:[#allocation2 + $0x1a0] sm:$0xff]
    %v96 = vld [vmem:[#allocation2 + $0x1a8] sm:$0xff]
    %v97 = vld [vmem:[#allocation2 + $0x1b0] sm:$0xff]
    %v98 = vld [vmem:[#allocation2 + $0x1b8] sm:$0xff]
    %v99 = vld [vmem:[#allocation2 + $0x1c0] sm:$0xff]
    %v100 = vld [vmem:[#allocation2 + $0x1c8] sm:$0xff]
    %v101 = vld [vmem:[#allocation2 + $0x1d0] sm:$0xff]
    %v102 = vld [vmem:[#allocation2 + $0x1d8] sm:$0xff]
    %v103 = vld [vmem:[#allocation2 + $0x1e0] sm:$0xff]
    %v104 = vld [vmem:[#allocation2 + $0x1e8] sm:$0xff]
    %v105 = vld [vmem:[#allocation2 + $0x1f0] sm:$0xff]
    %v106 = vld [vmem:[#allocation2 + $0x1f8] sm:$0xff]
    %v107 = vld [vmem:[#allocation2 + $0x200] sm:$0xff]
    %v108 = vld [vmem:[#allocation2 + $0x208] sm:$0xff]
    %v109 = vld [vmem:[#allocation2 + $0x210] sm:$0xff]
    %v110 = vld [vmem:[#allocation2 + $0x218] sm:$0xff]
    %v111 = vld [vmem:[#allocation2 + $0x220] sm:$0xff]
    %v112 = vld [vmem:[#allocation2 + $0x228] sm:$0xff]
    %v113 = vld [vmem:[#allocation2 + $0x230] sm:$0xff]
    %v114 = vld [vmem:[#allocation2 + $0x238] sm:$0xff]
    %v115 = vld [vmem:[#allocation2 + $0x240] sm:$0xff]
    %v116 = vld [vmem:[#allocation2 + $0x248] sm:$0xff]
    %v117 = vld [vmem:[#allocation2 + $0x250] sm:$0xff]
    %v118 = vld [vmem:[#allocation2 + $0x258] sm:$0xff]
    %v119 = vld [vmem:[#allocation2 + $0x260] sm:$0xff]
    %v120 = vld [vmem:[#allocation2 + $0x268] sm:$0xff]
    %v121 = vld [vmem:[#allocation2 + $0x270] sm:$0xff]
    %v122 = vld [vmem:[#allocation2 + $0x278] sm:$0xff]
    %v123 = vld [vmem:[#allocation2 + $0x280] sm:$0xff]
    %v124 = vld [vmem:[#allocation2 + $0x288] sm:$0xff]
    %v125 = vld [vmem:[#allocation2 + $0x290] sm:$0xff]
    %v126 = vld [vmem:[#allocation2 + $0x298] sm:$0xff]
    %v127 = vld [vmem:[#allocation2 + $0x2a0] sm:$0xff]
    %v128 = vld [vmem:[#allocation2 + $0x2a8] sm:$0xff]
    %v129 = vld [vmem:[#allocation2 + $0x2b0] sm:$0xff]
    %v130 = vld [vmem:[#allocation2 + $0x2b8] sm:$0xff]
    %v131 = vld [vmem:[#allocation2 + $0x2c0] sm:$0xff]
    %v132 = vld [vmem:[#allocation2 + $0x2c8] sm:$0xff]
    %v133 = vld [vmem:[#allocation2 + $0x2d0] sm:$0xff]
    %v134 = vld [vmem:[#allocation2 + $0x2d8] sm:$0xff]
    %v135 = vld [vmem:[#allocation2 + $0x2e0] sm:$0xff]
    %v136 = vld [vmem:[#allocation2 + $0x2e8] sm:$0xff]
    %v137 = vld [vmem:[#allocation2 + $0x2f0] sm:$0xff]
    %v138 = vld [vmem:[#allocation2 + $0x2f8] sm:$0xff]
    %v139 = vld [vmem:[#allocation2 + $0x300] sm:$0xff]
    %v140 = vld [vmem:[#allocation2 + $0x308] sm:$0xff]
    %v141 = vld [vmem:[#allocation2 + $0x310] sm:$0xff]
    %v142 = vld [vmem:[#allocation2 + $0x318] sm:$0xff]
    %v143 = vld [vmem:[#allocation2 + $0x320] sm:$0xff]
    %v144 = vld [vmem:[#allocation2 + $0x328] sm:$0xff]
    %v145 = vld [vmem:[#allocation2 + $0x330] sm:$0xff]
    %v146 = vld [vmem:[#allocation2 + $0x338] sm:$0xff]
    %v147 = vld [vmem:[#allocation2 + $0x340] sm:$0xff]
    %v148 = vld [vmem:[#allocation2 + $0x348] sm:$0xff]
    %v149 = vld [vmem:[#allocation2 + $0x350] sm:$0xff]
    %v150 = vld [vmem:[#allocation2 + $0x358] sm:$0xff]
    %v151 = vld [vmem:[#allocation2 + $0x360] sm:$0xff]
    %v152 = vld [vmem:[#allocation2 + $0x368] sm:$0xff]
    %v153 = vld [vmem:[#allocation2 + $0x370] sm:$0xff]
    %v154 = vld [vmem:[#allocation2 + $0x378] sm:$0xff]
    %v155 = vld [vmem:[#allocation2 + $0x380] sm:$0xff]
    %v156 = vld [vmem:[#allocation2 + $0x388] sm:$0xff]
    %v157 = vld [vmem:[#allocation2 + $0x390] sm:$0xff]
    %v158 = vld [vmem:[#allocation2 + $0x398] sm:$0xff]
    %v159 = vld [vmem:[#allocation2 + $0x3a0] sm:$0xff]
    %v160 = vld [vmem:[#allocation2 + $0x3a8] sm:$0xff]
    %v161 = vld [vmem:[#allocation2 + $0x3b0] sm:$0xff]
    %v162 = vld [vmem:[#allocation2 + $0x3b8] sm:$0xff]
    %v163 = vld [vmem:[#allocation2 + $0x3c0] sm:$0xff]
    %v164 = vld [vmem:[#allocation2 + $0x3c8] sm:$0xff]
    %v165 = vld [vmem:[#allocation2 + $0x3d0] sm:$0xff]
    %v166 = vld [vmem:[#allocation2 + $0x3d8] sm:$0xff]
    %v167 = vld [vmem:[#allocation2 + $0x3e0] sm:$0xff]
    %v168 = vld [vmem:[#allocation2 + $0x3e8] sm:$0xff]
    %v169 = vld [vmem:[#allocation2 + $0x3f0] sm:$0xff]
    %v170 = vld [vmem:[#allocation2 + $0x3f8] sm:$0xff]
    %v171 = vld [vmem:[#allocation2 + $0x400] sm:$0xff]
    %v172 = vld [vmem:[#allocation2 + $0x408] sm:$0xff]
    %v173 = vld [vmem:[#allocation2 + $0x410] sm:$0xff]
    %v174 = vld [vmem:[#allocation2 + $0x418] sm:$0xff]
    %v175 = vld [vmem:[#allocation2 + $0x420] sm:$0xff]
    %v176 = vld [vmem:[#allocation2 + $0x428] sm:$0xff]
    %v177 = vld [vmem:[#allocation2 + $0x430] sm:$0xff]
    %v178 = vld [vmem:[#allocation2 + $0x438] sm:$0xff]
    %v179 = vld [vmem:[#allocation2 + $0x440] sm:$0xff]
    %v180 = vld [vmem:[#allocation2 + $0x448] sm:$0xff]
    %v181 = vld [vmem:[#allocation2 + $0x450] sm:$0xff]
    %v182 = vld [vmem:[#allocation2 + $0x458] sm:$0xff]
    %v183 = vld [vmem:[#allocation2 + $0x460] sm:$0xff]
    %v184 = vld [vmem:[#allocation2 + $0x468] sm:$0xff]
    %v185 = vld [vmem:[#allocation2 + $0x470] sm:$0xff]
    %v186 = vld [vmem:[#allocation2 + $0x478] sm:$0xff]
    %v187 = vld [vmem:[#allocation2 + $0x480] sm:$0xff]
    %v188 = vld [vmem:[#allocation2 + $0x488] sm:$0xff]
    %v189 = vld [vmem:[#allocation2 + $0x490] sm:$0xff]
    %v190 = vld [vmem:[#allocation2 + $0x498] sm:$0xff]
    %v191 = vld [vmem:[#allocation2 + $0x4a0] sm:$0xff]
    %v192 = vld [vmem:[#allocation2 + $0x4a8] sm:$0xff]
    %v193 = vld [vmem:[#allocation2 + $0x4b0] sm:$0xff]
    %v194 = vld [vmem:[#allocation2 + $0x4b8] sm:$0xff]
    %v195 = vld [vmem:[#allocation2 + $0x4c0] sm:$0xff]
    %v196 = vld [vmem:[#allocation2 + $0x4c8] sm:$0xff]
    %v197 = vld [vmem:[#allocation2 + $0x4d0] sm:$0xff]
    %v198 = vld [vmem:[#allocation2 + $0x4d8] sm:$0xff]
    %v199 = vld [vmem:[#allocation2 + $0x4e0] sm:$0xff]
    %v200 = vld [vmem:[#allocation2 + $0x4e8] sm:$0xff]
    %v201 = vld [vmem:[#allocation2 + $0x4f0] sm:$0xff]
    %v202 = vld [vmem:[#allocation2 + $0x4f8] sm:$0xff]
    %v203 = vld [vmem:[#allocation2 + $0x500] sm:$0xff]
    %v204 = vld [vmem:[#allocation2 + $0x508] sm:$0xff]
    %v205 = vld [vmem:[#allocation2 + $0x510] sm:$0xff]
    %v206 = vld [vmem:[#allocation2 + $0x518] sm:$0xff]
    %v207 = vld [vmem:[#allocation2 + $0x520] sm:$0xff]
    %v208 = vld [vmem:[#allocation2 + $0x528] sm:$0xff]
    %v209 = vld [vmem:[#allocation2 + $0x530] sm:$0xff]
    %v210 = vld [vmem:[#allocation2 + $0x538] sm:$0xff]
    %v211 = vld [vmem:[#allocation2 + $0x540] sm:$0xff]
    %v212 = vld [vmem:[#allocation2 + $0x548] sm:$0xff]
    %v213 = vld [vmem:[#allocation2 + $0x550] sm:$0xff]
    %v214 = vld [vmem:[#allocation2 + $0x558] sm:$0xff]
    %v215 = vld [vmem:[#allocation2 + $0x560] sm:$0xff]
    %v216 = vld [vmem:[#allocation2 + $0x568] sm:$0xff]
    %v217 = vld [vmem:[#allocation2 + $0x570] sm:$0xff]
    %v218 = vld [vmem:[#allocation2 + $0x578] sm:$0xff]
    %v219 = vld [vmem:[#allocation2 + $0x580] sm:$0xff]
    %v220 = vld [vmem:[#allocation2 + $0x588] sm:$0xff]
    %v221 = vld [vmem:[#allocation2 + $0x590] sm:$0xff]
    %v222 = vld [vmem:[#allocation2 + $0x598] sm:$0xff]
    %v223 = vld [vmem:[#allocation2 + $0x5a0] sm:$0xff]
    %v224 = vld [vmem:[#allocation2 + $0x5a8] sm:$0xff]
    %v225 = vld [vmem:[#allocation2 + $0x5b0] sm:$0xff]
    %v226 = vld [vmem:[#allocation2 + $0x5b8] sm:$0xff]
    %v227 = vld [vmem:[#allocation2 + $0x5c0] sm:$0xff]
    %v228 = vld [vmem:[#allocation2 + $0x5c8] sm:$0xff]
    %v229 = vld [vmem:[#allocation2 + $0x5d0] sm:$0xff]
    %v230 = vld [vmem:[#allocation2 + $0x5d8] sm:$0xff]
    %v231 = vld [vmem:[#allocation2 + $0x5e0] sm:$0xff]
    %v232 = vld [vmem:[#allocation2 + $0x5e8] sm:$0xff]
    %v233 = vld [vmem:[#allocation2 + $0x5f0] sm:$0xff]
    %v234 = vld [vmem:[#allocation2 + $0x5f8] sm:$0xff]
    %v235 = vld [vmem:[#allocation2 + $0x600] sm:$0xff]
    %v236 = vld [vmem:[#allocation2 + $0x608] sm:$0xff]
    %v237 = vld [vmem:[#allocation2 + $0x610] sm:$0xff]
    %v238 = vld [vmem:[#allocation2 + $0x618] sm:$0xff]
    %v239 = vld [vmem:[#allocation2 + $0x620] sm:$0xff]
    %v240 = vld [vmem:[#allocation2 + $0x628] sm:$0xff]
    %v241 = vld [vmem:[#allocation2 + $0x630] sm:$0xff]
    %v242 = vld [vmem:[#allocation2 + $0x638] sm:$0xff]
    %v243 = vld [vmem:[#allocation2 + $0x640] sm:$0xff]
    %v244 = vld [vmem:[#allocation2 + $0x648] sm:$0xff]
    %v245 = vld [vmem:[#allocation2 + $0x650] sm:$0xff]
    %v246 = vld [vmem:[#allocation2 + $0x658] sm:$0xff]
    %v247 = vld [vmem:[#allocation2 + $0x660] sm:$0xff]
    %v248 = vld [vmem:[#allocation2 + $0x668] sm:$0xff]
    %v249 = vld [vmem:[#allocation2 + $0x670] sm:$0xff]
    %v250 = vld [vmem:[#allocation2 + $0x678] sm:$0xff]
    %v251 = vld [vmem:[#allocation2 + $0x680] sm:$0xff]
    %v252 = vld [vmem:[#allocation2 + $0x688] sm:$0xff]
    %v253 = vld [vmem:[#allocation2 + $0x690] sm:$0xff]
    %v254 = vld [vmem:[#allocation2 + $0x698] sm:$0xff]
    %v255 = vld [vmem:[#allocation2 + $0x6a0] sm:$0xff]
    %v256 = vld [vmem:[#allocation2 + $0x6a8] sm:$0xff]
    %v257 = vld [vmem:[#allocation2 + $0x6b0] sm:$0xff]
    %v258 = vld [vmem:[#allocation2 + $0x6b8] sm:$0xff]
    %v259 = vld [vmem:[#allocation2 + $0x6c0] sm:$0xff]
    %v260 = vld [vmem:[#allocation2 + $0x6c8] sm:$0xff]
    %v261 = vld [vmem:[#allocation2 + $0x6d0] sm:$0xff]
    %v262 = vld [vmem:[#allocation2 + $0x6d8] sm:$0xff]
    %v263 = vld [vmem:[#allocation2 + $0x6e0] sm:$0xff]
    %v264 = vld [vmem:[#allocation2 + $0x6e8] sm:$0xff]
    %v265 = vld [vmem:[#allocation2 + $0x6f0] sm:$0xff]
    %v266 = vld [vmem:[#allocation2 + $0x6f8] sm:$0xff]
    %v267 = vld [vmem:[#allocation2 + $0x700] sm:$0xff]
    %v268 = vld [vmem:[#allocation2 + $0x708] sm:$0xff]
    %v269 = vld [vmem:[#allocation2 + $0x710] sm:$0xff]
    %v270 = vld [vmem:[#allocation2 + $0x718] sm:$0xff]
    %v271 = vld [vmem:[#allocation2 + $0x720] sm:$0xff]
    %v272 = vld [vmem:[#allocation2 + $0x728] sm:$0xff]
    %v273 = vld [vmem:[#allocation2 + $0x730] sm:$0xff]
    %v274 = vld [vmem:[#allocation2 + $0x738] sm:$0xff]
    %v275 = vld [vmem:[#allocation2 + $0x740] sm:$0xff]
    %v276 = vld [vmem:[#allocation2 + $0x748] sm:$0xff]
    %v277 = vld [vmem:[#allocation2 + $0x750] sm:$0xff]
    %v278 = vld [vmem:[#allocation2 + $0x758] sm:$0xff]
    %v279 = vld [vmem:[#allocation2 + $0x760] sm:$0xff]
    %v280 = vld [vmem:[#allocation2 + $0x768] sm:$0xff]
    %v281 = vld [vmem:[#allocation2 + $0x770] sm:$0xff]
    %v282 = vld [vmem:[#allocation2 + $0x778] sm:$0xff]
    %v283 = vld [vmem:[#allocation2 + $0x780] sm:$0xff]
    %v284 = vld [vmem:[#allocation2 + $0x788] sm:$0xff]
    %v285 = vld [vmem:[#allocation2 + $0x790] sm:$0xff]
    %v286 = vld [vmem:[#allocation2 + $0x798] sm:$0xff]
    %v287 = vld [vmem:[#allocation2 + $0x7a0] sm:$0xff]
    %v288 = vld [vmem:[#allocation2 + $0x7a8] sm:$0xff]
    %v289 = vld [vmem:[#allocation2 + $0x7b0] sm:$0xff]
    %v290 = vld [vmem:[#allocation2 + $0x7b8] sm:$0xff]
    %v291 = vld [vmem:[#allocation2 + $0x7c0] sm:$0xff]
    %v292 = vld [vmem:[#allocation2 + $0x7c8] sm:$0xff]
    %v293 = vld [vmem:[#allocation2 + $0x7d0] sm:$0xff]
    %v294 = vld [vmem:[#allocation2 + $0x7d8] sm:$0xff]
    %v295 = vld [vmem:[#allocation2 + $0x7e0] sm:$0xff]
    %v296 = vld [vmem:[#allocation2 + $0x7e8] sm:$0xff]
    %v297 = vld [vmem:[#allocation2 + $0x7f0] sm:$0xff]
    %v298 = vld [vmem:[#allocation2 + $0x7f8] sm:$0xff]
    %v299 = vld [vmem:[#allocation2 + $0x800] sm:$0xff]
    %v300 = vld [vmem:[#allocation2 + $0x808] sm:$0xff]
    %v301 = vld [vmem:[#allocation2 + $0x810] sm:$0xff]
    %v302 = vld [vmem:[#allocation2 + $0x818] sm:$0xff]
    %v303 = vld [vmem:[#allocation2 + $0x820] sm:$0xff]
    %v304 = vld [vmem:[#allocation2 + $0x828] sm:$0xff]
    %v305 = vld [vmem:[#allocation2 + $0x830] sm:$0xff]
    %v306 = vld [vmem:[#allocation2 + $0x838] sm:$0xff]
    %v307 = vld [vmem:[#allocation2 + $0x840] sm:$0xff]
    %v308 = vld [vmem:[#allocation2 + $0x848] sm:$0xff]
    %v309 = vld [vmem:[#allocation2 + $0x850] sm:$0xff]
    %v310 = vld [vmem:[#allocation2 + $0x858] sm:$0xff]
    %v311 = vld [vmem:[#allocation2 + $0x860] sm:$0xff]
    %v312 = vld [vmem:[#allocation2 + $0x868] sm:$0xff]
    %v313 = vld [vmem:[#allocation2 + $0x870] sm:$0xff]
    %v314 = vld [vmem:[#allocation2 + $0x878] sm:$0xff]
    %v315 = vld [vmem:[#allocation2 + $0x880] sm:$0xff]
    %v316 = vld [vmem:[#allocation2 + $0x888] sm:$0xff]
    %v317 = vld [vmem:[#allocation2 + $0x890] sm:$0xff]
    %v318 = vld [vmem:[#allocation2 + $0x898] sm:$0xff]
    %v319 = vld [vmem:[#allocation2 + $0x8a0] sm:$0xff]
    %v320 = vld [vmem:[#allocation2 + $0x8a8] sm:$0xff]
    %v321 = vld [vmem:[#allocation2 + $0x8b0] sm:$0xff]
    %v322 = vld [vmem:[#allocation2 + $0x8b8] sm:$0xff]
    %v323 = vld [vmem:[#allocation2 + $0x8c0] sm:$0xff]
    %v324 = vld [vmem:[#allocation2 + $0x8c8] sm:$0xff]
    %v325 = vld [vmem:[#allocation2 + $0x8d0] sm:$0xff]
    %v326 = vld [vmem:[#allocation2 + $0x8d8] sm:$0xff]
    %v327 = vld [vmem:[#allocation2 + $0x8e0] sm:$0xff]
    %v328 = vld [vmem:[#allocation2 + $0x8e8] sm:$0xff]
    %v329 = vld [vmem:[#allocation2 + $0x8f0] sm:$0xff]
    %v330 = vld [vmem:[#allocation2 + $0x8f8] sm:$0xff]
    %v331 = vld [vmem:[#allocation2 + $0x900] sm:$0xff]
    %v332 = vld [vmem:[#allocation2 + $0x908] sm:$0xff]
    %v333 = vld [vmem:[#allocation2 + $0x910] sm:$0xff]
    %v334 = vld [vmem:[#allocation2 + $0x918] sm:$0xff]
    %v335 = vld [vmem:[#allocation2 + $0x920] sm:$0xff]
    %v336 = vld [vmem:[#allocation2 + $0x928] sm:$0xff]
    %v337 = vld [vmem:[#allocation2 + $0x930] sm:$0xff]
    %v338 = vld [vmem:[#allocation2 + $0x938] sm:$0xff]
    %v339 = vld [vmem:[#allocation2 + $0x940] sm:$0xff]
    %v340 = vld [vmem:[#allocation2 + $0x948] sm:$0xff]
    %v341 = vld [vmem:[#allocation2 + $0x950] sm:$0xff]
    %v342 = vld [vmem:[#allocation2 + $0x958] sm:$0xff]
    %v343 = vld [vmem:[#allocation2 + $0x960] sm:$0xff]
    %v344 = vld [vmem:[#allocation2 + $0x968] sm:$0xff]
    %v345 = vld [vmem:[#allocation2 + $0x970] sm:$0xff]
    %v346 = vld [vmem:[#allocation2 + $0x978] sm:$0xff]
    %v347 = vld [vmem:[#allocation2 + $0x980] sm:$0xff]
    %v348 = vld [vmem:[#allocation2 + $0x988] sm:$0xff]
    %v349 = vld [vmem:[#allocation2 + $0x990] sm:$0xff]
    %v350 = vld [vmem:[#allocation2 + $0x998] sm:$0xff]
    %v351 = vld [vmem:[#allocation2 + $0x9a0] sm:$0xff]
    %v352 = vld [vmem:[#allocation2 + $0x9a8] sm:$0xff]
    %v353 = vld [vmem:[#allocation2 + $0x9b0] sm:$0xff]
    %v354 = vld [vmem:[#allocation2 + $0x9b8] sm:$0xff]
    %v355 = vld [vmem:[#allocation2 + $0x9c0] sm:$0xff]
    %v356 = vld [vmem:[#allocation2 + $0x9c8] sm:$0xff]
    %v357 = vld [vmem:[#allocation2 + $0x9d0] sm:$0xff]
    %v358 = vld [vmem:[#allocation2 + $0x9d8] sm:$0xff]
    %v359 = vld [vmem:[#allocation2 + $0x9e0] sm:$0xff]
    %v360 = vld [vmem:[#allocation2 + $0x9e8] sm:$0xff]
    %v361 = vld [vmem:[#allocation2 + $0x9f0] sm:$0xff]
    %v362 = vld [vmem:[#allocation2 + $0x9f8] sm:$0xff]
    %v363 = vld [vmem:[#allocation2 + $0xa00] sm:$0xff]
    %v364 = vld [vmem:[#allocation2 + $0xa08] sm:$0xff]
    %v365 = vld [vmem:[#allocation2 + $0xa10] sm:$0xff]
    %v366 = vld [vmem:[#allocation2 + $0xa18] sm:$0xff]
    %v367 = vld [vmem:[#allocation2 + $0xa20] sm:$0xff]
    %v368 = vld [vmem:[#allocation2 + $0xa28] sm:$0xff]
    %v369 = vld [vmem:[#allocation2 + $0xa30] sm:$0xff]
    %v370 = vld [vmem:[#allocation2 + $0xa38] sm:$0xff]
    %v371 = vld [vmem:[#allocation2 + $0xa40] sm:$0xff]
    %v372 = vld [vmem:[#allocation2 + $0xa48] sm:$0xff]
    %v373 = vld [vmem:[#allocation2 + $0xa50] sm:$0xff]
    %v374 = vld [vmem:[#allocation2 + $0xa58] sm:$0xff]
    %v375 = vld [vmem:[#allocation2 + $0xa60] sm:$0xff]
    %v376 = vld [vmem:[#allocation2 + $0xa68] sm:$0xff]
    %v377 = vld [vmem:[#allocation2 + $0xa70] sm:$0xff]
    %v378 = vld [vmem:[#allocation2 + $0xa78] sm:$0xff]
    %v379 = vld [vmem:[#allocation2 + $0xa80] sm:$0xff]
    %v380 = vld [vmem:[#allocation2 + $0xa88] sm:$0xff]
    %v381 = vld [vmem:[#allocation2 + $0xa90] sm:$0xff]
    %v382 = vld [vmem:[#allocation2 + $0xa98] sm:$0xff]
    %v383 = vld [vmem:[#allocation2 + $0xaa0] sm:$0xff]
    %v384 = vld [vmem:[#allocation2 + $0xaa8] sm:$0xff]
    %v385 = vld [vmem:[#allocation2 + $0xab0] sm:$0xff]
    %v386 = vld [vmem:[#allocation2 + $0xab8] sm:$0xff]
    %v387 = vld [vmem:[#allocation2 + $0xac0] sm:$0xff]
    %v388 = vld [vmem:[#allocation2 + $0xac8] sm:$0xff]
    %v389 = vld [vmem:[#allocation2 + $0xad0] sm:$0xff]
    %v390 = vld [vmem:[#allocation2 + $0xad8] sm:$0xff]
    %v391 = vld [vmem:[#allocation2 + $0xae0] sm:$0xff]
    %v392 = vld [vmem:[#allocation2 + $0xae8] sm:$0xff]
    %v393 = vld [vmem:[#allocation2 + $0xaf0] sm:$0xff]
    %v394 = vld [vmem:[#allocation2 + $0xaf8] sm:$0xff]
    %v395 = vld [vmem:[#allocation2 + $0xb00] sm:$0xff]
    %v396 = vld [vmem:[#allocation2 + $0xb08] sm:$0xff]
    %v397 = vld [vmem:[#allocation2 + $0xb10] sm:$0xff]
    %v398 = vld [vmem:[#allocation2 + $0xb18] sm:$0xff]
    %v399 = vld [vmem:[#allocation2 + $0xb20] sm:$0xff]
    %v400 = vld [vmem:[#allocation2 + $0xb28] sm:$0xff]
    %v401 = vld [vmem:[#allocation2 + $0xb30] sm:$0xff]
    %v402 = vld [vmem:[#allocation2 + $0xb38] sm:$0xff]
    %v403 = vld [vmem:[#allocation2 + $0xb40] sm:$0xff]
    %v404 = vld [vmem:[#allocation2 + $0xb48] sm:$0xff]
    %v405 = vld [vmem:[#allocation2 + $0xb50] sm:$0xff]
    %v406 = vld [vmem:[#allocation2 + $0xb58] sm:$0xff]
    %v407 = vld [vmem:[#allocation2 + $0xb60] sm:$0xff]
    %v408 = vld [vmem:[#allocation2 + $0xb68] sm:$0xff]
    %v409 = vld [vmem:[#allocation2 + $0xb70] sm:$0xff]
    %v410 = vld [vmem:[#allocation2 + $0xb78] sm:$0xff]
    %v411 = vld [vmem:[#allocation2 + $0xb80] sm:$0xff]
    %v412 = vld [vmem:[#allocation2 + $0xb88] sm:$0xff]
    %v413 = vld [vmem:[#allocation2 + $0xb90] sm:$0xff]
    %v414 = vld [vmem:[#allocation2 + $0xb98] sm:$0xff]
    %v415 = vld [vmem:[#allocation2 + $0xba0] sm:$0xff]
    %v416 = vld [vmem:[#allocation2 + $0xba8] sm:$0xff]
    %v417 = vld [vmem:[#allocation2 + $0xbb0] sm:$0xff]
    %v418 = vld [vmem:[#allocation2 + $0xbb8] sm:$0xff]
    %v419 = vld [vmem:[#allocation2 + $0xbc0] sm:$0xff]
    %v420 = vld [vmem:[#allocation2 + $0xbc8] sm:$0xff]
    %v421 = vld [vmem:[#allocation2 + $0xbd0] sm:$0xff]
    %v422 = vld [vmem:[#allocation2 + $0xbd8] sm:$0xff]
    %v423 = vld [vmem:[#allocation2 + $0xbe0] sm:$0xff]
    %v424 = vld [vmem:[#allocation2 + $0xbe8] sm:$0xff]
    %v425 = vld [vmem:[#allocation2 + $0xbf0] sm:$0xff]
    %v426 = vld [vmem:[#allocation2 + $0xbf8] sm:$0xff]
    %v427 = vld [vmem:[#allocation2 + $0xc00] sm:$0xff]
    %v428 = vld [vmem:[#allocation2 + $0xc08] sm:$0xff]
    %v429 = vld [vmem:[#allocation2 + $0xc10] sm:$0xff]
    %v430 = vld [vmem:[#allocation2 + $0xc18] sm:$0xff]
    %v431 = vld [vmem:[#allocation2 + $0xc20] sm:$0xff]
    %v432 = vld [vmem:[#allocation2 + $0xc28] sm:$0xff]
    %v433 = vld [vmem:[#allocation2 + $0xc30] sm:$0xff]
    %v434 = vld [vmem:[#allocation2 + $0xc38] sm:$0xff]
    %v435 = vld [vmem:[#allocation2 + $0xc40] sm:$0xff]
    %v436 = vld [vmem:[#allocation2 + $0xc48] sm:$0xff]
    %v437 = vld [vmem:[#allocation2 + $0xc50] sm:$0xff]
    %v438 = vld [vmem:[#allocation2 + $0xc58] sm:$0xff]
    %v439 = vld [vmem:[#allocation2 + $0xc60] sm:$0xff]
    %v440 = vld [vmem:[#allocation2 + $0xc68] sm:$0xff]
    %v441 = vld [vmem:[#allocation2 + $0xc70] sm:$0xff]
    %v442 = vld [vmem:[#allocation2 + $0xc78] sm:$0xff]
    %v443 = vld [vmem:[#allocation2 + $0xc80] sm:$0xff]
    %v444 = vld [vmem:[#allocation2 + $0xc88] sm:$0xff]
    %v445 = vld [vmem:[#allocation2 + $0xc90] sm:$0xff]
    %v446 = vld [vmem:[#allocation2 + $0xc98] sm:$0xff]
    %v447 = vld [vmem:[#allocation2 + $0xca0] sm:$0xff]
    %v448 = vld [vmem:[#allocation2 + $0xca8] sm:$0xff]
    %v449 = vld [vmem:[#allocation2 + $0xcb0] sm:$0xff]
    %v450 = vld [vmem:[#allocation2 + $0xcb8] sm:$0xff]
    %v451 = vld [vmem:[#allocation2 + $0xcc0] sm:$0xff]
    %v452 = vld [vmem:[#allocation2 + $0xcc8] sm:$0xff]
    %v453 = vld [vmem:[#allocation2 + $0xcd0] sm:$0xff]
    %v454 = vld [vmem:[#allocation2 + $0xcd8] sm:$0xff]
    %v455 = vld [vmem:[#allocation2 + $0xce0] sm:$0xff]
    %v456 = vld [vmem:[#allocation2 + $0xce8] sm:$0xff]
    %v457 = vld [vmem:[#allocation2 + $0xcf0] sm:$0xff]
    %v458 = vld [vmem:[#allocation2 + $0xcf8] sm:$0xff]
    %v459 = vld [vmem:[#allocation2 + $0xd00] sm:$0xff]
    %v460 = vld [vmem:[#allocation2 + $0xd08] sm:$0xff]
    %v461 = vld [vmem:[#allocation2 + $0xd10] sm:$0xff]
    %v462 = vld [vmem:[#allocation2 + $0xd18] sm:$0xff]
    %v463 = vld [vmem:[#allocation2 + $0xd20] sm:$0xff]
    %v464 = vld [vmem:[#allocation2 + $0xd28] sm:$0xff]
    %v465 = vld [vmem:[#allocation2 + $0xd30] sm:$0xff]
    %v466 = vld [vmem:[#allocation2 + $0xd38] sm:$0xff]
    %v467 = vld [vmem:[#allocation2 + $0xd40] sm:$0xff]
    %v468 = vld [vmem:[#allocation2 + $0xd48] sm:$0xff]
    %v469 = vld [vmem:[#allocation2 + $0xd50] sm:$0xff]
    %v470 = vld [vmem:[#allocation2 + $0xd58] sm:$0xff]
    %v471 = vld [vmem:[#allocation2 + $0xd60] sm:$0xff]
    %v472 = vld [vmem:[#allocation2 + $0xd68] sm:$0xff]
    %v473 = vld [vmem:[#allocation2 + $0xd70] sm:$0xff]
    %v474 = vld [vmem:[#allocation2 + $0xd78] sm:$0xff]
    %v475 = vld [vmem:[#allocation2 + $0xd80] sm:$0xff]
    %v476 = vld [vmem:[#allocation2 + $0xd88] sm:$0xff]
    %v477 = vld [vmem:[#allocation2 + $0xd90] sm:$0xff]
    %v478 = vld [vmem:[#allocation2 + $0xd98] sm:$0xff]
    %v479 = vld [vmem:[#allocation2 + $0xda0] sm:$0xff]
    %v480 = vld [vmem:[#allocation2 + $0xda8] sm:$0xff]
    %v481 = vld [vmem:[#allocation2 + $0xdb0] sm:$0xff]
    %v482 = vld [vmem:[#allocation2 + $0xdb8] sm:$0xff]
    %v483 = vld [vmem:[#allocation2 + $0xdc0] sm:$0xff]
    %v484 = vld [vmem:[#allocation2 + $0xdc8] sm:$0xff]
    %v485 = vld [vmem:[#allocation2 + $0xdd0] sm:$0xff]
    %v486 = vld [vmem:[#allocation2 + $0xdd8] sm:$0xff]
    %v487 = vld [vmem:[#allocation2 + $0xde0] sm:$0xff]
    %v488 = vld [vmem:[#allocation2 + $0xde8] sm:$0xff]
    %v489 = vld [vmem:[#allocation2 + $0xdf0] sm:$0xff]
    %v490 = vld [vmem:[#allocation2 + $0xdf8] sm:$0xff]
    %v491 = vld [vmem:[#allocation2 + $0xe00] sm:$0xff]
    %v492 = vld [vmem:[#allocation2 + $0xe08] sm:$0xff]
    %v493 = vld [vmem:[#allocation2 + $0xe10] sm:$0xff]
    %v494 = vld [vmem:[#allocation2 + $0xe18] sm:$0xff]
    %v495 = vld [vmem:[#allocation2 + $0xe20] sm:$0xff]
    %v496 = vld [vmem:[#allocation2 + $0xe28] sm:$0xff]
    %v497 = vld [vmem:[#allocation2 + $0xe30] sm:$0xff]
    %v498 = vld [vmem:[#allocation2 + $0xe38] sm:$0xff]
    %v499 = vld [vmem:[#allocation2 + $0xe40] sm:$0xff]
    %v500 = vld [vmem:[#allocation2 + $0xe48] sm:$0xff]
    %v501 = vld [vmem:[#allocation2 + $0xe50] sm:$0xff]
    %v502 = vld [vmem:[#allocation2 + $0xe58] sm:$0xff]
    %v503 = vld [vmem:[#allocation2 + $0xe60] sm:$0xff]
    %v504 = vld [vmem:[#allocation2 + $0xe68] sm:$0xff]
    %v505 = vld [vmem:[#allocation2 + $0xe70] sm:$0xff]
    %v506 = vld [vmem:[#allocation2 + $0xe78] sm:$0xff]
    %v507 = vld [vmem:[#allocation2 + $0xe80] sm:$0xff]
    %v508 = vld [vmem:[#allocation2 + $0xe88] sm:$0xff]
    %v509 = vld [vmem:[#allocation2 + $0xe90] sm:$0xff]
    %v510 = vld [vmem:[#allocation2 + $0xe98] sm:$0xff]
    %v511 = vld [vmem:[#allocation2 + $0xea0] sm:$0xff]
    %v512 = vld [vmem:[#allocation2 + $0xea8] sm:$0xff]
    %v513 = vld [vmem:[#allocation2 + $0xeb0] sm:$0xff]
    %v514 = vld [vmem:[#allocation2 + $0xeb8] sm:$0xff]
    %v515 = vld [vmem:[#allocation2 + $0xec0] sm:$0xff]
    %v516 = vld [vmem:[#allocation2 + $0xec8] sm:$0xff]
    %v517 = vld [vmem:[#allocation2 + $0xed0] sm:$0xff]
    %v518 = vld [vmem:[#allocation2 + $0xed8] sm:$0xff]
    %v519 = vld [vmem:[#allocation2 + $0xee0] sm:$0xff]
    %v520 = vld [vmem:[#allocation2 + $0xee8] sm:$0xff]
    %v521 = vld [vmem:[#allocation2 + $0xef0] sm:$0xff]
    %v522 = vld [vmem:[#allocation2 + $0xef8] sm:$0xff]
    %v523 = vld [vmem:[#allocation2 + $0xf00] sm:$0xff]
    %v524 = vld [vmem:[#allocation2 + $0xf08] sm:$0xff]
    %v525 = vld [vmem:[#allocation2 + $0xf10] sm:$0xff]
    %v526 = vld [vmem:[#allocation2 + $0xf18] sm:$0xff]
    %v527 = vld [vmem:[#allocation2 + $0xf20] sm:$0xff]
    %v528 = vld [vmem:[#allocation2 + $0xf28] sm:$0xff]
    %v529 = vld [vmem:[#allocation2 + $0xf30] sm:$0xff]
    %v530 = vld [vmem:[#allocation2 + $0xf38] sm:$0xff]
    %v531 = vld [vmem:[#allocation2 + $0xf40] sm:$0xff]
    %v532 = vld [vmem:[#allocation2 + $0xf48] sm:$0xff]
    %v533 = vld [vmem:[#allocation2 + $0xf50] sm:$0xff]
    %v534 = vld [vmem:[#allocation2 + $0xf58] sm:$0xff]
    %v535 = vld [vmem:[#allocation2 + $0xf60] sm:$0xff]
    %v536 = vld [vmem:[#allocation2 + $0xf68] sm:$0xff]
    %v537 = vld [vmem:[#allocation2 + $0xf70] sm:$0xff]
    %v538 = vld [vmem:[#allocation2 + $0xf78] sm:$0xff]
    %v539 = vld [vmem:[#allocation2 + $0xf80] sm:$0xff]
    %v540 = vld [vmem:[#allocation2 + $0xf88] sm:$0xff]
    %v541 = vld [vmem:[#allocation2 + $0xf90] sm:$0xff]
    %v542 = vld [vmem:[#allocation2 + $0xf98] sm:$0xff]
    %v543 = vld [vmem:[#allocation2 + $0xfa0] sm:$0xff]
    %v544 = vld [vmem:[#allocation2 + $0xfa8] sm:$0xff]
    %v545 = vld [vmem:[#allocation2 + $0xfb0] sm:$0xff]
    %v546 = vld [vmem:[#allocation2 + $0xfb8] sm:$0xff]
    %v547 = vld [vmem:[#allocation2 + $0xfc0] sm:$0xff]
    %v548 = vld [vmem:[#allocation2 + $0xfc8] sm:$0xff]
    %v549 = vld [vmem:[#allocation2 + $0xfd0] sm:$0xff]
    %v550 = vld [vmem:[#allocation2 + $0xfd8] sm:$0xff]
    %v551 = vld [vmem:[#allocation2 + $0xfe0] sm:$0xff]
    %v552 = vld [vmem:[#allocation2 + $0xfe8] sm:$0xff]
    %v553 = vld [vmem:[#allocation2 + $0xff0] sm:$0xff]
    %v554 = vld [vmem:[#allocation2 + $0xff8] sm:$0xff]
    %v555 = vld [vmem:[#allocation2 + $0x1000] sm:$0xff]
    %v556 = vld [vmem:[#allocation2 + $0x1008] sm:$0xff]
    %v557 = vld [vmem:[#allocation2 + $0x1010] sm:$0xff]
    %v558 = vld [vmem:[#allocation2 + $0x1018] sm:$0xff]
    %v559 = vld [vmem:[#allocation2 + $0x1020] sm:$0xff]
    %v560 = vld [vmem:[#allocation2 + $0x1028] sm:$0xff]
    %v561 = vld [vmem:[#allocation2 + $0x1030] sm:$0xff]
    %v562 = vld [vmem:[#allocation2 + $0x1038] sm:$0xff]
    %v563 = vld [vmem:[#allocation2 + $0x1040] sm:$0xff]
    %v564 = vld [vmem:[#allocation2 + $0x1048] sm:$0xff]
    %v565 = vld [vmem:[#allocation2 + $0x1050] sm:$0xff]
    %v566 = vld [vmem:[#allocation2 + $0x1058] sm:$0xff]
    %v567 = vld [vmem:[#allocation2 + $0x1060] sm:$0xff]
    %v568 = vld [vmem:[#allocation2 + $0x1068] sm:$0xff]
    %v569 = vld [vmem:[#allocation2 + $0x1070] sm:$0xff]
    %v570 = vld [vmem:[#allocation2 + $0x1078] sm:$0xff]
    %v571 = vld [vmem:[#allocation2 + $0x1080] sm:$0xff]
    %v572 = vld [vmem:[#allocation2 + $0x1088] sm:$0xff]
    %v573 = vld [vmem:[#allocation2 + $0x1090] sm:$0xff]
    %v574 = vld [vmem:[#allocation2 + $0x1098] sm:$0xff]
    %v575 = vld [vmem:[#allocation2 + $0x10a0] sm:$0xff]
    %v576 = vld [vmem:[#allocation2 + $0x10a8] sm:$0xff]
    %v577 = vld [vmem:[#allocation2 + $0x10b0] sm:$0xff]
    %v578 = vld [vmem:[#allocation2 + $0x10b8] sm:$0xff]
    %v579 = vld [vmem:[#allocation2 + $0x10c0] sm:$0xff]
    %v580 = vld [vmem:[#allocation2 + $0x10c8] sm:$0xff]
    %v581 = vld [vmem:[#allocation2 + $0x10d0] sm:$0xff]
    %v582 = vld [vmem:[#allocation2 + $0x10d8] sm:$0xff]
    %v583 = vld [vmem:[#allocation2 + $0x10e0] sm:$0xff]
    %v584 = vld [vmem:[#allocation2 + $0x10e8] sm:$0xff]
    %v585 = vld [vmem:[#allocation2 + $0x10f0] sm:$0xff]
    %v586 = vld [vmem:[#allocation2 + $0x10f8] sm:$0xff]
    %v587 = vld [vmem:[#allocation2 + $0x1100] sm:$0xff]
    %v588 = vld [vmem:[#allocation2 + $0x1108] sm:$0xff]
    %v589 = vld [vmem:[#allocation2 + $0x1110] sm:$0xff]
    %v590 = vld [vmem:[#allocation2 + $0x1118] sm:$0xff]
    %v591 = vld [vmem:[#allocation2 + $0x1120] sm:$0xff]
    %v592 = vld [vmem:[#allocation2 + $0x1128] sm:$0xff]
    %v593 = vld [vmem:[#allocation2 + $0x1130] sm:$0xff]
    %v594 = vld [vmem:[#allocation2 + $0x1138] sm:$0xff]
    %v595 = vld [vmem:[#allocation2 + $0x1140] sm:$0xff]
    %v596 = vld [vmem:[#allocation2 + $0x1148] sm:$0xff]
    %v597 = vld [vmem:[#allocation2 + $0x1150] sm:$0xff]
    %v598 = vld [vmem:[#allocation2 + $0x1158] sm:$0xff]
    %v599 = vld [vmem:[#allocation2 + $0x1160] sm:$0xff]
    %v600 = vld [vmem:[#allocation2 + $0x1168] sm:$0xff]
    %v601 = vld [vmem:[#allocation2 + $0x1170] sm:$0xff]
    %v602 = vld [vmem:[#allocation2 + $0x1178] sm:$0xff]
    %v603 = vld [vmem:[#allocation2 + $0x1180] sm:$0xff]
    %v604 = vld [vmem:[#allocation2 + $0x1188] sm:$0xff]
    %v605 = vld [vmem:[#allocation2 + $0x1190] sm:$0xff]
    %v606 = vld [vmem:[#allocation2 + $0x1198] sm:$0xff]
    %v607 = vld [vmem:[#allocation2 + $0x11a0] sm:$0xff]
    %v608 = vld [vmem:[#allocation2 + $0x11a8] sm:$0xff]
    %v609 = vld [vmem:[#allocation2 + $0x11b0] sm:$0xff]
    %v610 = vld [vmem:[#allocation2 + $0x11b8] sm:$0xff]
    %v611 = vld [vmem:[#allocation2 + $0x11c0] sm:$0xff]
    %v612 = vld [vmem:[#allocation2 + $0x11c8] sm:$0xff]
    %v613 = vld [vmem:[#allocation2 + $0x11d0] sm:$0xff]
    %v614 = vld [vmem:[#allocation2 + $0x11d8] sm:$0xff]
    %v615 = vld [vmem:[#allocation2 + $0x11e0] sm:$0xff]
    %v616 = vld [vmem:[#allocation2 + $0x11e8] sm:$0xff]
    %v617 = vld [vmem:[#allocation2 + $0x11f0] sm:$0xff]
    %v618 = vld [vmem:[#allocation2 + $0x11f8] sm:$0xff]
    %v619 = vld [vmem:[#allocation2 + $0x1200] sm:$0xff]
    %v620 = vld [vmem:[#allocation2 + $0x1208] sm:$0xff]
    %v621 = vld [vmem:[#allocation2 + $0x1210] sm:$0xff]
    %v622 = vld [vmem:[#allocation2 + $0x1218] sm:$0xff]
    %v623 = vld [vmem:[#allocation2 + $0x1220] sm:$0xff]
    %v624 = vld [vmem:[#allocation2 + $0x1228] sm:$0xff]
    %v625 = vld [vmem:[#allocation2 + $0x1230] sm:$0xff]
    %v626 = vld [vmem:[#allocation2 + $0x1238] sm:$0xff]
    %v627 = vld [vmem:[#allocation2 + $0x1240] sm:$0xff]
    %v628 = vld [vmem:[#allocation2 + $0x1248] sm:$0xff]
    %v629 = vld [vmem:[#allocation2 + $0x1250] sm:$0xff]
    %v630 = vld [vmem:[#allocation2 + $0x1258] sm:$0xff]
    %v631 = vld [vmem:[#allocation2 + $0x1260] sm:$0xff]
    %v632 = vld [vmem:[#allocation2 + $0x1268] sm:$0xff]
    %v633 = vld [vmem:[#allocation2 + $0x1270] sm:$0xff]
    %v634 = vld [vmem:[#allocation2 + $0x1278] sm:$0xff]
    %v635 = vld [vmem:[#allocation2 + $0x1280] sm:$0xff]
    %v636 = vld [vmem:[#allocation2 + $0x1288] sm:$0xff]
    %v637 = vld [vmem:[#allocation2 + $0x1290] sm:$0xff]
    %v638 = vld [vmem:[#allocation2 + $0x1298] sm:$0xff]
    %v639 = vld [vmem:[#allocation2 + $0x12a0] sm:$0xff]
    %v640 = vld [vmem:[#allocation2 + $0x12a8] sm:$0xff]
    %v641 = vld [vmem:[#allocation2 + $0x12b0] sm:$0xff]
    %v642 = vld [vmem:[#allocation2 + $0x12b8] sm:$0xff]
    %v643 = vld [vmem:[#allocation2 + $0x12c0] sm:$0xff]
    %v644 = vld [vmem:[#allocation2 + $0x12c8] sm:$0xff]
    %v645 = vld [vmem:[#allocation2 + $0x12d0] sm:$0xff]
    %v646 = vld [vmem:[#allocation2 + $0x12d8] sm:$0xff]
    %v647 = vld [vmem:[#allocation2 + $0x12e0] sm:$0xff]
    %v648 = vld [vmem:[#allocation2 + $0x12e8] sm:$0xff]
    %v649 = vld [vmem:[#allocation2 + $0x12f0] sm:$0xff]
    %v650 = vld [vmem:[#allocation2 + $0x12f8] sm:$0xff]
    %v651 = vld [vmem:[#allocation2 + $0x1300] sm:$0xff]
    %v652 = vld [vmem:[#allocation2 + $0x1308] sm:$0xff]
    %v653 = vld [vmem:[#allocation2 + $0x1310] sm:$0xff]
    %v654 = vld [vmem:[#allocation2 + $0x1318] sm:$0xff]
    %v655 = vld [vmem:[#allocation2 + $0x1320] sm:$0xff]
    %v656 = vld [vmem:[#allocation2 + $0x1328] sm:$0xff]
    %v657 = vld [vmem:[#allocation2 + $0x1330] sm:$0xff]
    %v658 = vld [vmem:[#allocation2 + $0x1338] sm:$0xff]
    %v659 = vld [vmem:[#allocation2 + $0x1340] sm:$0xff]
    %v660 = vld [vmem:[#allocation2 + $0x1348] sm:$0xff]
    %v661 = vld [vmem:[#allocation2 + $0x1350] sm:$0xff]
    %v662 = vld [vmem:[#allocation2 + $0x1358] sm:$0xff]
    %v663 = vld [vmem:[#allocation2 + $0x1360] sm:$0xff]
    %v664 = vld [vmem:[#allocation2 + $0x1368] sm:$0xff]
    %v665 = vld [vmem:[#allocation2 + $0x1370] sm:$0xff]
    %v666 = vld [vmem:[#allocation2 + $0x1378] sm:$0xff]
    %v667 = vld [vmem:[#allocation2 + $0x1380] sm:$0xff]
    %v668 = vld [vmem:[#allocation2 + $0x1388] sm:$0xff]
    %v669 = vld [vmem:[#allocation2 + $0x1390] sm:$0xff]
    %v670 = vld [vmem:[#allocation2 + $0x1398] sm:$0xff]
    %v671 = vld [vmem:[#allocation2 + $0x13a0] sm:$0xff]
    %v672 = vld [vmem:[#allocation2 + $0x13a8] sm:$0xff]
    %v673 = vld [vmem:[#allocation2 + $0x13b0] sm:$0xff]
    %v674 = vld [vmem:[#allocation2 + $0x13b8] sm:$0xff]
    %v675 = vld [vmem:[#allocation2 + $0x13c0] sm:$0xff]
    %v676 = vld [vmem:[#allocation2 + $0x13c8] sm:$0xff]
    %v677 = vld [vmem:[#allocation2 + $0x13d0] sm:$0xff]
    %v678 = vld [vmem:[#allocation2 + $0x13d8] sm:$0xff]
    %v679 = vld [vmem:[#allocation2 + $0x13e0] sm:$0xff]
    %v680 = vld [vmem:[#allocation2 + $0x13e8] sm:$0xff]
    %v681 = vld [vmem:[#allocation2 + $0x13f0] sm:$0xff]
    %v682 = vld [vmem:[#allocation2 + $0x13f8] sm:$0xff]
    %v683 = vld [vmem:[#allocation2 + $0x1400] sm:$0xff]
    %v684 = vld [vmem:[#allocation2 + $0x1408] sm:$0xff]
    %v685 = vld [vmem:[#allocation2 + $0x1410] sm:$0xff]
    %v686 = vld [vmem:[#allocation2 + $0x1418] sm:$0xff]
    %v687 = vld [vmem:[#allocation2 + $0x1420] sm:$0xff]
    %v688 = vld [vmem:[#allocation2 + $0x1428] sm:$0xff]
    %v689 = vld [vmem:[#allocation2 + $0x1430] sm:$0xff]
    %v690 = vld [vmem:[#allocation2 + $0x1438] sm:$0xff]
    %v691 = vld [vmem:[#allocation2 + $0x1440] sm:$0xff]
    %v692 = vld [vmem:[#allocation2 + $0x1448] sm:$0xff]
    %v693 = vld [vmem:[#allocation2 + $0x1450] sm:$0xff]
    %v694 = vld [vmem:[#allocation2 + $0x1458] sm:$0xff]
    %v695 = vld [vmem:[#allocation2 + $0x1460] sm:$0xff]
    %v696 = vld [vmem:[#allocation2 + $0x1468] sm:$0xff]
    %v697 = vld [vmem:[#allocation2 + $0x1470] sm:$0xff]
    %v698 = vld [vmem:[#allocation2 + $0x1478] sm:$0xff]
    %v699 = vld [vmem:[#allocation2 + $0x1480] sm:$0xff]
    %v700 = vld [vmem:[#allocation2 + $0x1488] sm:$0xff]
    %v701 = vld [vmem:[#allocation2 + $0x1490] sm:$0xff]
    %v702 = vld [vmem:[#allocation2 + $0x1498] sm:$0xff]
    %v703 = vld [vmem:[#allocation2 + $0x14a0] sm:$0xff]
    %v704 = vld [vmem:[#allocation2 + $0x14a8] sm:$0xff]
    %v705 = vld [vmem:[#allocation2 + $0x14b0] sm:$0xff]
    %v706 = vld [vmem:[#allocation2 + $0x14b8] sm:$0xff]
    %v707 = vld [vmem:[#allocation2 + $0x14c0] sm:$0xff]
    %v708 = vld [vmem:[#allocation2 + $0x14c8] sm:$0xff]
    %v709 = vld [vmem:[#allocation2 + $0x14d0] sm:$0xff]
    %v710 = vld [vmem:[#allocation2 + $0x14d8] sm:$0xff]
    %v711 = vld [vmem:[#allocation2 + $0x14e0] sm:$0xff]
    %v712 = vld [vmem:[#allocation2 + $0x14e8] sm:$0xff]
    %v713 = vld [vmem:[#allocation2 + $0x14f0] sm:$0xff]
    %v714 = vld [vmem:[#allocation2 + $0x14f8] sm:$0xff]
    %v715 = vld [vmem:[#allocation2 + $0x1500] sm:$0xff]
    %v716 = vld [vmem:[#allocation2 + $0x1508] sm:$0xff]
    %v717 = vld [vmem:[#allocation2 + $0x1510] sm:$0xff]
    %v718 = vld [vmem:[#allocation2 + $0x1518] sm:$0xff]
    %v719 = vld [vmem:[#allocation2 + $0x1520] sm:$0xff]
    %v720 = vld [vmem:[#allocation2 + $0x1528] sm:$0xff]
    %v721 = vld [vmem:[#allocation2 + $0x1530] sm:$0xff]
    %v722 = vld [vmem:[#allocation2 + $0x1538] sm:$0xff]
    %v723 = vld [vmem:[#allocation2 + $0x1540] sm:$0xff]
    %v724 = vld [vmem:[#allocation2 + $0x1548] sm:$0xff]
    %v725 = vld [vmem:[#allocation2 + $0x1550] sm:$0xff]
    %v726 = vld [vmem:[#allocation2 + $0x1558] sm:$0xff]
    %v727 = vld [vmem:[#allocation2 + $0x1560] sm:$0xff]
    %v728 = vld [vmem:[#allocation2 + $0x1568] sm:$0xff]
    %v729 = vld [vmem:[#allocation2 + $0x1570] sm:$0xff]
    %v730 = vld [vmem:[#allocation2 + $0x1578] sm:$0xff]
    %v731 = vld [vmem:[#allocation2 + $0x1580] sm:$0xff]
    %v732 = vld [vmem:[#allocation2 + $0x1588] sm:$0xff]
    %v733 = vld [vmem:[#allocation2 + $0x1590] sm:$0xff]
    %v734 = vld [vmem:[#allocation2 + $0x1598] sm:$0xff]
    %v735 = vld [vmem:[#allocation2 + $0x15a0] sm:$0xff]
    %v736 = vld [vmem:[#allocation2 + $0x15a8] sm:$0xff]
    %v737 = vld [vmem:[#allocation2 + $0x15b0] sm:$0xff]
    %v738 = vld [vmem:[#allocation2 + $0x15b8] sm:$0xff]
    %v739 = vld [vmem:[#allocation2 + $0x15c0] sm:$0xff]
    %v740 = vld [vmem:[#allocation2 + $0x15c8] sm:$0xff]
    %v741 = vld [vmem:[#allocation2 + $0x15d0] sm:$0xff]
    %v742 = vld [vmem:[#allocation2 + $0x15d8] sm:$0xff]
    %v743 = vld [vmem:[#allocation2 + $0x15e0] sm:$0xff]
    %v744 = vld [vmem:[#allocation2 + $0x15e8] sm:$0xff]
    %v745 = vld [vmem:[#allocation2 + $0x15f0] sm:$0xff]
    %v746 = vld [vmem:[#allocation2 + $0x15f8] sm:$0xff]
    %v747 = vld [vmem:[#allocation2 + $0x1600] sm:$0xff]
    %v748 = vld [vmem:[#allocation2 + $0x1608] sm:$0xff]
    %v749 = vld [vmem:[#allocation2 + $0x1610] sm:$0xff]
    %v750 = vld [vmem:[#allocation2 + $0x1618] sm:$0xff]
    %v751 = vld [vmem:[#allocation2 + $0x1620] sm:$0xff]
    %v752 = vld [vmem:[#allocation2 + $0x1628] sm:$0xff]
    %v753 = vld [vmem:[#allocation2 + $0x1630] sm:$0xff]
    %v754 = vld [vmem:[#allocation2 + $0x1638] sm:$0xff]
    %v755 = vld [vmem:[#allocation2 + $0x1640] sm:$0xff]
    %v756 = vld [vmem:[#allocation2 + $0x1648] sm:$0xff]
    %v757 = vld [vmem:[#allocation2 + $0x1650] sm:$0xff]
    %v758 = vld [vmem:[#allocation2 + $0x1658] sm:$0xff]
    %v759 = vld [vmem:[#allocation2 + $0x1660] sm:$0xff]
    %v760 = vld [vmem:[#allocation2 + $0x1668] sm:$0xff]
    %v761 = vld [vmem:[#allocation2 + $0x1670] sm:$0xff]
    %v762 = vld [vmem:[#allocation2 + $0x1678] sm:$0xff]
    %v763 = vld [vmem:[#allocation2 + $0x1680] sm:$0xff]
    %v764 = vld [vmem:[#allocation2 + $0x1688] sm:$0xff]
    %v765 = vld [vmem:[#allocation2 + $0x1690] sm:$0xff]
    %v766 = vld [vmem:[#allocation2 + $0x1698] sm:$0xff]
    %v767 = vld [vmem:[#allocation2 + $0x16a0] sm:$0xff]
    %v768 = vld [vmem:[#allocation2 + $0x16a8] sm:$0xff]
    %v769 = vld [vmem:[#allocation2 + $0x16b0] sm:$0xff]
    %v770 = vld [vmem:[#allocation2 + $0x16b8] sm:$0xff]
    %v771 = vld [vmem:[#allocation2 + $0x16c0] sm:$0xff]
    %v772 = vld [vmem:[#allocation2 + $0x16c8] sm:$0xff]
    %v773 = vld [vmem:[#allocation2 + $0x16d0] sm:$0xff]
    %v774 = vld [vmem:[#allocation2 + $0x16d8] sm:$0xff]
    %v775 = vld [vmem:[#allocation2 + $0x16e0] sm:$0xff]
    %v776 = vld [vmem:[#allocation2 + $0x16e8] sm:$0xff]
    %v777 = vld [vmem:[#allocation2 + $0x16f0] sm:$0xff]
    %v778 = vld [vmem:[#allocation2 + $0x16f8] sm:$0xff]
    %v779 = vld [vmem:[#allocation2 + $0x1700] sm:$0xff]
    %v780 = vld [vmem:[#allocation2 + $0x1708] sm:$0xff]
    %v781 = vld [vmem:[#allocation2 + $0x1710] sm:$0xff]
    %v782 = vld [vmem:[#allocation2 + $0x1718] sm:$0xff]
    %v783 = vld [vmem:[#allocation2 + $0x1720] sm:$0xff]
    %v784 = vld [vmem:[#allocation2 + $0x1728] sm:$0xff]
    %v785 = vld [vmem:[#allocation2 + $0x1730] sm:$0xff]
    %v786 = vld [vmem:[#allocation2 + $0x1738] sm:$0xff]
    %v787 = vld [vmem:[#allocation2 + $0x1740] sm:$0xff]
    %v788 = vld [vmem:[#allocation2 + $0x1748] sm:$0xff]
    %v789 = vld [vmem:[#allocation2 + $0x1750] sm:$0xff]
    %v790 = vld [vmem:[#allocation2 + $0x1758] sm:$0xff]
    %v791 = vld [vmem:[#allocation2 + $0x1760] sm:$0xff]
    %v792 = vld [vmem:[#allocation2 + $0x1768] sm:$0xff]
    %v793 = vld [vmem:[#allocation2 + $0x1770] sm:$0xff]
    %v794 = vld [vmem:[#allocation2 + $0x1778] sm:$0xff]
    %v795 = vld [vmem:[#allocation2 + $0x1780] sm:$0xff]
    %v796 = vld [vmem:[#allocation2 + $0x1788] sm:$0xff]
    %v797 = vld [vmem:[#allocation2 + $0x1790] sm:$0xff]
    %v798 = vld [vmem:[#allocation2 + $0x1798] sm:$0xff]
    %v799 = vld [vmem:[#allocation2 + $0x17a0] sm:$0xff]
    %v800 = vld [vmem:[#allocation2 + $0x17a8] sm:$0xff]
    %v801 = vld [vmem:[#allocation2 + $0x17b0] sm:$0xff]
    %v802 = vld [vmem:[#allocation2 + $0x17b8] sm:$0xff]
    %v803 = vld [vmem:[#allocation2 + $0x17c0] sm:$0xff]
    %v804 = vld [vmem:[#allocation2 + $0x17c8] sm:$0xff]
    %v805 = vld [vmem:[#allocation2 + $0x17d0] sm:$0xff]
    %v806 = vld [vmem:[#allocation2 + $0x17d8] sm:$0xff]
    %v807 = vld [vmem:[#allocation2 + $0x17e0] sm:$0xff]
    %v808 = vld [vmem:[#allocation2 + $0x17e8] sm:$0xff]
    %v809 = vld [vmem:[#allocation2 + $0x17f0] sm:$0xff]
    %v810 = vld [vmem:[#allocation2 + $0x17f8] sm:$0xff]
    %v811 = vld [vmem:[#allocation2 + $0x1800] sm:$0xff]
    %v812 = vld [vmem:[#allocation2 + $0x1808] sm:$0xff]
    %v813 = vld [vmem:[#allocation2 + $0x1810] sm:$0xff]
    %v814 = vld [vmem:[#allocation2 + $0x1818] sm:$0xff]
    %v815 = vld [vmem:[#allocation2 + $0x1820] sm:$0xff]
    %v816 = vld [vmem:[#allocation2 + $0x1828] sm:$0xff]
    %v817 = vld [vmem:[#allocation2 + $0x1830] sm:$0xff]
    %v818 = vld [vmem:[#allocation2 + $0x1838] sm:$0xff]
    %v819 = vld [vmem:[#allocation2 + $0x1840] sm:$0xff]
    %v820 = vld [vmem:[#allocation2 + $0x1848] sm:$0xff]
    %v821 = vld [vmem:[#allocation2 + $0x1850] sm:$0xff]
    %v822 = vld [vmem:[#allocation2 + $0x1858] sm:$0xff]
    %v823 = vld [vmem:[#allocation2 + $0x1860] sm:$0xff]
    %v824 = vld [vmem:[#allocation2 + $0x1868] sm:$0xff]
    %v825 = vld [vmem:[#allocation2 + $0x1870] sm:$0xff]
    %v826 = vld [vmem:[#allocation2 + $0x1878] sm:$0xff]
    %v827 = vld [vmem:[#allocation2 + $0x1880] sm:$0xff]
    %v828 = vld [vmem:[#allocation2 + $0x1888] sm:$0xff]
    %v829 = vld [vmem:[#allocation2 + $0x1890] sm:$0xff]
    %v830 = vld [vmem:[#allocation2 + $0x1898] sm:$0xff]
    %v831 = vld [vmem:[#allocation2 + $0x18a0] sm:$0xff]
    %v832 = vld [vmem:[#allocation2 + $0x18a8] sm:$0xff]
    %v833 = vld [vmem:[#allocation2 + $0x18b0] sm:$0xff]
    %v834 = vld [vmem:[#allocation2 + $0x18b8] sm:$0xff]
    %v835 = vld [vmem:[#allocation2 + $0x18c0] sm:$0xff]
    %v836 = vld [vmem:[#allocation2 + $0x18c8] sm:$0xff]
    %v837 = vld [vmem:[#allocation2 + $0x18d0] sm:$0xff]
    %v838 = vld [vmem:[#allocation2 + $0x18d8] sm:$0xff]
    %v839 = vld [vmem:[#allocation2 + $0x18e0] sm:$0xff]
    %v840 = vld [vmem:[#allocation2 + $0x18e8] sm:$0xff]
    %v841 = vld [vmem:[#allocation2 + $0x18f0] sm:$0xff]
    %v842 = vld [vmem:[#allocation2 + $0x18f8] sm:$0xff]
    %v843 = vld [vmem:[#allocation5] sm:$0xff]
    %v844 = vld [vmem:[#allocation5 + $0x8] sm:$0x3]
    %v847 = vcombine.high %v41, %v41
    %v849 = vunpack.c.l.s4 1966171168
    %v850 = vunpack.c.0.s8 %v849
    %v851 = vlaneseq
    %v852 = vshrl.u32 %v851, 7
    %v853 = vsub.s32 %v850, %v852
    %v854 = vrot.slane %v41, %v853
    %v856 = vunpack.c.l.s4 1966171168
    %v857 = vunpack.c.0.s8 %v856
    %v858 = vlaneseq
    %v859 = vshrl.u32 %v858, 7
    %v860 = vsub.s32 %v857, %v859
    %v861 = vrot.slane %v847, %v860
    %v862 = vcombine.high %v854, %v854
    %v863 = vcombine.high %v861, %v861
    %v865 = vunpack.c.l.s4 1966171168
    %v866 = vunpack.c.0.s8 %v865
    %v867 = vlaneseq
    %v868 = vshrl.u32 %v867, 7
    %v869 = vsub.s32 %v866, %v868
    %v870 = vrot.slane %v854, %v869
    %v872 = vunpack.c.l.s4 1966171168
    %v873 = vunpack.c.0.s8 %v872
    %v874 = vlaneseq
    %v875 = vshrl.u32 %v874, 7
    %v876 = vsub.s32 %v873, %v875
    %v877 = vrot.slane %v861, %v876
    %v879 = vunpack.c.l.s4 1966171168
    %v880 = vunpack.c.0.s8 %v879
    %v881 = vlaneseq
    %v882 = vshrl.u32 %v881, 7
    %v883 = vsub.s32 %v880, %v882
    %v884 = vrot.slane %v862, %v883
    %v886 = vunpack.c.l.s4 1966171168
    %v887 = vunpack.c.0.s8 %v886
    %v888 = vlaneseq
    %v889 = vshrl.u32 %v888, 7
    %v890 = vsub.s32 %v887, %v889
    %v891 = vrot.slane %v863, %v890
    %v892 = vcombine.high %v870, %v870
    %v893 = vcombine.high %v877, %v877
    %v894 = vcombine.high %v884, %v884
    %v895 = vcombine.high %v891, %v891
    %v897 = vunpack.c.l.s4 1966171168
    %v898 = vunpack.c.0.s8 %v897
    %v899 = vlaneseq
    %v900 = vshrl.u32 %v899, 7
    %v901 = vsub.s32 %v898, %v900
    %v902 = vrot.slane %v42, %v901
    %v903 = vcombine.high %v902, %v902
    %v905 = vunpack.c.l.s4 1966171168
    %v906 = vunpack.c.0.s8 %v905
    %v907 = vlaneseq
    %v908 = vshrl.u32 %v907, 7
    %v909 = vsub.s32 %v906, %v908
    %v910 = vrot.slane %v902, %v909
    %v912 = vunpack.c.l.s4 1966171168
    %v913 = vunpack.c.0.s8 %v912
    %v914 = vlaneseq
    %v915 = vshrl.u32 %v914, 7
    %v916 = vsub.s32 %v913, %v915
    %v917 = vrot.slane %v903, %v916
    %v1728 = vunpack.c.l.b16 %v43
    %v1729 = vunpack.c.h.b16 %v43
    %v1730 = vunpack.c.l.b16 %v44
    %v1731 = vunpack.c.h.b16 %v44
    %v1732 = vunpack.c.l.b16 %v45
    %v1733 = vunpack.c.h.b16 %v45
    %v1734 = vunpack.c.l.b16 %v46
    %v1735 = vunpack.c.h.b16 %v46
    %v1736 = vunpack.c.l.b16 %v47
    %v1737 = vunpack.c.h.b16 %v47
    %v1738 = vunpack.c.l.b16 %v48
    %v1739 = vunpack.c.h.b16 %v48
    %v1740 = vunpack.c.l.b16 %v49
    %v1741 = vunpack.c.h.b16 %v49
    %v1742 = vunpack.c.l.b16 %v50
    %v1743 = vunpack.c.h.b16 %v50
    %v1744 = vunpack.c.l.b16 %v51
    %v1745 = vunpack.c.h.b16 %v51
    %v1746 = vunpack.c.l.b16 %v52
    %v1747 = vunpack.c.h.b16 %v52
    %v1748 = vunpack.c.l.b16 %v53
    %v1749 = vunpack.c.h.b16 %v53
    %v1750 = vunpack.c.l.b16 %v54
    %v1751 = vunpack.c.h.b16 %v54
    %v1752 = vunpack.c.l.b16 %v55
    %v1753 = vunpack.c.h.b16 %v55
    %v1754 = vunpack.c.l.b16 %v56
    %v1755 = vunpack.c.h.b16 %v56
    %v1756 = vunpack.c.l.b16 %v57
    %v1757 = vunpack.c.h.b16 %v57
    %v1758 = vunpack.c.l.b16 %v58
    %v1759 = vunpack.c.h.b16 %v58
    %v1760 = vunpack.c.l.b16 %v59
    %v1761 = vunpack.c.h.b16 %v59
    %v1762 = vunpack.c.l.b16 %v60
    %v1763 = vunpack.c.h.b16 %v60
    %v1764 = vunpack.c.l.b16 %v61
    %v1765 = vunpack.c.h.b16 %v61
    %v1766 = vunpack.c.l.b16 %v62
    %v1767 = vunpack.c.h.b16 %v62
    %v1768 = vunpack.c.l.b16 %v63
    %v1769 = vunpack.c.h.b16 %v63
    %v1770 = vunpack.c.l.b16 %v64
    %v1771 = vunpack.c.h.b16 %v64
    %v1772 = vunpack.c.l.b16 %v65
    %v1773 = vunpack.c.h.b16 %v65
    %v1774 = vunpack.c.l.b16 %v66
    %v1775 = vunpack.c.h.b16 %v66
    %v1776 = vunpack.c.l.b16 %v67
    %v1777 = vunpack.c.h.b16 %v67
    %v1778 = vunpack.c.l.b16 %v68
    %v1779 = vunpack.c.h.b16 %v68
    %v1780 = vunpack.c.l.b16 %v69
    %v1781 = vunpack.c.h.b16 %v69
    %v1782 = vunpack.c.l.b16 %v70
    %v1783 = vunpack.c.h.b16 %v70
    %v1784 = vunpack.c.l.b16 %v71
    %v1785 = vunpack.c.h.b16 %v71
    %v1786 = vunpack.c.l.b16 %v72
    %v1787 = vunpack.c.h.b16 %v72
    %v1788 = vunpack.c.l.b16 %v73
    %v1789 = vunpack.c.h.b16 %v73
    %v1790 = vunpack.c.l.b16 %v74
    %v1791 = vunpack.c.h.b16 %v74
    %v1792 = vunpack.c.l.b16 %v75
    %v1793 = vunpack.c.h.b16 %v75
    %v1794 = vunpack.c.l.b16 %v76
    %v1795 = vunpack.c.h.b16 %v76
    %v1796 = vunpack.c.l.b16 %v77
    %v1797 = vunpack.c.h.b16 %v77
    %v1798 = vunpack.c.l.b16 %v78
    %v1799 = vunpack.c.h.b16 %v78
    %v1800 = vunpack.c.l.b16 %v79
    %v1801 = vunpack.c.h.b16 %v79
    %v1802 = vunpack.c.l.b16 %v80
    %v1803 = vunpack.c.h.b16 %v80
    %v1804 = vunpack.c.l.b16 %v81
    %v1805 = vunpack.c.h.b16 %v81
    %v1806 = vunpack.c.l.b16 %v82
    %v1807 = vunpack.c.h.b16 %v82
    %v1808 = vunpack.c.l.b16 %v83
    %v1809 = vunpack.c.h.b16 %v83
    %v1810 = vunpack.c.l.b16 %v84
    %v1811 = vunpack.c.h.b16 %v84
    %v1812 = vunpack.c.l.b16 %v85
    %v1813 = vunpack.c.h.b16 %v85
    %v1814 = vunpack.c.l.b16 %v86
    %v1815 = vunpack.c.h.b16 %v86
    %v1816 = vunpack.c.l.b16 %v87
    %v1817 = vunpack.c.h.b16 %v87
    %v1818 = vunpack.c.l.b16 %v88
    %v1819 = vunpack.c.h.b16 %v88
    %v1820 = vunpack.c.l.b16 %v89
    %v1821 = vunpack.c.h.b16 %v89
    %v1822 = vunpack.c.l.b16 %v90
    %v1823 = vunpack.c.h.b16 %v90
    %v1824 = vunpack.c.l.b16 %v91
    %v1825 = vunpack.c.h.b16 %v91
    %v1826 = vunpack.c.l.b16 %v92
    %v1827 = vunpack.c.h.b16 %v92
    %v1828 = vunpack.c.l.b16 %v93
    %v1829 = vunpack.c.h.b16 %v93
    %v1830 = vunpack.c.l.b16 %v94
    %v1831 = vunpack.c.h.b16 %v94
    %v1832 = vunpack.c.l.b16 %v95
    %v1833 = vunpack.c.h.b16 %v95
    %v1834 = vunpack.c.l.b16 %v96
    %v1835 = vunpack.c.h.b16 %v96
    %v1836 = vunpack.c.l.b16 %v97
    %v1837 = vunpack.c.h.b16 %v97
    %v1838 = vunpack.c.l.b16 %v98
    %v1839 = vunpack.c.h.b16 %v98
    %v1840 = vunpack.c.l.b16 %v99
    %v1841 = vunpack.c.h.b16 %v99
    %v1842 = vunpack.c.l.b16 %v100
    %v1843 = vunpack.c.h.b16 %v100
    %v1844 = vunpack.c.l.b16 %v101
    %v1845 = vunpack.c.h.b16 %v101
    %v1846 = vunpack.c.l.b16 %v102
    %v1847 = vunpack.c.h.b16 %v102
    %v1848 = vunpack.c.l.b16 %v103
    %v1849 = vunpack.c.h.b16 %v103
    %v1850 = vunpack.c.l.b16 %v104
    %v1851 = vunpack.c.h.b16 %v104
    %v1852 = vunpack.c.l.b16 %v105
    %v1853 = vunpack.c.h.b16 %v105
    %v1854 = vunpack.c.l.b16 %v106
    %v1855 = vunpack.c.h.b16 %v106
    %v1856 = vunpack.c.l.b16 %v107
    %v1857 = vunpack.c.h.b16 %v107
    %v1858 = vunpack.c.l.b16 %v108
    %v1859 = vunpack.c.h.b16 %v108
    %v1860 = vunpack.c.l.b16 %v109
    %v1861 = vunpack.c.h.b16 %v109
    %v1862 = vunpack.c.l.b16 %v110
    %v1863 = vunpack.c.h.b16 %v110
    %v1864 = vunpack.c.l.b16 %v111
    %v1865 = vunpack.c.h.b16 %v111
    %v1866 = vunpack.c.l.b16 %v112
    %v1867 = vunpack.c.h.b16 %v112
    %v1868 = vunpack.c.l.b16 %v113
    %v1869 = vunpack.c.h.b16 %v113
    %v1870 = vunpack.c.l.b16 %v114
    %v1871 = vunpack.c.h.b16 %v114
    %v1872 = vunpack.c.l.b16 %v115
    %v1873 = vunpack.c.h.b16 %v115
    %v1874 = vunpack.c.l.b16 %v116
    %v1875 = vunpack.c.h.b16 %v116
    %v1876 = vunpack.c.l.b16 %v117
    %v1877 = vunpack.c.h.b16 %v117
    %v1878 = vunpack.c.l.b16 %v118
    %v1879 = vunpack.c.h.b16 %v118
    %v1880 = vunpack.c.l.b16 %v119
    %v1881 = vunpack.c.h.b16 %v119
    %v1882 = vunpack.c.l.b16 %v120
    %v1883 = vunpack.c.h.b16 %v120
    %v1884 = vunpack.c.l.b16 %v121
    %v1885 = vunpack.c.h.b16 %v121
    %v1886 = vunpack.c.l.b16 %v122
    %v1887 = vunpack.c.h.b16 %v122
    %v1888 = vunpack.c.l.b16 %v123
    %v1889 = vunpack.c.h.b16 %v123
    %v1890 = vunpack.c.l.b16 %v124
    %v1891 = vunpack.c.h.b16 %v124
    %v1892 = vunpack.c.l.b16 %v125
    %v1893 = vunpack.c.h.b16 %v125
    %v1894 = vunpack.c.l.b16 %v126
    %v1895 = vunpack.c.h.b16 %v126
    %v1896 = vunpack.c.l.b16 %v127
    %v1897 = vunpack.c.h.b16 %v127
    %v1898 = vunpack.c.l.b16 %v128
    %v1899 = vunpack.c.h.b16 %v128
    %v1900 = vunpack.c.l.b16 %v129
    %v1901 = vunpack.c.h.b16 %v129
    %v1902 = vunpack.c.l.b16 %v130
    %v1903 = vunpack.c.h.b16 %v130
    %v1904 = vunpack.c.l.b16 %v131
    %v1905 = vunpack.c.h.b16 %v131
    %v1906 = vunpack.c.l.b16 %v132
    %v1907 = vunpack.c.h.b16 %v132
    %v1908 = vunpack.c.l.b16 %v133
    %v1909 = vunpack.c.h.b16 %v133
    %v1910 = vunpack.c.l.b16 %v134
    %v1911 = vunpack.c.h.b16 %v134
    %v1912 = vunpack.c.l.b16 %v135
    %v1913 = vunpack.c.h.b16 %v135
    %v1914 = vunpack.c.l.b16 %v136
    %v1915 = vunpack.c.h.b16 %v136
    %v1916 = vunpack.c.l.b16 %v137
    %v1917 = vunpack.c.h.b16 %v137
    %v1918 = vunpack.c.l.b16 %v138
    %v1919 = vunpack.c.h.b16 %v138
    %v1920 = vunpack.c.l.b16 %v139
    %v1921 = vunpack.c.h.b16 %v139
    %v1922 = vunpack.c.l.b16 %v140
    %v1923 = vunpack.c.h.b16 %v140
    %v1924 = vunpack.c.l.b16 %v141
    %v1925 = vunpack.c.h.b16 %v141
    %v1926 = vunpack.c.l.b16 %v142
    %v1927 = vunpack.c.h.b16 %v142
    %v1928 = vunpack.c.l.b16 %v143
    %v1929 = vunpack.c.h.b16 %v143
    %v1930 = vunpack.c.l.b16 %v144
    %v1931 = vunpack.c.h.b16 %v144
    %v1932 = vunpack.c.l.b16 %v145
    %v1933 = vunpack.c.h.b16 %v145
    %v1934 = vunpack.c.l.b16 %v146
    %v1935 = vunpack.c.h.b16 %v146
    %v1936 = vunpack.c.l.b16 %v147
    %v1937 = vunpack.c.h.b16 %v147
    %v1938 = vunpack.c.l.b16 %v148
    %v1939 = vunpack.c.h.b16 %v148
    %v1940 = vunpack.c.l.b16 %v149
    %v1941 = vunpack.c.h.b16 %v149
    %v1942 = vunpack.c.l.b16 %v150
    %v1943 = vunpack.c.h.b16 %v150
    %v1944 = vunpack.c.l.b16 %v151
    %v1945 = vunpack.c.h.b16 %v151
    %v1946 = vunpack.c.l.b16 %v152
    %v1947 = vunpack.c.h.b16 %v152
    %v1948 = vunpack.c.l.b16 %v153
    %v1949 = vunpack.c.h.b16 %v153
    %v1950 = vunpack.c.l.b16 %v154
    %v1951 = vunpack.c.h.b16 %v154
    %v1952 = vunpack.c.l.b16 %v155
    %v1953 = vunpack.c.h.b16 %v155
    %v1954 = vunpack.c.l.b16 %v156
    %v1955 = vunpack.c.h.b16 %v156
    %v1956 = vunpack.c.l.b16 %v157
    %v1957 = vunpack.c.h.b16 %v157
    %v1958 = vunpack.c.l.b16 %v158
    %v1959 = vunpack.c.h.b16 %v158
    %v1960 = vunpack.c.l.b16 %v159
    %v1961 = vunpack.c.h.b16 %v159
    %v1962 = vunpack.c.l.b16 %v160
    %v1963 = vunpack.c.h.b16 %v160
    %v1964 = vunpack.c.l.b16 %v161
    %v1965 = vunpack.c.h.b16 %v161
    %v1966 = vunpack.c.l.b16 %v162
    %v1967 = vunpack.c.h.b16 %v162
    %v1968 = vunpack.c.l.b16 %v163
    %v1969 = vunpack.c.h.b16 %v163
    %v1970 = vunpack.c.l.b16 %v164
    %v1971 = vunpack.c.h.b16 %v164
    %v1972 = vunpack.c.l.b16 %v165
    %v1973 = vunpack.c.h.b16 %v165
    %v1974 = vunpack.c.l.b16 %v166
    %v1975 = vunpack.c.h.b16 %v166
    %v1976 = vunpack.c.l.b16 %v167
    %v1977 = vunpack.c.h.b16 %v167
    %v1978 = vunpack.c.l.b16 %v168
    %v1979 = vunpack.c.h.b16 %v168
    %v1980 = vunpack.c.l.b16 %v169
    %v1981 = vunpack.c.h.b16 %v169
    %v1982 = vunpack.c.l.b16 %v170
    %v1983 = vunpack.c.h.b16 %v170
    %v1984 = vunpack.c.l.b16 %v171
    %v1985 = vunpack.c.h.b16 %v171
    %v1986 = vunpack.c.l.b16 %v172
    %v1987 = vunpack.c.h.b16 %v172
    %v1988 = vunpack.c.l.b16 %v173
    %v1989 = vunpack.c.h.b16 %v173
    %v1990 = vunpack.c.l.b16 %v174
    %v1991 = vunpack.c.h.b16 %v174
    %v1992 = vunpack.c.l.b16 %v175
    %v1993 = vunpack.c.h.b16 %v175
    %v1994 = vunpack.c.l.b16 %v176
    %v1995 = vunpack.c.h.b16 %v176
    %v1996 = vunpack.c.l.b16 %v177
    %v1997 = vunpack.c.h.b16 %v177
    %v1998 = vunpack.c.l.b16 %v178
    %v1999 = vunpack.c.h.b16 %v178
    %v2000 = vunpack.c.l.b16 %v179
    %v2001 = vunpack.c.h.b16 %v179
    %v2002 = vunpack.c.l.b16 %v180
    %v2003 = vunpack.c.h.b16 %v180
    %v2004 = vunpack.c.l.b16 %v181
    %v2005 = vunpack.c.h.b16 %v181
    %v2006 = vunpack.c.l.b16 %v182
    %v2007 = vunpack.c.h.b16 %v182
    %v2008 = vunpack.c.l.b16 %v183
    %v2009 = vunpack.c.h.b16 %v183
    %v2010 = vunpack.c.l.b16 %v184
    %v2011 = vunpack.c.h.b16 %v184
    %v2012 = vunpack.c.l.b16 %v185
    %v2013 = vunpack.c.h.b16 %v185
    %v2014 = vunpack.c.l.b16 %v186
    %v2015 = vunpack.c.h.b16 %v186
    %v2016 = vunpack.c.l.b16 %v187
    %v2017 = vunpack.c.h.b16 %v187
    %v2018 = vunpack.c.l.b16 %v188
    %v2019 = vunpack.c.h.b16 %v188
    %v2020 = vunpack.c.l.b16 %v189
    %v2021 = vunpack.c.h.b16 %v189
    %v2022 = vunpack.c.l.b16 %v190
    %v2023 = vunpack.c.h.b16 %v190
    %v2024 = vunpack.c.l.b16 %v191
    %v2025 = vunpack.c.h.b16 %v191
    %v2026 = vunpack.c.l.b16 %v192
    %v2027 = vunpack.c.h.b16 %v192
    %v2028 = vunpack.c.l.b16 %v193
    %v2029 = vunpack.c.h.b16 %v193
    %v2030 = vunpack.c.l.b16 %v194
    %v2031 = vunpack.c.h.b16 %v194
    %v2032 = vunpack.c.l.b16 %v195
    %v2033 = vunpack.c.h.b16 %v195
    %v2034 = vunpack.c.l.b16 %v196
    %v2035 = vunpack.c.h.b16 %v196
    %v2036 = vunpack.c.l.b16 %v197
    %v2037 = vunpack.c.h.b16 %v197
    %v2038 = vunpack.c.l.b16 %v198
    %v2039 = vunpack.c.h.b16 %v198
    %v2040 = vunpack.c.l.b16 %v199
    %v2041 = vunpack.c.h.b16 %v199
    %v2042 = vunpack.c.l.b16 %v200
    %v2043 = vunpack.c.h.b16 %v200
    %v2044 = vunpack.c.l.b16 %v201
    %v2045 = vunpack.c.h.b16 %v201
    %v2046 = vunpack.c.l.b16 %v202
    %v2047 = vunpack.c.h.b16 %v202
    %v2048 = vunpack.c.l.b16 %v203
    %v2049 = vunpack.c.h.b16 %v203
    %v2050 = vunpack.c.l.b16 %v204
    %v2051 = vunpack.c.h.b16 %v204
    %v2052 = vunpack.c.l.b16 %v205
    %v2053 = vunpack.c.h.b16 %v205
    %v2054 = vunpack.c.l.b16 %v206
    %v2055 = vunpack.c.h.b16 %v206
    %v2056 = vunpack.c.l.b16 %v207
    %v2057 = vunpack.c.h.b16 %v207
    %v2058 = vunpack.c.l.b16 %v208
    %v2059 = vunpack.c.h.b16 %v208
    %v2060 = vunpack.c.l.b16 %v209
    %v2061 = vunpack.c.h.b16 %v209
    %v2062 = vunpack.c.l.b16 %v210
    %v2063 = vunpack.c.h.b16 %v210
    %v2064 = vunpack.c.l.b16 %v211
    %v2065 = vunpack.c.h.b16 %v211
    %v2066 = vunpack.c.l.b16 %v212
    %v2067 = vunpack.c.h.b16 %v212
    %v2068 = vunpack.c.l.b16 %v213
    %v2069 = vunpack.c.h.b16 %v213
    %v2070 = vunpack.c.l.b16 %v214
    %v2071 = vunpack.c.h.b16 %v214
    %v2072 = vunpack.c.l.b16 %v215
    %v2073 = vunpack.c.h.b16 %v215
    %v2074 = vunpack.c.l.b16 %v216
    %v2075 = vunpack.c.h.b16 %v216
    %v2076 = vunpack.c.l.b16 %v217
    %v2077 = vunpack.c.h.b16 %v217
    %v2078 = vunpack.c.l.b16 %v218
    %v2079 = vunpack.c.h.b16 %v218
    %v2080 = vunpack.c.l.b16 %v219
    %v2081 = vunpack.c.h.b16 %v219
    %v2082 = vunpack.c.l.b16 %v220
    %v2083 = vunpack.c.h.b16 %v220
    %v2084 = vunpack.c.l.b16 %v221
    %v2085 = vunpack.c.h.b16 %v221
    %v2086 = vunpack.c.l.b16 %v222
    %v2087 = vunpack.c.h.b16 %v222
    %v2088 = vunpack.c.l.b16 %v223
    %v2089 = vunpack.c.h.b16 %v223
    %v2090 = vunpack.c.l.b16 %v224
    %v2091 = vunpack.c.h.b16 %v224
    %v2092 = vunpack.c.l.b16 %v225
    %v2093 = vunpack.c.h.b16 %v225
    %v2094 = vunpack.c.l.b16 %v226
    %v2095 = vunpack.c.h.b16 %v226
    %v2096 = vunpack.c.l.b16 %v227
    %v2097 = vunpack.c.h.b16 %v227
    %v2098 = vunpack.c.l.b16 %v228
    %v2099 = vunpack.c.h.b16 %v228
    %v2100 = vunpack.c.l.b16 %v229
    %v2101 = vunpack.c.h.b16 %v229
    %v2102 = vunpack.c.l.b16 %v230
    %v2103 = vunpack.c.h.b16 %v230
    %v2104 = vunpack.c.l.b16 %v231
    %v2105 = vunpack.c.h.b16 %v231
    %v2106 = vunpack.c.l.b16 %v232
    %v2107 = vunpack.c.h.b16 %v232
    %v2108 = vunpack.c.l.b16 %v233
    %v2109 = vunpack.c.h.b16 %v233
    %v2110 = vunpack.c.l.b16 %v234
    %v2111 = vunpack.c.h.b16 %v234
    %v2112 = vunpack.c.l.b16 %v235
    %v2113 = vunpack.c.h.b16 %v235
    %v2114 = vunpack.c.l.b16 %v236
    %v2115 = vunpack.c.h.b16 %v236
    %v2116 = vunpack.c.l.b16 %v237
    %v2117 = vunpack.c.h.b16 %v237
    %v2118 = vunpack.c.l.b16 %v238
    %v2119 = vunpack.c.h.b16 %v238
    %v2120 = vunpack.c.l.b16 %v239
    %v2121 = vunpack.c.h.b16 %v239
    %v2122 = vunpack.c.l.b16 %v240
    %v2123 = vunpack.c.h.b16 %v240
    %v2124 = vunpack.c.l.b16 %v241
    %v2125 = vunpack.c.h.b16 %v241
    %v2126 = vunpack.c.l.b16 %v242
    %v2127 = vunpack.c.h.b16 %v242
    %v2128 = vunpack.c.l.b16 %v243
    %v2129 = vunpack.c.h.b16 %v243
    %v2130 = vunpack.c.l.b16 %v244
    %v2131 = vunpack.c.h.b16 %v244
    %v2132 = vunpack.c.l.b16 %v245
    %v2133 = vunpack.c.h.b16 %v245
    %v2134 = vunpack.c.l.b16 %v246
    %v2135 = vunpack.c.h.b16 %v246
    %v2136 = vunpack.c.l.b16 %v247
    %v2137 = vunpack.c.h.b16 %v247
    %v2138 = vunpack.c.l.b16 %v248
    %v2139 = vunpack.c.h.b16 %v248
    %v2140 = vunpack.c.l.b16 %v249
    %v2141 = vunpack.c.h.b16 %v249
    %v2142 = vunpack.c.l.b16 %v250
    %v2143 = vunpack.c.h.b16 %v250
    %v2144 = vunpack.c.l.b16 %v251
    %v2145 = vunpack.c.h.b16 %v251
    %v2146 = vunpack.c.l.b16 %v252
    %v2147 = vunpack.c.h.b16 %v252
    %v2148 = vunpack.c.l.b16 %v253
    %v2149 = vunpack.c.h.b16 %v253
    %v2150 = vunpack.c.l.b16 %v254
    %v2151 = vunpack.c.h.b16 %v254
    %v2152 = vunpack.c.l.b16 %v255
    %v2153 = vunpack.c.h.b16 %v255
    %v2154 = vunpack.c.l.b16 %v256
    %v2155 = vunpack.c.h.b16 %v256
    %v2156 = vunpack.c.l.b16 %v257
    %v2157 = vunpack.c.h.b16 %v257
    %v2158 = vunpack.c.l.b16 %v258
    %v2159 = vunpack.c.h.b16 %v258
    %v2160 = vunpack.c.l.b16 %v259
    %v2161 = vunpack.c.h.b16 %v259
    %v2162 = vunpack.c.l.b16 %v260
    %v2163 = vunpack.c.h.b16 %v260
    %v2164 = vunpack.c.l.b16 %v261
    %v2165 = vunpack.c.h.b16 %v261
    %v2166 = vunpack.c.l.b16 %v262
    %v2167 = vunpack.c.h.b16 %v262
    %v2168 = vunpack.c.l.b16 %v263
    %v2169 = vunpack.c.h.b16 %v263
    %v2170 = vunpack.c.l.b16 %v264
    %v2171 = vunpack.c.h.b16 %v264
    %v2172 = vunpack.c.l.b16 %v265
    %v2173 = vunpack.c.h.b16 %v265
    %v2174 = vunpack.c.l.b16 %v266
    %v2175 = vunpack.c.h.b16 %v266
    %v2176 = vunpack.c.l.b16 %v267
    %v2177 = vunpack.c.h.b16 %v267
    %v2178 = vunpack.c.l.b16 %v268
    %v2179 = vunpack.c.h.b16 %v268
    %v2180 = vunpack.c.l.b16 %v269
    %v2181 = vunpack.c.h.b16 %v269
    %v2182 = vunpack.c.l.b16 %v270
    %v2183 = vunpack.c.h.b16 %v270
    %v2184 = vunpack.c.l.b16 %v271
    %v2185 = vunpack.c.h.b16 %v271
    %v2186 = vunpack.c.l.b16 %v272
    %v2187 = vunpack.c.h.b16 %v272
    %v2188 = vunpack.c.l.b16 %v273
    %v2189 = vunpack.c.h.b16 %v273
    %v2190 = vunpack.c.l.b16 %v274
    %v2191 = vunpack.c.h.b16 %v274
    %v2192 = vunpack.c.l.b16 %v275
    %v2193 = vunpack.c.h.b16 %v275
    %v2194 = vunpack.c.l.b16 %v276
    %v2195 = vunpack.c.h.b16 %v276
    %v2196 = vunpack.c.l.b16 %v277
    %v2197 = vunpack.c.h.b16 %v277
    %v2198 = vunpack.c.l.b16 %v278
    %v2199 = vunpack.c.h.b16 %v278
    %v2200 = vunpack.c.l.b16 %v279
    %v2201 = vunpack.c.h.b16 %v279
    %v2202 = vunpack.c.l.b16 %v280
    %v2203 = vunpack.c.h.b16 %v280
    %v2204 = vunpack.c.l.b16 %v281
    %v2205 = vunpack.c.h.b16 %v281
    %v2206 = vunpack.c.l.b16 %v282
    %v2207 = vunpack.c.h.b16 %v282
    %v2208 = vunpack.c.l.b16 %v283
    %v2209 = vunpack.c.h.b16 %v283
    %v2210 = vunpack.c.l.b16 %v284
    %v2211 = vunpack.c.h.b16 %v284
    %v2212 = vunpack.c.l.b16 %v285
    %v2213 = vunpack.c.h.b16 %v285
    %v2214 = vunpack.c.l.b16 %v286
    %v2215 = vunpack.c.h.b16 %v286
    %v2216 = vunpack.c.l.b16 %v287
    %v2217 = vunpack.c.h.b16 %v287
    %v2218 = vunpack.c.l.b16 %v288
    %v2219 = vunpack.c.h.b16 %v288
    %v2220 = vunpack.c.l.b16 %v289
    %v2221 = vunpack.c.h.b16 %v289
    %v2222 = vunpack.c.l.b16 %v290
    %v2223 = vunpack.c.h.b16 %v290
    %v2224 = vunpack.c.l.b16 %v291
    %v2225 = vunpack.c.h.b16 %v291
    %v2226 = vunpack.c.l.b16 %v292
    %v2227 = vunpack.c.h.b16 %v292
    %v2228 = vunpack.c.l.b16 %v293
    %v2229 = vunpack.c.h.b16 %v293
    %v2230 = vunpack.c.l.b16 %v294
    %v2231 = vunpack.c.h.b16 %v294
    %v2232 = vunpack.c.l.b16 %v295
    %v2233 = vunpack.c.h.b16 %v295
    %v2234 = vunpack.c.l.b16 %v296
    %v2235 = vunpack.c.h.b16 %v296
    %v2236 = vunpack.c.l.b16 %v297
    %v2237 = vunpack.c.h.b16 %v297
    %v2238 = vunpack.c.l.b16 %v298
    %v2239 = vunpack.c.h.b16 %v298
    %v2240 = vunpack.c.l.b16 %v299
    %v2241 = vunpack.c.h.b16 %v299
    %v2242 = vunpack.c.l.b16 %v300
    %v2243 = vunpack.c.h.b16 %v300
    %v2244 = vunpack.c.l.b16 %v301
    %v2245 = vunpack.c.h.b16 %v301
    %v2246 = vunpack.c.l.b16 %v302
    %v2247 = vunpack.c.h.b16 %v302
    %v2248 = vunpack.c.l.b16 %v303
    %v2249 = vunpack.c.h.b16 %v303
    %v2250 = vunpack.c.l.b16 %v304
    %v2251 = vunpack.c.h.b16 %v304
    %v2252 = vunpack.c.l.b16 %v305
    %v2253 = vunpack.c.h.b16 %v305
    %v2254 = vunpack.c.l.b16 %v306
    %v2255 = vunpack.c.h.b16 %v306
    %v2256 = vunpack.c.l.b16 %v307
    %v2257 = vunpack.c.h.b16 %v307
    %v2258 = vunpack.c.l.b16 %v308
    %v2259 = vunpack.c.h.b16 %v308
    %v2260 = vunpack.c.l.b16 %v309
    %v2261 = vunpack.c.h.b16 %v309
    %v2262 = vunpack.c.l.b16 %v310
    %v2263 = vunpack.c.h.b16 %v310
    %v2264 = vunpack.c.l.b16 %v311
    %v2265 = vunpack.c.h.b16 %v311
    %v2266 = vunpack.c.l.b16 %v312
    %v2267 = vunpack.c.h.b16 %v312
    %v2268 = vunpack.c.l.b16 %v313
    %v2269 = vunpack.c.h.b16 %v313
    %v2270 = vunpack.c.l.b16 %v314
    %v2271 = vunpack.c.h.b16 %v314
    %v2272 = vunpack.c.l.b16 %v315
    %v2273 = vunpack.c.h.b16 %v315
    %v2274 = vunpack.c.l.b16 %v316
    %v2275 = vunpack.c.h.b16 %v316
    %v2276 = vunpack.c.l.b16 %v317
    %v2277 = vunpack.c.h.b16 %v317
    %v2278 = vunpack.c.l.b16 %v318
    %v2279 = vunpack.c.h.b16 %v318
    %v2280 = vunpack.c.l.b16 %v319
    %v2281 = vunpack.c.h.b16 %v319
    %v2282 = vunpack.c.l.b16 %v320
    %v2283 = vunpack.c.h.b16 %v320
    %v2284 = vunpack.c.l.b16 %v321
    %v2285 = vunpack.c.h.b16 %v321
    %v2286 = vunpack.c.l.b16 %v322
    %v2287 = vunpack.c.h.b16 %v322
    %v2288 = vunpack.c.l.b16 %v323
    %v2289 = vunpack.c.h.b16 %v323
    %v2290 = vunpack.c.l.b16 %v324
    %v2291 = vunpack.c.h.b16 %v324
    %v2292 = vunpack.c.l.b16 %v325
    %v2293 = vunpack.c.h.b16 %v325
    %v2294 = vunpack.c.l.b16 %v326
    %v2295 = vunpack.c.h.b16 %v326
    %v2296 = vunpack.c.l.b16 %v327
    %v2297 = vunpack.c.h.b16 %v327
    %v2298 = vunpack.c.l.b16 %v328
    %v2299 = vunpack.c.h.b16 %v328
    %v2300 = vunpack.c.l.b16 %v329
    %v2301 = vunpack.c.h.b16 %v329
    %v2302 = vunpack.c.l.b16 %v330
    %v2303 = vunpack.c.h.b16 %v330
    %v2304 = vunpack.c.l.b16 %v331
    %v2305 = vunpack.c.h.b16 %v331
    %v2306 = vunpack.c.l.b16 %v332
    %v2307 = vunpack.c.h.b16 %v332
    %v2308 = vunpack.c.l.b16 %v333
    %v2309 = vunpack.c.h.b16 %v333
    %v2310 = vunpack.c.l.b16 %v334
    %v2311 = vunpack.c.h.b16 %v334
    %v2312 = vunpack.c.l.b16 %v335
    %v2313 = vunpack.c.h.b16 %v335
    %v2314 = vunpack.c.l.b16 %v336
    %v2315 = vunpack.c.h.b16 %v336
    %v2316 = vunpack.c.l.b16 %v337
    %v2317 = vunpack.c.h.b16 %v337
    %v2318 = vunpack.c.l.b16 %v338
    %v2319 = vunpack.c.h.b16 %v338
    %v2320 = vunpack.c.l.b16 %v339
    %v2321 = vunpack.c.h.b16 %v339
    %v2322 = vunpack.c.l.b16 %v340
    %v2323 = vunpack.c.h.b16 %v340
    %v2324 = vunpack.c.l.b16 %v341
    %v2325 = vunpack.c.h.b16 %v341
    %v2326 = vunpack.c.l.b16 %v342
    %v2327 = vunpack.c.h.b16 %v342
    %v2328 = vunpack.c.l.b16 %v343
    %v2329 = vunpack.c.h.b16 %v343
    %v2330 = vunpack.c.l.b16 %v344
    %v2331 = vunpack.c.h.b16 %v344
    %v2332 = vunpack.c.l.b16 %v345
    %v2333 = vunpack.c.h.b16 %v345
    %v2334 = vunpack.c.l.b16 %v346
    %v2335 = vunpack.c.h.b16 %v346
    %v2336 = vunpack.c.l.b16 %v347
    %v2337 = vunpack.c.h.b16 %v347
    %v2338 = vunpack.c.l.b16 %v348
    %v2339 = vunpack.c.h.b16 %v348
    %v2340 = vunpack.c.l.b16 %v349
    %v2341 = vunpack.c.h.b16 %v349
    %v2342 = vunpack.c.l.b16 %v350
    %v2343 = vunpack.c.h.b16 %v350
    %v2344 = vunpack.c.l.b16 %v351
    %v2345 = vunpack.c.h.b16 %v351
    %v2346 = vunpack.c.l.b16 %v352
    %v2347 = vunpack.c.h.b16 %v352
    %v2348 = vunpack.c.l.b16 %v353
    %v2349 = vunpack.c.h.b16 %v353
    %v2350 = vunpack.c.l.b16 %v354
    %v2351 = vunpack.c.h.b16 %v354
    %v2352 = vunpack.c.l.b16 %v355
    %v2353 = vunpack.c.h.b16 %v355
    %v2354 = vunpack.c.l.b16 %v356
    %v2355 = vunpack.c.h.b16 %v356
    %v2356 = vunpack.c.l.b16 %v357
    %v2357 = vunpack.c.h.b16 %v357
    %v2358 = vunpack.c.l.b16 %v358
    %v2359 = vunpack.c.h.b16 %v358
    %v2360 = vunpack.c.l.b16 %v359
    %v2361 = vunpack.c.h.b16 %v359
    %v2362 = vunpack.c.l.b16 %v360
    %v2363 = vunpack.c.h.b16 %v360
    %v2364 = vunpack.c.l.b16 %v361
    %v2365 = vunpack.c.h.b16 %v361
    %v2366 = vunpack.c.l.b16 %v362
    %v2367 = vunpack.c.h.b16 %v362
    %v2368 = vunpack.c.l.b16 %v363
    %v2369 = vunpack.c.h.b16 %v363
    %v2370 = vunpack.c.l.b16 %v364
    %v2371 = vunpack.c.h.b16 %v364
    %v2372 = vunpack.c.l.b16 %v365
    %v2373 = vunpack.c.h.b16 %v365
    %v2374 = vunpack.c.l.b16 %v366
    %v2375 = vunpack.c.h.b16 %v366
    %v2376 = vunpack.c.l.b16 %v367
    %v2377 = vunpack.c.h.b16 %v367
    %v2378 = vunpack.c.l.b16 %v368
    %v2379 = vunpack.c.h.b16 %v368
    %v2380 = vunpack.c.l.b16 %v369
    %v2381 = vunpack.c.h.b16 %v369
    %v2382 = vunpack.c.l.b16 %v370
    %v2383 = vunpack.c.h.b16 %v370
    %v2384 = vunpack.c.l.b16 %v371
    %v2385 = vunpack.c.h.b16 %v371
    %v2386 = vunpack.c.l.b16 %v372
    %v2387 = vunpack.c.h.b16 %v372
    %v2388 = vunpack.c.l.b16 %v373
    %v2389 = vunpack.c.h.b16 %v373
    %v2390 = vunpack.c.l.b16 %v374
    %v2391 = vunpack.c.h.b16 %v374
    %v2392 = vunpack.c.l.b16 %v375
    %v2393 = vunpack.c.h.b16 %v375
    %v2394 = vunpack.c.l.b16 %v376
    %v2395 = vunpack.c.h.b16 %v376
    %v2396 = vunpack.c.l.b16 %v377
    %v2397 = vunpack.c.h.b16 %v377
    %v2398 = vunpack.c.l.b16 %v378
    %v2399 = vunpack.c.h.b16 %v378
    %v2400 = vunpack.c.l.b16 %v379
    %v2401 = vunpack.c.h.b16 %v379
    %v2402 = vunpack.c.l.b16 %v380
    %v2403 = vunpack.c.h.b16 %v380
    %v2404 = vunpack.c.l.b16 %v381
    %v2405 = vunpack.c.h.b16 %v381
    %v2406 = vunpack.c.l.b16 %v382
    %v2407 = vunpack.c.h.b16 %v382
    %v2408 = vunpack.c.l.b16 %v383
    %v2409 = vunpack.c.h.b16 %v383
    %v2410 = vunpack.c.l.b16 %v384
    %v2411 = vunpack.c.h.b16 %v384
    %v2412 = vunpack.c.l.b16 %v385
    %v2413 = vunpack.c.h.b16 %v385
    %v2414 = vunpack.c.l.b16 %v386
    %v2415 = vunpack.c.h.b16 %v386
    %v2416 = vunpack.c.l.b16 %v387
    %v2417 = vunpack.c.h.b16 %v387
    %v2418 = vunpack.c.l.b16 %v388
    %v2419 = vunpack.c.h.b16 %v388
    %v2420 = vunpack.c.l.b16 %v389
    %v2421 = vunpack.c.h.b16 %v389
    %v2422 = vunpack.c.l.b16 %v390
    %v2423 = vunpack.c.h.b16 %v390
    %v2424 = vunpack.c.l.b16 %v391
    %v2425 = vunpack.c.h.b16 %v391
    %v2426 = vunpack.c.l.b16 %v392
    %v2427 = vunpack.c.h.b16 %v392
    %v2428 = vunpack.c.l.b16 %v393
    %v2429 = vunpack.c.h.b16 %v393
    %v2430 = vunpack.c.l.b16 %v394
    %v2431 = vunpack.c.h.b16 %v394
    %v2432 = vunpack.c.l.b16 %v395
    %v2433 = vunpack.c.h.b16 %v395
    %v2434 = vunpack.c.l.b16 %v396
    %v2435 = vunpack.c.h.b16 %v396
    %v2436 = vunpack.c.l.b16 %v397
    %v2437 = vunpack.c.h.b16 %v397
    %v2438 = vunpack.c.l.b16 %v398
    %v2439 = vunpack.c.h.b16 %v398
    %v2440 = vunpack.c.l.b16 %v399
    %v2441 = vunpack.c.h.b16 %v399
    %v2442 = vunpack.c.l.b16 %v400
    %v2443 = vunpack.c.h.b16 %v400
    %v2444 = vunpack.c.l.b16 %v401
    %v2445 = vunpack.c.h.b16 %v401
    %v2446 = vunpack.c.l.b16 %v402
    %v2447 = vunpack.c.h.b16 %v402
    %v2448 = vunpack.c.l.b16 %v403
    %v2449 = vunpack.c.h.b16 %v403
    %v2450 = vunpack.c.l.b16 %v404
    %v2451 = vunpack.c.h.b16 %v404
    %v2452 = vunpack.c.l.b16 %v405
    %v2453 = vunpack.c.h.b16 %v405
    %v2454 = vunpack.c.l.b16 %v406
    %v2455 = vunpack.c.h.b16 %v406
    %v2456 = vunpack.c.l.b16 %v407
    %v2457 = vunpack.c.h.b16 %v407
    %v2458 = vunpack.c.l.b16 %v408
    %v2459 = vunpack.c.h.b16 %v408
    %v2460 = vunpack.c.l.b16 %v409
    %v2461 = vunpack.c.h.b16 %v409
    %v2462 = vunpack.c.l.b16 %v410
    %v2463 = vunpack.c.h.b16 %v410
    %v2464 = vunpack.c.l.b16 %v411
    %v2465 = vunpack.c.h.b16 %v411
    %v2466 = vunpack.c.l.b16 %v412
    %v2467 = vunpack.c.h.b16 %v412
    %v2468 = vunpack.c.l.b16 %v413
    %v2469 = vunpack.c.h.b16 %v413
    %v2470 = vunpack.c.l.b16 %v414
    %v2471 = vunpack.c.h.b16 %v414
    %v2472 = vunpack.c.l.b16 %v415
    %v2473 = vunpack.c.h.b16 %v415
    %v2474 = vunpack.c.l.b16 %v416
    %v2475 = vunpack.c.h.b16 %v416
    %v2476 = vunpack.c.l.b16 %v417
    %v2477 = vunpack.c.h.b16 %v417
    %v2478 = vunpack.c.l.b16 %v418
    %v2479 = vunpack.c.h.b16 %v418
    %v2480 = vunpack.c.l.b16 %v419
    %v2481 = vunpack.c.h.b16 %v419
    %v2482 = vunpack.c.l.b16 %v420
    %v2483 = vunpack.c.h.b16 %v420
    %v2484 = vunpack.c.l.b16 %v421
    %v2485 = vunpack.c.h.b16 %v421
    %v2486 = vunpack.c.l.b16 %v422
    %v2487 = vunpack.c.h.b16 %v422
    %v2488 = vunpack.c.l.b16 %v423
    %v2489 = vunpack.c.h.b16 %v423
    %v2490 = vunpack.c.l.b16 %v424
    %v2491 = vunpack.c.h.b16 %v424
    %v2492 = vunpack.c.l.b16 %v425
    %v2493 = vunpack.c.h.b16 %v425
    %v2494 = vunpack.c.l.b16 %v426
    %v2495 = vunpack.c.h.b16 %v426
    %v2496 = vunpack.c.l.b16 %v427
    %v2497 = vunpack.c.h.b16 %v427
    %v2498 = vunpack.c.l.b16 %v428
    %v2499 = vunpack.c.h.b16 %v428
    %v2500 = vunpack.c.l.b16 %v429
    %v2501 = vunpack.c.h.b16 %v429
    %v2502 = vunpack.c.l.b16 %v430
    %v2503 = vunpack.c.h.b16 %v430
    %v2504 = vunpack.c.l.b16 %v431
    %v2505 = vunpack.c.h.b16 %v431
    %v2506 = vunpack.c.l.b16 %v432
    %v2507 = vunpack.c.h.b16 %v432
    %v2508 = vunpack.c.l.b16 %v433
    %v2509 = vunpack.c.h.b16 %v433
    %v2510 = vunpack.c.l.b16 %v434
    %v2511 = vunpack.c.h.b16 %v434
    %v2512 = vunpack.c.l.b16 %v435
    %v2513 = vunpack.c.h.b16 %v435
    %v2514 = vunpack.c.l.b16 %v436
    %v2515 = vunpack.c.h.b16 %v436
    %v2516 = vunpack.c.l.b16 %v437
    %v2517 = vunpack.c.h.b16 %v437
    %v2518 = vunpack.c.l.b16 %v438
    %v2519 = vunpack.c.h.b16 %v438
    %v2520 = vunpack.c.l.b16 %v439
    %v2521 = vunpack.c.h.b16 %v439
    %v2522 = vunpack.c.l.b16 %v440
    %v2523 = vunpack.c.h.b16 %v440
    %v2524 = vunpack.c.l.b16 %v441
    %v2525 = vunpack.c.h.b16 %v441
    %v2526 = vunpack.c.l.b16 %v442
    %v2527 = vunpack.c.h.b16 %v442
    %v2528 = vunpack.c.l.b16 %v443
    %v2529 = vunpack.c.h.b16 %v443
    %v2530 = vunpack.c.l.b16 %v444
    %v2531 = vunpack.c.h.b16 %v444
    %v2532 = vunpack.c.l.b16 %v445
    %v2533 = vunpack.c.h.b16 %v445
    %v2534 = vunpack.c.l.b16 %v446
    %v2535 = vunpack.c.h.b16 %v446
    %v2536 = vunpack.c.l.b16 %v447
    %v2537 = vunpack.c.h.b16 %v447
    %v2538 = vunpack.c.l.b16 %v448
    %v2539 = vunpack.c.h.b16 %v448
    %v2540 = vunpack.c.l.b16 %v449
    %v2541 = vunpack.c.h.b16 %v449
    %v2542 = vunpack.c.l.b16 %v450
    %v2543 = vunpack.c.h.b16 %v450
    %v2544 = vunpack.c.l.b16 %v451
    %v2545 = vunpack.c.h.b16 %v451
    %v2546 = vunpack.c.l.b16 %v452
    %v2547 = vunpack.c.h.b16 %v452
    %v2548 = vunpack.c.l.b16 %v453
    %v2549 = vunpack.c.h.b16 %v453
    %v2550 = vunpack.c.l.b16 %v454
    %v2551 = vunpack.c.h.b16 %v454
    %v2552 = vunpack.c.l.b16 %v455
    %v2553 = vunpack.c.h.b16 %v455
    %v2554 = vunpack.c.l.b16 %v456
    %v2555 = vunpack.c.h.b16 %v456
    %v2556 = vunpack.c.l.b16 %v457
    %v2557 = vunpack.c.h.b16 %v457
    %v2558 = vunpack.c.l.b16 %v458
    %v2559 = vunpack.c.h.b16 %v458
    %v2560 = vunpack.c.l.b16 %v459
    %v2561 = vunpack.c.h.b16 %v459
    %v2562 = vunpack.c.l.b16 %v460
    %v2563 = vunpack.c.h.b16 %v460
    %v2564 = vunpack.c.l.b16 %v461
    %v2565 = vunpack.c.h.b16 %v461
    %v2566 = vunpack.c.l.b16 %v462
    %v2567 = vunpack.c.h.b16 %v462
    %v2568 = vunpack.c.l.b16 %v463
    %v2569 = vunpack.c.h.b16 %v463
    %v2570 = vunpack.c.l.b16 %v464
    %v2571 = vunpack.c.h.b16 %v464
    %v2572 = vunpack.c.l.b16 %v465
    %v2573 = vunpack.c.h.b16 %v465
    %v2574 = vunpack.c.l.b16 %v466
    %v2575 = vunpack.c.h.b16 %v466
    %v2576 = vunpack.c.l.b16 %v467
    %v2577 = vunpack.c.h.b16 %v467
    %v2578 = vunpack.c.l.b16 %v468
    %v2579 = vunpack.c.h.b16 %v468
    %v2580 = vunpack.c.l.b16 %v469
    %v2581 = vunpack.c.h.b16 %v469
    %v2582 = vunpack.c.l.b16 %v470
    %v2583 = vunpack.c.h.b16 %v470
    %v2584 = vunpack.c.l.b16 %v471
    %v2585 = vunpack.c.h.b16 %v471
    %v2586 = vunpack.c.l.b16 %v472
    %v2587 = vunpack.c.h.b16 %v472
    %v2588 = vunpack.c.l.b16 %v473
    %v2589 = vunpack.c.h.b16 %v473
    %v2590 = vunpack.c.l.b16 %v474
    %v2591 = vunpack.c.h.b16 %v474
    %v2592 = vunpack.c.l.b16 %v475
    %v2593 = vunpack.c.h.b16 %v475
    %v2594 = vunpack.c.l.b16 %v476
    %v2595 = vunpack.c.h.b16 %v476
    %v2596 = vunpack.c.l.b16 %v477
    %v2597 = vunpack.c.h.b16 %v477
    %v2598 = vunpack.c.l.b16 %v478
    %v2599 = vunpack.c.h.b16 %v478
    %v2600 = vunpack.c.l.b16 %v479
    %v2601 = vunpack.c.h.b16 %v479
    %v2602 = vunpack.c.l.b16 %v480
    %v2603 = vunpack.c.h.b16 %v480
    %v2604 = vunpack.c.l.b16 %v481
    %v2605 = vunpack.c.h.b16 %v481
    %v2606 = vunpack.c.l.b16 %v482
    %v2607 = vunpack.c.h.b16 %v482
    %v2608 = vunpack.c.l.b16 %v483
    %v2609 = vunpack.c.h.b16 %v483
    %v2610 = vunpack.c.l.b16 %v484
    %v2611 = vunpack.c.h.b16 %v484
    %v2612 = vunpack.c.l.b16 %v485
    %v2613 = vunpack.c.h.b16 %v485
    %v2614 = vunpack.c.l.b16 %v486
    %v2615 = vunpack.c.h.b16 %v486
    %v2616 = vunpack.c.l.b16 %v487
    %v2617 = vunpack.c.h.b16 %v487
    %v2618 = vunpack.c.l.b16 %v488
    %v2619 = vunpack.c.h.b16 %v488
    %v2620 = vunpack.c.l.b16 %v489
    %v2621 = vunpack.c.h.b16 %v489
    %v2622 = vunpack.c.l.b16 %v490
    %v2623 = vunpack.c.h.b16 %v490
    %v2624 = vunpack.c.l.b16 %v491
    %v2625 = vunpack.c.h.b16 %v491
    %v2626 = vunpack.c.l.b16 %v492
    %v2627 = vunpack.c.h.b16 %v492
    %v2628 = vunpack.c.l.b16 %v493
    %v2629 = vunpack.c.h.b16 %v493
    %v2630 = vunpack.c.l.b16 %v494
    %v2631 = vunpack.c.h.b16 %v494
    %v2632 = vunpack.c.l.b16 %v495
    %v2633 = vunpack.c.h.b16 %v495
    %v2634 = vunpack.c.l.b16 %v496
    %v2635 = vunpack.c.h.b16 %v496
    %v2636 = vunpack.c.l.b16 %v497
    %v2637 = vunpack.c.h.b16 %v497
    %v2638 = vunpack.c.l.b16 %v498
    %v2639 = vunpack.c.h.b16 %v498
    %v2640 = vunpack.c.l.b16 %v499
    %v2641 = vunpack.c.h.b16 %v499
    %v2642 = vunpack.c.l.b16 %v500
    %v2643 = vunpack.c.h.b16 %v500
    %v2644 = vunpack.c.l.b16 %v501
    %v2645 = vunpack.c.h.b16 %v501
    %v2646 = vunpack.c.l.b16 %v502
    %v2647 = vunpack.c.h.b16 %v502
    %v2648 = vunpack.c.l.b16 %v503
    %v2649 = vunpack.c.h.b16 %v503
    %v2650 = vunpack.c.l.b16 %v504
    %v2651 = vunpack.c.h.b16 %v504
    %v2652 = vunpack.c.l.b16 %v505
    %v2653 = vunpack.c.h.b16 %v505
    %v2654 = vunpack.c.l.b16 %v506
    %v2655 = vunpack.c.h.b16 %v506
    %v2656 = vunpack.c.l.b16 %v507
    %v2657 = vunpack.c.h.b16 %v507
    %v2658 = vunpack.c.l.b16 %v508
    %v2659 = vunpack.c.h.b16 %v508
    %v2660 = vunpack.c.l.b16 %v509
    %v2661 = vunpack.c.h.b16 %v509
    %v2662 = vunpack.c.l.b16 %v510
    %v2663 = vunpack.c.h.b16 %v510
    %v2664 = vunpack.c.l.b16 %v511
    %v2665 = vunpack.c.h.b16 %v511
    %v2666 = vunpack.c.l.b16 %v512
    %v2667 = vunpack.c.h.b16 %v512
    %v2668 = vunpack.c.l.b16 %v513
    %v2669 = vunpack.c.h.b16 %v513
    %v2670 = vunpack.c.l.b16 %v514
    %v2671 = vunpack.c.h.b16 %v514
    %v2672 = vunpack.c.l.b16 %v515
    %v2673 = vunpack.c.h.b16 %v515
    %v2674 = vunpack.c.l.b16 %v516
    %v2675 = vunpack.c.h.b16 %v516
    %v2676 = vunpack.c.l.b16 %v517
    %v2677 = vunpack.c.h.b16 %v517
    %v2678 = vunpack.c.l.b16 %v518
    %v2679 = vunpack.c.h.b16 %v518
    %v2680 = vunpack.c.l.b16 %v519
    %v2681 = vunpack.c.h.b16 %v519
    %v2682 = vunpack.c.l.b16 %v520
    %v2683 = vunpack.c.h.b16 %v520
    %v2684 = vunpack.c.l.b16 %v521
    %v2685 = vunpack.c.h.b16 %v521
    %v2686 = vunpack.c.l.b16 %v522
    %v2687 = vunpack.c.h.b16 %v522
    %v2688 = vunpack.c.l.b16 %v523
    %v2689 = vunpack.c.h.b16 %v523
    %v2690 = vunpack.c.l.b16 %v524
    %v2691 = vunpack.c.h.b16 %v524
    %v2692 = vunpack.c.l.b16 %v525
    %v2693 = vunpack.c.h.b16 %v525
    %v2694 = vunpack.c.l.b16 %v526
    %v2695 = vunpack.c.h.b16 %v526
    %v2696 = vunpack.c.l.b16 %v527
    %v2697 = vunpack.c.h.b16 %v527
    %v2698 = vunpack.c.l.b16 %v528
    %v2699 = vunpack.c.h.b16 %v528
    %v2700 = vunpack.c.l.b16 %v529
    %v2701 = vunpack.c.h.b16 %v529
    %v2702 = vunpack.c.l.b16 %v530
    %v2703 = vunpack.c.h.b16 %v530
    %v2704 = vunpack.c.l.b16 %v531
    %v2705 = vunpack.c.h.b16 %v531
    %v2706 = vunpack.c.l.b16 %v532
    %v2707 = vunpack.c.h.b16 %v532
    %v2708 = vunpack.c.l.b16 %v533
    %v2709 = vunpack.c.h.b16 %v533
    %v2710 = vunpack.c.l.b16 %v534
    %v2711 = vunpack.c.h.b16 %v534
    %v2712 = vunpack.c.l.b16 %v535
    %v2713 = vunpack.c.h.b16 %v535
    %v2714 = vunpack.c.l.b16 %v536
    %v2715 = vunpack.c.h.b16 %v536
    %v2716 = vunpack.c.l.b16 %v537
    %v2717 = vunpack.c.h.b16 %v537
    %v2718 = vunpack.c.l.b16 %v538
    %v2719 = vunpack.c.h.b16 %v538
    %v2720 = vunpack.c.l.b16 %v539
    %v2721 = vunpack.c.h.b16 %v539
    %v2722 = vunpack.c.l.b16 %v540
    %v2723 = vunpack.c.h.b16 %v540
    %v2724 = vunpack.c.l.b16 %v541
    %v2725 = vunpack.c.h.b16 %v541
    %v2726 = vunpack.c.l.b16 %v542
    %v2727 = vunpack.c.h.b16 %v542
    %v2728 = vunpack.c.l.b16 %v543
    %v2729 = vunpack.c.h.b16 %v543
    %v2730 = vunpack.c.l.b16 %v544
    %v2731 = vunpack.c.h.b16 %v544
    %v2732 = vunpack.c.l.b16 %v545
    %v2733 = vunpack.c.h.b16 %v545
    %v2734 = vunpack.c.l.b16 %v546
    %v2735 = vunpack.c.h.b16 %v546
    %v2736 = vunpack.c.l.b16 %v547
    %v2737 = vunpack.c.h.b16 %v547
    %v2738 = vunpack.c.l.b16 %v548
    %v2739 = vunpack.c.h.b16 %v548
    %v2740 = vunpack.c.l.b16 %v549
    %v2741 = vunpack.c.h.b16 %v549
    %v2742 = vunpack.c.l.b16 %v550
    %v2743 = vunpack.c.h.b16 %v550
    %v2744 = vunpack.c.l.b16 %v551
    %v2745 = vunpack.c.h.b16 %v551
    %v2746 = vunpack.c.l.b16 %v552
    %v2747 = vunpack.c.h.b16 %v552
    %v2748 = vunpack.c.l.b16 %v553
    %v2749 = vunpack.c.h.b16 %v553
    %v2750 = vunpack.c.l.b16 %v554
    %v2751 = vunpack.c.h.b16 %v554
    %v2752 = vunpack.c.l.b16 %v555
    %v2753 = vunpack.c.h.b16 %v555
    %v2754 = vunpack.c.l.b16 %v556
    %v2755 = vunpack.c.h.b16 %v556
    %v2756 = vunpack.c.l.b16 %v557
    %v2757 = vunpack.c.h.b16 %v557
    %v2758 = vunpack.c.l.b16 %v558
    %v2759 = vunpack.c.h.b16 %v558
    %v2760 = vunpack.c.l.b16 %v559
    %v2761 = vunpack.c.h.b16 %v559
    %v2762 = vunpack.c.l.b16 %v560
    %v2763 = vunpack.c.h.b16 %v560
    %v2764 = vunpack.c.l.b16 %v561
    %v2765 = vunpack.c.h.b16 %v561
    %v2766 = vunpack.c.l.b16 %v562
    %v2767 = vunpack.c.h.b16 %v562
    %v2768 = vunpack.c.l.b16 %v563
    %v2769 = vunpack.c.h.b16 %v563
    %v2770 = vunpack.c.l.b16 %v564
    %v2771 = vunpack.c.h.b16 %v564
    %v2772 = vunpack.c.l.b16 %v565
    %v2773 = vunpack.c.h.b16 %v565
    %v2774 = vunpack.c.l.b16 %v566
    %v2775 = vunpack.c.h.b16 %v566
    %v2776 = vunpack.c.l.b16 %v567
    %v2777 = vunpack.c.h.b16 %v567
    %v2778 = vunpack.c.l.b16 %v568
    %v2779 = vunpack.c.h.b16 %v568
    %v2780 = vunpack.c.l.b16 %v569
    %v2781 = vunpack.c.h.b16 %v569
    %v2782 = vunpack.c.l.b16 %v570
    %v2783 = vunpack.c.h.b16 %v570
    %v2784 = vunpack.c.l.b16 %v571
    %v2785 = vunpack.c.h.b16 %v571
    %v2786 = vunpack.c.l.b16 %v572
    %v2787 = vunpack.c.h.b16 %v572
    %v2788 = vunpack.c.l.b16 %v573
    %v2789 = vunpack.c.h.b16 %v573
    %v2790 = vunpack.c.l.b16 %v574
    %v2791 = vunpack.c.h.b16 %v574
    %v2792 = vunpack.c.l.b16 %v575
    %v2793 = vunpack.c.h.b16 %v575
    %v2794 = vunpack.c.l.b16 %v576
    %v2795 = vunpack.c.h.b16 %v576
    %v2796 = vunpack.c.l.b16 %v577
    %v2797 = vunpack.c.h.b16 %v577
    %v2798 = vunpack.c.l.b16 %v578
    %v2799 = vunpack.c.h.b16 %v578
    %v2800 = vunpack.c.l.b16 %v579
    %v2801 = vunpack.c.h.b16 %v579
    %v2802 = vunpack.c.l.b16 %v580
    %v2803 = vunpack.c.h.b16 %v580
    %v2804 = vunpack.c.l.b16 %v581
    %v2805 = vunpack.c.h.b16 %v581
    %v2806 = vunpack.c.l.b16 %v582
    %v2807 = vunpack.c.h.b16 %v582
    %v2808 = vunpack.c.l.b16 %v583
    %v2809 = vunpack.c.h.b16 %v583
    %v2810 = vunpack.c.l.b16 %v584
    %v2811 = vunpack.c.h.b16 %v584
    %v2812 = vunpack.c.l.b16 %v585
    %v2813 = vunpack.c.h.b16 %v585
    %v2814 = vunpack.c.l.b16 %v586
    %v2815 = vunpack.c.h.b16 %v586
    %v2816 = vunpack.c.l.b16 %v587
    %v2817 = vunpack.c.h.b16 %v587
    %v2818 = vunpack.c.l.b16 %v588
    %v2819 = vunpack.c.h.b16 %v588
    %v2820 = vunpack.c.l.b16 %v589
    %v2821 = vunpack.c.h.b16 %v589
    %v2822 = vunpack.c.l.b16 %v590
    %v2823 = vunpack.c.h.b16 %v590
    %v2824 = vunpack.c.l.b16 %v591
    %v2825 = vunpack.c.h.b16 %v591
    %v2826 = vunpack.c.l.b16 %v592
    %v2827 = vunpack.c.h.b16 %v592
    %v2828 = vunpack.c.l.b16 %v593
    %v2829 = vunpack.c.h.b16 %v593
    %v2830 = vunpack.c.l.b16 %v594
    %v2831 = vunpack.c.h.b16 %v594
    %v2832 = vunpack.c.l.b16 %v595
    %v2833 = vunpack.c.h.b16 %v595
    %v2834 = vunpack.c.l.b16 %v596
    %v2835 = vunpack.c.h.b16 %v596
    %v2836 = vunpack.c.l.b16 %v597
    %v2837 = vunpack.c.h.b16 %v597
    %v2838 = vunpack.c.l.b16 %v598
    %v2839 = vunpack.c.h.b16 %v598
    %v2840 = vunpack.c.l.b16 %v599
    %v2841 = vunpack.c.h.b16 %v599
    %v2842 = vunpack.c.l.b16 %v600
    %v2843 = vunpack.c.h.b16 %v600
    %v2844 = vunpack.c.l.b16 %v601
    %v2845 = vunpack.c.h.b16 %v601
    %v2846 = vunpack.c.l.b16 %v602
    %v2847 = vunpack.c.h.b16 %v602
    %v2848 = vunpack.c.l.b16 %v603
    %v2849 = vunpack.c.h.b16 %v603
    %v2850 = vunpack.c.l.b16 %v604
    %v2851 = vunpack.c.h.b16 %v604
    %v2852 = vunpack.c.l.b16 %v605
    %v2853 = vunpack.c.h.b16 %v605
    %v2854 = vunpack.c.l.b16 %v606
    %v2855 = vunpack.c.h.b16 %v606
    %v2856 = vunpack.c.l.b16 %v607
    %v2857 = vunpack.c.h.b16 %v607
    %v2858 = vunpack.c.l.b16 %v608
    %v2859 = vunpack.c.h.b16 %v608
    %v2860 = vunpack.c.l.b16 %v609
    %v2861 = vunpack.c.h.b16 %v609
    %v2862 = vunpack.c.l.b16 %v610
    %v2863 = vunpack.c.h.b16 %v610
    %v2864 = vunpack.c.l.b16 %v611
    %v2865 = vunpack.c.h.b16 %v611
    %v2866 = vunpack.c.l.b16 %v612
    %v2867 = vunpack.c.h.b16 %v612
    %v2868 = vunpack.c.l.b16 %v613
    %v2869 = vunpack.c.h.b16 %v613
    %v2870 = vunpack.c.l.b16 %v614
    %v2871 = vunpack.c.h.b16 %v614
    %v2872 = vunpack.c.l.b16 %v615
    %v2873 = vunpack.c.h.b16 %v615
    %v2874 = vunpack.c.l.b16 %v616
    %v2875 = vunpack.c.h.b16 %v616
    %v2876 = vunpack.c.l.b16 %v617
    %v2877 = vunpack.c.h.b16 %v617
    %v2878 = vunpack.c.l.b16 %v618
    %v2879 = vunpack.c.h.b16 %v618
    %v2880 = vunpack.c.l.b16 %v619
    %v2881 = vunpack.c.h.b16 %v619
    %v2882 = vunpack.c.l.b16 %v620
    %v2883 = vunpack.c.h.b16 %v620
    %v2884 = vunpack.c.l.b16 %v621
    %v2885 = vunpack.c.h.b16 %v621
    %v2886 = vunpack.c.l.b16 %v622
    %v2887 = vunpack.c.h.b16 %v622
    %v2888 = vunpack.c.l.b16 %v623
    %v2889 = vunpack.c.h.b16 %v623
    %v2890 = vunpack.c.l.b16 %v624
    %v2891 = vunpack.c.h.b16 %v624
    %v2892 = vunpack.c.l.b16 %v625
    %v2893 = vunpack.c.h.b16 %v625
    %v2894 = vunpack.c.l.b16 %v626
    %v2895 = vunpack.c.h.b16 %v626
    %v2896 = vunpack.c.l.b16 %v627
    %v2897 = vunpack.c.h.b16 %v627
    %v2898 = vunpack.c.l.b16 %v628
    %v2899 = vunpack.c.h.b16 %v628
    %v2900 = vunpack.c.l.b16 %v629
    %v2901 = vunpack.c.h.b16 %v629
    %v2902 = vunpack.c.l.b16 %v630
    %v2903 = vunpack.c.h.b16 %v630
    %v2904 = vunpack.c.l.b16 %v631
    %v2905 = vunpack.c.h.b16 %v631
    %v2906 = vunpack.c.l.b16 %v632
    %v2907 = vunpack.c.h.b16 %v632
    %v2908 = vunpack.c.l.b16 %v633
    %v2909 = vunpack.c.h.b16 %v633
    %v2910 = vunpack.c.l.b16 %v634
    %v2911 = vunpack.c.h.b16 %v634
    %v2912 = vunpack.c.l.b16 %v635
    %v2913 = vunpack.c.h.b16 %v635
    %v2914 = vunpack.c.l.b16 %v636
    %v2915 = vunpack.c.h.b16 %v636
    %v2916 = vunpack.c.l.b16 %v637
    %v2917 = vunpack.c.h.b16 %v637
    %v2918 = vunpack.c.l.b16 %v638
    %v2919 = vunpack.c.h.b16 %v638
    %v2920 = vunpack.c.l.b16 %v639
    %v2921 = vunpack.c.h.b16 %v639
    %v2922 = vunpack.c.l.b16 %v640
    %v2923 = vunpack.c.h.b16 %v640
    %v2924 = vunpack.c.l.b16 %v641
    %v2925 = vunpack.c.h.b16 %v641
    %v2926 = vunpack.c.l.b16 %v642
    %v2927 = vunpack.c.h.b16 %v642
    %v2928 = vunpack.c.l.b16 %v643
    %v2929 = vunpack.c.h.b16 %v643
    %v2930 = vunpack.c.l.b16 %v644
    %v2931 = vunpack.c.h.b16 %v644
    %v2932 = vunpack.c.l.b16 %v645
    %v2933 = vunpack.c.h.b16 %v645
    %v2934 = vunpack.c.l.b16 %v646
    %v2935 = vunpack.c.h.b16 %v646
    %v2936 = vunpack.c.l.b16 %v647
    %v2937 = vunpack.c.h.b16 %v647
    %v2938 = vunpack.c.l.b16 %v648
    %v2939 = vunpack.c.h.b16 %v648
    %v2940 = vunpack.c.l.b16 %v649
    %v2941 = vunpack.c.h.b16 %v649
    %v2942 = vunpack.c.l.b16 %v650
    %v2943 = vunpack.c.h.b16 %v650
    %v2944 = vunpack.c.l.b16 %v651
    %v2945 = vunpack.c.h.b16 %v651
    %v2946 = vunpack.c.l.b16 %v652
    %v2947 = vunpack.c.h.b16 %v652
    %v2948 = vunpack.c.l.b16 %v653
    %v2949 = vunpack.c.h.b16 %v653
    %v2950 = vunpack.c.l.b16 %v654
    %v2951 = vunpack.c.h.b16 %v654
    %v2952 = vunpack.c.l.b16 %v655
    %v2953 = vunpack.c.h.b16 %v655
    %v2954 = vunpack.c.l.b16 %v656
    %v2955 = vunpack.c.h.b16 %v656
    %v2956 = vunpack.c.l.b16 %v657
    %v2957 = vunpack.c.h.b16 %v657
    %v2958 = vunpack.c.l.b16 %v658
    %v2959 = vunpack.c.h.b16 %v658
    %v2960 = vunpack.c.l.b16 %v659
    %v2961 = vunpack.c.h.b16 %v659
    %v2962 = vunpack.c.l.b16 %v660
    %v2963 = vunpack.c.h.b16 %v660
    %v2964 = vunpack.c.l.b16 %v661
    %v2965 = vunpack.c.h.b16 %v661
    %v2966 = vunpack.c.l.b16 %v662
    %v2967 = vunpack.c.h.b16 %v662
    %v2968 = vunpack.c.l.b16 %v663
    %v2969 = vunpack.c.h.b16 %v663
    %v2970 = vunpack.c.l.b16 %v664
    %v2971 = vunpack.c.h.b16 %v664
    %v2972 = vunpack.c.l.b16 %v665
    %v2973 = vunpack.c.h.b16 %v665
    %v2974 = vunpack.c.l.b16 %v666
    %v2975 = vunpack.c.h.b16 %v666
    %v2976 = vunpack.c.l.b16 %v667
    %v2977 = vunpack.c.h.b16 %v667
    %v2978 = vunpack.c.l.b16 %v668
    %v2979 = vunpack.c.h.b16 %v668
    %v2980 = vunpack.c.l.b16 %v669
    %v2981 = vunpack.c.h.b16 %v669
    %v2982 = vunpack.c.l.b16 %v670
    %v2983 = vunpack.c.h.b16 %v670
    %v2984 = vunpack.c.l.b16 %v671
    %v2985 = vunpack.c.h.b16 %v671
    %v2986 = vunpack.c.l.b16 %v672
    %v2987 = vunpack.c.h.b16 %v672
    %v2988 = vunpack.c.l.b16 %v673
    %v2989 = vunpack.c.h.b16 %v673
    %v2990 = vunpack.c.l.b16 %v674
    %v2991 = vunpack.c.h.b16 %v674
    %v2992 = vunpack.c.l.b16 %v675
    %v2993 = vunpack.c.h.b16 %v675
    %v2994 = vunpack.c.l.b16 %v676
    %v2995 = vunpack.c.h.b16 %v676
    %v2996 = vunpack.c.l.b16 %v677
    %v2997 = vunpack.c.h.b16 %v677
    %v2998 = vunpack.c.l.b16 %v678
    %v2999 = vunpack.c.h.b16 %v678
    %v3000 = vunpack.c.l.b16 %v679
    %v3001 = vunpack.c.h.b16 %v679
    %v3002 = vunpack.c.l.b16 %v680
    %v3003 = vunpack.c.h.b16 %v680
    %v3004 = vunpack.c.l.b16 %v681
    %v3005 = vunpack.c.h.b16 %v681
    %v3006 = vunpack.c.l.b16 %v682
    %v3007 = vunpack.c.h.b16 %v682
    %v3008 = vunpack.c.l.b16 %v683
    %v3009 = vunpack.c.h.b16 %v683
    %v3010 = vunpack.c.l.b16 %v684
    %v3011 = vunpack.c.h.b16 %v684
    %v3012 = vunpack.c.l.b16 %v685
    %v3013 = vunpack.c.h.b16 %v685
    %v3014 = vunpack.c.l.b16 %v686
    %v3015 = vunpack.c.h.b16 %v686
    %v3016 = vunpack.c.l.b16 %v687
    %v3017 = vunpack.c.h.b16 %v687
    %v3018 = vunpack.c.l.b16 %v688
    %v3019 = vunpack.c.h.b16 %v688
    %v3020 = vunpack.c.l.b16 %v689
    %v3021 = vunpack.c.h.b16 %v689
    %v3022 = vunpack.c.l.b16 %v690
    %v3023 = vunpack.c.h.b16 %v690
    %v3024 = vunpack.c.l.b16 %v691
    %v3025 = vunpack.c.h.b16 %v691
    %v3026 = vunpack.c.l.b16 %v692
    %v3027 = vunpack.c.h.b16 %v692
    %v3028 = vunpack.c.l.b16 %v693
    %v3029 = vunpack.c.h.b16 %v693
    %v3030 = vunpack.c.l.b16 %v694
    %v3031 = vunpack.c.h.b16 %v694
    %v3032 = vunpack.c.l.b16 %v695
    %v3033 = vunpack.c.h.b16 %v695
    %v3034 = vunpack.c.l.b16 %v696
    %v3035 = vunpack.c.h.b16 %v696
    %v3036 = vunpack.c.l.b16 %v697
    %v3037 = vunpack.c.h.b16 %v697
    %v3038 = vunpack.c.l.b16 %v698
    %v3039 = vunpack.c.h.b16 %v698
    %v3040 = vunpack.c.l.b16 %v699
    %v3041 = vunpack.c.h.b16 %v699
    %v3042 = vunpack.c.l.b16 %v700
    %v3043 = vunpack.c.h.b16 %v700
    %v3044 = vunpack.c.l.b16 %v701
    %v3045 = vunpack.c.h.b16 %v701
    %v3046 = vunpack.c.l.b16 %v702
    %v3047 = vunpack.c.h.b16 %v702
    %v3048 = vunpack.c.l.b16 %v703
    %v3049 = vunpack.c.h.b16 %v703
    %v3050 = vunpack.c.l.b16 %v704
    %v3051 = vunpack.c.h.b16 %v704
    %v3052 = vunpack.c.l.b16 %v705
    %v3053 = vunpack.c.h.b16 %v705
    %v3054 = vunpack.c.l.b16 %v706
    %v3055 = vunpack.c.h.b16 %v706
    %v3056 = vunpack.c.l.b16 %v707
    %v3057 = vunpack.c.h.b16 %v707
    %v3058 = vunpack.c.l.b16 %v708
    %v3059 = vunpack.c.h.b16 %v708
    %v3060 = vunpack.c.l.b16 %v709
    %v3061 = vunpack.c.h.b16 %v709
    %v3062 = vunpack.c.l.b16 %v710
    %v3063 = vunpack.c.h.b16 %v710
    %v3064 = vunpack.c.l.b16 %v711
    %v3065 = vunpack.c.h.b16 %v711
    %v3066 = vunpack.c.l.b16 %v712
    %v3067 = vunpack.c.h.b16 %v712
    %v3068 = vunpack.c.l.b16 %v713
    %v3069 = vunpack.c.h.b16 %v713
    %v3070 = vunpack.c.l.b16 %v714
    %v3071 = vunpack.c.h.b16 %v714
    %v3072 = vunpack.c.l.b16 %v715
    %v3073 = vunpack.c.h.b16 %v715
    %v3074 = vunpack.c.l.b16 %v716
    %v3075 = vunpack.c.h.b16 %v716
    %v3076 = vunpack.c.l.b16 %v717
    %v3077 = vunpack.c.h.b16 %v717
    %v3078 = vunpack.c.l.b16 %v718
    %v3079 = vunpack.c.h.b16 %v718
    %v3080 = vunpack.c.l.b16 %v719
    %v3081 = vunpack.c.h.b16 %v719
    %v3082 = vunpack.c.l.b16 %v720
    %v3083 = vunpack.c.h.b16 %v720
    %v3084 = vunpack.c.l.b16 %v721
    %v3085 = vunpack.c.h.b16 %v721
    %v3086 = vunpack.c.l.b16 %v722
    %v3087 = vunpack.c.h.b16 %v722
    %v3088 = vunpack.c.l.b16 %v723
    %v3089 = vunpack.c.h.b16 %v723
    %v3090 = vunpack.c.l.b16 %v724
    %v3091 = vunpack.c.h.b16 %v724
    %v3092 = vunpack.c.l.b16 %v725
    %v3093 = vunpack.c.h.b16 %v725
    %v3094 = vunpack.c.l.b16 %v726
    %v3095 = vunpack.c.h.b16 %v726
    %v3096 = vunpack.c.l.b16 %v727
    %v3097 = vunpack.c.h.b16 %v727
    %v3098 = vunpack.c.l.b16 %v728
    %v3099 = vunpack.c.h.b16 %v728
    %v3100 = vunpack.c.l.b16 %v729
    %v3101 = vunpack.c.h.b16 %v729
    %v3102 = vunpack.c.l.b16 %v730
    %v3103 = vunpack.c.h.b16 %v730
    %v3104 = vunpack.c.l.b16 %v731
    %v3105 = vunpack.c.h.b16 %v731
    %v3106 = vunpack.c.l.b16 %v732
    %v3107 = vunpack.c.h.b16 %v732
    %v3108 = vunpack.c.l.b16 %v733
    %v3109 = vunpack.c.h.b16 %v733
    %v3110 = vunpack.c.l.b16 %v734
    %v3111 = vunpack.c.h.b16 %v734
    %v3112 = vunpack.c.l.b16 %v735
    %v3113 = vunpack.c.h.b16 %v735
    %v3114 = vunpack.c.l.b16 %v736
    %v3115 = vunpack.c.h.b16 %v736
    %v3116 = vunpack.c.l.b16 %v737
    %v3117 = vunpack.c.h.b16 %v737
    %v3118 = vunpack.c.l.b16 %v738
    %v3119 = vunpack.c.h.b16 %v738
    %v3120 = vunpack.c.l.b16 %v739
    %v3121 = vunpack.c.h.b16 %v739
    %v3122 = vunpack.c.l.b16 %v740
    %v3123 = vunpack.c.h.b16 %v740
    %v3124 = vunpack.c.l.b16 %v741
    %v3125 = vunpack.c.h.b16 %v741
    %v3126 = vunpack.c.l.b16 %v742
    %v3127 = vunpack.c.h.b16 %v742
    %v3128 = vunpack.c.l.b16 %v743
    %v3129 = vunpack.c.h.b16 %v743
    %v3130 = vunpack.c.l.b16 %v744
    %v3131 = vunpack.c.h.b16 %v744
    %v3132 = vunpack.c.l.b16 %v745
    %v3133 = vunpack.c.h.b16 %v745
    %v3134 = vunpack.c.l.b16 %v746
    %v3135 = vunpack.c.h.b16 %v746
    %v3136 = vunpack.c.l.b16 %v747
    %v3137 = vunpack.c.h.b16 %v747
    %v3138 = vunpack.c.l.b16 %v748
    %v3139 = vunpack.c.h.b16 %v748
    %v3140 = vunpack.c.l.b16 %v749
    %v3141 = vunpack.c.h.b16 %v749
    %v3142 = vunpack.c.l.b16 %v750
    %v3143 = vunpack.c.h.b16 %v750
    %v3144 = vunpack.c.l.b16 %v751
    %v3145 = vunpack.c.h.b16 %v751
    %v3146 = vunpack.c.l.b16 %v752
    %v3147 = vunpack.c.h.b16 %v752
    %v3148 = vunpack.c.l.b16 %v753
    %v3149 = vunpack.c.h.b16 %v753
    %v3150 = vunpack.c.l.b16 %v754
    %v3151 = vunpack.c.h.b16 %v754
    %v3152 = vunpack.c.l.b16 %v755
    %v3153 = vunpack.c.h.b16 %v755
    %v3154 = vunpack.c.l.b16 %v756
    %v3155 = vunpack.c.h.b16 %v756
    %v3156 = vunpack.c.l.b16 %v757
    %v3157 = vunpack.c.h.b16 %v757
    %v3158 = vunpack.c.l.b16 %v758
    %v3159 = vunpack.c.h.b16 %v758
    %v3160 = vunpack.c.l.b16 %v759
    %v3161 = vunpack.c.h.b16 %v759
    %v3162 = vunpack.c.l.b16 %v760
    %v3163 = vunpack.c.h.b16 %v760
    %v3164 = vunpack.c.l.b16 %v761
    %v3165 = vunpack.c.h.b16 %v761
    %v3166 = vunpack.c.l.b16 %v762
    %v3167 = vunpack.c.h.b16 %v762
    %v3168 = vunpack.c.l.b16 %v763
    %v3169 = vunpack.c.h.b16 %v763
    %v3170 = vunpack.c.l.b16 %v764
    %v3171 = vunpack.c.h.b16 %v764
    %v3172 = vunpack.c.l.b16 %v765
    %v3173 = vunpack.c.h.b16 %v765
    %v3174 = vunpack.c.l.b16 %v766
    %v3175 = vunpack.c.h.b16 %v766
    %v3176 = vunpack.c.l.b16 %v767
    %v3177 = vunpack.c.h.b16 %v767
    %v3178 = vunpack.c.l.b16 %v768
    %v3179 = vunpack.c.h.b16 %v768
    %v3180 = vunpack.c.l.b16 %v769
    %v3181 = vunpack.c.h.b16 %v769
    %v3182 = vunpack.c.l.b16 %v770
    %v3183 = vunpack.c.h.b16 %v770
    %v3184 = vunpack.c.l.b16 %v771
    %v3185 = vunpack.c.h.b16 %v771
    %v3186 = vunpack.c.l.b16 %v772
    %v3187 = vunpack.c.h.b16 %v772
    %v3188 = vunpack.c.l.b16 %v773
    %v3189 = vunpack.c.h.b16 %v773
    %v3190 = vunpack.c.l.b16 %v774
    %v3191 = vunpack.c.h.b16 %v774
    %v3192 = vunpack.c.l.b16 %v775
    %v3193 = vunpack.c.h.b16 %v775
    %v3194 = vunpack.c.l.b16 %v776
    %v3195 = vunpack.c.h.b16 %v776
    %v3196 = vunpack.c.l.b16 %v777
    %v3197 = vunpack.c.h.b16 %v777
    %v3198 = vunpack.c.l.b16 %v778
    %v3199 = vunpack.c.h.b16 %v778
    %v3200 = vunpack.c.l.b16 %v779
    %v3201 = vunpack.c.h.b16 %v779
    %v3202 = vunpack.c.l.b16 %v780
    %v3203 = vunpack.c.h.b16 %v780
    %v3204 = vunpack.c.l.b16 %v781
    %v3205 = vunpack.c.h.b16 %v781
    %v3206 = vunpack.c.l.b16 %v782
    %v3207 = vunpack.c.h.b16 %v782
    %v3208 = vunpack.c.l.b16 %v783
    %v3209 = vunpack.c.h.b16 %v783
    %v3210 = vunpack.c.l.b16 %v784
    %v3211 = vunpack.c.h.b16 %v784
    %v3212 = vunpack.c.l.b16 %v785
    %v3213 = vunpack.c.h.b16 %v785
    %v3214 = vunpack.c.l.b16 %v786
    %v3215 = vunpack.c.h.b16 %v786
    %v3216 = vunpack.c.l.b16 %v787
    %v3217 = vunpack.c.h.b16 %v787
    %v3218 = vunpack.c.l.b16 %v788
    %v3219 = vunpack.c.h.b16 %v788
    %v3220 = vunpack.c.l.b16 %v789
    %v3221 = vunpack.c.h.b16 %v789
    %v3222 = vunpack.c.l.b16 %v790
    %v3223 = vunpack.c.h.b16 %v790
    %v3224 = vunpack.c.l.b16 %v791
    %v3225 = vunpack.c.h.b16 %v791
    %v3226 = vunpack.c.l.b16 %v792
    %v3227 = vunpack.c.h.b16 %v792
    %v3228 = vunpack.c.l.b16 %v793
    %v3229 = vunpack.c.h.b16 %v793
    %v3230 = vunpack.c.l.b16 %v794
    %v3231 = vunpack.c.h.b16 %v794
    %v3232 = vunpack.c.l.b16 %v795
    %v3233 = vunpack.c.h.b16 %v795
    %v3234 = vunpack.c.l.b16 %v796
    %v3235 = vunpack.c.h.b16 %v796
    %v3236 = vunpack.c.l.b16 %v797
    %v3237 = vunpack.c.h.b16 %v797
    %v3238 = vunpack.c.l.b16 %v798
    %v3239 = vunpack.c.h.b16 %v798
    %v3240 = vunpack.c.l.b16 %v799
    %v3241 = vunpack.c.h.b16 %v799
    %v3242 = vunpack.c.l.b16 %v800
    %v3243 = vunpack.c.h.b16 %v800
    %v3244 = vunpack.c.l.b16 %v801
    %v3245 = vunpack.c.h.b16 %v801
    %v3246 = vunpack.c.l.b16 %v802
    %v3247 = vunpack.c.h.b16 %v802
    %v3248 = vunpack.c.l.b16 %v803
    %v3249 = vunpack.c.h.b16 %v803
    %v3250 = vunpack.c.l.b16 %v804
    %v3251 = vunpack.c.h.b16 %v804
    %v3252 = vunpack.c.l.b16 %v805
    %v3253 = vunpack.c.h.b16 %v805
    %v3254 = vunpack.c.l.b16 %v806
    %v3255 = vunpack.c.h.b16 %v806
    %v3256 = vunpack.c.l.b16 %v807
    %v3257 = vunpack.c.h.b16 %v807
    %v3258 = vunpack.c.l.b16 %v808
    %v3259 = vunpack.c.h.b16 %v808
    %v3260 = vunpack.c.l.b16 %v809
    %v3261 = vunpack.c.h.b16 %v809
    %v3262 = vunpack.c.l.b16 %v810
    %v3263 = vunpack.c.h.b16 %v810
    %v3264 = vunpack.c.l.b16 %v811
    %v3265 = vunpack.c.h.b16 %v811
    %v3266 = vunpack.c.l.b16 %v812
    %v3267 = vunpack.c.h.b16 %v812
    %v3268 = vunpack.c.l.b16 %v813
    %v3269 = vunpack.c.h.b16 %v813
    %v3270 = vunpack.c.l.b16 %v814
    %v3271 = vunpack.c.h.b16 %v814
    %v3272 = vunpack.c.l.b16 %v815
    %v3273 = vunpack.c.h.b16 %v815
    %v3274 = vunpack.c.l.b16 %v816
    %v3275 = vunpack.c.h.b16 %v816
    %v3276 = vunpack.c.l.b16 %v817
    %v3277 = vunpack.c.h.b16 %v817
    %v3278 = vunpack.c.l.b16 %v818
    %v3279 = vunpack.c.h.b16 %v818
    %v3280 = vunpack.c.l.b16 %v819
    %v3281 = vunpack.c.h.b16 %v819
    %v3282 = vunpack.c.l.b16 %v820
    %v3283 = vunpack.c.h.b16 %v820
    %v3284 = vunpack.c.l.b16 %v821
    %v3285 = vunpack.c.h.b16 %v821
    %v3286 = vunpack.c.l.b16 %v822
    %v3287 = vunpack.c.h.b16 %v822
    %v3288 = vunpack.c.l.b16 %v823
    %v3289 = vunpack.c.h.b16 %v823
    %v3290 = vunpack.c.l.b16 %v824
    %v3291 = vunpack.c.h.b16 %v824
    %v3292 = vunpack.c.l.b16 %v825
    %v3293 = vunpack.c.h.b16 %v825
    %v3294 = vunpack.c.l.b16 %v826
    %v3295 = vunpack.c.h.b16 %v826
    %v3296 = vunpack.c.l.b16 %v827
    %v3297 = vunpack.c.h.b16 %v827
    %v3298 = vunpack.c.l.b16 %v828
    %v3299 = vunpack.c.h.b16 %v828
    %v3300 = vunpack.c.l.b16 %v829
    %v3301 = vunpack.c.h.b16 %v829
    %v3302 = vunpack.c.l.b16 %v830
    %v3303 = vunpack.c.h.b16 %v830
    %v3304 = vunpack.c.l.b16 %v831
    %v3305 = vunpack.c.h.b16 %v831
    %v3306 = vunpack.c.l.b16 %v832
    %v3307 = vunpack.c.h.b16 %v832
    %v3308 = vunpack.c.l.b16 %v833
    %v3309 = vunpack.c.h.b16 %v833
    %v3310 = vunpack.c.l.b16 %v834
    %v3311 = vunpack.c.h.b16 %v834
    %v3312 = vunpack.c.l.b16 %v835
    %v3313 = vunpack.c.h.b16 %v835
    %v3314 = vunpack.c.l.b16 %v836
    %v3315 = vunpack.c.h.b16 %v836
    %v3316 = vunpack.c.l.b16 %v837
    %v3317 = vunpack.c.h.b16 %v837
    %v3318 = vunpack.c.l.b16 %v838
    %v3319 = vunpack.c.h.b16 %v838
    %v3320 = vunpack.c.l.b16 %v839
    %v3321 = vunpack.c.h.b16 %v839
    %v3322 = vunpack.c.l.b16 %v840
    %v3323 = vunpack.c.h.b16 %v840
    %v3324 = vunpack.c.l.b16 %v841
    %v3325 = vunpack.c.h.b16 %v841
    %v3326 = vunpack.c.l.b16 %v842
    %v3327 = vunpack.c.h.b16 %v842
    %v3328 = vpack.c.b16 %v1738, %v1728
    %v3329 = vpack.c.b16 %v1739, %v1729
    %v3330 = vpack.c.b16 %v1740, %v1730
    %v3331 = vpack.c.b16 %v1741, %v1731
    %v3332 = vpack.c.b16 %v1742, %v1732
    %v3333 = vpack.c.b16 %v1743, %v1733
    %v3334 = vpack.c.b16 %v1744, %v1734
    %v3335 = vpack.c.b16 %v1745, %v1735
    %v3336 = vpack.c.b16 %v1746, %v1736
    %v3337 = vpack.c.b16 %v1747, %v1737
    %v3338 = vpack.c.b16 %v1758, %v1748
    %v3339 = vpack.c.b16 %v1759, %v1749
    %v3340 = vpack.c.b16 %v1760, %v1750
    %v3341 = vpack.c.b16 %v1761, %v1751
    %v3342 = vpack.c.b16 %v1762, %v1752
    %v3343 = vpack.c.b16 %v1763, %v1753
    %v3344 = vpack.c.b16 %v1764, %v1754
    %v3345 = vpack.c.b16 %v1765, %v1755
    %v3346 = vpack.c.b16 %v1766, %v1756
    %v3347 = vpack.c.b16 %v1767, %v1757
    %v3348 = vpack.c.b16 %v1778, %v1768
    %v3349 = vpack.c.b16 %v1779, %v1769
    %v3350 = vpack.c.b16 %v1780, %v1770
    %v3351 = vpack.c.b16 %v1781, %v1771
    %v3352 = vpack.c.b16 %v1782, %v1772
    %v3353 = vpack.c.b16 %v1783, %v1773
    %v3354 = vpack.c.b16 %v1784, %v1774
    %v3355 = vpack.c.b16 %v1785, %v1775
    %v3356 = vpack.c.b16 %v1786, %v1776
    %v3357 = vpack.c.b16 %v1787, %v1777
    %v3358 = vpack.c.b16 %v1798, %v1788
    %v3359 = vpack.c.b16 %v1799, %v1789
    %v3360 = vpack.c.b16 %v1800, %v1790
    %v3361 = vpack.c.b16 %v1801, %v1791
    %v3362 = vpack.c.b16 %v1802, %v1792
    %v3363 = vpack.c.b16 %v1803, %v1793
    %v3364 = vpack.c.b16 %v1804, %v1794
    %v3365 = vpack.c.b16 %v1805, %v1795
    %v3366 = vpack.c.b16 %v1806, %v1796
    %v3367 = vpack.c.b16 %v1807, %v1797
    %v3368 = vpack.c.b16 %v1818, %v1808
    %v3369 = vpack.c.b16 %v1819, %v1809
    %v3370 = vpack.c.b16 %v1820, %v1810
    %v3371 = vpack.c.b16 %v1821, %v1811
    %v3372 = vpack.c.b16 %v1822, %v1812
    %v3373 = vpack.c.b16 %v1823, %v1813
    %v3374 = vpack.c.b16 %v1824, %v1814
    %v3375 = vpack.c.b16 %v1825, %v1815
    %v3376 = vpack.c.b16 %v1826, %v1816
    %v3377 = vpack.c.b16 %v1827, %v1817
    %v3378 = vpack.c.b16 %v1838, %v1828
    %v3379 = vpack.c.b16 %v1839, %v1829
    %v3380 = vpack.c.b16 %v1840, %v1830
    %v3381 = vpack.c.b16 %v1841, %v1831
    %v3382 = vpack.c.b16 %v1842, %v1832
    %v3383 = vpack.c.b16 %v1843, %v1833
    %v3384 = vpack.c.b16 %v1844, %v1834
    %v3385 = vpack.c.b16 %v1845, %v1835
    %v3386 = vpack.c.b16 %v1846, %v1836
    %v3387 = vpack.c.b16 %v1847, %v1837
    %v3388 = vpack.c.b16 %v1858, %v1848
    %v3389 = vpack.c.b16 %v1859, %v1849
    %v3390 = vpack.c.b16 %v1860, %v1850
    %v3391 = vpack.c.b16 %v1861, %v1851
    %v3392 = vpack.c.b16 %v1862, %v1852
    %v3393 = vpack.c.b16 %v1863, %v1853
    %v3394 = vpack.c.b16 %v1864, %v1854
    %v3395 = vpack.c.b16 %v1865, %v1855
    %v3396 = vpack.c.b16 %v1866, %v1856
    %v3397 = vpack.c.b16 %v1867, %v1857
    %v3398 = vpack.c.b16 %v1878, %v1868
    %v3399 = vpack.c.b16 %v1879, %v1869
    %v3400 = vpack.c.b16 %v1880, %v1870
    %v3401 = vpack.c.b16 %v1881, %v1871
    %v3402 = vpack.c.b16 %v1882, %v1872
    %v3403 = vpack.c.b16 %v1883, %v1873
    %v3404 = vpack.c.b16 %v1884, %v1874
    %v3405 = vpack.c.b16 %v1885, %v1875
    %v3406 = vpack.c.b16 %v1886, %v1876
    %v3407 = vpack.c.b16 %v1887, %v1877
    %v3408 = vpack.c.b16 %v1898, %v1888
    %v3409 = vpack.c.b16 %v1899, %v1889
    %v3410 = vpack.c.b16 %v1900, %v1890
    %v3411 = vpack.c.b16 %v1901, %v1891
    %v3412 = vpack.c.b16 %v1902, %v1892
    %v3413 = vpack.c.b16 %v1903, %v1893
    %v3414 = vpack.c.b16 %v1904, %v1894
    %v3415 = vpack.c.b16 %v1905, %v1895
    %v3416 = vpack.c.b16 %v1906, %v1896
    %v3417 = vpack.c.b16 %v1907, %v1897
    %v3418 = vpack.c.b16 %v1918, %v1908
    %v3419 = vpack.c.b16 %v1919, %v1909
    %v3420 = vpack.c.b16 %v1920, %v1910
    %v3421 = vpack.c.b16 %v1921, %v1911
    %v3422 = vpack.c.b16 %v1922, %v1912
    %v3423 = vpack.c.b16 %v1923, %v1913
    %v3424 = vpack.c.b16 %v1924, %v1914
    %v3425 = vpack.c.b16 %v1925, %v1915
    %v3426 = vpack.c.b16 %v1926, %v1916
    %v3427 = vpack.c.b16 %v1927, %v1917
    %v3428 = vpack.c.b16 %v1938, %v1928
    %v3429 = vpack.c.b16 %v1939, %v1929
    %v3430 = vpack.c.b16 %v1940, %v1930
    %v3431 = vpack.c.b16 %v1941, %v1931
    %v3432 = vpack.c.b16 %v1942, %v1932
    %v3433 = vpack.c.b16 %v1943, %v1933
    %v3434 = vpack.c.b16 %v1944, %v1934
    %v3435 = vpack.c.b16 %v1945, %v1935
    %v3436 = vpack.c.b16 %v1946, %v1936
    %v3437 = vpack.c.b16 %v1947, %v1937
    %v3438 = vpack.c.b16 %v1958, %v1948
    %v3439 = vpack.c.b16 %v1959, %v1949
    %v3440 = vpack.c.b16 %v1960, %v1950
    %v3441 = vpack.c.b16 %v1961, %v1951
    %v3442 = vpack.c.b16 %v1962, %v1952
    %v3443 = vpack.c.b16 %v1963, %v1953
    %v3444 = vpack.c.b16 %v1964, %v1954
    %v3445 = vpack.c.b16 %v1965, %v1955
    %v3446 = vpack.c.b16 %v1966, %v1956
    %v3447 = vpack.c.b16 %v1967, %v1957
    %v3448 = vpack.c.b16 %v1978, %v1968
    %v3449 = vpack.c.b16 %v1979, %v1969
    %v3450 = vpack.c.b16 %v1980, %v1970
    %v3451 = vpack.c.b16 %v1981, %v1971
    %v3452 = vpack.c.b16 %v1982, %v1972
    %v3453 = vpack.c.b16 %v1983, %v1973
    %v3454 = vpack.c.b16 %v1984, %v1974
    %v3455 = vpack.c.b16 %v1985, %v1975
    %v3456 = vpack.c.b16 %v1986, %v1976
    %v3457 = vpack.c.b16 %v1987, %v1977
    %v3458 = vpack.c.b16 %v1998, %v1988
    %v3459 = vpack.c.b16 %v1999, %v1989
    %v3460 = vpack.c.b16 %v2000, %v1990
    %v3461 = vpack.c.b16 %v2001, %v1991
    %v3462 = vpack.c.b16 %v2002, %v1992
    %v3463 = vpack.c.b16 %v2003, %v1993
    %v3464 = vpack.c.b16 %v2004, %v1994
    %v3465 = vpack.c.b16 %v2005, %v1995
    %v3466 = vpack.c.b16 %v2006, %v1996
    %v3467 = vpack.c.b16 %v2007, %v1997
    %v3468 = vpack.c.b16 %v2018, %v2008
    %v3469 = vpack.c.b16 %v2019, %v2009
    %v3470 = vpack.c.b16 %v2020, %v2010
    %v3471 = vpack.c.b16 %v2021, %v2011
    %v3472 = vpack.c.b16 %v2022, %v2012
    %v3473 = vpack.c.b16 %v2023, %v2013
    %v3474 = vpack.c.b16 %v2024, %v2014
    %v3475 = vpack.c.b16 %v2025, %v2015
    %v3476 = vpack.c.b16 %v2026, %v2016
    %v3477 = vpack.c.b16 %v2027, %v2017
    %v3478 = vpack.c.b16 %v2038, %v2028
    %v3479 = vpack.c.b16 %v2039, %v2029
    %v3480 = vpack.c.b16 %v2040, %v2030
    %v3481 = vpack.c.b16 %v2041, %v2031
    %v3482 = vpack.c.b16 %v2042, %v2032
    %v3483 = vpack.c.b16 %v2043, %v2033
    %v3484 = vpack.c.b16 %v2044, %v2034
    %v3485 = vpack.c.b16 %v2045, %v2035
    %v3486 = vpack.c.b16 %v2046, %v2036
    %v3487 = vpack.c.b16 %v2047, %v2037
    %v3488 = vpack.c.b16 %v2058, %v2048
    %v3489 = vpack.c.b16 %v2059, %v2049
    %v3490 = vpack.c.b16 %v2060, %v2050
    %v3491 = vpack.c.b16 %v2061, %v2051
    %v3492 = vpack.c.b16 %v2062, %v2052
    %v3493 = vpack.c.b16 %v2063, %v2053
    %v3494 = vpack.c.b16 %v2064, %v2054
    %v3495 = vpack.c.b16 %v2065, %v2055
    %v3496 = vpack.c.b16 %v2066, %v2056
    %v3497 = vpack.c.b16 %v2067, %v2057
    %v3498 = vpack.c.b16 %v2078, %v2068
    %v3499 = vpack.c.b16 %v2079, %v2069
    %v3500 = vpack.c.b16 %v2080, %v2070
    %v3501 = vpack.c.b16 %v2081, %v2071
    %v3502 = vpack.c.b16 %v2082, %v2072
    %v3503 = vpack.c.b16 %v2083, %v2073
    %v3504 = vpack.c.b16 %v2084, %v2074
    %v3505 = vpack.c.b16 %v2085, %v2075
    %v3506 = vpack.c.b16 %v2086, %v2076
    %v3507 = vpack.c.b16 %v2087, %v2077
    %v3508 = vpack.c.b16 %v2098, %v2088
    %v3509 = vpack.c.b16 %v2099, %v2089
    %v3510 = vpack.c.b16 %v2100, %v2090
    %v3511 = vpack.c.b16 %v2101, %v2091
    %v3512 = vpack.c.b16 %v2102, %v2092
    %v3513 = vpack.c.b16 %v2103, %v2093
    %v3514 = vpack.c.b16 %v2104, %v2094
    %v3515 = vpack.c.b16 %v2105, %v2095
    %v3516 = vpack.c.b16 %v2106, %v2096
    %v3517 = vpack.c.b16 %v2107, %v2097
    %v3518 = vpack.c.b16 %v2118, %v2108
    %v3519 = vpack.c.b16 %v2119, %v2109
    %v3520 = vpack.c.b16 %v2120, %v2110
    %v3521 = vpack.c.b16 %v2121, %v2111
    %v3522 = vpack.c.b16 %v2122, %v2112
    %v3523 = vpack.c.b16 %v2123, %v2113
    %v3524 = vpack.c.b16 %v2124, %v2114
    %v3525 = vpack.c.b16 %v2125, %v2115
    %v3526 = vpack.c.b16 %v2126, %v2116
    %v3527 = vpack.c.b16 %v2127, %v2117
    %v3528 = vpack.c.b16 %v2138, %v2128
    %v3529 = vpack.c.b16 %v2139, %v2129
    %v3530 = vpack.c.b16 %v2140, %v2130
    %v3531 = vpack.c.b16 %v2141, %v2131
    %v3532 = vpack.c.b16 %v2142, %v2132
    %v3533 = vpack.c.b16 %v2143, %v2133
    %v3534 = vpack.c.b16 %v2144, %v2134
    %v3535 = vpack.c.b16 %v2145, %v2135
    %v3536 = vpack.c.b16 %v2146, %v2136
    %v3537 = vpack.c.b16 %v2147, %v2137
    %v3538 = vpack.c.b16 %v2158, %v2148
    %v3539 = vpack.c.b16 %v2159, %v2149
    %v3540 = vpack.c.b16 %v2160, %v2150
    %v3541 = vpack.c.b16 %v2161, %v2151
    %v3542 = vpack.c.b16 %v2162, %v2152
    %v3543 = vpack.c.b16 %v2163, %v2153
    %v3544 = vpack.c.b16 %v2164, %v2154
    %v3545 = vpack.c.b16 %v2165, %v2155
    %v3546 = vpack.c.b16 %v2166, %v2156
    %v3547 = vpack.c.b16 %v2167, %v2157
    %v3548 = vpack.c.b16 %v2178, %v2168
    %v3549 = vpack.c.b16 %v2179, %v2169
    %v3550 = vpack.c.b16 %v2180, %v2170
    %v3551 = vpack.c.b16 %v2181, %v2171
    %v3552 = vpack.c.b16 %v2182, %v2172
    %v3553 = vpack.c.b16 %v2183, %v2173
    %v3554 = vpack.c.b16 %v2184, %v2174
    %v3555 = vpack.c.b16 %v2185, %v2175
    %v3556 = vpack.c.b16 %v2186, %v2176
    %v3557 = vpack.c.b16 %v2187, %v2177
    %v3558 = vpack.c.b16 %v2198, %v2188
    %v3559 = vpack.c.b16 %v2199, %v2189
    %v3560 = vpack.c.b16 %v2200, %v2190
    %v3561 = vpack.c.b16 %v2201, %v2191
    %v3562 = vpack.c.b16 %v2202, %v2192
    %v3563 = vpack.c.b16 %v2203, %v2193
    %v3564 = vpack.c.b16 %v2204, %v2194
    %v3565 = vpack.c.b16 %v2205, %v2195
    %v3566 = vpack.c.b16 %v2206, %v2196
    %v3567 = vpack.c.b16 %v2207, %v2197
    %v3568 = vpack.c.b16 %v2218, %v2208
    %v3569 = vpack.c.b16 %v2219, %v2209
    %v3570 = vpack.c.b16 %v2220, %v2210
    %v3571 = vpack.c.b16 %v2221, %v2211
    %v3572 = vpack.c.b16 %v2222, %v2212
    %v3573 = vpack.c.b16 %v2223, %v2213
    %v3574 = vpack.c.b16 %v2224, %v2214
    %v3575 = vpack.c.b16 %v2225, %v2215
    %v3576 = vpack.c.b16 %v2226, %v2216
    %v3577 = vpack.c.b16 %v2227, %v2217
    %v3578 = vpack.c.b16 %v2238, %v2228
    %v3579 = vpack.c.b16 %v2239, %v2229
    %v3580 = vpack.c.b16 %v2240, %v2230
    %v3581 = vpack.c.b16 %v2241, %v2231
    %v3582 = vpack.c.b16 %v2242, %v2232
    %v3583 = vpack.c.b16 %v2243, %v2233
    %v3584 = vpack.c.b16 %v2244, %v2234
    %v3585 = vpack.c.b16 %v2245, %v2235
    %v3586 = vpack.c.b16 %v2246, %v2236
    %v3587 = vpack.c.b16 %v2247, %v2237
    %v3588 = vpack.c.b16 %v2258, %v2248
    %v3589 = vpack.c.b16 %v2259, %v2249
    %v3590 = vpack.c.b16 %v2260, %v2250
    %v3591 = vpack.c.b16 %v2261, %v2251
    %v3592 = vpack.c.b16 %v2262, %v2252
    %v3593 = vpack.c.b16 %v2263, %v2253
    %v3594 = vpack.c.b16 %v2264, %v2254
    %v3595 = vpack.c.b16 %v2265, %v2255
    %v3596 = vpack.c.b16 %v2266, %v2256
    %v3597 = vpack.c.b16 %v2267, %v2257
    %v3598 = vpack.c.b16 %v2278, %v2268
    %v3599 = vpack.c.b16 %v2279, %v2269
    %v3600 = vpack.c.b16 %v2280, %v2270
    %v3601 = vpack.c.b16 %v2281, %v2271
    %v3602 = vpack.c.b16 %v2282, %v2272
    %v3603 = vpack.c.b16 %v2283, %v2273
    %v3604 = vpack.c.b16 %v2284, %v2274
    %v3605 = vpack.c.b16 %v2285, %v2275
    %v3606 = vpack.c.b16 %v2286, %v2276
    %v3607 = vpack.c.b16 %v2287, %v2277
    %v3608 = vpack.c.b16 %v2298, %v2288
    %v3609 = vpack.c.b16 %v2299, %v2289
    %v3610 = vpack.c.b16 %v2300, %v2290
    %v3611 = vpack.c.b16 %v2301, %v2291
    %v3612 = vpack.c.b16 %v2302, %v2292
    %v3613 = vpack.c.b16 %v2303, %v2293
    %v3614 = vpack.c.b16 %v2304, %v2294
    %v3615 = vpack.c.b16 %v2305, %v2295
    %v3616 = vpack.c.b16 %v2306, %v2296
    %v3617 = vpack.c.b16 %v2307, %v2297
    %v3618 = vpack.c.b16 %v2318, %v2308
    %v3619 = vpack.c.b16 %v2319, %v2309
    %v3620 = vpack.c.b16 %v2320, %v2310
    %v3621 = vpack.c.b16 %v2321, %v2311
    %v3622 = vpack.c.b16 %v2322, %v2312
    %v3623 = vpack.c.b16 %v2323, %v2313
    %v3624 = vpack.c.b16 %v2324, %v2314
    %v3625 = vpack.c.b16 %v2325, %v2315
    %v3626 = vpack.c.b16 %v2326, %v2316
    %v3627 = vpack.c.b16 %v2327, %v2317
    %v3628 = vpack.c.b16 %v2338, %v2328
    %v3629 = vpack.c.b16 %v2339, %v2329
    %v3630 = vpack.c.b16 %v2340, %v2330
    %v3631 = vpack.c.b16 %v2341, %v2331
    %v3632 = vpack.c.b16 %v2342, %v2332
    %v3633 = vpack.c.b16 %v2343, %v2333
    %v3634 = vpack.c.b16 %v2344, %v2334
    %v3635 = vpack.c.b16 %v2345, %v2335
    %v3636 = vpack.c.b16 %v2346, %v2336
    %v3637 = vpack.c.b16 %v2347, %v2337
    %v3638 = vpack.c.b16 %v2358, %v2348
    %v3639 = vpack.c.b16 %v2359, %v2349
    %v3640 = vpack.c.b16 %v2360, %v2350
    %v3641 = vpack.c.b16 %v2361, %v2351
    %v3642 = vpack.c.b16 %v2362, %v2352
    %v3643 = vpack.c.b16 %v2363, %v2353
    %v3644 = vpack.c.b16 %v2364, %v2354
    %v3645 = vpack.c.b16 %v2365, %v2355
    %v3646 = vpack.c.b16 %v2366, %v2356
    %v3647 = vpack.c.b16 %v2367, %v2357
    %v3648 = vpack.c.b16 %v2378, %v2368
    %v3649 = vpack.c.b16 %v2379, %v2369
    %v3650 = vpack.c.b16 %v2380, %v2370
    %v3651 = vpack.c.b16 %v2381, %v2371
    %v3652 = vpack.c.b16 %v2382, %v2372
    %v3653 = vpack.c.b16 %v2383, %v2373
    %v3654 = vpack.c.b16 %v2384, %v2374
    %v3655 = vpack.c.b16 %v2385, %v2375
    %v3656 = vpack.c.b16 %v2386, %v2376
    %v3657 = vpack.c.b16 %v2387, %v2377
    %v3658 = vpack.c.b16 %v2398, %v2388
    %v3659 = vpack.c.b16 %v2399, %v2389
    %v3660 = vpack.c.b16 %v2400, %v2390
    %v3661 = vpack.c.b16 %v2401, %v2391
    %v3662 = vpack.c.b16 %v2402, %v2392
    %v3663 = vpack.c.b16 %v2403, %v2393
    %v3664 = vpack.c.b16 %v2404, %v2394
    %v3665 = vpack.c.b16 %v2405, %v2395
    %v3666 = vpack.c.b16 %v2406, %v2396
    %v3667 = vpack.c.b16 %v2407, %v2397
    %v3668 = vpack.c.b16 %v2418, %v2408
    %v3669 = vpack.c.b16 %v2419, %v2409
    %v3670 = vpack.c.b16 %v2420, %v2410
    %v3671 = vpack.c.b16 %v2421, %v2411
    %v3672 = vpack.c.b16 %v2422, %v2412
    %v3673 = vpack.c.b16 %v2423, %v2413
    %v3674 = vpack.c.b16 %v2424, %v2414
    %v3675 = vpack.c.b16 %v2425, %v2415
    %v3676 = vpack.c.b16 %v2426, %v2416
    %v3677 = vpack.c.b16 %v2427, %v2417
    %v3678 = vpack.c.b16 %v2438, %v2428
    %v3679 = vpack.c.b16 %v2439, %v2429
    %v3680 = vpack.c.b16 %v2440, %v2430
    %v3681 = vpack.c.b16 %v2441, %v2431
    %v3682 = vpack.c.b16 %v2442, %v2432
    %v3683 = vpack.c.b16 %v2443, %v2433
    %v3684 = vpack.c.b16 %v2444, %v2434
    %v3685 = vpack.c.b16 %v2445, %v2435
    %v3686 = vpack.c.b16 %v2446, %v2436
    %v3687 = vpack.c.b16 %v2447, %v2437
    %v3688 = vpack.c.b16 %v2458, %v2448
    %v3689 = vpack.c.b16 %v2459, %v2449
    %v3690 = vpack.c.b16 %v2460, %v2450
    %v3691 = vpack.c.b16 %v2461, %v2451
    %v3692 = vpack.c.b16 %v2462, %v2452
    %v3693 = vpack.c.b16 %v2463, %v2453
    %v3694 = vpack.c.b16 %v2464, %v2454
    %v3695 = vpack.c.b16 %v2465, %v2455
    %v3696 = vpack.c.b16 %v2466, %v2456
    %v3697 = vpack.c.b16 %v2467, %v2457
    %v3698 = vpack.c.b16 %v2478, %v2468
    %v3699 = vpack.c.b16 %v2479, %v2469
    %v3700 = vpack.c.b16 %v2480, %v2470
    %v3701 = vpack.c.b16 %v2481, %v2471
    %v3702 = vpack.c.b16 %v2482, %v2472
    %v3703 = vpack.c.b16 %v2483, %v2473
    %v3704 = vpack.c.b16 %v2484, %v2474
    %v3705 = vpack.c.b16 %v2485, %v2475
    %v3706 = vpack.c.b16 %v2486, %v2476
    %v3707 = vpack.c.b16 %v2487, %v2477
    %v3708 = vpack.c.b16 %v2498, %v2488
    %v3709 = vpack.c.b16 %v2499, %v2489
    %v3710 = vpack.c.b16 %v2500, %v2490
    %v3711 = vpack.c.b16 %v2501, %v2491
    %v3712 = vpack.c.b16 %v2502, %v2492
    %v3713 = vpack.c.b16 %v2503, %v2493
    %v3714 = vpack.c.b16 %v2504, %v2494
    %v3715 = vpack.c.b16 %v2505, %v2495
    %v3716 = vpack.c.b16 %v2506, %v2496
    %v3717 = vpack.c.b16 %v2507, %v2497
    %v3718 = vpack.c.b16 %v2518, %v2508
    %v3719 = vpack.c.b16 %v2519, %v2509
    %v3720 = vpack.c.b16 %v2520, %v2510
    %v3721 = vpack.c.b16 %v2521, %v2511
    %v3722 = vpack.c.b16 %v2522, %v2512
    %v3723 = vpack.c.b16 %v2523, %v2513
    %v3724 = vpack.c.b16 %v2524, %v2514
    %v3725 = vpack.c.b16 %v2525, %v2515
    %v3726 = vpack.c.b16 %v2526, %v2516
    %v3727 = vpack.c.b16 %v2527, %v2517
    %v3728 = vpack.c.b16 %v2538, %v2528
    %v3729 = vpack.c.b16 %v2539, %v2529
    %v3730 = vpack.c.b16 %v2540, %v2530
    %v3731 = vpack.c.b16 %v2541, %v2531
    %v3732 = vpack.c.b16 %v2542, %v2532
    %v3733 = vpack.c.b16 %v2543, %v2533
    %v3734 = vpack.c.b16 %v2544, %v2534
    %v3735 = vpack.c.b16 %v2545, %v2535
    %v3736 = vpack.c.b16 %v2546, %v2536
    %v3737 = vpack.c.b16 %v2547, %v2537
    %v3738 = vpack.c.b16 %v2558, %v2548
    %v3739 = vpack.c.b16 %v2559, %v2549
    %v3740 = vpack.c.b16 %v2560, %v2550
    %v3741 = vpack.c.b16 %v2561, %v2551
    %v3742 = vpack.c.b16 %v2562, %v2552
    %v3743 = vpack.c.b16 %v2563, %v2553
    %v3744 = vpack.c.b16 %v2564, %v2554
    %v3745 = vpack.c.b16 %v2565, %v2555
    %v3746 = vpack.c.b16 %v2566, %v2556
    %v3747 = vpack.c.b16 %v2567, %v2557
    %v3748 = vpack.c.b16 %v2578, %v2568
    %v3749 = vpack.c.b16 %v2579, %v2569
    %v3750 = vpack.c.b16 %v2580, %v2570
    %v3751 = vpack.c.b16 %v2581, %v2571
    %v3752 = vpack.c.b16 %v2582, %v2572
    %v3753 = vpack.c.b16 %v2583, %v2573
    %v3754 = vpack.c.b16 %v2584, %v2574
    %v3755 = vpack.c.b16 %v2585, %v2575
    %v3756 = vpack.c.b16 %v2586, %v2576
    %v3757 = vpack.c.b16 %v2587, %v2577
    %v3758 = vpack.c.b16 %v2598, %v2588
    %v3759 = vpack.c.b16 %v2599, %v2589
    %v3760 = vpack.c.b16 %v2600, %v2590
    %v3761 = vpack.c.b16 %v2601, %v2591
    %v3762 = vpack.c.b16 %v2602, %v2592
    %v3763 = vpack.c.b16 %v2603, %v2593
    %v3764 = vpack.c.b16 %v2604, %v2594
    %v3765 = vpack.c.b16 %v2605, %v2595
    %v3766 = vpack.c.b16 %v2606, %v2596
    %v3767 = vpack.c.b16 %v2607, %v2597
    %v3768 = vpack.c.b16 %v2618, %v2608
    %v3769 = vpack.c.b16 %v2619, %v2609
    %v3770 = vpack.c.b16 %v2620, %v2610
    %v3771 = vpack.c.b16 %v2621, %v2611
    %v3772 = vpack.c.b16 %v2622, %v2612
    %v3773 = vpack.c.b16 %v2623, %v2613
    %v3774 = vpack.c.b16 %v2624, %v2614
    %v3775 = vpack.c.b16 %v2625, %v2615
    %v3776 = vpack.c.b16 %v2626, %v2616
    %v3777 = vpack.c.b16 %v2627, %v2617
    %v3778 = vpack.c.b16 %v2638, %v2628
    %v3779 = vpack.c.b16 %v2639, %v2629
    %v3780 = vpack.c.b16 %v2640, %v2630
    %v3781 = vpack.c.b16 %v2641, %v2631
    %v3782 = vpack.c.b16 %v2642, %v2632
    %v3783 = vpack.c.b16 %v2643, %v2633
    %v3784 = vpack.c.b16 %v2644, %v2634
    %v3785 = vpack.c.b16 %v2645, %v2635
    %v3786 = vpack.c.b16 %v2646, %v2636
    %v3787 = vpack.c.b16 %v2647, %v2637
    %v3788 = vpack.c.b16 %v2658, %v2648
    %v3789 = vpack.c.b16 %v2659, %v2649
    %v3790 = vpack.c.b16 %v2660, %v2650
    %v3791 = vpack.c.b16 %v2661, %v2651
    %v3792 = vpack.c.b16 %v2662, %v2652
    %v3793 = vpack.c.b16 %v2663, %v2653
    %v3794 = vpack.c.b16 %v2664, %v2654
    %v3795 = vpack.c.b16 %v2665, %v2655
    %v3796 = vpack.c.b16 %v2666, %v2656
    %v3797 = vpack.c.b16 %v2667, %v2657
    %v3798 = vpack.c.b16 %v2678, %v2668
    %v3799 = vpack.c.b16 %v2679, %v2669
    %v3800 = vpack.c.b16 %v2680, %v2670
    %v3801 = vpack.c.b16 %v2681, %v2671
    %v3802 = vpack.c.b16 %v2682, %v2672
    %v3803 = vpack.c.b16 %v2683, %v2673
    %v3804 = vpack.c.b16 %v2684, %v2674
    %v3805 = vpack.c.b16 %v2685, %v2675
    %v3806 = vpack.c.b16 %v2686, %v2676
    %v3807 = vpack.c.b16 %v2687, %v2677
    %v3808 = vpack.c.b16 %v2698, %v2688
    %v3809 = vpack.c.b16 %v2699, %v2689
    %v3810 = vpack.c.b16 %v2700, %v2690
    %v3811 = vpack.c.b16 %v2701, %v2691
    %v3812 = vpack.c.b16 %v2702, %v2692
    %v3813 = vpack.c.b16 %v2703, %v2693
    %v3814 = vpack.c.b16 %v2704, %v2694
    %v3815 = vpack.c.b16 %v2705, %v2695
    %v3816 = vpack.c.b16 %v2706, %v2696
    %v3817 = vpack.c.b16 %v2707, %v2697
    %v3818 = vpack.c.b16 %v2718, %v2708
    %v3819 = vpack.c.b16 %v2719, %v2709
    %v3820 = vpack.c.b16 %v2720, %v2710
    %v3821 = vpack.c.b16 %v2721, %v2711
    %v3822 = vpack.c.b16 %v2722, %v2712
    %v3823 = vpack.c.b16 %v2723, %v2713
    %v3824 = vpack.c.b16 %v2724, %v2714
    %v3825 = vpack.c.b16 %v2725, %v2715
    %v3826 = vpack.c.b16 %v2726, %v2716
    %v3827 = vpack.c.b16 %v2727, %v2717
    %v3828 = vpack.c.b16 %v2738, %v2728
    %v3829 = vpack.c.b16 %v2739, %v2729
    %v3830 = vpack.c.b16 %v2740, %v2730
    %v3831 = vpack.c.b16 %v2741, %v2731
    %v3832 = vpack.c.b16 %v2742, %v2732
    %v3833 = vpack.c.b16 %v2743, %v2733
    %v3834 = vpack.c.b16 %v2744, %v2734
    %v3835 = vpack.c.b16 %v2745, %v2735
    %v3836 = vpack.c.b16 %v2746, %v2736
    %v3837 = vpack.c.b16 %v2747, %v2737
    %v3838 = vpack.c.b16 %v2758, %v2748
    %v3839 = vpack.c.b16 %v2759, %v2749
    %v3840 = vpack.c.b16 %v2760, %v2750
    %v3841 = vpack.c.b16 %v2761, %v2751
    %v3842 = vpack.c.b16 %v2762, %v2752
    %v3843 = vpack.c.b16 %v2763, %v2753
    %v3844 = vpack.c.b16 %v2764, %v2754
    %v3845 = vpack.c.b16 %v2765, %v2755
    %v3846 = vpack.c.b16 %v2766, %v2756
    %v3847 = vpack.c.b16 %v2767, %v2757
    %v3848 = vpack.c.b16 %v2778, %v2768
    %v3849 = vpack.c.b16 %v2779, %v2769
    %v3850 = vpack.c.b16 %v2780, %v2770
    %v3851 = vpack.c.b16 %v2781, %v2771
    %v3852 = vpack.c.b16 %v2782, %v2772
    %v3853 = vpack.c.b16 %v2783, %v2773
    %v3854 = vpack.c.b16 %v2784, %v2774
    %v3855 = vpack.c.b16 %v2785, %v2775
    %v3856 = vpack.c.b16 %v2786, %v2776
    %v3857 = vpack.c.b16 %v2787, %v2777
    %v3858 = vpack.c.b16 %v2798, %v2788
    %v3859 = vpack.c.b16 %v2799, %v2789
    %v3860 = vpack.c.b16 %v2800, %v2790
    %v3861 = vpack.c.b16 %v2801, %v2791
    %v3862 = vpack.c.b16 %v2802, %v2792
    %v3863 = vpack.c.b16 %v2803, %v2793
    %v3864 = vpack.c.b16 %v2804, %v2794
    %v3865 = vpack.c.b16 %v2805, %v2795
    %v3866 = vpack.c.b16 %v2806, %v2796
    %v3867 = vpack.c.b16 %v2807, %v2797
    %v3868 = vpack.c.b16 %v2818, %v2808
    %v3869 = vpack.c.b16 %v2819, %v2809
    %v3870 = vpack.c.b16 %v2820, %v2810
    %v3871 = vpack.c.b16 %v2821, %v2811
    %v3872 = vpack.c.b16 %v2822, %v2812
    %v3873 = vpack.c.b16 %v2823, %v2813
    %v3874 = vpack.c.b16 %v2824, %v2814
    %v3875 = vpack.c.b16 %v2825, %v2815
    %v3876 = vpack.c.b16 %v2826, %v2816
    %v3877 = vpack.c.b16 %v2827, %v2817
    %v3878 = vpack.c.b16 %v2838, %v2828
    %v3879 = vpack.c.b16 %v2839, %v2829
    %v3880 = vpack.c.b16 %v2840, %v2830
    %v3881 = vpack.c.b16 %v2841, %v2831
    %v3882 = vpack.c.b16 %v2842, %v2832
    %v3883 = vpack.c.b16 %v2843, %v2833
    %v3884 = vpack.c.b16 %v2844, %v2834
    %v3885 = vpack.c.b16 %v2845, %v2835
    %v3886 = vpack.c.b16 %v2846, %v2836
    %v3887 = vpack.c.b16 %v2847, %v2837
    %v3888 = vpack.c.b16 %v2858, %v2848
    %v3889 = vpack.c.b16 %v2859, %v2849
    %v3890 = vpack.c.b16 %v2860, %v2850
    %v3891 = vpack.c.b16 %v2861, %v2851
    %v3892 = vpack.c.b16 %v2862, %v2852
    %v3893 = vpack.c.b16 %v2863, %v2853
    %v3894 = vpack.c.b16 %v2864, %v2854
    %v3895 = vpack.c.b16 %v2865, %v2855
    %v3896 = vpack.c.b16 %v2866, %v2856
    %v3897 = vpack.c.b16 %v2867, %v2857
    %v3898 = vpack.c.b16 %v2878, %v2868
    %v3899 = vpack.c.b16 %v2879, %v2869
    %v3900 = vpack.c.b16 %v2880, %v2870
    %v3901 = vpack.c.b16 %v2881, %v2871
    %v3902 = vpack.c.b16 %v2882, %v2872
    %v3903 = vpack.c.b16 %v2883, %v2873
    %v3904 = vpack.c.b16 %v2884, %v2874
    %v3905 = vpack.c.b16 %v2885, %v2875
    %v3906 = vpack.c.b16 %v2886, %v2876
    %v3907 = vpack.c.b16 %v2887, %v2877
    %v3908 = vpack.c.b16 %v2898, %v2888
    %v3909 = vpack.c.b16 %v2899, %v2889
    %v3910 = vpack.c.b16 %v2900, %v2890
    %v3911 = vpack.c.b16 %v2901, %v2891
    %v3912 = vpack.c.b16 %v2902, %v2892
    %v3913 = vpack.c.b16 %v2903, %v2893
    %v3914 = vpack.c.b16 %v2904, %v2894
    %v3915 = vpack.c.b16 %v2905, %v2895
    %v3916 = vpack.c.b16 %v2906, %v2896
    %v3917 = vpack.c.b16 %v2907, %v2897
    %v3918 = vpack.c.b16 %v2918, %v2908
    %v3919 = vpack.c.b16 %v2919, %v2909
    %v3920 = vpack.c.b16 %v2920, %v2910
    %v3921 = vpack.c.b16 %v2921, %v2911
    %v3922 = vpack.c.b16 %v2922, %v2912
    %v3923 = vpack.c.b16 %v2923, %v2913
    %v3924 = vpack.c.b16 %v2924, %v2914
    %v3925 = vpack.c.b16 %v2925, %v2915
    %v3926 = vpack.c.b16 %v2926, %v2916
    %v3927 = vpack.c.b16 %v2927, %v2917
    %v3928 = vpack.c.b16 %v2938, %v2928
    %v3929 = vpack.c.b16 %v2939, %v2929
    %v3930 = vpack.c.b16 %v2940, %v2930
    %v3931 = vpack.c.b16 %v2941, %v2931
    %v3932 = vpack.c.b16 %v2942, %v2932
    %v3933 = vpack.c.b16 %v2943, %v2933
    %v3934 = vpack.c.b16 %v2944, %v2934
    %v3935 = vpack.c.b16 %v2945, %v2935
    %v3936 = vpack.c.b16 %v2946, %v2936
    %v3937 = vpack.c.b16 %v2947, %v2937
    %v3938 = vpack.c.b16 %v2958, %v2948
    %v3939 = vpack.c.b16 %v2959, %v2949
    %v3940 = vpack.c.b16 %v2960, %v2950
    %v3941 = vpack.c.b16 %v2961, %v2951
    %v3942 = vpack.c.b16 %v2962, %v2952
    %v3943 = vpack.c.b16 %v2963, %v2953
    %v3944 = vpack.c.b16 %v2964, %v2954
    %v3945 = vpack.c.b16 %v2965, %v2955
    %v3946 = vpack.c.b16 %v2966, %v2956
    %v3947 = vpack.c.b16 %v2967, %v2957
    %v3948 = vpack.c.b16 %v2978, %v2968
    %v3949 = vpack.c.b16 %v2979, %v2969
    %v3950 = vpack.c.b16 %v2980, %v2970
    %v3951 = vpack.c.b16 %v2981, %v2971
    %v3952 = vpack.c.b16 %v2982, %v2972
    %v3953 = vpack.c.b16 %v2983, %v2973
    %v3954 = vpack.c.b16 %v2984, %v2974
    %v3955 = vpack.c.b16 %v2985, %v2975
    %v3956 = vpack.c.b16 %v2986, %v2976
    %v3957 = vpack.c.b16 %v2987, %v2977
    %v3958 = vpack.c.b16 %v2998, %v2988
    %v3959 = vpack.c.b16 %v2999, %v2989
    %v3960 = vpack.c.b16 %v3000, %v2990
    %v3961 = vpack.c.b16 %v3001, %v2991
    %v3962 = vpack.c.b16 %v3002, %v2992
    %v3963 = vpack.c.b16 %v3003, %v2993
    %v3964 = vpack.c.b16 %v3004, %v2994
    %v3965 = vpack.c.b16 %v3005, %v2995
    %v3966 = vpack.c.b16 %v3006, %v2996
    %v3967 = vpack.c.b16 %v3007, %v2997
    %v3968 = vpack.c.b16 %v3018, %v3008
    %v3969 = vpack.c.b16 %v3019, %v3009
    %v3970 = vpack.c.b16 %v3020, %v3010
    %v3971 = vpack.c.b16 %v3021, %v3011
    %v3972 = vpack.c.b16 %v3022, %v3012
    %v3973 = vpack.c.b16 %v3023, %v3013
    %v3974 = vpack.c.b16 %v3024, %v3014
    %v3975 = vpack.c.b16 %v3025, %v3015
    %v3976 = vpack.c.b16 %v3026, %v3016
    %v3977 = vpack.c.b16 %v3027, %v3017
    %v3978 = vpack.c.b16 %v3038, %v3028
    %v3979 = vpack.c.b16 %v3039, %v3029
    %v3980 = vpack.c.b16 %v3040, %v3030
    %v3981 = vpack.c.b16 %v3041, %v3031
    %v3982 = vpack.c.b16 %v3042, %v3032
    %v3983 = vpack.c.b16 %v3043, %v3033
    %v3984 = vpack.c.b16 %v3044, %v3034
    %v3985 = vpack.c.b16 %v3045, %v3035
    %v3986 = vpack.c.b16 %v3046, %v3036
    %v3987 = vpack.c.b16 %v3047, %v3037
    %v3988 = vpack.c.b16 %v3058, %v3048
    %v3989 = vpack.c.b16 %v3059, %v3049
    %v3990 = vpack.c.b16 %v3060, %v3050
    %v3991 = vpack.c.b16 %v3061, %v3051
    %v3992 = vpack.c.b16 %v3062, %v3052
    %v3993 = vpack.c.b16 %v3063, %v3053
    %v3994 = vpack.c.b16 %v3064, %v3054
    %v3995 = vpack.c.b16 %v3065, %v3055
    %v3996 = vpack.c.b16 %v3066, %v3056
    %v3997 = vpack.c.b16 %v3067, %v3057
    %v3998 = vpack.c.b16 %v3078, %v3068
    %v3999 = vpack.c.b16 %v3079, %v3069
    %v4000 = vpack.c.b16 %v3080, %v3070
    %v4001 = vpack.c.b16 %v3081, %v3071
    %v4002 = vpack.c.b16 %v3082, %v3072
    %v4003 = vpack.c.b16 %v3083, %v3073
    %v4004 = vpack.c.b16 %v3084, %v3074
    %v4005 = vpack.c.b16 %v3085, %v3075
    %v4006 = vpack.c.b16 %v3086, %v3076
    %v4007 = vpack.c.b16 %v3087, %v3077
    %v4008 = vpack.c.b16 %v3098, %v3088
    %v4009 = vpack.c.b16 %v3099, %v3089
    %v4010 = vpack.c.b16 %v3100, %v3090
    %v4011 = vpack.c.b16 %v3101, %v3091
    %v4012 = vpack.c.b16 %v3102, %v3092
    %v4013 = vpack.c.b16 %v3103, %v3093
    %v4014 = vpack.c.b16 %v3104, %v3094
    %v4015 = vpack.c.b16 %v3105, %v3095
    %v4016 = vpack.c.b16 %v3106, %v3096
    %v4017 = vpack.c.b16 %v3107, %v3097
    %v4018 = vpack.c.b16 %v3118, %v3108
    %v4019 = vpack.c.b16 %v3119, %v3109
    %v4020 = vpack.c.b16 %v3120, %v3110
    %v4021 = vpack.c.b16 %v3121, %v3111
    %v4022 = vpack.c.b16 %v3122, %v3112
    %v4023 = vpack.c.b16 %v3123, %v3113
    %v4024 = vpack.c.b16 %v3124, %v3114
    %v4025 = vpack.c.b16 %v3125, %v3115
    %v4026 = vpack.c.b16 %v3126, %v3116
    %v4027 = vpack.c.b16 %v3127, %v3117
    %v4028 = vpack.c.b16 %v3138, %v3128
    %v4029 = vpack.c.b16 %v3139, %v3129
    %v4030 = vpack.c.b16 %v3140, %v3130
    %v4031 = vpack.c.b16 %v3141, %v3131
    %v4032 = vpack.c.b16 %v3142, %v3132
    %v4033 = vpack.c.b16 %v3143, %v3133
    %v4034 = vpack.c.b16 %v3144, %v3134
    %v4035 = vpack.c.b16 %v3145, %v3135
    %v4036 = vpack.c.b16 %v3146, %v3136
    %v4037 = vpack.c.b16 %v3147, %v3137
    %v4038 = vpack.c.b16 %v3158, %v3148
    %v4039 = vpack.c.b16 %v3159, %v3149
    %v4040 = vpack.c.b16 %v3160, %v3150
    %v4041 = vpack.c.b16 %v3161, %v3151
    %v4042 = vpack.c.b16 %v3162, %v3152
    %v4043 = vpack.c.b16 %v3163, %v3153
    %v4044 = vpack.c.b16 %v3164, %v3154
    %v4045 = vpack.c.b16 %v3165, %v3155
    %v4046 = vpack.c.b16 %v3166, %v3156
    %v4047 = vpack.c.b16 %v3167, %v3157
    %v4048 = vpack.c.b16 %v3178, %v3168
    %v4049 = vpack.c.b16 %v3179, %v3169
    %v4050 = vpack.c.b16 %v3180, %v3170
    %v4051 = vpack.c.b16 %v3181, %v3171
    %v4052 = vpack.c.b16 %v3182, %v3172
    %v4053 = vpack.c.b16 %v3183, %v3173
    %v4054 = vpack.c.b16 %v3184, %v3174
    %v4055 = vpack.c.b16 %v3185, %v3175
    %v4056 = vpack.c.b16 %v3186, %v3176
    %v4057 = vpack.c.b16 %v3187, %v3177
    %v4058 = vpack.c.b16 %v3198, %v3188
    %v4059 = vpack.c.b16 %v3199, %v3189
    %v4060 = vpack.c.b16 %v3200, %v3190
    %v4061 = vpack.c.b16 %v3201, %v3191
    %v4062 = vpack.c.b16 %v3202, %v3192
    %v4063 = vpack.c.b16 %v3203, %v3193
    %v4064 = vpack.c.b16 %v3204, %v3194
    %v4065 = vpack.c.b16 %v3205, %v3195
    %v4066 = vpack.c.b16 %v3206, %v3196
    %v4067 = vpack.c.b16 %v3207, %v3197
    %v4068 = vpack.c.b16 %v3218, %v3208
    %v4069 = vpack.c.b16 %v3219, %v3209
    %v4070 = vpack.c.b16 %v3220, %v3210
    %v4071 = vpack.c.b16 %v3221, %v3211
    %v4072 = vpack.c.b16 %v3222, %v3212
    %v4073 = vpack.c.b16 %v3223, %v3213
    %v4074 = vpack.c.b16 %v3224, %v3214
    %v4075 = vpack.c.b16 %v3225, %v3215
    %v4076 = vpack.c.b16 %v3226, %v3216
    %v4077 = vpack.c.b16 %v3227, %v3217
    %v4078 = vpack.c.b16 %v3238, %v3228
    %v4079 = vpack.c.b16 %v3239, %v3229
    %v4080 = vpack.c.b16 %v3240, %v3230
    %v4081 = vpack.c.b16 %v3241, %v3231
    %v4082 = vpack.c.b16 %v3242, %v3232
    %v4083 = vpack.c.b16 %v3243, %v3233
    %v4084 = vpack.c.b16 %v3244, %v3234
    %v4085 = vpack.c.b16 %v3245, %v3235
    %v4086 = vpack.c.b16 %v3246, %v3236
    %v4087 = vpack.c.b16 %v3247, %v3237
    %v4088 = vpack.c.b16 %v3258, %v3248
    %v4089 = vpack.c.b16 %v3259, %v3249
    %v4090 = vpack.c.b16 %v3260, %v3250
    %v4091 = vpack.c.b16 %v3261, %v3251
    %v4092 = vpack.c.b16 %v3262, %v3252
    %v4093 = vpack.c.b16 %v3263, %v3253
    %v4094 = vpack.c.b16 %v3264, %v3254
    %v4095 = vpack.c.b16 %v3265, %v3255
    %v4096 = vpack.c.b16 %v3266, %v3256
    %v4097 = vpack.c.b16 %v3267, %v3257
    %v4098 = vpack.c.b16 %v3278, %v3268
    %v4099 = vpack.c.b16 %v3279, %v3269
    %v4100 = vpack.c.b16 %v3280, %v3270
    %v4101 = vpack.c.b16 %v3281, %v3271
    %v4102 = vpack.c.b16 %v3282, %v3272
    %v4103 = vpack.c.b16 %v3283, %v3273
    %v4104 = vpack.c.b16 %v3284, %v3274
    %v4105 = vpack.c.b16 %v3285, %v3275
    %v4106 = vpack.c.b16 %v3286, %v3276
    %v4107 = vpack.c.b16 %v3287, %v3277
    %v4108 = vpack.c.b16 %v3298, %v3288
    %v4109 = vpack.c.b16 %v3299, %v3289
    %v4110 = vpack.c.b16 %v3300, %v3290
    %v4111 = vpack.c.b16 %v3301, %v3291
    %v4112 = vpack.c.b16 %v3302, %v3292
    %v4113 = vpack.c.b16 %v3303, %v3293
    %v4114 = vpack.c.b16 %v3304, %v3294
    %v4115 = vpack.c.b16 %v3305, %v3295
    %v4116 = vpack.c.b16 %v3306, %v3296
    %v4117 = vpack.c.b16 %v3307, %v3297
    %v4118 = vpack.c.b16 %v3318, %v3308
    %v4119 = vpack.c.b16 %v3319, %v3309
    %v4120 = vpack.c.b16 %v3320, %v3310
    %v4121 = vpack.c.b16 %v3321, %v3311
    %v4122 = vpack.c.b16 %v3322, %v3312
    %v4123 = vpack.c.b16 %v3323, %v3313
    %v4124 = vpack.c.b16 %v3324, %v3314
    %v4125 = vpack.c.b16 %v3325, %v3315
    %v4126 = vpack.c.b16 %v3326, %v3316
    %v4127 = vpack.c.b16 %v3327, %v3317
    %v4930 = vlaneseq
    %v4931 = vshrl.u32 %v4930, 7
    %v4932 = vsub.s32 0, %v4931
    %v4933 = vrot.slane %v843, %v4932
    %v4934 = vlaneseq
    %v4935 = vshrl.u32 %v4934, 7
    %v4936 = vsub.s32 1, %v4935
    %v4937 = vrot.slane %v843, %v4936
    %v4938 = vlaneseq
    %v4939 = vshrl.u32 %v4938, 7
    %v4940 = vsub.s32 2, %v4939
    %v4941 = vrot.slane %v843, %v4940
    %v4942 = vlaneseq
    %v4943 = vshrl.u32 %v4942, 7
    %v4944 = vsub.s32 3, %v4943
    %v4945 = vrot.slane %v843, %v4944
    %v4946 = vlaneseq
    %v4947 = vshrl.u32 %v4946, 7
    %v4948 = vsub.s32 4, %v4947
    %v4949 = vrot.slane %v843, %v4948
    %v4950 = vlaneseq
    %v4951 = vshrl.u32 %v4950, 7
    %v4952 = vsub.s32 5, %v4951
    %v4953 = vrot.slane %v843, %v4952
    %v4954 = vlaneseq
    %v4955 = vshrl.u32 %v4954, 7
    %v4956 = vsub.s32 6, %v4955
    %v4957 = vrot.slane %v843, %v4956
    %v4958 = vlaneseq
    %v4959 = vshrl.u32 %v4958, 7
    %v4960 = vsub.s32 7, %v4959
    %v4961 = vrot.slane %v843, %v4960
    %v4962 = vlaneseq
    %v4963 = vshrl.u32 %v4962, 7
    %v4964 = vsub.s32 0, %v4963
    %v4965 = vrot.slane %v844, %v4964
    %v4966 = vlaneseq
    %v4967 = vshrl.u32 %v4966, 7
    %v4968 = vsub.s32 1, %v4967
    %v4969 = vrot.slane %v844, %v4968
    %4980 = vmatprep.subr.bf16.mxu0 %v3329
    %4981 = vmatpush1.bf16.msra.mxu0 %v3328
    %4982 = vmatprep.subr.bf16.mxu0 %v3339
    %4983 = vmatpush1.bf16.msra.mxu0 %v3338
    %4984 = vmatprep.subr.bf16.mxu0 %v3349
    %4985 = vmatpush1.bf16.msra.mxu0 %v3348
    %4986 = vmatprep.subr.bf16.mxu0 %v3359
    %4987 = vmatpush1.bf16.msra.mxu0 %v3358
    %4988 = vmatprep.subr.bf16.mxu0 %v3369
    %4989 = vmatpush1.bf16.msra.mxu0 %v3368
    %4990 = vmatprep.subr.bf16.mxu0 %v3379
    %4991 = vmatpush1.bf16.msra.mxu0 %v3378
    %4992 = vmatprep.subr.bf16.mxu0 %v3389
    %4993 = vmatpush1.bf16.msra.mxu0 %v3388
    %4994 = vmatprep.subr.bf16.mxu0 %v3399
    %4995 = vmatpush1.bf16.msra.mxu0 %v3398
    %4996 = vmatprep.subr.bf16.mxu0 %v3409
    %4997 = vmatpush1.bf16.msra.mxu0 %v3408
    %4998 = vmatprep.subr.bf16.mxu0 %v3419
    %4999 = vmatpush1.bf16.msra.mxu0 %v3418
    %5000 = vmatprep.subr.bf16.mxu0 %v3429
    %5001 = vmatpush1.bf16.msra.mxu0 %v3428
    %5002 = vmatprep.subr.bf16.mxu0 %v3439
    %5003 = vmatpush1.bf16.msra.mxu0 %v3438
    %5004 = vmatprep.subr.bf16.mxu0 %v3449
    %5005 = vmatpush1.bf16.msra.mxu0 %v3448
    %5006 = vmatprep.subr.bf16.mxu0 %v3459
    %5007 = vmatpush1.bf16.msra.mxu0 %v3458
    %5008 = vmatprep.subr.bf16.mxu0 %v3469
    %5009 = vmatpush1.bf16.msra.mxu0 %v3468
    %5010 = vmatprep.subr.bf16.mxu0 %v3479
    %5011 = vmatpush1.bf16.msra.mxu0 %v3478
    %5012 = vmatprep.mubr.bf16.mxu0 %v884
    %5013 = vmatmul.mubr.bf16.gmra.mrb[0].mxu0 %v870
    %v5014 = vpop.f32.mrb[0].mxu0
    %v5015 = vadd.f32 %v4933, %v5014
    %v5016 = vpop.f32.mrb[0].mxu0
    %v5017 = vadd.f32 %v4937, %v5016
    %v5018 = vpop.f32.mrb[0].mxu0
    %v5019 = vpop.f32.mrb[0].mxu0
    %5020 = vdwg.mxu0
    %5021 = vmatprep.subr.bf16.mxu0 %v3489
    %5022 = vmatpush1.bf16.msra.mxu0 %v3488
    %5023 = vmatprep.subr.bf16.mxu0 %v3499
    %5024 = vmatpush1.bf16.msra.mxu0 %v3498
    %5025 = vmatprep.subr.bf16.mxu0 %v3509
    %5026 = vmatpush1.bf16.msra.mxu0 %v3508
    %5027 = vmatprep.subr.bf16.mxu0 %v3519
    %5028 = vmatpush1.bf16.msra.mxu0 %v3518
    %5029 = vmatprep.subr.bf16.mxu0 %v3529
    %5030 = vmatpush1.bf16.msra.mxu0 %v3528
    %5031 = vmatprep.subr.bf16.mxu0 %v3539
    %5032 = vmatpush1.bf16.msra.mxu0 %v3538
    %5033 = vmatprep.subr.bf16.mxu0 %v3549
    %5034 = vmatpush1.bf16.msra.mxu0 %v3548
    %5035 = vmatprep.subr.bf16.mxu0 %v3559
    %5036 = vmatpush1.bf16.msra.mxu0 %v3558
    %5037 = vmatprep.subr.bf16.mxu0 %v3569
    %5038 = vmatpush1.bf16.msra.mxu0 %v3568
    %5039 = vmatprep.subr.bf16.mxu0 %v3579
    %5040 = vmatpush1.bf16.msra.mxu0 %v3578
    %5041 = vmatprep.subr.bf16.mxu0 %v3589
    %5042 = vmatpush1.bf16.msra.mxu0 %v3588
    %5043 = vmatprep.subr.bf16.mxu0 %v3599
    %5044 = vmatpush1.bf16.msra.mxu0 %v3598
    %5045 = vmatprep.subr.bf16.mxu0 %v3609
    %5046 = vmatpush1.bf16.msra.mxu0 %v3608
    %5047 = vmatprep.subr.bf16.mxu0 %v3619
    %5048 = vmatpush1.bf16.msra.mxu0 %v3618
    %5049 = vmatprep.subr.bf16.mxu0 %v3629
    %5050 = vmatpush1.bf16.msra.mxu0 %v3628
    %5051 = vmatprep.subr.bf16.mxu0 %v3639
    %5052 = vmatpush1.bf16.msra.mxu0 %v3638
    %5053 = vmatprep.mubr.bf16.mxu0 %v894
    %5054 = vmatmul.mubr.bf16.gmra.mrb[0].mxu0 %v892
    %v5055 = vpop.f32.mrb[0].mxu0
    %v5056 = vadd.f32 %v5015, %v5055
    %v5057 = vpop.f32.mrb[0].mxu0
    %v5058 = vadd.f32 %v5017, %v5057
    %v5059 = vpop.f32.mrb[0].mxu0
    %v5060 = vpop.f32.mrb[0].mxu0
    %5061 = vdwg.mxu0
    %5062 = vmatprep.subr.bf16.mxu0 %v3649
    %5063 = vmatpush1.bf16.msra.mxu0 %v3648
    %5064 = vmatprep.subr.bf16.mxu0 %v3659
    %5065 = vmatpush1.bf16.msra.mxu0 %v3658
    %5066 = vmatprep.subr.bf16.mxu0 %v3669
    %5067 = vmatpush1.bf16.msra.mxu0 %v3668
    %5068 = vmatprep.subr.bf16.mxu0 %v3679
    %5069 = vmatpush1.bf16.msra.mxu0 %v3678
    %5070 = vmatprep.subr.bf16.mxu0 %v3689
    %5071 = vmatpush1.bf16.msra.mxu0 %v3688
    %5072 = vmatprep.subr.bf16.mxu0 %v3699
    %5073 = vmatpush1.bf16.msra.mxu0 %v3698
    %5074 = vmatprep.subr.bf16.mxu0 %v3709
    %5075 = vmatpush1.bf16.msra.mxu0 %v3708
    %5076 = vmatprep.subr.bf16.mxu0 %v3719
    %5077 = vmatpush1.bf16.msra.mxu0 %v3718
    %5078 = vmatprep.subr.bf16.mxu0 %v3729
    %5079 = vmatpush1.bf16.msra.mxu0 %v3728
    %5080 = vmatprep.subr.bf16.mxu0 %v3739
    %5081 = vmatpush1.bf16.msra.mxu0 %v3738
    %5082 = vmatprep.subr.bf16.mxu0 %v3749
    %5083 = vmatpush1.bf16.msra.mxu0 %v3748
    %5084 = vmatprep.subr.bf16.mxu0 %v3759
    %5085 = vmatpush1.bf16.msra.mxu0 %v3758
    %5086 = vmatprep.subr.bf16.mxu0 %v3769
    %5087 = vmatpush1.bf16.msra.mxu0 %v3768
    %5088 = vmatprep.subr.bf16.mxu0 %v3779
    %5089 = vmatpush1.bf16.msra.mxu0 %v3778
    %5090 = vmatprep.subr.bf16.mxu0 %v3789
    %5091 = vmatpush1.bf16.msra.mxu0 %v3788
    %5092 = vmatprep.subr.bf16.mxu0 %v3799
    %5093 = vmatpush1.bf16.msra.mxu0 %v3798
    %5094 = vmatprep.mubr.bf16.mxu0 %v891
    %5095 = vmatmul.mubr.bf16.gmra.mrb[0].mxu0 %v877
    %v5096 = vpop.f32.mrb[0].mxu0
    %v5097 = vadd.f32 %v5056, %v5096
    %v5098 = vpop.f32.mrb[0].mxu0
    %v5099 = vadd.f32 %v5058, %v5098
    %v5100 = vpop.f32.mrb[0].mxu0
    %v5101 = vpop.f32.mrb[0].mxu0
    %5102 = vdwg.mxu0
    %5103 = vmatprep.subr.bf16.mxu0 %v3809
    %5104 = vmatpush1.bf16.msra.mxu0 %v3808
    %5105 = vmatprep.subr.bf16.mxu0 %v3819
    %5106 = vmatpush1.bf16.msra.mxu0 %v3818
    %5107 = vmatprep.subr.bf16.mxu0 %v3829
    %5108 = vmatpush1.bf16.msra.mxu0 %v3828
    %5109 = vmatprep.subr.bf16.mxu0 %v3839
    %5110 = vmatpush1.bf16.msra.mxu0 %v3838
    %5111 = vmatprep.subr.bf16.mxu0 %v3849
    %5112 = vmatpush1.bf16.msra.mxu0 %v3848
    %5113 = vmatprep.subr.bf16.mxu0 %v3859
    %5114 = vmatpush1.bf16.msra.mxu0 %v3858
    %5115 = vmatprep.subr.bf16.mxu0 %v3869
    %5116 = vmatpush1.bf16.msra.mxu0 %v3868
    %5117 = vmatprep.subr.bf16.mxu0 %v3879
    %5118 = vmatpush1.bf16.msra.mxu0 %v3878
    %5119 = vmatprep.subr.bf16.mxu0 %v3889
    %5120 = vmatpush1.bf16.msra.mxu0 %v3888
    %5121 = vmatprep.subr.bf16.mxu0 %v3899
    %5122 = vmatpush1.bf16.msra.mxu0 %v3898
    %5123 = vmatprep.subr.bf16.mxu0 %v3909
    %5124 = vmatpush1.bf16.msra.mxu0 %v3908
    %5125 = vmatprep.subr.bf16.mxu0 %v3919
    %5126 = vmatpush1.bf16.msra.mxu0 %v3918
    %5127 = vmatprep.subr.bf16.mxu0 %v3929
    %5128 = vmatpush1.bf16.msra.mxu0 %v3928
    %5129 = vmatprep.subr.bf16.mxu0 %v3939
    %5130 = vmatpush1.bf16.msra.mxu0 %v3938
    %5131 = vmatprep.subr.bf16.mxu0 %v3949
    %5132 = vmatpush1.bf16.msra.mxu0 %v3948
    %5133 = vmatprep.subr.bf16.mxu0 %v3959
    %5134 = vmatpush1.bf16.msra.mxu0 %v3958
    %5135 = vmatprep.mubr.bf16.mxu0 %v895
    %5136 = vmatmul.mubr.bf16.gmra.mrb[0].mxu0 %v893
    %v5137 = vpop.f32.mrb[0].mxu0
    %v5138 = vadd.f32 %v5097, %v5137
    %v5139 = vpop.f32.mrb[0].mxu0
    %v5140 = vadd.f32 %v5099, %v5139
    %v5141 = vpop.f32.mrb[0].mxu0
    %v5142 = vpop.f32.mrb[0].mxu0
    %5143 = vdwg.mxu0
    %5144 = vmatprep.subr.bf16.mxu0 %v3969
    %5145 = vmatpush1.bf16.msra.mxu0 %v3968
    %5146 = vmatprep.subr.bf16.mxu0 %v3979
    %5147 = vmatpush1.bf16.msra.mxu0 %v3978
    %5148 = vmatprep.subr.bf16.mxu0 %v3989
    %5149 = vmatpush1.bf16.msra.mxu0 %v3988
    %5150 = vmatprep.subr.bf16.mxu0 %v3999
    %5151 = vmatpush1.bf16.msra.mxu0 %v3998
    %5152 = vmatprep.subr.bf16.mxu0 %v4009
    %5153 = vmatpush1.bf16.msra.mxu0 %v4008
    %5154 = vmatprep.subr.bf16.mxu0 %v4019
    %5155 = vmatpush1.bf16.msra.mxu0 %v4018
    %5156 = vmatprep.subr.bf16.mxu0 %v4029
    %5157 = vmatpush1.bf16.msra.mxu0 %v4028
    %5158 = vmatprep.subr.bf16.mxu0 %v4039
    %5159 = vmatpush1.bf16.msra.mxu0 %v4038
    %5160 = vmatprep.subr.bf16.mxu0 %v4049
    %5161 = vmatpush1.bf16.msra.mxu0 %v4048
    %5162 = vmatprep.subr.bf16.mxu0 %v4059
    %5163 = vmatpush1.bf16.msra.mxu0 %v4058
    %5164 = vmatprep.subr.bf16.mxu0 %v4069
    %5165 = vmatpush1.bf16.msra.mxu0 %v4068
    %5166 = vmatprep.subr.bf16.mxu0 %v4079
    %5167 = vmatpush1.bf16.msra.mxu0 %v4078
    %5168 = vmatprep.subr.bf16.mxu0 %v4089
    %5169 = vmatpush1.bf16.msra.mxu0 %v4088
    %5170 = vmatprep.subr.bf16.mxu0 %v4099
    %5171 = vmatpush1.bf16.msra.mxu0 %v4098
    %5172 = vmatprep.subr.bf16.mxu0 %v4109
    %5173 = vmatpush1.bf16.msra.mxu0 %v4108
    %5174 = vmatprep.subr.bf16.mxu0 %v4119
    %5175 = vmatpush1.bf16.msra.mxu0 %v4118
    %5176 = vmatprep.mubr.bf16.mxu0 %v917
    %5177 = vmatmul.mubr.bf16.gmra.mrb[0].mxu0 %v910
    %v5178 = vpop.f32.mrb[0].mxu0
    %v5179 = vadd.f32 %v5138, %v5178
    %v5180 = vpop.f32.mrb[0].mxu0
    %v5181 = vadd.f32 %v5140, %v5180
    %v5182 = vpop.f32.mrb[0].mxu0
    %v5183 = vpop.f32.mrb[0].mxu0
    %5184 = vdwg.mxu0
    %5185 = vmatprep.subr.bf16.mxu0 %v3331
    %5186 = vmatpush1.bf16.msra.mxu0 %v3330
    %5187 = vmatprep.subr.bf16.mxu0 %v3341
    %5188 = vmatpush1.bf16.msra.mxu0 %v3340
    %5189 = vmatprep.subr.bf16.mxu0 %v3351
    %5190 = vmatpush1.bf16.msra.mxu0 %v3350
    %5191 = vmatprep.subr.bf16.mxu0 %v3361
    %5192 = vmatpush1.bf16.msra.mxu0 %v3360
    %5193 = vmatprep.subr.bf16.mxu0 %v3371
    %5194 = vmatpush1.bf16.msra.mxu0 %v3370
    %5195 = vmatprep.subr.bf16.mxu0 %v3381
    %5196 = vmatpush1.bf16.msra.mxu0 %v3380
    %5197 = vmatprep.subr.bf16.mxu0 %v3391
    %5198 = vmatpush1.bf16.msra.mxu0 %v3390
    %5199 = vmatprep.subr.bf16.mxu0 %v3401
    %5200 = vmatpush1.bf16.msra.mxu0 %v3400
    %5201 = vmatprep.subr.bf16.mxu0 %v3411
    %5202 = vmatpush1.bf16.msra.mxu0 %v3410
    %5203 = vmatprep.subr.bf16.mxu0 %v3421
    %5204 = vmatpush1.bf16.msra.mxu0 %v3420
    %5205 = vmatprep.subr.bf16.mxu0 %v3431
    %5206 = vmatpush1.bf16.msra.mxu0 %v3430
    %5207 = vmatprep.subr.bf16.mxu0 %v3441
    %5208 = vmatpush1.bf16.msra.mxu0 %v3440
    %5209 = vmatprep.subr.bf16.mxu0 %v3451
    %5210 = vmatpush1.bf16.msra.mxu0 %v3450
    %5211 = vmatprep.subr.bf16.mxu0 %v3461
    %5212 = vmatpush1.bf16.msra.mxu0 %v3460
    %5213 = vmatprep.subr.bf16.mxu0 %v3471
    %5214 = vmatpush1.bf16.msra.mxu0 %v3470
    %5215 = vmatprep.subr.bf16.mxu0 %v3481
    %5216 = vmatpush1.bf16.msra.mxu0 %v3480
    %5217 = vmatprep.mubr.bf16.mxu0 %v884
    %5218 = vmatmul.mubr.bf16.gmra.mrb[0].mxu0 %v870
    %v5219 = vpop.f32.mrb[0].mxu0
    %v5220 = vadd.f32 %v4941, %v5219
    %v5221 = vpop.f32.mrb[0].mxu0
    %v5222 = vadd.f32 %v4945, %v5221
    %v5223 = vpop.f32.mrb[0].mxu0
    %v5224 = vpop.f32.mrb[0].mxu0
    %5225 = vdwg.mxu0
    %5226 = vmatprep.subr.bf16.mxu0 %v3491
    %5227 = vmatpush1.bf16.msra.mxu0 %v3490
    %5228 = vmatprep.subr.bf16.mxu0 %v3501
    %5229 = vmatpush1.bf16.msra.mxu0 %v3500
    %5230 = vmatprep.subr.bf16.mxu0 %v3511
    %5231 = vmatpush1.bf16.msra.mxu0 %v3510
    %5232 = vmatprep.subr.bf16.mxu0 %v3521
    %5233 = vmatpush1.bf16.msra.mxu0 %v3520
    %5234 = vmatprep.subr.bf16.mxu0 %v3531
    %5235 = vmatpush1.bf16.msra.mxu0 %v3530
    %5236 = vmatprep.subr.bf16.mxu0 %v3541
    %5237 = vmatpush1.bf16.msra.mxu0 %v3540
    %5238 = vmatprep.subr.bf16.mxu0 %v3551
    %5239 = vmatpush1.bf16.msra.mxu0 %v3550
    %5240 = vmatprep.subr.bf16.mxu0 %v3561
    %5241 = vmatpush1.bf16.msra.mxu0 %v3560
    %5242 = vmatprep.subr.bf16.mxu0 %v3571
    %5243 = vmatpush1.bf16.msra.mxu0 %v3570
    %5244 = vmatprep.subr.bf16.mxu0 %v3581
    %5245 = vmatpush1.bf16.msra.mxu0 %v3580
    %5246 = vmatprep.subr.bf16.mxu0 %v3591
    %5247 = vmatpush1.bf16.msra.mxu0 %v3590
    %5248 = vmatprep.subr.bf16.mxu0 %v3601
    %5249 = vmatpush1.bf16.msra.mxu0 %v3600
    %5250 = vmatprep.subr.bf16.mxu0 %v3611
    %5251 = vmatpush1.bf16.msra.mxu0 %v3610
    %5252 = vmatprep.subr.bf16.mxu0 %v3621
    %5253 = vmatpush1.bf16.msra.mxu0 %v3620
    %5254 = vmatprep.subr.bf16.mxu0 %v3631
    %5255 = vmatpush1.bf16.msra.mxu0 %v3630
    %5256 = vmatprep.subr.bf16.mxu0 %v3641
    %5257 = vmatpush1.bf16.msra.mxu0 %v3640
    %5258 = vmatprep.mubr.bf16.mxu0 %v894
    %5259 = vmatmul.mubr.bf16.gmra.mrb[0].mxu0 %v892
    %v5260 = vpop.f32.mrb[0].mxu0
    %v5261 = vadd.f32 %v5220, %v5260
    %v5262 = vpop.f32.mrb[0].mxu0
    %v5263 = vadd.f32 %v5222, %v5262
    %v5264 = vpop.f32.mrb[0].mxu0
    %v5265 = vpop.f32.mrb[0].mxu0
    %5266 = vdwg.mxu0
    %5267 = vmatprep.subr.bf16.mxu0 %v3651
    %5268 = vmatpush1.bf16.msra.mxu0 %v3650
    %5269 = vmatprep.subr.bf16.mxu0 %v3661
    %5270 = vmatpush1.bf16.msra.mxu0 %v3660
    %5271 = vmatprep.subr.bf16.mxu0 %v3671
    %5272 = vmatpush1.bf16.msra.mxu0 %v3670
    %5273 = vmatprep.subr.bf16.mxu0 %v3681
    %5274 = vmatpush1.bf16.msra.mxu0 %v3680
    %5275 = vmatprep.subr.bf16.mxu0 %v3691
    %5276 = vmatpush1.bf16.msra.mxu0 %v3690
    %5277 = vmatprep.subr.bf16.mxu0 %v3701
    %5278 = vmatpush1.bf16.msra.mxu0 %v3700
    %5279 = vmatprep.subr.bf16.mxu0 %v3711
    %5280 = vmatpush1.bf16.msra.mxu0 %v3710
    %5281 = vmatprep.subr.bf16.mxu0 %v3721
    %5282 = vmatpush1.bf16.msra.mxu0 %v3720
    %5283 = vmatprep.subr.bf16.mxu0 %v3731
    %5284 = vmatpush1.bf16.msra.mxu0 %v3730
    %5285 = vmatprep.subr.bf16.mxu0 %v3741
    %5286 = vmatpush1.bf16.msra.mxu0 %v3740
    %5287 = vmatprep.subr.bf16.mxu0 %v3751
    %5288 = vmatpush1.bf16.msra.mxu0 %v3750
    %5289 = vmatprep.subr.bf16.mxu0 %v3761
    %5290 = vmatpush1.bf16.msra.mxu0 %v3760
    %5291 = vmatprep.subr.bf16.mxu0 %v3771
    %5292 = vmatpush1.bf16.msra.mxu0 %v3770
    %5293 = vmatprep.subr.bf16.mxu0 %v3781
    %5294 = vmatpush1.bf16.msra.mxu0 %v3780
    %5295 = vmatprep.subr.bf16.mxu0 %v3791
    %5296 = vmatpush1.bf16.msra.mxu0 %v3790
    %5297 = vmatprep.subr.bf16.mxu0 %v3801
    %5298 = vmatpush1.bf16.msra.mxu0 %v3800
    %5299 = vmatprep.mubr.bf16.mxu0 %v891
    %5300 = vmatmul.mubr.bf16.gmra.mrb[0].mxu0 %v877
    %v5301 = vpop.f32.mrb[0].mxu0
    %v5302 = vadd.f32 %v5261, %v5301
    %v5303 = vpop.f32.mrb[0].mxu0
    %v5304 = vadd.f32 %v5263, %v5303
    %v5305 = vpop.f32.mrb[0].mxu0
    %v5306 = vpop.f32.mrb[0].mxu0
    %5307 = vdwg.mxu0
    %5308 = vmatprep.subr.bf16.mxu0 %v3811
    %5309 = vmatpush1.bf16.msra.mxu0 %v3810
    %5310 = vmatprep.subr.bf16.mxu0 %v3821
    %5311 = vmatpush1.bf16.msra.mxu0 %v3820
    %5312 = vmatprep.subr.bf16.mxu0 %v3831
    %5313 = vmatpush1.bf16.msra.mxu0 %v3830
    %5314 = vmatprep.subr.bf16.mxu0 %v3841
    %5315 = vmatpush1.bf16.msra.mxu0 %v3840
    %5316 = vmatprep.subr.bf16.mxu0 %v3851
    %5317 = vmatpush1.bf16.msra.mxu0 %v3850
    %5318 = vmatprep.subr.bf16.mxu0 %v3861
    %5319 = vmatpush1.bf16.msra.mxu0 %v3860
    %5320 = vmatprep.subr.bf16.mxu0 %v3871
    %5321 = vmatpush1.bf16.msra.mxu0 %v3870
    %5322 = vmatprep.subr.bf16.mxu0 %v3881
    %5323 = vmatpush1.bf16.msra.mxu0 %v3880
    %5324 = vmatprep.subr.bf16.mxu0 %v3891
    %5325 = vmatpush1.bf16.msra.mxu0 %v3890
    %5326 = vmatprep.subr.bf16.mxu0 %v3901
    %5327 = vmatpush1.bf16.msra.mxu0 %v3900
    %5328 = vmatprep.subr.bf16.mxu0 %v3911
    %5329 = vmatpush1.bf16.msra.mxu0 %v3910
    %5330 = vmatprep.subr.bf16.mxu0 %v3921
    %5331 = vmatpush1.bf16.msra.mxu0 %v3920
    %5332 = vmatprep.subr.bf16.mxu0 %v3931
    %5333 = vmatpush1.bf16.msra.mxu0 %v3930
    %5334 = vmatprep.subr.bf16.mxu0 %v3941
    %5335 = vmatpush1.bf16.msra.mxu0 %v3940
    %5336 = vmatprep.subr.bf16.mxu0 %v3951
    %5337 = vmatpush1.bf16.msra.mxu0 %v3950
    %5338 = vmatprep.subr.bf16.mxu0 %v3961
    %5339 = vmatpush1.bf16.msra.mxu0 %v3960
    %5340 = vmatprep.mubr.bf16.mxu0 %v895
    %5341 = vmatmul.mubr.bf16.gmra.mrb[0].mxu0 %v893
    %v5342 = vpop.f32.mrb[0].mxu0
    %v5343 = vadd.f32 %v5302, %v5342
    %v5344 = vpop.f32.mrb[0].mxu0
    %v5345 = vadd.f32 %v5304, %v5344
    %v5346 = vpop.f32.mrb[0].mxu0
    %v5347 = vpop.f32.mrb[0].mxu0
    %5348 = vdwg.mxu0
    %5349 = vmatprep.subr.bf16.mxu0 %v3971
    %5350 = vmatpush1.bf16.msra.mxu0 %v3970
    %5351 = vmatprep.subr.bf16.mxu0 %v3981
    %5352 = vmatpush1.bf16.msra.mxu0 %v3980
    %5353 = vmatprep.subr.bf16.mxu0 %v3991
    %5354 = vmatpush1.bf16.msra.mxu0 %v3990
    %5355 = vmatprep.subr.bf16.mxu0 %v4001
    %5356 = vmatpush1.bf16.msra.mxu0 %v4000
    %5357 = vmatprep.subr.bf16.mxu0 %v4011
    %5358 = vmatpush1.bf16.msra.mxu0 %v4010
    %5359 = vmatprep.subr.bf16.mxu0 %v4021
    %5360 = vmatpush1.bf16.msra.mxu0 %v4020
    %5361 = vmatprep.subr.bf16.mxu0 %v4031
    %5362 = vmatpush1.bf16.msra.mxu0 %v4030
    %5363 = vmatprep.subr.bf16.mxu0 %v4041
    %5364 = vmatpush1.bf16.msra.mxu0 %v4040
    %5365 = vmatprep.subr.bf16.mxu0 %v4051
    %5366 = vmatpush1.bf16.msra.mxu0 %v4050
    %5367 = vmatprep.subr.bf16.mxu0 %v4061
    %5368 = vmatpush1.bf16.msra.mxu0 %v4060
    %5369 = vmatprep.subr.bf16.mxu0 %v4071
    %5370 = vmatpush1.bf16.msra.mxu0 %v4070
    %5371 = vmatprep.subr.bf16.mxu0 %v4081
    %5372 = vmatpush1.bf16.msra.mxu0 %v4080
    %5373 = vmatprep.subr.bf16.mxu0 %v4091
    %5374 = vmatpush1.bf16.msra.mxu0 %v4090
    %5375 = vmatprep.subr.bf16.mxu0 %v4101
    %5376 = vmatpush1.bf16.msra.mxu0 %v4100
    %5377 = vmatprep.subr.bf16.mxu0 %v4111
    %5378 = vmatpush1.bf16.msra.mxu0 %v4110
    %5379 = vmatprep.subr.bf16.mxu0 %v4121
    %5380 = vmatpush1.bf16.msra.mxu0 %v4120
    %5381 = vmatprep.mubr.bf16.mxu0 %v917
    %5382 = vmatmul.mubr.bf16.gmra.mrb[0].mxu0 %v910
    %v5383 = vpop.f32.mrb[0].mxu0
    %v5384 = vadd.f32 %v5343, %v5383
    %v5385 = vpop.f32.mrb[0].mxu0
    %v5386 = vadd.f32 %v5345, %v5385
    %v5387 = vpop.f32.mrb[0].mxu0
    %v5388 = vpop.f32.mrb[0].mxu0
    %5389 = vdwg.mxu0
    %5390 = vmatprep.subr.bf16.mxu0 %v3333
    %5391 = vmatpush1.bf16.msra.mxu0 %v3332
    %5392 = vmatprep.subr.bf16.mxu0 %v3343
    %5393 = vmatpush1.bf16.msra.mxu0 %v3342
    %5394 = vmatprep.subr.bf16.mxu0 %v3353
    %5395 = vmatpush1.bf16.msra.mxu0 %v3352
    %5396 = vmatprep.subr.bf16.mxu0 %v3363
    %5397 = vmatpush1.bf16.msra.mxu0 %v3362
    %5398 = vmatprep.subr.bf16.mxu0 %v3373
    %5399 = vmatpush1.bf16.msra.mxu0 %v3372
    %5400 = vmatprep.subr.bf16.mxu0 %v3383
    %5401 = vmatpush1.bf16.msra.mxu0 %v3382
    %5402 = vmatprep.subr.bf16.mxu0 %v3393
    %5403 = vmatpush1.bf16.msra.mxu0 %v3392
    %5404 = vmatprep.subr.bf16.mxu0 %v3403
    %5405 = vmatpush1.bf16.msra.mxu0 %v3402
    %5406 = vmatprep.subr.bf16.mxu0 %v3413
    %5407 = vmatpush1.bf16.msra.mxu0 %v3412
    %5408 = vmatprep.subr.bf16.mxu0 %v3423
    %5409 = vmatpush1.bf16.msra.mxu0 %v3422
    %5410 = vmatprep.subr.bf16.mxu0 %v3433
    %5411 = vmatpush1.bf16.msra.mxu0 %v3432
    %5412 = vmatprep.subr.bf16.mxu0 %v3443
    %5413 = vmatpush1.bf16.msra.mxu0 %v3442
    %5414 = vmatprep.subr.bf16.mxu0 %v3453
    %5415 = vmatpush1.bf16.msra.mxu0 %v3452
    %5416 = vmatprep.subr.bf16.mxu0 %v3463
    %5417 = vmatpush1.bf16.msra.mxu0 %v3462
    %5418 = vmatprep.subr.bf16.mxu0 %v3473
    %5419 = vmatpush1.bf16.msra.mxu0 %v3472
    %5420 = vmatprep.subr.bf16.mxu0 %v3483
    %5421 = vmatpush1.bf16.msra.mxu0 %v3482
    %5422 = vmatprep.mubr.bf16.mxu0 %v884
    %5423 = vmatmul.mubr.bf16.gmra.mrb[0].mxu0 %v870
    %v5424 = vpop.f32.mrb[0].mxu0
    %v5425 = vadd.f32 %v4949, %v5424
    %v5426 = vpop.f32.mrb[0].mxu0
    %v5427 = vadd.f32 %v4953, %v5426
    %v5428 = vpop.f32.mrb[0].mxu0
    %v5429 = vpop.f32.mrb[0].mxu0
    %5430 = vdwg.mxu0
    %5431 = vmatprep.subr.bf16.mxu0 %v3493
    %5432 = vmatpush1.bf16.msra.mxu0 %v3492
    %5433 = vmatprep.subr.bf16.mxu0 %v3503
    %5434 = vmatpush1.bf16.msra.mxu0 %v3502
    %5435 = vmatprep.subr.bf16.mxu0 %v3513
    %5436 = vmatpush1.bf16.msra.mxu0 %v3512
    %5437 = vmatprep.subr.bf16.mxu0 %v3523
    %5438 = vmatpush1.bf16.msra.mxu0 %v3522
    %5439 = vmatprep.subr.bf16.mxu0 %v3533
    %5440 = vmatpush1.bf16.msra.mxu0 %v3532
    %5441 = vmatprep.subr.bf16.mxu0 %v3543
    %5442 = vmatpush1.bf16.msra.mxu0 %v3542
    %5443 = vmatprep.subr.bf16.mxu0 %v3553
    %5444 = vmatpush1.bf16.msra.mxu0 %v3552
    %5445 = vmatprep.subr.bf16.mxu0 %v3563
    %5446 = vmatpush1.bf16.msra.mxu0 %v3562
    %5447 = vmatprep.subr.bf16.mxu0 %v3573
    %5448 = vmatpush1.bf16.msra.mxu0 %v3572
    %5449 = vmatprep.subr.bf16.mxu0 %v3583
    %5450 = vmatpush1.bf16.msra.mxu0 %v3582
    %5451 = vmatprep.subr.bf16.mxu0 %v3593
    %5452 = vmatpush1.bf16.msra.mxu0 %v3592
    %5453 = vmatprep.subr.bf16.mxu0 %v3603
    %5454 = vmatpush1.bf16.msra.mxu0 %v3602
    %5455 = vmatprep.subr.bf16.mxu0 %v3613
    %5456 = vmatpush1.bf16.msra.mxu0 %v3612
    %5457 = vmatprep.subr.bf16.mxu0 %v3623
    %5458 = vmatpush1.bf16.msra.mxu0 %v3622
    %5459 = vmatprep.subr.bf16.mxu0 %v3633
    %5460 = vmatpush1.bf16.msra.mxu0 %v3632
    %5461 = vmatprep.subr.bf16.mxu0 %v3643
    %5462 = vmatpush1.bf16.msra.mxu0 %v3642
    %5463 = vmatprep.mubr.bf16.mxu0 %v894
    %5464 = vmatmul.mubr.bf16.gmra.mrb[0].mxu0 %v892
    %v5465 = vpop.f32.mrb[0].mxu0
    %v5466 = vadd.f32 %v5425, %v5465
    %v5467 = vpop.f32.mrb[0].mxu0
    %v5468 = vadd.f32 %v5427, %v5467
    %v5469 = vpop.f32.mrb[0].mxu0
    %v5470 = vpop.f32.mrb[0].mxu0
    %5471 = vdwg.mxu0
    %5472 = vmatprep.subr.bf16.mxu0 %v3653
    %5473 = vmatpush1.bf16.msra.mxu0 %v3652
    %5474 = vmatprep.subr.bf16.mxu0 %v3663
    %5475 = vmatpush1.bf16.msra.mxu0 %v3662
    %5476 = vmatprep.subr.bf16.mxu0 %v3673
    %5477 = vmatpush1.bf16.msra.mxu0 %v3672
    %5478 = vmatprep.subr.bf16.mxu0 %v3683
    %5479 = vmatpush1.bf16.msra.mxu0 %v3682
    %5480 = vmatprep.subr.bf16.mxu0 %v3693
    %5481 = vmatpush1.bf16.msra.mxu0 %v3692
    %5482 = vmatprep.subr.bf16.mxu0 %v3703
    %5483 = vmatpush1.bf16.msra.mxu0 %v3702
    %5484 = vmatprep.subr.bf16.mxu0 %v3713
    %5485 = vmatpush1.bf16.msra.mxu0 %v3712
    %5486 = vmatprep.subr.bf16.mxu0 %v3723
    %5487 = vmatpush1.bf16.msra.mxu0 %v3722
    %5488 = vmatprep.subr.bf16.mxu0 %v3733
    %5489 = vmatpush1.bf16.msra.mxu0 %v3732
    %5490 = vmatprep.subr.bf16.mxu0 %v3743
    %5491 = vmatpush1.bf16.msra.mxu0 %v3742
    %5492 = vmatprep.subr.bf16.mxu0 %v3753
    %5493 = vmatpush1.bf16.msra.mxu0 %v3752
    %5494 = vmatprep.subr.bf16.mxu0 %v3763
    %5495 = vmatpush1.bf16.msra.mxu0 %v3762
    %5496 = vmatprep.subr.bf16.mxu0 %v3773
    %5497 = vmatpush1.bf16.msra.mxu0 %v3772
    %5498 = vmatprep.subr.bf16.mxu0 %v3783
    %5499 = vmatpush1.bf16.msra.mxu0 %v3782
    %5500 = vmatprep.subr.bf16.mxu0 %v3793
    %5501 = vmatpush1.bf16.msra.mxu0 %v3792
    %5502 = vmatprep.subr.bf16.mxu0 %v3803
    %5503 = vmatpush1.bf16.msra.mxu0 %v3802
    %5504 = vmatprep.mubr.bf16.mxu0 %v891
    %5505 = vmatmul.mubr.bf16.gmra.mrb[0].mxu0 %v877
    %v5506 = vpop.f32.mrb[0].mxu0
    %v5507 = vadd.f32 %v5466, %v5506
    %v5508 = vpop.f32.mrb[0].mxu0
    %v5509 = vadd.f32 %v5468, %v5508
    %v5510 = vpop.f32.mrb[0].mxu0
    %v5511 = vpop.f32.mrb[0].mxu0
    %5512 = vdwg.mxu0
    %5513 = vmatprep.subr.bf16.mxu0 %v3813
    %5514 = vmatpush1.bf16.msra.mxu0 %v3812
    %5515 = vmatprep.subr.bf16.mxu0 %v3823
    %5516 = vmatpush1.bf16.msra.mxu0 %v3822
    %5517 = vmatprep.subr.bf16.mxu0 %v3833
    %5518 = vmatpush1.bf16.msra.mxu0 %v3832
    %5519 = vmatprep.subr.bf16.mxu0 %v3843
    %5520 = vmatpush1.bf16.msra.mxu0 %v3842
    %5521 = vmatprep.subr.bf16.mxu0 %v3853
    %5522 = vmatpush1.bf16.msra.mxu0 %v3852
    %5523 = vmatprep.subr.bf16.mxu0 %v3863
    %5524 = vmatpush1.bf16.msra.mxu0 %v3862
    %5525 = vmatprep.subr.bf16.mxu0 %v3873
    %5526 = vmatpush1.bf16.msra.mxu0 %v3872
    %5527 = vmatprep.subr.bf16.mxu0 %v3883
    %5528 = vmatpush1.bf16.msra.mxu0 %v3882
    %5529 = vmatprep.subr.bf16.mxu0 %v3893
    %5530 = vmatpush1.bf16.msra.mxu0 %v3892
    %5531 = vmatprep.subr.bf16.mxu0 %v3903
    %5532 = vmatpush1.bf16.msra.mxu0 %v3902
    %5533 = vmatprep.subr.bf16.mxu0 %v3913
    %5534 = vmatpush1.bf16.msra.mxu0 %v3912
    %5535 = vmatprep.subr.bf16.mxu0 %v3923
    %5536 = vmatpush1.bf16.msra.mxu0 %v3922
    %5537 = vmatprep.subr.bf16.mxu0 %v3933
    %5538 = vmatpush1.bf16.msra.mxu0 %v3932
    %5539 = vmatprep.subr.bf16.mxu0 %v3943
    %5540 = vmatpush1.bf16.msra.mxu0 %v3942
    %5541 = vmatprep.subr.bf16.mxu0 %v3953
    %5542 = vmatpush1.bf16.msra.mxu0 %v3952
    %5543 = vmatprep.subr.bf16.mxu0 %v3963
    %5544 = vmatpush1.bf16.msra.mxu0 %v3962
    %5545 = vmatprep.mubr.bf16.mxu0 %v895
    %5546 = vmatmul.mubr.bf16.gmra.mrb[0].mxu0 %v893
    %v5547 = vpop.f32.mrb[0].mxu0
    %v5548 = vadd.f32 %v5507, %v5547
    %v5549 = vpop.f32.mrb[0].mxu0
    %v5550 = vadd.f32 %v5509, %v5549
    %v5551 = vpop.f32.mrb[0].mxu0
    %v5552 = vpop.f32.mrb[0].mxu0
    %5553 = vdwg.mxu0
    %5554 = vmatprep.subr.bf16.mxu0 %v3973
    %5555 = vmatpush1.bf16.msra.mxu0 %v3972
    %5556 = vmatprep.subr.bf16.mxu0 %v3983
    %5557 = vmatpush1.bf16.msra.mxu0 %v3982
    %5558 = vmatprep.subr.bf16.mxu0 %v3993
    %5559 = vmatpush1.bf16.msra.mxu0 %v3992
    %5560 = vmatprep.subr.bf16.mxu0 %v4003
    %5561 = vmatpush1.bf16.msra.mxu0 %v4002
    %5562 = vmatprep.subr.bf16.mxu0 %v4013
    %5563 = vmatpush1.bf16.msra.mxu0 %v4012
    %5564 = vmatprep.subr.bf16.mxu0 %v4023
    %5565 = vmatpush1.bf16.msra.mxu0 %v4022
    %5566 = vmatprep.subr.bf16.mxu0 %v4033
    %5567 = vmatpush1.bf16.msra.mxu0 %v4032
    %5568 = vmatprep.subr.bf16.mxu0 %v4043
    %5569 = vmatpush1.bf16.msra.mxu0 %v4042
    %5570 = vmatprep.subr.bf16.mxu0 %v4053
    %5571 = vmatpush1.bf16.msra.mxu0 %v4052
    %5572 = vmatprep.subr.bf16.mxu0 %v4063
    %5573 = vmatpush1.bf16.msra.mxu0 %v4062
    %5574 = vmatprep.subr.bf16.mxu0 %v4073
    %5575 = vmatpush1.bf16.msra.mxu0 %v4072
    %5576 = vmatprep.subr.bf16.mxu0 %v4083
    %5577 = vmatpush1.bf16.msra.mxu0 %v4082
    %5578 = vmatprep.subr.bf16.mxu0 %v4093
    %5579 = vmatpush1.bf16.msra.mxu0 %v4092
    %5580 = vmatprep.subr.bf16.mxu0 %v4103
    %5581 = vmatpush1.bf16.msra.mxu0 %v4102
    %5582 = vmatprep.subr.bf16.mxu0 %v4113
    %5583 = vmatpush1.bf16.msra.mxu0 %v4112
    %5584 = vmatprep.subr.bf16.mxu0 %v4123
    %5585 = vmatpush1.bf16.msra.mxu0 %v4122
    %5586 = vmatprep.mubr.bf16.mxu0 %v917
    %5587 = vmatmul.mubr.bf16.gmra.mrb[0].mxu0 %v910
    %v5588 = vpop.f32.mrb[0].mxu0
    %v5589 = vadd.f32 %v5548, %v5588
    %v5590 = vpop.f32.mrb[0].mxu0
    %v5591 = vadd.f32 %v5550, %v5590
    %v5592 = vpop.f32.mrb[0].mxu0
    %v5593 = vpop.f32.mrb[0].mxu0
    %5594 = vdwg.mxu0
    %5595 = vmatprep.subr.bf16.mxu0 %v3335
    %5596 = vmatpush1.bf16.msra.mxu0 %v3334
    %5597 = vmatprep.subr.bf16.mxu0 %v3345
    %5598 = vmatpush1.bf16.msra.mxu0 %v3344
    %5599 = vmatprep.subr.bf16.mxu0 %v3355
    %5600 = vmatpush1.bf16.msra.mxu0 %v3354
    %5601 = vmatprep.subr.bf16.mxu0 %v3365
    %5602 = vmatpush1.bf16.msra.mxu0 %v3364
    %5603 = vmatprep.subr.bf16.mxu0 %v3375
    %5604 = vmatpush1.bf16.msra.mxu0 %v3374
    %5605 = vmatprep.subr.bf16.mxu0 %v3385
    %5606 = vmatpush1.bf16.msra.mxu0 %v3384
    %5607 = vmatprep.subr.bf16.mxu0 %v3395
    %5608 = vmatpush1.bf16.msra.mxu0 %v3394
    %5609 = vmatprep.subr.bf16.mxu0 %v3405
    %5610 = vmatpush1.bf16.msra.mxu0 %v3404
    %5611 = vmatprep.subr.bf16.mxu0 %v3415
    %5612 = vmatpush1.bf16.msra.mxu0 %v3414
    %5613 = vmatprep.subr.bf16.mxu0 %v3425
    %5614 = vmatpush1.bf16.msra.mxu0 %v3424
    %5615 = vmatprep.subr.bf16.mxu0 %v3435
    %5616 = vmatpush1.bf16.msra.mxu0 %v3434
    %5617 = vmatprep.subr.bf16.mxu0 %v3445
    %5618 = vmatpush1.bf16.msra.mxu0 %v3444
    %5619 = vmatprep.subr.bf16.mxu0 %v3455
    %5620 = vmatpush1.bf16.msra.mxu0 %v3454
    %5621 = vmatprep.subr.bf16.mxu0 %v3465
    %5622 = vmatpush1.bf16.msra.mxu0 %v3464
    %5623 = vmatprep.subr.bf16.mxu0 %v3475
    %5624 = vmatpush1.bf16.msra.mxu0 %v3474
    %5625 = vmatprep.subr.bf16.mxu0 %v3485
    %5626 = vmatpush1.bf16.msra.mxu0 %v3484
    %5627 = vmatprep.mubr.bf16.mxu0 %v884
    %5628 = vmatmul.mubr.bf16.gmra.mrb[0].mxu0 %v870
    %v5629 = vpop.f32.mrb[0].mxu0
    %v5630 = vadd.f32 %v4957, %v5629
    %v5631 = vpop.f32.mrb[0].mxu0
    %v5632 = vadd.f32 %v4961, %v5631
    %v5633 = vpop.f32.mrb[0].mxu0
    %v5634 = vpop.f32.mrb[0].mxu0
    %5635 = vdwg.mxu0
    %5636 = vmatprep.subr.bf16.mxu0 %v3495
    %5637 = vmatpush1.bf16.msra.mxu0 %v3494
    %5638 = vmatprep.subr.bf16.mxu0 %v3505
    %5639 = vmatpush1.bf16.msra.mxu0 %v3504
    %5640 = vmatprep.subr.bf16.mxu0 %v3515
    %5641 = vmatpush1.bf16.msra.mxu0 %v3514
    %5642 = vmatprep.subr.bf16.mxu0 %v3525
    %5643 = vmatpush1.bf16.msra.mxu0 %v3524
    %5644 = vmatprep.subr.bf16.mxu0 %v3535
    %5645 = vmatpush1.bf16.msra.mxu0 %v3534
    %5646 = vmatprep.subr.bf16.mxu0 %v3545
    %5647 = vmatpush1.bf16.msra.mxu0 %v3544
    %5648 = vmatprep.subr.bf16.mxu0 %v3555
    %5649 = vmatpush1.bf16.msra.mxu0 %v3554
    %5650 = vmatprep.subr.bf16.mxu0 %v3565
    %5651 = vmatpush1.bf16.msra.mxu0 %v3564
    %5652 = vmatprep.subr.bf16.mxu0 %v3575
    %5653 = vmatpush1.bf16.msra.mxu0 %v3574
    %5654 = vmatprep.subr.bf16.mxu0 %v3585
    %5655 = vmatpush1.bf16.msra.mxu0 %v3584
    %5656 = vmatprep.subr.bf16.mxu0 %v3595
    %5657 = vmatpush1.bf16.msra.mxu0 %v3594
    %5658 = vmatprep.subr.bf16.mxu0 %v3605
    %5659 = vmatpush1.bf16.msra.mxu0 %v3604
    %5660 = vmatprep.subr.bf16.mxu0 %v3615
    %5661 = vmatpush1.bf16.msra.mxu0 %v3614
    %5662 = vmatprep.subr.bf16.mxu0 %v3625
    %5663 = vmatpush1.bf16.msra.mxu0 %v3624
    %5664 = vmatprep.subr.bf16.mxu0 %v3635
    %5665 = vmatpush1.bf16.msra.mxu0 %v3634
    %5666 = vmatprep.subr.bf16.mxu0 %v3645
    %5667 = vmatpush1.bf16.msra.mxu0 %v3644
    %5668 = vmatprep.mubr.bf16.mxu0 %v894
    %5669 = vmatmul.mubr.bf16.gmra.mrb[0].mxu0 %v892
    %v5670 = vpop.f32.mrb[0].mxu0
    %v5671 = vadd.f32 %v5630, %v5670
    %v5672 = vpop.f32.mrb[0].mxu0
    %v5673 = vadd.f32 %v5632, %v5672
    %v5674 = vpop.f32.mrb[0].mxu0
    %v5675 = vpop.f32.mrb[0].mxu0
    %5676 = vdwg.mxu0
    %5677 = vmatprep.subr.bf16.mxu0 %v3655
    %5678 = vmatpush1.bf16.msra.mxu0 %v3654
    %5679 = vmatprep.subr.bf16.mxu0 %v3665
    %5680 = vmatpush1.bf16.msra.mxu0 %v3664
    %5681 = vmatprep.subr.bf16.mxu0 %v3675
    %5682 = vmatpush1.bf16.msra.mxu0 %v3674
    %5683 = vmatprep.subr.bf16.mxu0 %v3685
    %5684 = vmatpush1.bf16.msra.mxu0 %v3684
    %5685 = vmatprep.subr.bf16.mxu0 %v3695
    %5686 = vmatpush1.bf16.msra.mxu0 %v3694
    %5687 = vmatprep.subr.bf16.mxu0 %v3705
    %5688 = vmatpush1.bf16.msra.mxu0 %v3704
    %5689 = vmatprep.subr.bf16.mxu0 %v3715
    %5690 = vmatpush1.bf16.msra.mxu0 %v3714
    %5691 = vmatprep.subr.bf16.mxu0 %v3725
    %5692 = vmatpush1.bf16.msra.mxu0 %v3724
    %5693 = vmatprep.subr.bf16.mxu0 %v3735
    %5694 = vmatpush1.bf16.msra.mxu0 %v3734
    %5695 = vmatprep.subr.bf16.mxu0 %v3745
    %5696 = vmatpush1.bf16.msra.mxu0 %v3744
    %5697 = vmatprep.subr.bf16.mxu0 %v3755
    %5698 = vmatpush1.bf16.msra.mxu0 %v3754
    %5699 = vmatprep.subr.bf16.mxu0 %v3765
    %5700 = vmatpush1.bf16.msra.mxu0 %v3764
    %5701 = vmatprep.subr.bf16.mxu0 %v3775
    %5702 = vmatpush1.bf16.msra.mxu0 %v3774
    %5703 = vmatprep.subr.bf16.mxu0 %v3785
    %5704 = vmatpush1.bf16.msra.mxu0 %v3784
    %5705 = vmatprep.subr.bf16.mxu0 %v3795
    %5706 = vmatpush1.bf16.msra.mxu0 %v3794
    %5707 = vmatprep.subr.bf16.mxu0 %v3805
    %5708 = vmatpush1.bf16.msra.mxu0 %v3804
    %5709 = vmatprep.mubr.bf16.mxu0 %v891
    %5710 = vmatmul.mubr.bf16.gmra.mrb[0].mxu0 %v877
    %v5711 = vpop.f32.mrb[0].mxu0
    %v5712 = vadd.f32 %v5671, %v5711
    %v5713 = vpop.f32.mrb[0].mxu0
    %v5714 = vadd.f32 %v5673, %v5713
    %v5715 = vpop.f32.mrb[0].mxu0
    %v5716 = vpop.f32.mrb[0].mxu0
    %5717 = vdwg.mxu0
    %5718 = vmatprep.subr.bf16.mxu0 %v3815
    %5719 = vmatpush1.bf16.msra.mxu0 %v3814
    %5720 = vmatprep.subr.bf16.mxu0 %v3825
    %5721 = vmatpush1.bf16.msra.mxu0 %v3824
    %5722 = vmatprep.subr.bf16.mxu0 %v3835
    %5723 = vmatpush1.bf16.msra.mxu0 %v3834
    %5724 = vmatprep.subr.bf16.mxu0 %v3845
    %5725 = vmatpush1.bf16.msra.mxu0 %v3844
    %5726 = vmatprep.subr.bf16.mxu0 %v3855
    %5727 = vmatpush1.bf16.msra.mxu0 %v3854
    %5728 = vmatprep.subr.bf16.mxu0 %v3865
    %5729 = vmatpush1.bf16.msra.mxu0 %v3864
    %5730 = vmatprep.subr.bf16.mxu0 %v3875
    %5731 = vmatpush1.bf16.msra.mxu0 %v3874
    %5732 = vmatprep.subr.bf16.mxu0 %v3885
    %5733 = vmatpush1.bf16.msra.mxu0 %v3884
    %5734 = vmatprep.subr.bf16.mxu0 %v3895
    %5735 = vmatpush1.bf16.msra.mxu0 %v3894
    %5736 = vmatprep.subr.bf16.mxu0 %v3905
    %5737 = vmatpush1.bf16.msra.mxu0 %v3904
    %5738 = vmatprep.subr.bf16.mxu0 %v3915
    %5739 = vmatpush1.bf16.msra.mxu0 %v3914
    %5740 = vmatprep.subr.bf16.mxu0 %v3925
    %5741 = vmatpush1.bf16.msra.mxu0 %v3924
    %5742 = vmatprep.subr.bf16.mxu0 %v3935
    %5743 = vmatpush1.bf16.msra.mxu0 %v3934
    %5744 = vmatprep.subr.bf16.mxu0 %v3945
    %5745 = vmatpush1.bf16.msra.mxu0 %v3944
    %5746 = vmatprep.subr.bf16.mxu0 %v3955
    %5747 = vmatpush1.bf16.msra.mxu0 %v3954
    %5748 = vmatprep.subr.bf16.mxu0 %v3965
    %5749 = vmatpush1.bf16.msra.mxu0 %v3964
    %5750 = vmatprep.mubr.bf16.mxu0 %v895
    %5751 = vmatmul.mubr.bf16.gmra.mrb[0].mxu0 %v893
    %v5752 = vpop.f32.mrb[0].mxu0
    %v5753 = vadd.f32 %v5712, %v5752
    %v5754 = vpop.f32.mrb[0].mxu0
    %v5755 = vadd.f32 %v5714, %v5754
    %v5756 = vpop.f32.mrb[0].mxu0
    %v5757 = vpop.f32.mrb[0].mxu0
    %5758 = vdwg.mxu0
    %5759 = vmatprep.subr.bf16.mxu0 %v3975
    %5760 = vmatpush1.bf16.msra.mxu0 %v3974
    %5761 = vmatprep.subr.bf16.mxu0 %v3985
    %5762 = vmatpush1.bf16.msra.mxu0 %v3984
    %5763 = vmatprep.subr.bf16.mxu0 %v3995
    %5764 = vmatpush1.bf16.msra.mxu0 %v3994
    %5765 = vmatprep.subr.bf16.mxu0 %v4005
    %5766 = vmatpush1.bf16.msra.mxu0 %v4004
    %5767 = vmatprep.subr.bf16.mxu0 %v4015
    %5768 = vmatpush1.bf16.msra.mxu0 %v4014
    %5769 = vmatprep.subr.bf16.mxu0 %v4025
    %5770 = vmatpush1.bf16.msra.mxu0 %v4024
    %5771 = vmatprep.subr.bf16.mxu0 %v4035
    %5772 = vmatpush1.bf16.msra.mxu0 %v4034
    %5773 = vmatprep.subr.bf16.mxu0 %v4045
    %5774 = vmatpush1.bf16.msra.mxu0 %v4044
    %5775 = vmatprep.subr.bf16.mxu0 %v4055
    %5776 = vmatpush1.bf16.msra.mxu0 %v4054
    %5777 = vmatprep.subr.bf16.mxu0 %v4065
    %5778 = vmatpush1.bf16.msra.mxu0 %v4064
    %5779 = vmatprep.subr.bf16.mxu0 %v4075
    %5780 = vmatpush1.bf16.msra.mxu0 %v4074
    %5781 = vmatprep.subr.bf16.mxu0 %v4085
    %5782 = vmatpush1.bf16.msra.mxu0 %v4084
    %5783 = vmatprep.subr.bf16.mxu0 %v4095
    %5784 = vmatpush1.bf16.msra.mxu0 %v4094
    %5785 = vmatprep.subr.bf16.mxu0 %v4105
    %5786 = vmatpush1.bf16.msra.mxu0 %v4104
    %5787 = vmatprep.subr.bf16.mxu0 %v4115
    %5788 = vmatpush1.bf16.msra.mxu0 %v4114
    %5789 = vmatprep.subr.bf16.mxu0 %v4125
    %5790 = vmatpush1.bf16.msra.mxu0 %v4124
    %5791 = vmatprep.mubr.bf16.mxu0 %v917
    %5792 = vmatmul.mubr.bf16.gmra.mrb[0].mxu0 %v910
    %v5793 = vpop.f32.mrb[0].mxu0
    %v5794 = vadd.f32 %v5753, %v5793
    %v5795 = vpop.f32.mrb[0].mxu0
    %v5796 = vadd.f32 %v5755, %v5795
    %v5797 = vpop.f32.mrb[0].mxu0
    %v5798 = vpop.f32.mrb[0].mxu0
    %5799 = vdwg.mxu0
    %5800 = vmatprep.subr.bf16.mxu0 %v3337
    %5801 = vmatpush1.bf16.msra.mxu0 %v3336
    %5802 = vmatprep.subr.bf16.mxu0 %v3347
    %5803 = vmatpush1.bf16.msra.mxu0 %v3346
    %5804 = vmatprep.subr.bf16.mxu0 %v3357
    %5805 = vmatpush1.bf16.msra.mxu0 %v3356
    %5806 = vmatprep.subr.bf16.mxu0 %v3367
    %5807 = vmatpush1.bf16.msra.mxu0 %v3366
    %5808 = vmatprep.subr.bf16.mxu0 %v3377
    %5809 = vmatpush1.bf16.msra.mxu0 %v3376
    %5810 = vmatprep.subr.bf16.mxu0 %v3387
    %5811 = vmatpush1.bf16.msra.mxu0 %v3386
    %5812 = vmatprep.subr.bf16.mxu0 %v3397
    %5813 = vmatpush1.bf16.msra.mxu0 %v3396
    %5814 = vmatprep.subr.bf16.mxu0 %v3407
    %5815 = vmatpush1.bf16.msra.mxu0 %v3406
    %5816 = vmatprep.subr.bf16.mxu0 %v3417
    %5817 = vmatpush1.bf16.msra.mxu0 %v3416
    %5818 = vmatprep.subr.bf16.mxu0 %v3427
    %5819 = vmatpush1.bf16.msra.mxu0 %v3426
    %5820 = vmatprep.subr.bf16.mxu0 %v3437
    %5821 = vmatpush1.bf16.msra.mxu0 %v3436
    %5822 = vmatprep.subr.bf16.mxu0 %v3447
    %5823 = vmatpush1.bf16.msra.mxu0 %v3446
    %5824 = vmatprep.subr.bf16.mxu0 %v3457
    %5825 = vmatpush1.bf16.msra.mxu0 %v3456
    %5826 = vmatprep.subr.bf16.mxu0 %v3467
    %5827 = vmatpush1.bf16.msra.mxu0 %v3466
    %5828 = vmatprep.subr.bf16.mxu0 %v3477
    %5829 = vmatpush1.bf16.msra.mxu0 %v3476
    %5830 = vmatprep.subr.bf16.mxu0 %v3487
    %5831 = vmatpush1.bf16.msra.mxu0 %v3486
    %5832 = vmatprep.mubr.bf16.mxu0 %v884
    %5833 = vmatmul.mubr.bf16.gmra.mrb[0].mxu0 %v870
    %v5834 = vpop.f32.mrb[0].mxu0
    %v5835 = vadd.f32 %v4965, %v5834
    %v5836 = vpop.f32.mrb[0].mxu0
    %v5837 = vadd.f32 %v4969, %v5836
    %v5838 = vpop.f32.mrb[0].mxu0
    %v5839 = vpop.f32.mrb[0].mxu0
    %5840 = vdwg.mxu0
    %5841 = vmatprep.subr.bf16.mxu0 %v3497
    %5842 = vmatpush1.bf16.msra.mxu0 %v3496
    %5843 = vmatprep.subr.bf16.mxu0 %v3507
    %5844 = vmatpush1.bf16.msra.mxu0 %v3506
    %5845 = vmatprep.subr.bf16.mxu0 %v3517
    %5846 = vmatpush1.bf16.msra.mxu0 %v3516
    %5847 = vmatprep.subr.bf16.mxu0 %v3527
    %5848 = vmatpush1.bf16.msra.mxu0 %v3526
    %5849 = vmatprep.subr.bf16.mxu0 %v3537
    %5850 = vmatpush1.bf16.msra.mxu0 %v3536
    %5851 = vmatprep.subr.bf16.mxu0 %v3547
    %5852 = vmatpush1.bf16.msra.mxu0 %v3546
    %5853 = vmatprep.subr.bf16.mxu0 %v3557
    %5854 = vmatpush1.bf16.msra.mxu0 %v3556
    %5855 = vmatprep.subr.bf16.mxu0 %v3567
    %5856 = vmatpush1.bf16.msra.mxu0 %v3566
    %5857 = vmatprep.subr.bf16.mxu0 %v3577
    %5858 = vmatpush1.bf16.msra.mxu0 %v3576
    %5859 = vmatprep.subr.bf16.mxu0 %v3587
    %5860 = vmatpush1.bf16.msra.mxu0 %v3586
    %5861 = vmatprep.subr.bf16.mxu0 %v3597
    %5862 = vmatpush1.bf16.msra.mxu0 %v3596
    %5863 = vmatprep.subr.bf16.mxu0 %v3607
    %5864 = vmatpush1.bf16.msra.mxu0 %v3606
    %5865 = vmatprep.subr.bf16.mxu0 %v3617
    %5866 = vmatpush1.bf16.msra.mxu0 %v3616
    %5867 = vmatprep.subr.bf16.mxu0 %v3627
    %5868 = vmatpush1.bf16.msra.mxu0 %v3626
    %5869 = vmatprep.subr.bf16.mxu0 %v3637
    %5870 = vmatpush1.bf16.msra.mxu0 %v3636
    %5871 = vmatprep.subr.bf16.mxu0 %v3647
    %5872 = vmatpush1.bf16.msra.mxu0 %v3646
    %5873 = vmatprep.mubr.bf16.mxu0 %v894
    %5874 = vmatmul.mubr.bf16.gmra.mrb[0].mxu0 %v892
    %v5875 = vpop.f32.mrb[0].mxu0
    %v5876 = vadd.f32 %v5835, %v5875
    %v5877 = vpop.f32.mrb[0].mxu0
    %v5878 = vadd.f32 %v5837, %v5877
    %v5879 = vpop.f32.mrb[0].mxu0
    %v5880 = vpop.f32.mrb[0].mxu0
    %5881 = vdwg.mxu0
    %5882 = vmatprep.subr.bf16.mxu0 %v3657
    %5883 = vmatpush1.bf16.msra.mxu0 %v3656
    %5884 = vmatprep.subr.bf16.mxu0 %v3667
    %5885 = vmatpush1.bf16.msra.mxu0 %v3666
    %5886 = vmatprep.subr.bf16.mxu0 %v3677
    %5887 = vmatpush1.bf16.msra.mxu0 %v3676
    %5888 = vmatprep.subr.bf16.mxu0 %v3687
    %5889 = vmatpush1.bf16.msra.mxu0 %v3686
    %5890 = vmatprep.subr.bf16.mxu0 %v3697
    %5891 = vmatpush1.bf16.msra.mxu0 %v3696
    %5892 = vmatprep.subr.bf16.mxu0 %v3707
    %5893 = vmatpush1.bf16.msra.mxu0 %v3706
    %5894 = vmatprep.subr.bf16.mxu0 %v3717
    %5895 = vmatpush1.bf16.msra.mxu0 %v3716
    %5896 = vmatprep.subr.bf16.mxu0 %v3727
    %5897 = vmatpush1.bf16.msra.mxu0 %v3726
    %5898 = vmatprep.subr.bf16.mxu0 %v3737
    %5899 = vmatpush1.bf16.msra.mxu0 %v3736
    %5900 = vmatprep.subr.bf16.mxu0 %v3747
    %5901 = vmatpush1.bf16.msra.mxu0 %v3746
    %5902 = vmatprep.subr.bf16.mxu0 %v3757
    %5903 = vmatpush1.bf16.msra.mxu0 %v3756
    %5904 = vmatprep.subr.bf16.mxu0 %v3767
    %5905 = vmatpush1.bf16.msra.mxu0 %v3766
    %5906 = vmatprep.subr.bf16.mxu0 %v3777
    %5907 = vmatpush1.bf16.msra.mxu0 %v3776
    %5908 = vmatprep.subr.bf16.mxu0 %v3787
    %5909 = vmatpush1.bf16.msra.mxu0 %v3786
    %5910 = vmatprep.subr.bf16.mxu0 %v3797
    %5911 = vmatpush1.bf16.msra.mxu0 %v3796
    %5912 = vmatprep.subr.bf16.mxu0 %v3807
    %5913 = vmatpush1.bf16.msra.mxu0 %v3806
    %5914 = vmatprep.mubr.bf16.mxu0 %v891
    %5915 = vmatmul.mubr.bf16.gmra.mrb[0].mxu0 %v877
    %v5916 = vpop.f32.mrb[0].mxu0
    %v5917 = vadd.f32 %v5876, %v5916
    %v5918 = vpop.f32.mrb[0].mxu0
    %v5919 = vadd.f32 %v5878, %v5918
    %v5920 = vpop.f32.mrb[0].mxu0
    %v5921 = vpop.f32.mrb[0].mxu0
    %5922 = vdwg.mxu0
    %5923 = vmatprep.subr.bf16.mxu0 %v3817
    %5924 = vmatpush1.bf16.msra.mxu0 %v3816
    %5925 = vmatprep.subr.bf16.mxu0 %v3827
    %5926 = vmatpush1.bf16.msra.mxu0 %v3826
    %5927 = vmatprep.subr.bf16.mxu0 %v3837
    %5928 = vmatpush1.bf16.msra.mxu0 %v3836
    %5929 = vmatprep.subr.bf16.mxu0 %v3847
    %5930 = vmatpush1.bf16.msra.mxu0 %v3846
    %5931 = vmatprep.subr.bf16.mxu0 %v3857
    %5932 = vmatpush1.bf16.msra.mxu0 %v3856
    %5933 = vmatprep.subr.bf16.mxu0 %v3867
    %5934 = vmatpush1.bf16.msra.mxu0 %v3866
    %5935 = vmatprep.subr.bf16.mxu0 %v3877
    %5936 = vmatpush1.bf16.msra.mxu0 %v3876
    %5937 = vmatprep.subr.bf16.mxu0 %v3887
    %5938 = vmatpush1.bf16.msra.mxu0 %v3886
    %5939 = vmatprep.subr.bf16.mxu0 %v3897
    %5940 = vmatpush1.bf16.msra.mxu0 %v3896
    %5941 = vmatprep.subr.bf16.mxu0 %v3907
    %5942 = vmatpush1.bf16.msra.mxu0 %v3906
    %5943 = vmatprep.subr.bf16.mxu0 %v3917
    %5944 = vmatpush1.bf16.msra.mxu0 %v3916
    %5945 = vmatprep.subr.bf16.mxu0 %v3927
    %5946 = vmatpush1.bf16.msra.mxu0 %v3926
    %5947 = vmatprep.subr.bf16.mxu0 %v3937
    %5948 = vmatpush1.bf16.msra.mxu0 %v3936
    %5949 = vmatprep.subr.bf16.mxu0 %v3947
    %5950 = vmatpush1.bf16.msra.mxu0 %v3946
    %5951 = vmatprep.subr.bf16.mxu0 %v3957
    %5952 = vmatpush1.bf16.msra.mxu0 %v3956
    %5953 = vmatprep.subr.bf16.mxu0 %v3967
    %5954 = vmatpush1.bf16.msra.mxu0 %v3966
    %5955 = vmatprep.mubr.bf16.mxu0 %v895
    %5956 = vmatmul.mubr.bf16.gmra.mrb[0].mxu0 %v893
    %v5957 = vpop.f32.mrb[0].mxu0
    %v5958 = vadd.f32 %v5917, %v5957
    %v5959 = vpop.f32.mrb[0].mxu0
    %v5960 = vadd.f32 %v5919, %v5959
    %v5961 = vpop.f32.mrb[0].mxu0
    %v5962 = vpop.f32.mrb[0].mxu0
    %5963 = vdwg.mxu0
    %5964 = vmatprep.subr.bf16.mxu0 %v3977
    %5965 = vmatpush1.bf16.msra.mxu0 %v3976
    %5966 = vmatprep.subr.bf16.mxu0 %v3987
    %5967 = vmatpush1.bf16.msra.mxu0 %v3986
    %5968 = vmatprep.subr.bf16.mxu0 %v3997
    %5969 = vmatpush1.bf16.msra.mxu0 %v3996
    %5970 = vmatprep.subr.bf16.mxu0 %v4007
    %5971 = vmatpush1.bf16.msra.mxu0 %v4006
    %5972 = vmatprep.subr.bf16.mxu0 %v4017
    %5973 = vmatpush1.bf16.msra.mxu0 %v4016
    %5974 = vmatprep.subr.bf16.mxu0 %v4027
    %5975 = vmatpush1.bf16.msra.mxu0 %v4026
    %5976 = vmatprep.subr.bf16.mxu0 %v4037
    %5977 = vmatpush1.bf16.msra.mxu0 %v4036
    %5978 = vmatprep.subr.bf16.mxu0 %v4047
    %5979 = vmatpush1.bf16.msra.mxu0 %v4046
    %5980 = vmatprep.subr.bf16.mxu0 %v4057
    %5981 = vmatpush1.bf16.msra.mxu0 %v4056
    %5982 = vmatprep.subr.bf16.mxu0 %v4067
    %5983 = vmatpush1.bf16.msra.mxu0 %v4066
    %5984 = vmatprep.subr.bf16.mxu0 %v4077
    %5985 = vmatpush1.bf16.msra.mxu0 %v4076
    %5986 = vmatprep.subr.bf16.mxu0 %v4087
    %5987 = vmatpush1.bf16.msra.mxu0 %v4086
    %5988 = vmatprep.subr.bf16.mxu0 %v4097
    %5989 = vmatpush1.bf16.msra.mxu0 %v4096
    %5990 = vmatprep.subr.bf16.mxu0 %v4107
    %5991 = vmatpush1.bf16.msra.mxu0 %v4106
    %5992 = vmatprep.subr.bf16.mxu0 %v4117
    %5993 = vmatpush1.bf16.msra.mxu0 %v4116
    %5994 = vmatprep.subr.bf16.mxu0 %v4127
    %5995 = vmatpush1.bf16.msra.mxu0 %v4126
    %5996 = vmatprep.mubr.bf16.mxu0 %v917
    %5997 = vmatmul.mubr.bf16.gmra.mrb[0].mxu0 %v910
    %v5998 = vpop.f32.mrb[0].mxu0
    %v5999 = vadd.f32 %v5958, %v5998
    %v6000 = vpop.f32.mrb[0].mxu0
    %v6001 = vadd.f32 %v5960, %v6000
    %v6002 = vpop.f32.mrb[0].mxu0
    %v6003 = vpop.f32.mrb[0].mxu0
    %6004 = vdwg.mxu0
    %v6005 = vxor.u32 %v5179, 2147483648
    %v6006 = vxor.u32 %v5181, 2147483648
    %v6007 = vxor.u32 %v5384, 2147483648
    %v6008 = vxor.u32 %v5386, 2147483648
    %v6009 = vxor.u32 %v5589, 2147483648
    %v6010 = vxor.u32 %v5591, 2147483648
    %v6011 = vxor.u32 %v5794, 2147483648
    %v6012 = vxor.u32 %v5796, 2147483648
    %v6013 = vxor.u32 %v5999, 2147483648
    %v6014 = vxor.u32 %v6001, 2147483648
    %v6015 = vmul.f32 %v6005, 1.442695
    %v6016 = vpow.pop %v6015
    %v6017 = vmul.f32 %v6006, 1.442695
    %v6018 = vpow.pop %v6017
    %v6019 = vmul.f32 %v6007, 1.442695
    %v6020 = vpow.pop %v6019
    %v6021 = vmul.f32 %v6008, 1.442695
    %v6022 = vpow.pop %v6021
    %v6023 = vmul.f32 %v6009, 1.442695
    %v6024 = vpow.pop %v6023
    %v6025 = vmul.f32 %v6010, 1.442695
    %v6026 = vpow.pop %v6025
    %v6027 = vmul.f32 %v6011, 1.442695
    %v6028 = vpow.pop %v6027
    %v6029 = vmul.f32 %v6012, 1.442695
    %v6030 = vpow.pop %v6029
    %v6031 = vmul.f32 %v6013, 1.442695
    %v6032 = vpow.pop %v6031
    %v6033 = vmul.f32 %v6014, 1.442695
    %v6034 = vpow.pop %v6033
    %v6035 = vadd.f32 %v6016, 1.0
    %v6036 = vadd.f32 %v6018, 1.0
    %v6037 = vadd.f32 %v6020, 1.0
    %v6038 = vadd.f32 %v6022, 1.0
    %v6039 = vadd.f32 %v6024, 1.0
    %v6040 = vadd.f32 %v6026, 1.0
    %v6041 = vadd.f32 %v6028, 1.0
    %v6042 = vadd.f32 %v6030, 1.0
    %v6043 = vadd.f32 %v6032, 1.0
    %v6044 = vadd.f32 %v6034, 1.0
    %v6045 = vrcp.pop %v6035
    %v6046 = vmul.f32 1.0, %v6045
    %v6047 = vrcp.pop %v6036
    %v6048 = vmul.f32 1.0, %v6047
    %v6049 = vrcp.pop %v6037
    %v6050 = vmul.f32 1.0, %v6049
    %v6051 = vrcp.pop %v6038
    %v6052 = vmul.f32 1.0, %v6051
    %v6053 = vrcp.pop %v6039
    %v6054 = vmul.f32 1.0, %v6053
    %v6055 = vrcp.pop %v6040
    %v6056 = vmul.f32 1.0, %v6055
    %v6057 = vrcp.pop %v6041
    %v6058 = vmul.f32 1.0, %v6057
    %v6059 = vrcp.pop %v6042
    %v6060 = vmul.f32 1.0, %v6059
    %v6061 = vrcp.pop %v6043
    %v6062 = vmul.f32 1.0, %v6061
    %v6063 = vrcp.pop %v6044
    %v6064 = vmul.f32 1.0, %v6063
    %v6065 = vmul.f32 %v5179, %v6046
    %v6066 = vmul.f32 %v5181, %v6048
    %v6067 = vmul.f32 %v5384, %v6050
    %v6068 = vmul.f32 %v5386, %v6052
    %v6069 = vmul.f32 %v5589, %v6054
    %v6070 = vmul.f32 %v5591, %v6056
    %v6071 = vmul.f32 %v5794, %v6058
    %v6072 = vmul.f32 %v5796, %v6060
    %v6073 = vmul.f32 %v5999, %v6062
    %v6074 = vmul.f32 %v6001, %v6064
    %v6075 = vpack.c.bf16 %v6065, %v6065
    %v6076 = vpack.c.bf16 %v6066, %v6066
    %v6077 = vpack.c.bf16 %v6067, %v6067
    %v6078 = vpack.c.bf16 %v6068, %v6068
    %v6079 = vpack.c.bf16 %v6069, %v6069
    %v6080 = vpack.c.bf16 %v6070, %v6070
    %v6081 = vpack.c.bf16 %v6071, %v6071
    %v6082 = vpack.c.bf16 %v6072, %v6072
    %v6083 = vpack.c.bf16 %v6073, %v6073
    %v6084 = vpack.c.bf16 %v6074, %v6074
    %v6095 = vcombine.low %v6075, %v6076
    %v6096 = vcombine.low %v6077, %v6078
    %v6097 = vcombine.low %v6079, %v6080
    %v6098 = vcombine.low %v6081, %v6082
    %v6100 = vunpack.c.l.s4 1966171168
    %v6101 = vunpack.c.0.s8 %v6100
    %v6102 = vlaneseq
    %v6103 = vshrl.u32 %v6102, 7
    %v6104 = vsub.s32 %v6101, %v6103
    %v6105 = vrot.slane %v6095, %v6104
    %v6107 = vunpack.c.l.s4 1966171168
    %v6108 = vunpack.c.0.s8 %v6107
    %v6109 = vlaneseq
    %v6110 = vshrl.u32 %v6109, 7
    %v6111 = vsub.s32 %v6108, %v6110
    %v6112 = vrot.slane %v6096, %v6111
    %v6114 = vunpack.c.l.s4 1966171168
    %v6115 = vunpack.c.0.s8 %v6114
    %v6116 = vlaneseq
    %v6117 = vshrl.u32 %v6116, 7
    %v6118 = vsub.s32 %v6115, %v6117
    %v6119 = vrot.slane %v6097, %v6118
    %v6121 = vunpack.c.l.s4 1966171168
    %v6122 = vunpack.c.0.s8 %v6121
    %v6123 = vlaneseq
    %v6124 = vshrl.u32 %v6123, 7
    %v6125 = vsub.s32 %v6122, %v6124
    %v6126 = vrot.slane %v6098, %v6125
    %v6127 = vcombine.low %v6105, %v6112
    %v6128 = vcombine.low %v6119, %v6126
    %v6130 = vunpack.c.l.s4 1966171168
    %v6131 = vunpack.c.0.s8 %v6130
    %v6132 = vlaneseq
    %v6133 = vshrl.u32 %v6132, 7
    %v6134 = vsub.s32 %v6131, %v6133
    %v6135 = vrot.slane %v6127, %v6134
    %v6137 = vunpack.c.l.s4 1966171168
    %v6138 = vunpack.c.0.s8 %v6137
    %v6139 = vlaneseq
    %v6140 = vshrl.u32 %v6139, 7
    %v6141 = vsub.s32 %v6138, %v6140
    %v6142 = vrot.slane %v6128, %v6141
    %v6143 = vcombine.low %v6135, %v6142
    %v6144 = vcombine.low %v6083, %v6084
    %v6146 = vunpack.c.l.s4 1966171168
    %v6147 = vunpack.c.0.s8 %v6146
    %v6148 = vlaneseq
    %v6149 = vshrl.u32 %v6148, 7
    %v6150 = vsub.s32 %v6147, %v6149
    %v6151 = vrot.slane %v6144, %v6150
    %v6153 = vunpack.c.l.s4 1966171168
    %v6154 = vunpack.c.0.s8 %v6153
    %v6155 = vlaneseq
    %v6156 = vshrl.u32 %v6155, 7
    %v6157 = vsub.s32 %v6154, %v6156
    %v6158 = vrot.slane %v6151, %v6157
    %vm6161 = vcmask 1040384
    %vm6162 = vsmask.f32 256
    %vm6163 = vmand %vm6161, %vm6162
    %vm6164 = vcmask 1041409
    %vm6165 = vsmask.f32 1280
    %vm6166 = vmand %vm6164, %vm6165
    %vm6167 = vmor %vm6166, %vm6163
    %vm6168 = vcmask 1042434
    %vm6169 = vsmask.f32 2304
    %vm6170 = vmand %vm6168, %vm6169
    %vm6171 = vmor %vm6170, %vm6167
    %vm6172 = vcmask 1043459
    %vm6173 = vsmask.f32 3328
    %vm6174 = vmand %vm6172, %vm6173
    %vm6175 = vmor %vm6174, %vm6171
    %vm6176 = vcmask 1044484
    %vm6177 = vsmask.f32 4352
    %vm6178 = vmand %vm6176, %vm6177
    %vm6179 = vmor %vm6178, %vm6175
    %vm6180 = vcmask 1045509
    %vm6181 = vsmask.f32 5376
    %vm6182 = vmand %vm6180, %vm6181
    %vm6183 = vmor %vm6182, %vm6179
    %vm6184 = vcmask 1046534
    %vm6185 = vsmask.f32 6400
    %vm6186 = vmand %vm6184, %vm6185
    %vm6187 = vmor %vm6186, %vm6183
    %vm6188 = vcmask 1047559
    %vm6189 = vsmask.f32 7424
    %vm6190 = vmand %vm6188, %vm6189
    %vm6191 = vmor %vm6190, %vm6187
    %v6192 = vld [vmem:[#allocation7] sm:$0xff]
    %v6193 = vsel %vm6191, %v6143, %v6192
    %6194 = vst [vmem:[#allocation7] sm:$0xff] %v6193
    %v6195 = vld [vmem:[#allocation7 + $0x8] sm:$0x3]
    %v6196 = vsel %vm6167, %v6158, %v6195
    %6197 = vst [vmem:[#allocation7 + $0x8] sm:$0x3] %v6196
    // Predicated region
    $region22: #{_time_embedding.3} parent=1 // pred_check
      _
    $region23: #{_time_embedding.3} parent=1 // pred_check_branch
      %6199 = sbr.rel (0) target = $region25
    $region24: #{_time_embedding.3} parent=1 // pred_region
      %s6201 = ssub.s32 160, 160
      %6202 = vsyncadd [#allocation4], %s6201
      %s6204 = sshll.u32 [#allocation7], 4
      %s6205 = int_to_ptr.vmem [resolvable:$true] %s6204
      %6207 = dma.vmem_to_hbm [thread:$0]  %s6205, 160, %s3, [#allocation4]
    $region25: #{_time_embedding.3} parent=1 // pred_fallthru
      _
    // Predicated region
    $region26: #{_time_embedding.3} parent=1 // pred_check
      _
    $region27: #{_time_embedding.3} parent=1 // pred_check_branch
      %6209 = sbr.rel (0) target = $region29
    $region28: #{_time_embedding.3} parent=1 // pred_region
      %6210 = dma.done [#allocation4], 160
    $region29: #{_time_embedding.3} parent=1 // pred_fallthru
      _
    %6211 = vsyncpa [#allocation3], 1
    %6212 = vsyncpa [#allocation6], 1
    %6213 = vsyncpa [#allocation4], 1

</llo_original>
